<compile_context>
chip_gen: v6e
topology: v6e:2x2x1
jax: 0.10.0
libtpu: 0.0.40
codegen_flags: <defaults>
</compile_context>

<pallas_src>
import functools
import math

import jax
import jax.numpy as jnp
from jax.experimental import pallas as pl
from jax.experimental.pallas import tpu as pltpu

_LN_EPS = 1e-5        # PyTorch nn.LayerNorm default
_NEG_INF = -1e9
_BF16 = jnp.bfloat16


# ---------------------------------------------------------------------------
# In-kernel helpers
# ---------------------------------------------------------------------------

def _ln(x, g, b, eps=_LN_EPS):
    """LayerNorm over the last dim (f32 math)."""
    mu = jnp.mean(x, axis=-1, keepdims=True)
    var = jnp.mean(jnp.square(x - mu), axis=-1, keepdims=True)
    return (x - mu) * jax.lax.rsqrt(var + eps) * g + b


def _mha_core(q, k, v, wo, bo, heads, causal):
    """Multi-head attention core + merged-head output projection.

    q: (Sq, D) f32, k/v: (Sk, D) f32, wo: (D, D) bf16, bo: (1, D) f32.
    K is materialized transposed once -> both matmuls contract lane(lhs) x sublane(rhs).
    """
    Sq, Dm = q.shape
    Sk = k.shape[0]
    dk = Dm // heads
    scale = 1.0 / math.sqrt(dk)

    qb, kb, vb = q.astype(_BF16), k.astype(_BF16), v.astype(_BF16)   # cast each once
    qh = jnp.stack([qb[:, h * dk:(h + 1) * dk] for h in range(heads)], axis=0)      # (H,Sq,dk)
    kT = jnp.stack([kb[:, h * dk:(h + 1) * dk].T for h in range(heads)], axis=0)    # (H,dk,Sk)
    vh = jnp.stack([vb[:, h * dk:(h + 1) * dk] for h in range(heads)], axis=0)      # (H,Sk,dk)

    s = jax.lax.dot_general(qh, kT, (((2,), (1,)), ((0,), (0,))),
                            preferred_element_type=jnp.float32) * scale             # (H,Sq,Sk)
    if causal:
        rows = jax.lax.broadcasted_iota(jnp.int32, (Sq, Sk), 0)
        cols = jax.lax.broadcasted_iota(jnp.int32, (Sq, Sk), 1)
        s = jnp.where((rows >= cols)[None], s, _NEG_INF)

    m = jnp.max(s, axis=-1, keepdims=True)
    e = jnp.exp(s - m)                                                               # f32 (EUP)
    p = e * pl.reciprocal(jnp.sum(e, axis=-1, keepdims=True), approx=True)

    o = jax.lax.dot_general(p.astype(_BF16), vh, (((2,), (1,)), ((0,), (0,))),
                            preferred_element_type=jnp.float32)                      # (H,Sq,dk)
    om = jnp.concatenate([o[h] for h in range(heads)], axis=-1)                      # (Sq, D)
    return jnp.dot(om.astype(_BF16), wo, preferred_element_type=jnp.float32) + bo


# ---------------------------------------------------------------------------
# Fused whole-stack kernels
# ---------------------------------------------------------------------------

def _encoder_kernel(src3_ref, cw_ref, cb_ref, pe_ref,
                    ln1g_ref, ln1b_ref, wqkv_ref, bqkv_ref, wo_ref, bo_ref,
                    ln2g_ref, ln2b_ref, w1_ref, b1_ref, w2_ref, b2_ref,
                    fng_ref, fnb_ref,
                    e_ref, x_vmem, *, heads):
    D = cw_ref.shape[-1]
    l = pl.program_id(1)                       # layer axis ("arbitrary", innermost)

    @pl.when(l == 0)
    def _():
        # Conv1d(k=3, same) as ONE K=3C matmul on pre-stacked taps, + ReLU + PE.
        h = jnp.dot(src3_ref[0].astype(_BF16), cw_ref[...],
                    preferred_element_type=jnp.float32)
        x_vmem[...] = jnp.maximum(h + cb_ref[...], 0.0) + pe_ref[...]

    x = x_vmem[...]                            # (T, D) residual stream, VMEM-resident

    # --- pre-norm self-attention sublayer (fused QKV projection) ---
    xn = _ln(x, ln1g_ref[0], ln1b_ref[0])
    qkv = jnp.dot(xn.astype(_BF16), wqkv_ref[0],
                  preferred_element_type=jnp.float32) + bqkv_ref[0]      # (T, 3D)
    x = x + _mha_core(qkv[:, :D], qkv[:, D:2 * D], qkv[:, 2 * D:],
                      wo_ref[0], bo_ref[0], heads, causal=False)

    # --- pre-norm FFN sublayer ---
    xn2 = _ln(x, ln2g_ref[0], ln2b_ref[0])
    h = jnp.maximum(jnp.dot(xn2.astype(_BF16), w1_ref[0],
                            preferred_element_type=jnp.float32) + b1_ref[0], 0.0)
    x = x + jnp.dot(h.astype(_BF16), w2_ref[0],
                    preferred_element_type=jnp.float32) + b2_ref[0]
    x_vmem[...] = x

    @pl.when(l == pl.num_programs(1) - 1)
    def _():
        e_ref[0] = _ln(x, fng_ref[...], fnb_ref[...])    # final encoder norm fused


def _decoder_kernel(x0_ref, e_ref,
                    sln_g, sln_b, s_wqkv, s_bqkv, s_wo, s_bo,
                    cln_g, cln_b, c_wq, c_bq, c_wkv, c_bkv, c_wo, c_bo,
                    fln_g, fln_b, w1_ref, b1_ref, w2_ref, b2_ref,
                    dng_ref, dnb_ref, ow_ref, ob_ref,
                    logit_ref, prob_ref, x_vmem, *, heads, vocab):
    D = c_wq.shape[-1]
    l = pl.program_id(1)

    @pl.when(l == 0)
    def _():
        x_vmem[...] = x0_ref[0]                # embedding*sqrt(D) + PE (built in wrapper)

    x = x_vmem[...]                            # (S, D)
    e_out = e_ref[0]                           # (T, D) encoder output

    # --- causal self-attention (fused QKV) ---
    xn = _ln(x, sln_g[0], sln_b[0])
    qkv = jnp.dot(xn.astype(_BF16), s_wqkv[0],
                  preferred_element_type=jnp.float32) + s_bqkv[0]
    x = x + _mha_core(qkv[:, :D], qkv[:, D:2 * D], qkv[:, 2 * D:],
                      s_wo[0], s_bo[0], heads, causal=True)

    # --- cross-attention over encoder output (fused KV, all-ones src mask skipped) ---
    xn = _ln(x, cln_g[0], cln_b[0])
    q = jnp.dot(xn.astype(_BF16), c_wq[0], preferred_element_type=jnp.float32) + c_bq[0]
    kv = jnp.dot(e_out.astype(_BF16), c_wkv[0],
                 preferred_element_type=jnp.float32) + c_bkv[0]
    x = x + _mha_core(q, kv[:, :D], kv[:, D:], c_wo[0], c_bo[0], heads, causal=False)

    # --- FFN ---
    xn = _ln(x, fln_g[0], fln_b[0])
    h = jnp.maximum(jnp.dot(xn.astype(_BF16), w1_ref[0],
                            preferred_element_type=jnp.float32) + b1_ref[0], 0.0)
    x = x + jnp.dot(h.astype(_BF16), w2_ref[0],
                    preferred_element_type=jnp.float32) + b2_ref[0]
    x_vmem[...] = x

    @pl.when(l == pl.num_programs(1) - 1)
    def _():
        d = _ln(x, dng_ref[...], dnb_ref[...])                       # final decoder norm
        logits = jnp.dot(d.astype(_BF16), ow_ref[...],
                         preferred_element_type=jnp.float32) + ob_ref[...]   # (S, Vp) lane-dense
        col = jax.lax.broadcasted_iota(jnp.int32, logits.shape, 1)
        masked = jnp.where(col < vocab, logits, _NEG_INF)            # padded lanes -> 0 prob
        m = jnp.max(masked, axis=-1, keepdims=True)
        ex = jnp.exp(masked - m)
        prob = ex / jnp.sum(ex, axis=-1, keepdims=True)              # exact divide (user-visible)
        logit_ref[0] = logits
        prob_ref[0] = prob


# ---------------------------------------------------------------------------
# Wrappers (pallas_call plumbing)
# ---------------------------------------------------------------------------

def encoder_forward(p, src, *, heads):
    B, T, C = src.shape
    D = p["conv_b"].shape[-1]
    N = p["enc_wqkv"].shape[0]
    dff = p["enc_w1"].shape[-1]

    # Pre-stack the 3 conv taps into (B, T, 3C): one XLA pad+concat, one in-kernel matmul.
    xp = jnp.pad(src, ((0, 0), (1, 1), (0, 0)))
    src3 = jnp.concatenate([xp[:, 0:T], xp[:, 1:T + 1], xp[:, 2:T + 2]], axis=-1)

    perb = lambda b, l: (b, 0, 0)
    perl = lambda b, l: (l, 0, 0)
    c2 = lambda b, l: (0, 0)

    return pl.pallas_call(
        functools.partial(_encoder_kernel, heads=heads),
        out_shape=jax.ShapeDtypeStruct((B, T, D), jnp.float32),
        grid=(B, N),
        in_specs=[
            pl.BlockSpec((1, T, 3 * C), perb),   # stacked conv taps
            pl.BlockSpec((3 * C, D), c2),        # conv weight
            pl.BlockSpec((1, D), c2),            # conv bias
            pl.BlockSpec((T, D), c2),            # positional encoding
            pl.BlockSpec((1, 1, D), perl), pl.BlockSpec((1, 1, D), perl),        # ln1 g/b
            pl.BlockSpec((1, D, 3 * D), perl), pl.BlockSpec((1, 1, 3 * D), perl),  # wqkv/bqkv
            pl.BlockSpec((1, D, D), perl), pl.BlockSpec((1, 1, D), perl),        # wo/bo
            pl.BlockSpec((1, 1, D), perl), pl.BlockSpec((1, 1, D), perl),        # ln2 g/b
            pl.BlockSpec((1, D, dff), perl), pl.BlockSpec((1, 1, dff), perl),    # w1/b1
            pl.BlockSpec((1, dff, D), perl), pl.BlockSpec((1, 1, D), perl),      # w2/b2
            pl.BlockSpec((1, D), c2), pl.BlockSpec((1, D), c2),                  # final norm g/b
        ],
        out_specs=pl.BlockSpec((1, T, D), perb),
        scratch_shapes=[pltpu.VMEM((T, D), jnp.float32)],
        compiler_params=pltpu.CompilerParams(
            dimension_semantics=("parallel", "arbitrary")),
    )(src3, p["conv_w"], p["conv_b"], p["pe_enc"],
      p["enc_ln1_g"], p["enc_ln1_b"], p["enc_wqkv"], p["enc_bqkv"],
      p["enc_wo"], p["enc_bo"], p["enc_ln2_g"], p["enc_ln2_b"],
      p["enc_w1"], p["enc_b1"], p["enc_w2"], p["enc_b2"],
      p["enc_norm_g"], p["enc_norm_b"])


def decoder_forward(p, trg, e_out, *, heads, vocab):
    B, S = trg.shape
    D = p["embed"].shape[1]
    N = p["dec_s_wqkv"].shape[0]
    dff = p["dec_w1"].shape[-1]
    T = e_out.shape[1]
    Vp = p["out_w"].shape[1]

    # TODO(synk): embedding gather left to XLA (tiny table lookup).
    x0 = jnp.take(p["embed"], trg, axis=0) * math.sqrt(D) + p["pe_dec"][None]

    perb = lambda b, l: (b, 0, 0)
    perl = lambda b, l: (l, 0, 0)
    c2 = lambda b, l: (0, 0)

    logits, probs = pl.pallas_call(
        functools.partial(_decoder_kernel, heads=heads, vocab=vocab),
        out_shape=(jax.ShapeDtypeStruct((B, S, Vp), jnp.float32),
                   jax.ShapeDtypeStruct((B, S, Vp), jnp.float32)),
        grid=(B, N),
        in_specs=[
            pl.BlockSpec((1, S, D), perb),       # embedded targets + PE
            pl.BlockSpec((1, T, D), perb),       # encoder output
            pl.BlockSpec((1, 1, D), perl), pl.BlockSpec((1, 1, D), perl),          # self ln
            pl.BlockSpec((1, D, 3 * D), perl), pl.BlockSpec((1, 1, 3 * D), perl),  # self wqkv
            pl.BlockSpec((1, D, D), perl), pl.BlockSpec((1, 1, D), perl),          # self wo
            pl.BlockSpec((1, 1, D), perl), pl.BlockSpec((1, 1, D), perl),          # cross ln
            pl.BlockSpec((1, D, D), perl), pl.BlockSpec((1, 1, D), perl),          # cross wq
            pl.BlockSpec((1, D, 2 * D), perl), pl.BlockSpec((1, 1, 2 * D), perl),  # cross wkv
            pl.BlockSpec((1, D, D), perl), pl.BlockSpec((1, 1, D), perl),          # cross wo
            pl.BlockSpec((1, 1, D), perl), pl.BlockSpec((1, 1, D), perl),          # ffn ln
            pl.BlockSpec((1, D, dff), perl), pl.BlockSpec((1, 1, dff), perl),      # w1/b1
            pl.BlockSpec((1, dff, D), perl), pl.BlockSpec((1, 1, D), perl),        # w2/b2
            pl.BlockSpec((1, D), c2), pl.BlockSpec((1, D), c2),                    # final norm
            pl.BlockSpec((D, Vp), c2), pl.BlockSpec((1, Vp), c2),                  # out proj
        ],
        out_specs=(pl.BlockSpec((1, S, Vp), perb),
                   pl.BlockSpec((1, S, Vp), perb)),
        scratch_shapes=[pltpu.VMEM((S, D), jnp.float32)],
        compiler_params=pltpu.CompilerParams(
            dimension_semantics=("parallel", "arbitrary")),
    )(x0, e_out,
      p["dec_s_ln_g"], p["dec_s_ln_b"], p["dec_s_wqkv"], p["dec_s_bqkv"],
      p["dec_s_wo"], p["dec_s_bo"],
      p["dec_c_ln_g"], p["dec_c_ln_b"], p["dec_c_wq"], p["dec_c_bq"],
      p["dec_c_wkv"], p["dec_c_bkv"], p["dec_c_wo"], p["dec_c_bo"],
      p["dec_f_ln_g"], p["dec_f_ln_b"], p["dec_w1"], p["dec_b1"],
      p["dec_w2"], p["dec_b2"],
      p["dec_norm_g"], p["dec_norm_b"], p["out_w"], p["out_b"])
    return logits[:, :, :vocab], probs[:, :, :vocab]


def cnn_transformer_forward(p, src, trg, *, heads, trg_vocab):
    e_out = encoder_forward(p, src, heads=heads)
    output, output_prob = decoder_forward(p, trg, e_out, heads=heads, vocab=trg_vocab)
    return output, output_prob


# ---------------------------------------------------------------------------
# Deterministic parameter init (directly in fused / stacked / bf16 kernel layouts)
# ---------------------------------------------------------------------------

def positional_encoding(seq_len, d_model):
    pos = jnp.arange(seq_len, dtype=jnp.float32)[:, None]
    i = jnp.arange(d_model // 2, dtype=jnp.float32)[None, :]
    angle = pos / jnp.power(10000.0, 2.0 * i / d_model)
    pe = jnp.zeros((seq_len, d_model), jnp.float32)
    pe = pe.at[:, 0::2].set(jnp.sin(angle))
    pe = pe.at[:, 1::2].set(jnp.cos(angle))
    return pe


def init_params(key, src_fmri_features, trg_vocab, d_model, d_ff, n_layers, heads,
                time_steps, max_seq_length, v_pad, ksize=3):
    keys = iter(jax.random.split(key, 256))

    def lin(fan_in, fan_out):
        bound = 1.0 / math.sqrt(fan_in)
        w = jax.random.uniform(next(keys), (fan_in, fan_out), jnp.float32, -bound, bound)
        b = jax.random.uniform(next(keys), (fan_out,), jnp.float32, -bound, bound)
        return w, b

    def stack_lin(fan_in, fan_out):
        ws, bs = zip(*[lin(fan_in, fan_out) for _ in range(n_layers)])
        return (jnp.stack(ws).astype(_BF16),
                jnp.stack([b.reshape(1, fan_out) for b in bs]))

    def stack_fused(parts):           # fused QKV (3) or KV (2) projection weights
        ws, bs = [], []
        for _ in range(n_layers):
            pw, pb = zip(*[lin(d_model, d_model) for _ in range(parts)])
            ws.append(jnp.concatenate(pw, axis=1))
            bs.append(jnp.concatenate(pb).reshape(1, parts * d_model))
        return jnp.stack(ws).astype(_BF16), jnp.stack(bs)

    ln_g = lambda: jnp.ones((n_layers, 1, d_model), jnp.float32)
    ln_b = lambda: jnp.zeros((n_layers, 1, d_model), jnp.float32)

    conv_w, conv_b = lin(ksize * src_fmri_features, d_model)
    out_w, out_b = lin(d_model, trg_vocab)

    enc_wqkv, enc_bqkv = stack_fused(3)
    enc_wo, enc_bo = stack_lin(d_model, d_model)
    enc_w1, enc_b1 = stack_lin(d_model, d_ff)
    enc_w2, enc_b2 = stack_lin(d_ff, d_model)

    dec_s_wqkv, dec_s_bqkv = stack_fused(3)
    dec_s_wo, dec_s_bo = stack_lin(d_model, d_model)
    dec_c_wq, dec_c_bq = stack_lin(d_model, d_model)
    dec_c_wkv, dec_c_bkv = stack_fused(2)
    dec_c_wo, dec_c_bo = stack_lin(d_model, d_model)
    dec_w1, dec_b1 = stack_lin(d_model, d_ff)
    dec_w2, dec_b2 = stack_lin(d_ff, d_model)

    return dict(
        conv_w=conv_w.astype(_BF16), conv_b=conv_b.reshape(1, d_model),
        pe_enc=positional_encoding(time_steps, d_model),
        enc_ln1_g=ln_g(), enc_ln1_b=ln_b(),
        enc_wqkv=enc_wqkv, enc_bqkv=enc_bqkv, enc_wo=enc_wo, enc_bo=enc_bo,
        enc_ln2_g=ln_g(), enc_ln2_b=ln_b(),
        enc_w1=enc_w1, enc_b1=enc_b1, enc_w2=enc_w2, enc_b2=enc_b2,
        enc_norm_g=jnp.ones((1, d_model), jnp.float32),
        enc_norm_b=jnp.zeros((1, d_model), jnp.float32),
        embed=jax.random.normal(next(keys), (trg_vocab, d_model), jnp.float32) * 0.02,
        pe_dec=positional_encoding(max_seq_length, d_model),
        dec_s_ln_g=ln_g(), dec_s_ln_b=ln_b(),
        dec_s_wqkv=dec_s_wqkv, dec_s_bqkv=dec_s_bqkv, dec_s_wo=dec_s_wo, dec_s_bo=dec_s_bo,
        dec_c_ln_g=ln_g(), dec_c_ln_b=ln_b(),
        dec_c_wq=dec_c_wq, dec_c_bq=dec_c_bq, dec_c_wkv=dec_c_wkv, dec_c_bkv=dec_c_bkv,
        dec_c_wo=dec_c_wo, dec_c_bo=dec_c_bo,
        dec_f_ln_g=ln_g(), dec_f_ln_b=ln_b(),
        dec_w1=dec_w1, dec_b1=dec_b1, dec_w2=dec_w2, dec_b2=dec_b2,
        dec_norm_g=jnp.ones((1, d_model), jnp.float32),
        dec_norm_b=jnp.zeros((1, d_model), jnp.float32),
        out_w=jnp.zeros((d_model, v_pad), jnp.float32).at[:, :trg_vocab].set(out_w).astype(_BF16),
        out_b=jnp.zeros((1, v_pad), jnp.float32).at[:, :trg_vocab].set(out_b),
    )


# ---------------------------------------------------------------------------
# Main
# ---------------------------------------------------------------------------

if __name__ == "__main__":
    B = 2
    time_steps = 16
    src_fmri_features = 8
    max_seq_length = 8
    trg_vocab = 12
    d_model = 32
    d_ff = 64
    N = 2
    heads = 4
    v_pad = max(128, ((trg_vocab + 127) // 128) * 128)   # lane-dense vocab axis

    key = jax.random.PRNGKey(0)
    k_param, k_src, k_trg = jax.random.split(key, 3)

    params = init_params(k_param, src_fmri_features, trg_vocab, d_model, d_ff, N,
                         heads, time_steps, max_seq_length, v_pad)
    src = jax.random.normal(k_src, (B, time_steps, src_fmri_features), jnp.float32)
    trg = jax.random.randint(k_trg, (B, max_seq_length), 1, trg_vocab)

    fwd = jax.jit(functools.partial(cnn_transformer_forward, heads=heads, trg_vocab=trg_vocab))
    output, output_prob = fwd(params, src, trg)
    jax.block_until_ready((output, output_prob))

    assert output.shape == (B, max_seq_length, trg_vocab)
    assert output_prob.shape == (B, max_seq_length, trg_vocab)
    assert jnp.allclose(jnp.sum(output_prob, axis=-1), 1.0, atol=1e-4)
    print("KERNEL_OK")
</pallas_src>

<mosaic_0001>
module attributes {stable_mosaic.version = 11 : i64} {
  func.func @_encoder_kernel(%arg0: i32, %arg1: i32, %arg2: memref<1x16x24xf32, #tpu.memory_space<vmem>>, %arg3: memref<24x32xbf16, #tpu.memory_space<vmem>>, %arg4: memref<1x32xf32, #tpu.memory_space<vmem>>, %arg5: memref<16x32xf32, #tpu.memory_space<vmem>>, %arg6: memref<1x1x32xf32, #tpu.memory_space<vmem>>, %arg7: memref<1x1x32xf32, #tpu.memory_space<vmem>>, %arg8: memref<1x32x96xbf16, #tpu.memory_space<vmem>>, %arg9: memref<1x1x96xf32, #tpu.memory_space<vmem>>, %arg10: memref<1x32x32xbf16, #tpu.memory_space<vmem>>, %arg11: memref<1x1x32xf32, #tpu.memory_space<vmem>>, %arg12: memref<1x1x32xf32, #tpu.memory_space<vmem>>, %arg13: memref<1x1x32xf32, #tpu.memory_space<vmem>>, %arg14: memref<1x32x64xbf16, #tpu.memory_space<vmem>>, %arg15: memref<1x1x64xf32, #tpu.memory_space<vmem>>, %arg16: memref<1x64x32xbf16, #tpu.memory_space<vmem>>, %arg17: memref<1x1x32xf32, #tpu.memory_space<vmem>>, %arg18: memref<1x32xf32, #tpu.memory_space<vmem>>, %arg19: memref<1x32xf32, #tpu.memory_space<vmem>>, %arg20: memref<1x16x32xf32, #tpu.memory_space<vmem>>, %arg21: memref<16x32xf32, #tpu.memory_space<vmem>>) attributes {dimension_semantics = [#tpu.dimension_semantics<parallel>, #tpu.dimension_semantics<arbitrary>], iteration_bounds = array<i64: 2, 2>, scalar_prefetch = 0 : i64, scratch_operands = 1 : i64, tpu.core_type = #tpu.core_type<tc>, window_params = [{transform_indices = @transform_0, window_bounds = array<i64: 1, 16, 24>}, {pipeline_mode = #tpu.pipeline_mode<synchronous>, transform_indices = @transform_1, window_bounds = array<i64: 24, 32>}, {pipeline_mode = #tpu.pipeline_mode<synchronous>, transform_indices = @transform_2, window_bounds = array<i64: 1, 32>}, {pipeline_mode = #tpu.pipeline_mode<synchronous>, transform_indices = @transform_3, window_bounds = array<i64: 16, 32>}, {transform_indices = @transform_4, window_bounds = array<i64: 1, 1, 32>}, {transform_indices = @transform_5, window_bounds = array<i64: 1, 1, 32>}, {transform_indices = @transform_6, window_bounds = array<i64: 1, 32, 96>}, {transform_indices = @transform_7, window_bounds = array<i64: 1, 1, 96>}, {transform_indices = @transform_8, window_bounds = array<i64: 1, 32, 32>}, {transform_indices = @transform_9, window_bounds = array<i64: 1, 1, 32>}, {transform_indices = @transform_10, window_bounds = array<i64: 1, 1, 32>}, {transform_indices = @transform_11, window_bounds = array<i64: 1, 1, 32>}, {transform_indices = @transform_12, window_bounds = array<i64: 1, 32, 64>}, {transform_indices = @transform_13, window_bounds = array<i64: 1, 1, 64>}, {transform_indices = @transform_14, window_bounds = array<i64: 1, 64, 32>}, {transform_indices = @transform_15, window_bounds = array<i64: 1, 1, 32>}, {pipeline_mode = #tpu.pipeline_mode<synchronous>, transform_indices = @transform_16, window_bounds = array<i64: 1, 32>}, {pipeline_mode = #tpu.pipeline_mode<synchronous>, transform_indices = @transform_17, window_bounds = array<i64: 1, 32>}, {transform_indices = @transform_18, window_bounds = array<i64: 1, 16, 32>}]} {
    %c0_i32 = arith.constant 0 : i32
    %0 = arith.cmpi eq, %arg1, %c0_i32 : i32
    %1 = arith.extui %0 : i1 to i32
    %c0_i32_0 = arith.constant 0 : i32
    %2 = arith.cmpi ne, %1, %c0_i32_0 : i32
    scf.if %2 {
      %c0_60 = arith.constant 0 : index
      %c0_61 = arith.constant 0 : index
      %c0_62 = arith.constant 0 : index
      %157 = vector.load %arg2[%c0_60, %c0_61, %c0_62] : memref<1x16x24xf32, #tpu.memory_space<vmem>>, vector<1x16x24xf32>
      %158 = vector.shape_cast %157 : vector<1x16x24xf32> to vector<16x24xf32>
      %159 = arith.truncf %158 : vector<16x24xf32> to vector<16x24xbf16>
      %c0_63 = arith.constant 0 : index
      %c0_64 = arith.constant 0 : index
      %160 = vector.load %arg3[%c0_63, %c0_64] : memref<24x32xbf16, #tpu.memory_space<vmem>>, vector<24x32xbf16>
      %cst_65 = arith.constant dense<0.000000e+00> : vector<16x32xf32>
      %161 = tpu.matmul %159, %160, %cst_65 {dimension_numbers = #tpu.dot_dimension_numbers<[1], [0], [0], [1], [0, 0, 1, 1], [], []>} : vector<16x24xbf16>, vector<24x32xbf16>, vector<16x32xf32> -> vector<16x32xf32>
      %c0_66 = arith.constant 0 : index
      %c0_67 = arith.constant 0 : index
      %162 = vector.load %arg4[%c0_66, %c0_67] : memref<1x32xf32, #tpu.memory_space<vmem>>, vector<1x32xf32>
      %163 = vector.broadcast %162 : vector<1x32xf32> to vector<16x32xf32>
      %164 = arith.addf %161, %163 : vector<16x32xf32>
      %cst_68 = arith.constant 0.000000e+00 : f32
      %165 = vector.broadcast %cst_68 : f32 to vector<16x32xf32>
      %166 = arith.maximumf %164, %165 : vector<16x32xf32>
      %c0_69 = arith.constant 0 : index
      %c0_70 = arith.constant 0 : index
      %167 = vector.load %arg5[%c0_69, %c0_70] : memref<16x32xf32, #tpu.memory_space<vmem>>, vector<16x32xf32>
      %168 = arith.addf %166, %167 : vector<16x32xf32>
      %c0_71 = arith.constant 0 : index
      %c0_72 = arith.constant 0 : index
      %169 = vector.load %arg21[%c0_71, %c0_72] : memref<16x32xf32, #tpu.memory_space<vmem>>, vector<16x32xf32>
      tpu.vector_store %arg21[%c0_71, %c0_72], %168 {strides = array<i32>} : memref<16x32xf32, #tpu.memory_space<vmem>>, vector<16x32xf32>,
    } else {
    }
    %c0 = arith.constant 0 : index
    %c0_1 = arith.constant 0 : index
    %3 = vector.load %arg21[%c0, %c0_1] : memref<16x32xf32, #tpu.memory_space<vmem>>, vector<16x32xf32>
    %c0_2 = arith.constant 0 : index
    %c0_3 = arith.constant 0 : index
    %c0_4 = arith.constant 0 : index
    %4 = vector.load %arg6[%c0_2, %c0_3, %c0_4] : memref<1x1x32xf32, #tpu.memory_space<vmem>>, vector<1x1x32xf32>
    %5 = vector.shape_cast %4 : vector<1x1x32xf32> to vector<1x32xf32>
    %c0_5 = arith.constant 0 : index
    %c0_6 = arith.constant 0 : index
    %c0_7 = arith.constant 0 : index
    %6 = vector.load %arg7[%c0_5, %c0_6, %c0_7] : memref<1x1x32xf32, #tpu.memory_space<vmem>>, vector<1x1x32xf32>
    %7 = vector.shape_cast %6 : vector<1x1x32xf32> to vector<1x32xf32>
    %cst = arith.constant dense<0.000000e+00> : vector<16xf32>
    %8 = vector.multi_reduction <add>, %3, %cst [1] : vector<16x32xf32> to vector<16xf32>
    %9 = vector.shape_cast %8 : vector<16xf32> to vector<16x1xf32>
    %cst_8 = arith.constant 3.200000e+01 : f32
    %10 = vector.broadcast %cst_8 : f32 to vector<16x1xf32>
    %11 = arith.divf %9, %10 : vector<16x1xf32>
    %12 = vector.broadcast %11 : vector<16x1xf32> to vector<16x32xf32>
    %13 = arith.subf %3, %12 : vector<16x32xf32>
    %14 = arith.mulf %13, %13 : vector<16x32xf32>
    %cst_9 = arith.constant dense<0.000000e+00> : vector<16xf32>
    %15 = vector.multi_reduction <add>, %14, %cst_9 [1] : vector<16x32xf32> to vector<16xf32>
    %16 = vector.shape_cast %15 : vector<16xf32> to vector<16x1xf32>
    %cst_10 = arith.constant 3.200000e+01 : f32
    %17 = vector.broadcast %cst_10 : f32 to vector<16x1xf32>
    %18 = arith.divf %16, %17 : vector<16x1xf32>
    %19 = vector.broadcast %11 : vector<16x1xf32> to vector<16x32xf32>
    %20 = arith.subf %3, %19 : vector<16x32xf32>
    %cst_11 = arith.constant 9.99999974E-6 : f32
    %21 = vector.broadcast %cst_11 : f32 to vector<16x1xf32>
    %22 = arith.addf %18, %21 : vector<16x1xf32>
    %23 = math.rsqrt %22 : vector<16x1xf32>
    %24 = vector.broadcast %23 : vector<16x1xf32> to vector<16x32xf32>
    %25 = arith.mulf %20, %24 : vector<16x32xf32>
    %26 = vector.broadcast %5 : vector<1x32xf32> to vector<16x32xf32>
    %27 = arith.mulf %25, %26 : vector<16x32xf32>
    %28 = vector.broadcast %7 : vector<1x32xf32> to vector<16x32xf32>
    %29 = arith.addf %27, %28 : vector<16x32xf32>
    %30 = arith.truncf %29 : vector<16x32xf32> to vector<16x32xbf16>
    %c0_12 = arith.constant 0 : index
    %c0_13 = arith.constant 0 : index
    %c0_14 = arith.constant 0 : index
    %31 = vector.load %arg8[%c0_12, %c0_13, %c0_14] : memref<1x32x96xbf16, #tpu.memory_space<vmem>>, vector<1x32x96xbf16>
    %32 = vector.shape_cast %31 : vector<1x32x96xbf16> to vector<32x96xbf16>
    %cst_15 = arith.constant dense<0.000000e+00> : vector<16x96xf32>
    %33 = tpu.matmul %30, %32, %cst_15 {dimension_numbers = #tpu.dot_dimension_numbers<[1], [0], [0], [1], [0, 0, 1, 1], [], []>} : vector<16x32xbf16>, vector<32x96xbf16>, vector<16x96xf32> -> vector<16x96xf32>
    %c0_16 = arith.constant 0 : index
    %c0_17 = arith.constant 0 : index
    %c0_18 = arith.constant 0 : index
    %34 = vector.load %arg9[%c0_16, %c0_17, %c0_18] : memref<1x1x96xf32, #tpu.memory_space<vmem>>, vector<1x1x96xf32>
    %35 = vector.shape_cast %34 : vector<1x1x96xf32> to vector<1x96xf32>
    %36 = vector.broadcast %35 : vector<1x96xf32> to vector<16x96xf32>
    %37 = arith.addf %33, %36 : vector<16x96xf32>
    %38 = vector.extract_strided_slice %37 {offsets = [0, 0], sizes = [16, 32], strides = [1, 1]} : vector<16x96xf32> to vector<16x32xf32>
    %39 = vector.extract_strided_slice %37 {offsets = [0, 32], sizes = [16, 32], strides = [1, 1]} : vector<16x96xf32> to vector<16x32xf32>
    %40 = vector.extract_strided_slice %37 {offsets = [0, 64], sizes = [16, 32], strides = [1, 1]} : vector<16x96xf32> to vector<16x32xf32>
    %c0_19 = arith.constant 0 : index
    %c0_20 = arith.constant 0 : index
    %c0_21 = arith.constant 0 : index
    %41 = vector.load %arg10[%c0_19, %c0_20, %c0_21] : memref<1x32x32xbf16, #tpu.memory_space<vmem>>, vector<1x32x32xbf16>
    %42 = vector.shape_cast %41 : vector<1x32x32xbf16> to vector<32x32xbf16>
    %c0_22 = arith.constant 0 : index
    %c0_23 = arith.constant 0 : index
    %c0_24 = arith.constant 0 : index
    %43 = vector.load %arg11[%c0_22, %c0_23, %c0_24] : memref<1x1x32xf32, #tpu.memory_space<vmem>>, vector<1x1x32xf32>
    %44 = vector.shape_cast %43 : vector<1x1x32xf32> to vector<1x32xf32>
    %45 = arith.truncf %38 : vector<16x32xf32> to vector<16x32xbf16>
    %46 = arith.truncf %39 : vector<16x32xf32> to vector<16x32xbf16>
    %47 = arith.truncf %40 : vector<16x32xf32> to vector<16x32xbf16>
    %48 = vector.extract_strided_slice %45 {offsets = [0, 0], sizes = [16, 8], strides = [1, 1]} : vector<16x32xbf16> to vector<16x8xbf16>
    %49 = vector.extract_strided_slice %45 {offsets = [0, 8], sizes = [16, 8], strides = [1, 1]} : vector<16x32xbf16> to vector<16x8xbf16>
    %50 = vector.extract_strided_slice %45 {offsets = [0, 16], sizes = [16, 8], strides = [1, 1]} : vector<16x32xbf16> to vector<16x8xbf16>
    %51 = vector.extract_strided_slice %45 {offsets = [0, 24], sizes = [16, 8], strides = [1, 1]} : vector<16x32xbf16> to vector<16x8xbf16>
    %52 = vector.shape_cast %48 : vector<16x8xbf16> to vector<1x16x8xbf16>
    %53 = vector.shape_cast %49 : vector<16x8xbf16> to vector<1x16x8xbf16>
    %54 = vector.shape_cast %50 : vector<16x8xbf16> to vector<1x16x8xbf16>
    %55 = vector.shape_cast %51 : vector<16x8xbf16> to vector<1x16x8xbf16>
    %56 = tpu.concatenate %52, %53, %54, %55 in 0 : vector<1x16x8xbf16>, vector<1x16x8xbf16>, vector<1x16x8xbf16>, vector<1x16x8xbf16> -> vector<4x16x8xbf16>
    %57 = vector.extract_strided_slice %46 {offsets = [0, 0], sizes = [16, 8], strides = [1, 1]} : vector<16x32xbf16> to vector<16x8xbf16>
    %58 = tpu.transpose %57, [1, 0] : vector<16x8xbf16> -> vector<8x16xbf16>
    %59 = vector.extract_strided_slice %46 {offsets = [0, 8], sizes = [16, 8], strides = [1, 1]} : vector<16x32xbf16> to vector<16x8xbf16>
    %60 = tpu.transpose %59, [1, 0] : vector<16x8xbf16> -> vector<8x16xbf16>
    %61 = vector.extract_strided_slice %46 {offsets = [0, 16], sizes = [16, 8], strides = [1, 1]} : vector<16x32xbf16> to vector<16x8xbf16>
    %62 = tpu.transpose %61, [1, 0] : vector<16x8xbf16> -> vector<8x16xbf16>
    %63 = vector.extract_strided_slice %46 {offsets = [0, 24], sizes = [16, 8], strides = [1, 1]} : vector<16x32xbf16> to vector<16x8xbf16>
    %64 = tpu.transpose %63, [1, 0] : vector<16x8xbf16> -> vector<8x16xbf16>
    %65 = vector.shape_cast %58 : vector<8x16xbf16> to vector<1x8x16xbf16>
    %66 = vector.shape_cast %60 : vector<8x16xbf16> to vector<1x8x16xbf16>
    %67 = vector.shape_cast %62 : vector<8x16xbf16> to vector<1x8x16xbf16>
    %68 = vector.shape_cast %64 : vector<8x16xbf16> to vector<1x8x16xbf16>
    %69 = tpu.concatenate %65, %66, %67, %68 in 0 : vector<1x8x16xbf16>, vector<1x8x16xbf16>, vector<1x8x16xbf16>, vector<1x8x16xbf16> -> vector<4x8x16xbf16>
    %70 = vector.extract_strided_slice %47 {offsets = [0, 0], sizes = [16, 8], strides = [1, 1]} : vector<16x32xbf16> to vector<16x8xbf16>
    %71 = vector.extract_strided_slice %47 {offsets = [0, 8], sizes = [16, 8], strides = [1, 1]} : vector<16x32xbf16> to vector<16x8xbf16>
    %72 = vector.extract_strided_slice %47 {offsets = [0, 16], sizes = [16, 8], strides = [1, 1]} : vector<16x32xbf16> to vector<16x8xbf16>
    %73 = vector.extract_strided_slice %47 {offsets = [0, 24], sizes = [16, 8], strides = [1, 1]} : vector<16x32xbf16> to vector<16x8xbf16>
    %74 = vector.shape_cast %70 : vector<16x8xbf16> to vector<1x16x8xbf16>
    %75 = vector.shape_cast %71 : vector<16x8xbf16> to vector<1x16x8xbf16>
    %76 = vector.shape_cast %72 : vector<16x8xbf16> to vector<1x16x8xbf16>
    %77 = vector.shape_cast %73 : vector<16x8xbf16> to vector<1x16x8xbf16>
    %78 = tpu.concatenate %74, %75, %76, %77 in 0 : vector<1x16x8xbf16>, vector<1x16x8xbf16>, vector<1x16x8xbf16>, vector<1x16x8xbf16> -> vector<4x16x8xbf16>
    %cst_25 = arith.constant dense<0.000000e+00> : vector<4x16x16xf32>
    %79 = tpu.matmul %56, %69, %cst_25 {dimension_numbers = #tpu.dot_dimension_numbers<[2], [1], [1], [2], [0, 0, 0, 1, 1, 2], [0], [0]>} : vector<4x16x8xbf16>, vector<4x8x16xbf16>, vector<4x16x16xf32> -> vector<4x16x16xf32>
    %cst_26 = arith.constant 0.353553385 : f32
    %80 = vector.broadcast %cst_26 : f32 to vector<4x16x16xf32>
    %81 = arith.mulf %79, %80 : vector<4x16x16xf32>
    %cst_27 = arith.constant dense<0xFF800000> : vector<4x16xf32>
    %82 = vector.multi_reduction <maximumf>, %81, %cst_27 [2] : vector<4x16x16xf32> to vector<4x16xf32>
    %83 = vector.shape_cast %82 : vector<4x16xf32> to vector<4x16x1xf32>
    %84 = vector.broadcast %83 : vector<4x16x1xf32> to vector<4x16x16xf32>
    %85 = arith.subf %81, %84 : vector<4x16x16xf32>
    %86 = math.exp %85 : vector<4x16x16xf32>
    %cst_28 = arith.constant dense<0.000000e+00> : vector<4x16xf32>
    %87 = vector.multi_reduction <add>, %86, %cst_28 [2] : vector<4x16x16xf32> to vector<4x16xf32>
    %88 = vector.shape_cast %87 : vector<4x16xf32> to vector<4x16x1xf32>
    %89 = tpu.reciprocal %88 {approx = true} : vector<4x16x1xf32> -> vector<4x16x1xf32>
    %90 = vector.broadcast %89 : vector<4x16x1xf32> to vector<4x16x16xf32>
    %91 = arith.mulf %86, %90 : vector<4x16x16xf32>
    %92 = arith.truncf %91 : vector<4x16x16xf32> to vector<4x16x16xbf16>
    %cst_29 = arith.constant dense<0.000000e+00> : vector<4x16x8xf32>
    %93 = tpu.matmul %92, %78, %cst_29 {dimension_numbers = #tpu.dot_dimension_numbers<[2], [1], [1], [2], [0, 0, 0, 1, 1, 2], [0], [0]>} : vector<4x16x16xbf16>, vector<4x16x8xbf16>, vector<4x16x8xf32> -> vector<4x16x8xf32>
    %94 = vector.extract_strided_slice %93 {offsets = [0, 0, 0], sizes = [1, 16, 8], strides = [1, 1, 1]} : vector<4x16x8xf32> to vector<1x16x8xf32>
    %95 = vector.shape_cast %94 : vector<1x16x8xf32> to vector<16x8xf32>
    %96 = vector.extract_strided_slice %93 {offsets = [1, 0, 0], sizes = [1, 16, 8], strides = [1, 1, 1]} : vector<4x16x8xf32> to vector<1x16x8xf32>
    %97 = vector.shape_cast %96 : vector<1x16x8xf32> to vector<16x8xf32>
    %98 = vector.extract_strided_slice %93 {offsets = [2, 0, 0], sizes = [1, 16, 8], strides = [1, 1, 1]} : vector<4x16x8xf32> to vector<1x16x8xf32>
    %99 = vector.shape_cast %98 : vector<1x16x8xf32> to vector<16x8xf32>
    %100 = vector.extract_strided_slice %93 {offsets = [3, 0, 0], sizes = [1, 16, 8], strides = [1, 1, 1]} : vector<4x16x8xf32> to vector<1x16x8xf32>
    %101 = vector.shape_cast %100 : vector<1x16x8xf32> to vector<16x8xf32>
    %102 = tpu.concatenate %95, %97, %99, %101 in 1 : vector<16x8xf32>, vector<16x8xf32>, vector<16x8xf32>, vector<16x8xf32> -> vector<16x32xf32>
    %103 = arith.truncf %102 : vector<16x32xf32> to vector<16x32xbf16>
    %cst_30 = arith.constant dense<0.000000e+00> : vector<16x32xf32>
    %104 = tpu.matmul %103, %42, %cst_30 {dimension_numbers = #tpu.dot_dimension_numbers<[1], [0], [0], [1], [0, 0, 1, 1], [], []>} : vector<16x32xbf16>, vector<32x32xbf16>, vector<16x32xf32> -> vector<16x32xf32>
    %105 = vector.broadcast %44 : vector<1x32xf32> to vector<16x32xf32>
    %106 = arith.addf %104, %105 : vector<16x32xf32>
    %107 = arith.addf %3, %106 : vector<16x32xf32>
    %c0_31 = arith.constant 0 : index
    %c0_32 = arith.constant 0 : index
    %c0_33 = arith.constant 0 : index
    %108 = vector.load %arg12[%c0_31, %c0_32, %c0_33] : memref<1x1x32xf32, #tpu.memory_space<vmem>>, vector<1x1x32xf32>
    %109 = vector.shape_cast %108 : vector<1x1x32xf32> to vector<1x32xf32>
    %c0_34 = arith.constant 0 : index
    %c0_35 = arith.constant 0 : index
    %c0_36 = arith.constant 0 : index
    %110 = vector.load %arg13[%c0_34, %c0_35, %c0_36] : memref<1x1x32xf32, #tpu.memory_space<vmem>>, vector<1x1x32xf32>
    %111 = vector.shape_cast %110 : vector<1x1x32xf32> to vector<1x32xf32>
    %cst_37 = arith.constant dense<0.000000e+00> : vector<16xf32>
    %112 = vector.multi_reduction <add>, %107, %cst_37 [1] : vector<16x32xf32> to vector<16xf32>
    %113 = vector.shape_cast %112 : vector<16xf32> to vector<16x1xf32>
    %cst_38 = arith.constant 3.200000e+01 : f32
    %114 = vector.broadcast %cst_38 : f32 to vector<16x1xf32>
    %115 = arith.divf %113, %114 : vector<16x1xf32>
    %116 = vector.broadcast %115 : vector<16x1xf32> to vector<16x32xf32>
    %117 = arith.subf %107, %116 : vector<16x32xf32>
    %118 = arith.mulf %117, %117 : vector<16x32xf32>
    %cst_39 = arith.constant dense<0.000000e+00> : vector<16xf32>
    %119 = vector.multi_reduction <add>, %118, %cst_39 [1] : vector<16x32xf32> to vector<16xf32>
    %120 = vector.shape_cast %119 : vector<16xf32> to vector<16x1xf32>
    %cst_40 = arith.constant 3.200000e+01 : f32
    %121 = vector.broadcast %cst_40 : f32 to vector<16x1xf32>
    %122 = arith.divf %120, %121 : vector<16x1xf32>
    %123 = vector.broadcast %115 : vector<16x1xf32> to vector<16x32xf32>
    %124 = arith.subf %107, %123 : vector<16x32xf32>
    %cst_41 = arith.constant 9.99999974E-6 : f32
    %125 = vector.broadcast %cst_41 : f32 to vector<16x1xf32>
    %126 = arith.addf %122, %125 : vector<16x1xf32>
    %127 = math.rsqrt %126 : vector<16x1xf32>
    %128 = vector.broadcast %127 : vector<16x1xf32> to vector<16x32xf32>
    %129 = arith.mulf %124, %128 : vector<16x32xf32>
    %130 = vector.broadcast %109 : vector<1x32xf32> to vector<16x32xf32>
    %131 = arith.mulf %129, %130 : vector<16x32xf32>
    %132 = vector.broadcast %111 : vector<1x32xf32> to vector<16x32xf32>
    %133 = arith.addf %131, %132 : vector<16x32xf32>
    %134 = arith.truncf %133 : vector<16x32xf32> to vector<16x32xbf16>
    %c0_42 = arith.constant 0 : index
    %c0_43 = arith.constant 0 : index
    %c0_44 = arith.constant 0 : index
    %135 = vector.load %arg14[%c0_42, %c0_43, %c0_44] : memref<1x32x64xbf16, #tpu.memory_space<vmem>>, vector<1x32x64xbf16>
    %136 = vector.shape_cast %135 : vector<1x32x64xbf16> to vector<32x64xbf16>
    %cst_45 = arith.constant dense<0.000000e+00> : vector<16x64xf32>
    %137 = tpu.matmul %134, %136, %cst_45 {dimension_numbers = #tpu.dot_dimension_numbers<[1], [0], [0], [1], [0, 0, 1, 1], [], []>} : vector<16x32xbf16>, vector<32x64xbf16>, vector<16x64xf32> -> vector<16x64xf32>
    %c0_46 = arith.constant 0 : index
    %c0_47 = arith.constant 0 : index
    %c0_48 = arith.constant 0 : index
    %138 = vector.load %arg15[%c0_46, %c0_47, %c0_48] : memref<1x1x64xf32, #tpu.memory_space<vmem>>, vector<1x1x64xf32>
    %139 = vector.shape_cast %138 : vector<1x1x64xf32> to vector<1x64xf32>
    %140 = vector.broadcast %139 : vector<1x64xf32> to vector<16x64xf32>
    %141 = arith.addf %137, %140 : vector<16x64xf32>
    %cst_49 = arith.constant 0.000000e+00 : f32
    %142 = vector.broadcast %cst_49 : f32 to vector<16x64xf32>
    %143 = arith.maximumf %141, %142 : vector<16x64xf32>
    %144 = arith.truncf %143 : vector<16x64xf32> to vector<16x64xbf16>
    %c0_50 = arith.constant 0 : index
    %c0_51 = arith.constant 0 : index
    %c0_52 = arith.constant 0 : index
    %145 = vector.load %arg16[%c0_50, %c0_51, %c0_52] : memref<1x64x32xbf16, #tpu.memory_space<vmem>>, vector<1x64x32xbf16>
    %146 = vector.shape_cast %145 : vector<1x64x32xbf16> to vector<64x32xbf16>
    %cst_53 = arith.constant dense<0.000000e+00> : vector<16x32xf32>
    %147 = tpu.matmul %144, %146, %cst_53 {dimension_numbers = #tpu.dot_dimension_numbers<[1], [0], [0], [1], [0, 0, 1, 1], [], []>} : vector<16x64xbf16>, vector<64x32xbf16>, vector<16x32xf32> -> vector<16x32xf32>
    %148 = arith.addf %107, %147 : vector<16x32xf32>
    %c0_54 = arith.constant 0 : index
    %c0_55 = arith.constant 0 : index
    %c0_56 = arith.constant 0 : index
    %149 = vector.load %arg17[%c0_54, %c0_55, %c0_56] : memref<1x1x32xf32, #tpu.memory_space<vmem>>, vector<1x1x32xf32>
    %150 = vector.shape_cast %149 : vector<1x1x32xf32> to vector<1x32xf32>
    %151 = vector.broadcast %150 : vector<1x32xf32> to vector<16x32xf32>
    %152 = arith.addf %148, %151 : vector<16x32xf32>
    %c0_57 = arith.constant 0 : index
    %c0_58 = arith.constant 0 : index
    %153 = vector.load %arg21[%c0_57, %c0_58] : memref<16x32xf32, #tpu.memory_space<vmem>>, vector<16x32xf32>
    tpu.vector_store %arg21[%c0_57, %c0_58], %152 {strides = array<i32>} : memref<16x32xf32, #tpu.memory_space<vmem>>, vector<16x32xf32>,
    %c1_i32 = arith.constant 1 : i32
    %154 = arith.cmpi eq, %arg1, %c1_i32 : i32
    %155 = arith.extui %154 : i1 to i32
    %c0_i32_59 = arith.constant 0 : i32
    %156 = arith.cmpi ne, %155, %c0_i32_59 : i32
    scf.if %156 {
      %c0_60 = arith.constant 0 : index
      %c0_61 = arith.constant 0 : index
      %157 = vector.load %arg18[%c0_60, %c0_61] : memref<1x32xf32, #tpu.memory_space<vmem>>, vector<1x32xf32>
      %c0_62 = arith.constant 0 : index
      %c0_63 = arith.constant 0 : index
      %158 = vector.load %arg19[%c0_62, %c0_63] : memref<1x32xf32, #tpu.memory_space<vmem>>, vector<1x32xf32>
      %cst_64 = arith.constant dense<0.000000e+00> : vector<16xf32>
      %159 = vector.multi_reduction <add>, %152, %cst_64 [1] : vector<16x32xf32> to vector<16xf32>
      %160 = vector.shape_cast %159 : vector<16xf32> to vector<16x1xf32>
      %cst_65 = arith.constant 3.200000e+01 : f32
      %161 = vector.broadcast %cst_65 : f32 to vector<16x1xf32>
      %162 = arith.divf %160, %161 : vector<16x1xf32>
      %163 = vector.broadcast %162 : vector<16x1xf32> to vector<16x32xf32>
      %164 = arith.subf %152, %163 : vector<16x32xf32>
      %165 = arith.mulf %164, %164 : vector<16x32xf32>
      %cst_66 = arith.constant dense<0.000000e+00> : vector<16xf32>
      %166 = vector.multi_reduction <add>, %165, %cst_66 [1] : vector<16x32xf32> to vector<16xf32>
      %167 = vector.shape_cast %166 : vector<16xf32> to vector<16x1xf32>
      %cst_67 = arith.constant 3.200000e+01 : f32
      %168 = vector.broadcast %cst_67 : f32 to vector<16x1xf32>
      %169 = arith.divf %167, %168 : vector<16x1xf32>
      %170 = vector.broadcast %162 : vector<16x1xf32> to vector<16x32xf32>
      %171 = arith.subf %152, %170 : vector<16x32xf32>
      %cst_68 = arith.constant 9.99999974E-6 : f32
      %172 = vector.broadcast %cst_68 : f32 to vector<16x1xf32>
      %173 = arith.addf %169, %172 : vector<16x1xf32>
      %174 = math.rsqrt %173 : vector<16x1xf32>
      %175 = vector.broadcast %174 : vector<16x1xf32> to vector<16x32xf32>
      %176 = arith.mulf %171, %175 : vector<16x32xf32>
      %177 = vector.broadcast %157 : vector<1x32xf32> to vector<16x32xf32>
      %178 = arith.mulf %176, %177 : vector<16x32xf32>
      %179 = vector.broadcast %158 : vector<1x32xf32> to vector<16x32xf32>
      %180 = arith.addf %178, %179 : vector<16x32xf32>
      %c0_69 = arith.constant 0 : index
      %c0_70 = arith.constant 0 : index
      %c0_71 = arith.constant 0 : index
      %181 = vector.load %arg20[%c0_69, %c0_70, %c0_71] : memref<1x16x32xf32, #tpu.memory_space<vmem>>, vector<1x16x32xf32>
      %182 = vector.shape_cast %181 : vector<1x16x32xf32> to vector<16x32xf32>
      %183 = vector.shape_cast %180 : vector<16x32xf32> to vector<1x16x32xf32>
      tpu.vector_store %arg20[%c0_69, %c0_70, %c0_71], %183 {strides = array<i32>} : memref<1x16x32xf32, #tpu.memory_space<vmem>>, vector<1x16x32xf32>,
    } else {
    }
    return
  }
  func.func @transform_0(%arg0: i32, %arg1: i32) -> (i32, i32, i32) {
    %c0_i32 = arith.constant 0 : i32
    %c0_i32_0 = arith.constant 0 : i32
    %c0_i32_1 = arith.constant 0 : i32
    return %arg0, %c0_i32, %c0_i32_0 : i32, i32, i32
  }
  func.func @transform_1(%arg0: i32, %arg1: i32) -> (i32, i32) {
    %c0_i32 = arith.constant 0 : i32
    %c0_i32_0 = arith.constant 0 : i32
    %c0_i32_1 = arith.constant 0 : i32
    return %c0_i32, %c0_i32_0 : i32, i32
  }
  func.func @transform_2(%arg0: i32, %arg1: i32) -> (i32, i32) {
    %c0_i32 = arith.constant 0 : i32
    %c0_i32_0 = arith.constant 0 : i32
    %c0_i32_1 = arith.constant 0 : i32
    return %c0_i32, %c0_i32_0 : i32, i32
  }
  func.func @transform_3(%arg0: i32, %arg1: i32) -> (i32, i32) {
    %c0_i32 = arith.constant 0 : i32
    %c0_i32_0 = arith.constant 0 : i32
    %c0_i32_1 = arith.constant 0 : i32
    return %c0_i32, %c0_i32_0 : i32, i32
  }
  func.func @transform_4(%arg0: i32, %arg1: i32) -> (i32, i32, i32) {
    %c0_i32 = arith.constant 0 : i32
    %c0_i32_0 = arith.constant 0 : i32
    %c0_i32_1 = arith.constant 0 : i32
    return %arg1, %c0_i32, %c0_i32_0 : i32, i32, i32
  }
  func.func @transform_5(%arg0: i32, %arg1: i32) -> (i32, i32, i32) {
    %c0_i32 = arith.constant 0 : i32
    %c0_i32_0 = arith.constant 0 : i32
    %c0_i32_1 = arith.constant 0 : i32
    return %arg1, %c0_i32, %c0_i32_0 : i32, i32, i32
  }
  func.func @transform_6(%arg0: i32, %arg1: i32) -> (i32, i32, i32) {
    %c0_i32 = arith.constant 0 : i32
    %c0_i32_0 = arith.constant 0 : i32
    %c0_i32_1 = arith.constant 0 : i32
    return %arg1, %c0_i32, %c0_i32_0 : i32, i32, i32
  }
  func.func @transform_7(%arg0: i32, %arg1: i32) -> (i32, i32, i32) {
    %c0_i32 = arith.constant 0 : i32
    %c0_i32_0 = arith.constant 0 : i32
    %c0_i32_1 = arith.constant 0 : i32
    return %arg1, %c0_i32, %c0_i32_0 : i32, i32, i32
  }
  func.func @transform_8(%arg0: i32, %arg1: i32) -> (i32, i32, i32) {
    %c0_i32 = arith.constant 0 : i32
    %c0_i32_0 = arith.constant 0 : i32
    %c0_i32_1 = arith.constant 0 : i32
    return %arg1, %c0_i32, %c0_i32_0 : i32, i32, i32
  }
  func.func @transform_9(%arg0: i32, %arg1: i32) -> (i32, i32, i32) {
    %c0_i32 = arith.constant 0 : i32
    %c0_i32_0 = arith.constant 0 : i32
    %c0_i32_1 = arith.constant 0 : i32
    return %arg1, %c0_i32, %c0_i32_0 : i32, i32, i32
  }
  func.func @transform_10(%arg0: i32, %arg1: i32) -> (i32, i32, i32) {
    %c0_i32 = arith.constant 0 : i32
    %c0_i32_0 = arith.constant 0 : i32
    %c0_i32_1 = arith.constant 0 : i32
    return %arg1, %c0_i32, %c0_i32_0 : i32, i32, i32
  }
  func.func @transform_11(%arg0: i32, %arg1: i32) -> (i32, i32, i32) {
    %c0_i32 = arith.constant 0 : i32
    %c0_i32_0 = arith.constant 0 : i32
    %c0_i32_1 = arith.constant 0 : i32
    return %arg1, %c0_i32, %c0_i32_0 : i32, i32, i32
  }
  func.func @transform_12(%arg0: i32, %arg1: i32) -> (i32, i32, i32) {
    %c0_i32 = arith.constant 0 : i32
    %c0_i32_0 = arith.constant 0 : i32
    %c0_i32_1 = arith.constant 0 : i32
    return %arg1, %c0_i32, %c0_i32_0 : i32, i32, i32
  }
  func.func @transform_13(%arg0: i32, %arg1: i32) -> (i32, i32, i32) {
    %c0_i32 = arith.constant 0 : i32
    %c0_i32_0 = arith.constant 0 : i32
    %c0_i32_1 = arith.constant 0 : i32
    return %arg1, %c0_i32, %c0_i32_0 : i32, i32, i32
  }
  func.func @transform_14(%arg0: i32, %arg1: i32) -> (i32, i32, i32) {
    %c0_i32 = arith.constant 0 : i32
    %c0_i32_0 = arith.constant 0 : i32
    %c0_i32_1 = arith.constant 0 : i32
    return %arg1, %c0_i32, %c0_i32_0 : i32, i32, i32
  }
  func.func @transform_15(%arg0: i32, %arg1: i32) -> (i32, i32, i32) {
    %c0_i32 = arith.constant 0 : i32
    %c0_i32_0 = arith.constant 0 : i32
    %c0_i32_1 = arith.constant 0 : i32
    return %arg1, %c0_i32, %c0_i32_0 : i32, i32, i32
  }
  func.func @transform_16(%arg0: i32, %arg1: i32) -> (i32, i32) {
    %c0_i32 = arith.constant 0 : i32
    %c0_i32_0 = arith.constant 0 : i32
    %c0_i32_1 = arith.constant 0 : i32
    return %c0_i32, %c0_i32_0 : i32, i32
  }
  func.func @transform_17(%arg0: i32, %arg1: i32) -> (i32, i32) {
    %c0_i32 = arith.constant 0 : i32
    %c0_i32_0 = arith.constant 0 : i32
    %c0_i32_1 = arith.constant 0 : i32
    return %c0_i32, %c0_i32_0 : i32, i32
  }
  func.func @transform_18(%arg0: i32, %arg1: i32) -> (i32, i32, i32) {
    %c0_i32 = arith.constant 0 : i32
    %c0_i32_0 = arith.constant 0 : i32
    %c0_i32_1 = arith.constant 0 : i32
    return %arg0, %c0_i32, %c0_i32_0 : i32, i32, i32
  }
}

module attributes {stable_mosaic.version = 11 : i64} {
  func.func @_decoder_kernel(%arg0: i32, %arg1: i32, %arg2: memref<1x8x32xf32, #tpu.memory_space<vmem>>, %arg3: memref<1x16x32xf32, #tpu.memory_space<vmem>>, %arg4: memref<1x1x32xf32, #tpu.memory_space<vmem>>, %arg5: memref<1x1x32xf32, #tpu.memory_space<vmem>>, %arg6: memref<1x32x96xbf16, #tpu.memory_space<vmem>>, %arg7: memref<1x1x96xf32, #tpu.memory_space<vmem>>, %arg8: memref<1x32x32xbf16, #tpu.memory_space<vmem>>, %arg9: memref<1x1x32xf32, #tpu.memory_space<vmem>>, %arg10: memref<1x1x32xf32, #tpu.memory_space<vmem>>, %arg11: memref<1x1x32xf32, #tpu.memory_space<vmem>>, %arg12: memref<1x32x32xbf16, #tpu.memory_space<vmem>>, %arg13: memref<1x1x32xf32, #tpu.memory_space<vmem>>, %arg14: memref<1x32x64xbf16, #tpu.memory_space<vmem>>, %arg15: memref<1x1x64xf32, #tpu.memory_space<vmem>>, %arg16: memref<1x32x32xbf16, #tpu.memory_space<vmem>>, %arg17: memref<1x1x32xf32, #tpu.memory_space<vmem>>, %arg18: memref<1x1x32xf32, #tpu.memory_space<vmem>>, %arg19: memref<1x1x32xf32, #tpu.memory_space<vmem>>, %arg20: memref<1x32x64xbf16, #tpu.memory_space<vmem>>, %arg21: memref<1x1x64xf32, #tpu.memory_space<vmem>>, %arg22: memref<1x64x32xbf16, #tpu.memory_space<vmem>>, %arg23: memref<1x1x32xf32, #tpu.memory_space<vmem>>, %arg24: memref<1x32xf32, #tpu.memory_space<vmem>>, %arg25: memref<1x32xf32, #tpu.memory_space<vmem>>, %arg26: memref<32x128xbf16, #tpu.memory_space<vmem>>, %arg27: memref<1x128xf32, #tpu.memory_space<vmem>>, %arg28: memref<1x8x128xf32, #tpu.memory_space<vmem>>, %arg29: memref<1x8x128xf32, #tpu.memory_space<vmem>>, %arg30: memref<8x32xf32, #tpu.memory_space<vmem>>) attributes {dimension_semantics = [#tpu.dimension_semantics<parallel>, #tpu.dimension_semantics<arbitrary>], iteration_bounds = array<i64: 2, 2>, scalar_prefetch = 0 : i64, scratch_operands = 1 : i64, tpu.core_type = #tpu.core_type<tc>, window_params = [{transform_indices = @transform_0, window_bounds = array<i64: 1, 8, 32>}, {transform_indices = @transform_1, window_bounds = array<i64: 1, 16, 32>}, {transform_indices = @transform_2, window_bounds = array<i64: 1, 1, 32>}, {transform_indices = @transform_3, window_bounds = array<i64: 1, 1, 32>}, {transform_indices = @transform_4, window_bounds = array<i64: 1, 32, 96>}, {transform_indices = @transform_5, window_bounds = array<i64: 1, 1, 96>}, {transform_indices = @transform_6, window_bounds = array<i64: 1, 32, 32>}, {transform_indices = @transform_7, window_bounds = array<i64: 1, 1, 32>}, {transform_indices = @transform_8, window_bounds = array<i64: 1, 1, 32>}, {transform_indices = @transform_9, window_bounds = array<i64: 1, 1, 32>}, {transform_indices = @transform_10, window_bounds = array<i64: 1, 32, 32>}, {transform_indices = @transform_11, window_bounds = array<i64: 1, 1, 32>}, {transform_indices = @transform_12, window_bounds = array<i64: 1, 32, 64>}, {transform_indices = @transform_13, window_bounds = array<i64: 1, 1, 64>}, {transform_indices = @transform_14, window_bounds = array<i64: 1, 32, 32>}, {transform_indices = @transform_15, window_bounds = array<i64: 1, 1, 32>}, {transform_indices = @transform_16, window_bounds = array<i64: 1, 1, 32>}, {transform_indices = @transform_17, window_bounds = array<i64: 1, 1, 32>}, {transform_indices = @transform_18, window_bounds = array<i64: 1, 32, 64>}, {transform_indices = @transform_19, window_bounds = array<i64: 1, 1, 64>}, {transform_indices = @transform_20, window_bounds = array<i64: 1, 64, 32>}, {transform_indices = @transform_21, window_bounds = array<i64: 1, 1, 32>}, {pipeline_mode = #tpu.pipeline_mode<synchronous>, transform_indices = @transform_22, window_bounds = array<i64: 1, 32>}, {pipeline_mode = #tpu.pipeline_mode<synchronous>, transform_indices = @transform_23, window_bounds = array<i64: 1, 32>}, {pipeline_mode = #tpu.pipeline_mode<synchronous>, transform_indices = @transform_24, window_bounds = array<i64: 32, 128>}, {pipeline_mode = #tpu.pipeline_mode<synchronous>, transform_indices = @transform_25, window_bounds = array<i64: 1, 128>}, {transform_indices = @transform_26, window_bounds = array<i64: 1, 8, 128>}, {transform_indices = @transform_27, window_bounds = array<i64: 1, 8, 128>}]} {
    %c0_i32 = arith.constant 0 : i32
    %0 = arith.cmpi eq, %arg1, %c0_i32 : i32
    %1 = arith.extui %0 : i1 to i32
    %c0_i32_0 = arith.constant 0 : i32
    %2 = arith.cmpi ne, %1, %c0_i32_0 : i32
    scf.if %2 {
      %c0_101 = arith.constant 0 : index
      %c0_102 = arith.constant 0 : index
      %c0_103 = arith.constant 0 : index
      %278 = vector.load %arg2[%c0_101, %c0_102, %c0_103] : memref<1x8x32xf32, #tpu.memory_space<vmem>>, vector<1x8x32xf32>
      %279 = vector.shape_cast %278 : vector<1x8x32xf32> to vector<8x32xf32>
      %c0_104 = arith.constant 0 : index
      %c0_105 = arith.constant 0 : index
      %280 = vector.load %arg30[%c0_104, %c0_105] : memref<8x32xf32, #tpu.memory_space<vmem>>, vector<8x32xf32>
      tpu.vector_store %arg30[%c0_104, %c0_105], %279 {strides = array<i32>} : memref<8x32xf32, #tpu.memory_space<vmem>>, vector<8x32xf32>,
    } else {
    }
    %c0 = arith.constant 0 : index
    %c0_1 = arith.constant 0 : index
    %3 = vector.load %arg30[%c0, %c0_1] : memref<8x32xf32, #tpu.memory_space<vmem>>, vector<8x32xf32>
    %c0_2 = arith.constant 0 : index
    %c0_3 = arith.constant 0 : index
    %c0_4 = arith.constant 0 : index
    %4 = vector.load %arg3[%c0_2, %c0_3, %c0_4] : memref<1x16x32xf32, #tpu.memory_space<vmem>>, vector<1x16x32xf32>
    %5 = vector.shape_cast %4 : vector<1x16x32xf32> to vector<16x32xf32>
    %c0_5 = arith.constant 0 : index
    %c0_6 = arith.constant 0 : index
    %c0_7 = arith.constant 0 : index
    %6 = vector.load %arg4[%c0_5, %c0_6, %c0_7] : memref<1x1x32xf32, #tpu.memory_space<vmem>>, vector<1x1x32xf32>
    %7 = vector.shape_cast %6 : vector<1x1x32xf32> to vector<1x32xf32>
    %c0_8 = arith.constant 0 : index
    %c0_9 = arith.constant 0 : index
    %c0_10 = arith.constant 0 : index
    %8 = vector.load %arg5[%c0_8, %c0_9, %c0_10] : memref<1x1x32xf32, #tpu.memory_space<vmem>>, vector<1x1x32xf32>
    %9 = vector.shape_cast %8 : vector<1x1x32xf32> to vector<1x32xf32>
    %cst = arith.constant dense<0.000000e+00> : vector<8xf32>
    %10 = vector.multi_reduction <add>, %3, %cst [1] : vector<8x32xf32> to vector<8xf32>
    %11 = vector.shape_cast %10 : vector<8xf32> to vector<8x1xf32>
    %cst_11 = arith.constant 3.200000e+01 : f32
    %12 = vector.broadcast %cst_11 : f32 to vector<8x1xf32>
    %13 = arith.divf %11, %12 : vector<8x1xf32>
    %14 = vector.broadcast %13 : vector<8x1xf32> to vector<8x32xf32>
    %15 = arith.subf %3, %14 : vector<8x32xf32>
    %16 = arith.mulf %15, %15 : vector<8x32xf32>
    %cst_12 = arith.constant dense<0.000000e+00> : vector<8xf32>
    %17 = vector.multi_reduction <add>, %16, %cst_12 [1] : vector<8x32xf32> to vector<8xf32>
    %18 = vector.shape_cast %17 : vector<8xf32> to vector<8x1xf32>
    %cst_13 = arith.constant 3.200000e+01 : f32
    %19 = vector.broadcast %cst_13 : f32 to vector<8x1xf32>
    %20 = arith.divf %18, %19 : vector<8x1xf32>
    %21 = vector.broadcast %13 : vector<8x1xf32> to vector<8x32xf32>
    %22 = arith.subf %3, %21 : vector<8x32xf32>
    %cst_14 = arith.constant 9.99999974E-6 : f32
    %23 = vector.broadcast %cst_14 : f32 to vector<8x1xf32>
    %24 = arith.addf %20, %23 : vector<8x1xf32>
    %25 = math.rsqrt %24 : vector<8x1xf32>
    %26 = vector.broadcast %25 : vector<8x1xf32> to vector<8x32xf32>
    %27 = arith.mulf %22, %26 : vector<8x32xf32>
    %28 = vector.broadcast %7 : vector<1x32xf32> to vector<8x32xf32>
    %29 = arith.mulf %27, %28 : vector<8x32xf32>
    %30 = vector.broadcast %9 : vector<1x32xf32> to vector<8x32xf32>
    %31 = arith.addf %29, %30 : vector<8x32xf32>
    %32 = arith.truncf %31 : vector<8x32xf32> to vector<8x32xbf16>
    %c0_15 = arith.constant 0 : index
    %c0_16 = arith.constant 0 : index
    %c0_17 = arith.constant 0 : index
    %33 = vector.load %arg6[%c0_15, %c0_16, %c0_17] : memref<1x32x96xbf16, #tpu.memory_space<vmem>>, vector<1x32x96xbf16>
    %34 = vector.shape_cast %33 : vector<1x32x96xbf16> to vector<32x96xbf16>
    %cst_18 = arith.constant dense<0.000000e+00> : vector<8x96xf32>
    %35 = tpu.matmul %32, %34, %cst_18 {dimension_numbers = #tpu.dot_dimension_numbers<[1], [0], [0], [1], [0, 0, 1, 1], [], []>} : vector<8x32xbf16>, vector<32x96xbf16>, vector<8x96xf32> -> vector<8x96xf32>
    %c0_19 = arith.constant 0 : index
    %c0_20 = arith.constant 0 : index
    %c0_21 = arith.constant 0 : index
    %36 = vector.load %arg7[%c0_19, %c0_20, %c0_21] : memref<1x1x96xf32, #tpu.memory_space<vmem>>, vector<1x1x96xf32>
    %37 = vector.shape_cast %36 : vector<1x1x96xf32> to vector<1x96xf32>
    %38 = vector.broadcast %37 : vector<1x96xf32> to vector<8x96xf32>
    %39 = arith.addf %35, %38 : vector<8x96xf32>
    %40 = vector.extract_strided_slice %39 {offsets = [0, 0], sizes = [8, 32], strides = [1, 1]} : vector<8x96xf32> to vector<8x32xf32>
    %41 = vector.extract_strided_slice %39 {offsets = [0, 32], sizes = [8, 32], strides = [1, 1]} : vector<8x96xf32> to vector<8x32xf32>
    %42 = vector.extract_strided_slice %39 {offsets = [0, 64], sizes = [8, 32], strides = [1, 1]} : vector<8x96xf32> to vector<8x32xf32>
    %c0_22 = arith.constant 0 : index
    %c0_23 = arith.constant 0 : index
    %c0_24 = arith.constant 0 : index
    %43 = vector.load %arg8[%c0_22, %c0_23, %c0_24] : memref<1x32x32xbf16, #tpu.memory_space<vmem>>, vector<1x32x32xbf16>
    %44 = vector.shape_cast %43 : vector<1x32x32xbf16> to vector<32x32xbf16>
    %c0_25 = arith.constant 0 : index
    %c0_26 = arith.constant 0 : index
    %c0_27 = arith.constant 0 : index
    %45 = vector.load %arg9[%c0_25, %c0_26, %c0_27] : memref<1x1x32xf32, #tpu.memory_space<vmem>>, vector<1x1x32xf32>
    %46 = vector.shape_cast %45 : vector<1x1x32xf32> to vector<1x32xf32>
    %47 = arith.truncf %40 : vector<8x32xf32> to vector<8x32xbf16>
    %48 = arith.truncf %41 : vector<8x32xf32> to vector<8x32xbf16>
    %49 = arith.truncf %42 : vector<8x32xf32> to vector<8x32xbf16>
    %50 = vector.extract_strided_slice %47 {offsets = [0, 0], sizes = [8, 8], strides = [1, 1]} : vector<8x32xbf16> to vector<8x8xbf16>
    %51 = vector.extract_strided_slice %47 {offsets = [0, 8], sizes = [8, 8], strides = [1, 1]} : vector<8x32xbf16> to vector<8x8xbf16>
    %52 = vector.extract_strided_slice %47 {offsets = [0, 16], sizes = [8, 8], strides = [1, 1]} : vector<8x32xbf16> to vector<8x8xbf16>
    %53 = vector.extract_strided_slice %47 {offsets = [0, 24], sizes = [8, 8], strides = [1, 1]} : vector<8x32xbf16> to vector<8x8xbf16>
    %54 = vector.shape_cast %50 : vector<8x8xbf16> to vector<1x8x8xbf16>
    %55 = vector.shape_cast %51 : vector<8x8xbf16> to vector<1x8x8xbf16>
    %56 = vector.shape_cast %52 : vector<8x8xbf16> to vector<1x8x8xbf16>
    %57 = vector.shape_cast %53 : vector<8x8xbf16> to vector<1x8x8xbf16>
    %58 = tpu.concatenate %54, %55, %56, %57 in 0 : vector<1x8x8xbf16>, vector<1x8x8xbf16>, vector<1x8x8xbf16>, vector<1x8x8xbf16> -> vector<4x8x8xbf16>
    %59 = vector.extract_strided_slice %48 {offsets = [0, 0], sizes = [8, 8], strides = [1, 1]} : vector<8x32xbf16> to vector<8x8xbf16>
    %60 = tpu.transpose %59, [1, 0] : vector<8x8xbf16> -> vector<8x8xbf16>
    %61 = vector.extract_strided_slice %48 {offsets = [0, 8], sizes = [8, 8], strides = [1, 1]} : vector<8x32xbf16> to vector<8x8xbf16>
    %62 = tpu.transpose %61, [1, 0] : vector<8x8xbf16> -> vector<8x8xbf16>
    %63 = vector.extract_strided_slice %48 {offsets = [0, 16], sizes = [8, 8], strides = [1, 1]} : vector<8x32xbf16> to vector<8x8xbf16>
    %64 = tpu.transpose %63, [1, 0] : vector<8x8xbf16> -> vector<8x8xbf16>
    %65 = vector.extract_strided_slice %48 {offsets = [0, 24], sizes = [8, 8], strides = [1, 1]} : vector<8x32xbf16> to vector<8x8xbf16>
    %66 = tpu.transpose %65, [1, 0] : vector<8x8xbf16> -> vector<8x8xbf16>
    %67 = vector.shape_cast %60 : vector<8x8xbf16> to vector<1x8x8xbf16>
    %68 = vector.shape_cast %62 : vector<8x8xbf16> to vector<1x8x8xbf16>
    %69 = vector.shape_cast %64 : vector<8x8xbf16> to vector<1x8x8xbf16>
    %70 = vector.shape_cast %66 : vector<8x8xbf16> to vector<1x8x8xbf16>
    %71 = tpu.concatenate %67, %68, %69, %70 in 0 : vector<1x8x8xbf16>, vector<1x8x8xbf16>, vector<1x8x8xbf16>, vector<1x8x8xbf16> -> vector<4x8x8xbf16>
    %72 = vector.extract_strided_slice %49 {offsets = [0, 0], sizes = [8, 8], strides = [1, 1]} : vector<8x32xbf16> to vector<8x8xbf16>
    %73 = vector.extract_strided_slice %49 {offsets = [0, 8], sizes = [8, 8], strides = [1, 1]} : vector<8x32xbf16> to vector<8x8xbf16>
    %74 = vector.extract_strided_slice %49 {offsets = [0, 16], sizes = [8, 8], strides = [1, 1]} : vector<8x32xbf16> to vector<8x8xbf16>
    %75 = vector.extract_strided_slice %49 {offsets = [0, 24], sizes = [8, 8], strides = [1, 1]} : vector<8x32xbf16> to vector<8x8xbf16>
    %76 = vector.shape_cast %72 : vector<8x8xbf16> to vector<1x8x8xbf16>
    %77 = vector.shape_cast %73 : vector<8x8xbf16> to vector<1x8x8xbf16>
    %78 = vector.shape_cast %74 : vector<8x8xbf16> to vector<1x8x8xbf16>
    %79 = vector.shape_cast %75 : vector<8x8xbf16> to vector<1x8x8xbf16>
    %80 = tpu.concatenate %76, %77, %78, %79 in 0 : vector<1x8x8xbf16>, vector<1x8x8xbf16>, vector<1x8x8xbf16>, vector<1x8x8xbf16> -> vector<4x8x8xbf16>
    %cst_28 = arith.constant dense<0.000000e+00> : vector<4x8x8xf32>
    %81 = tpu.matmul %58, %71, %cst_28 {dimension_numbers = #tpu.dot_dimension_numbers<[2], [1], [1], [2], [0, 0, 0, 1, 1, 2], [0], [0]>} : vector<4x8x8xbf16>, vector<4x8x8xbf16>, vector<4x8x8xf32> -> vector<4x8x8xf32>
    %cst_29 = arith.constant 0.353553385 : f32
    %82 = vector.broadcast %cst_29 : f32 to vector<4x8x8xf32>
    %83 = arith.mulf %81, %82 : vector<4x8x8xf32>
    %84 = tpu.iota {dimensions = array<i32: 0>} : vector<8x8xi32>
    %85 = tpu.iota {dimensions = array<i32: 1>} : vector<8x8xi32>
    %86 = arith.cmpi sge, %84, %85 : vector<8x8xi32>
    %87 = vector.shape_cast %86 : vector<8x8xi1> to vector<1x8x8xi1>
    %cst_30 = arith.constant -1.000000e+09 : f32
    %88 = vector.shape_cast %87 : vector<1x8x8xi1> to vector<1x8x8xi1>
    %89 = vector.broadcast %88 : vector<1x8x8xi1> to vector<4x8x8xi1>
    %90 = vector.broadcast %cst_30 : f32 to vector<4x8x8xf32>
    %91 = arith.select %89, %83, %90 : vector<4x8x8xi1>, vector<4x8x8xf32>
    %cst_31 = arith.constant dense<0xFF800000> : vector<4x8xf32>
    %92 = vector.multi_reduction <maximumf>, %91, %cst_31 [2] : vector<4x8x8xf32> to vector<4x8xf32>
    %93 = vector.shape_cast %92 : vector<4x8xf32> to vector<4x8x1xf32>
    %94 = vector.broadcast %93 : vector<4x8x1xf32> to vector<4x8x8xf32>
    %95 = arith.subf %91, %94 : vector<4x8x8xf32>
    %96 = math.exp %95 : vector<4x8x8xf32>
    %cst_32 = arith.constant dense<0.000000e+00> : vector<4x8xf32>
    %97 = vector.multi_reduction <add>, %96, %cst_32 [2] : vector<4x8x8xf32> to vector<4x8xf32>
    %98 = vector.shape_cast %97 : vector<4x8xf32> to vector<4x8x1xf32>
    %99 = tpu.reciprocal %98 {approx = true} : vector<4x8x1xf32> -> vector<4x8x1xf32>
    %100 = vector.broadcast %99 : vector<4x8x1xf32> to vector<4x8x8xf32>
    %101 = arith.mulf %96, %100 : vector<4x8x8xf32>
    %102 = arith.truncf %101 : vector<4x8x8xf32> to vector<4x8x8xbf16>
    %cst_33 = arith.constant dense<0.000000e+00> : vector<4x8x8xf32>
    %103 = tpu.matmul %102, %80, %cst_33 {dimension_numbers = #tpu.dot_dimension_numbers<[2], [1], [1], [2], [0, 0, 0, 1, 1, 2], [0], [0]>} : vector<4x8x8xbf16>, vector<4x8x8xbf16>, vector<4x8x8xf32> -> vector<4x8x8xf32>
    %104 = vector.extract_strided_slice %103 {offsets = [0, 0, 0], sizes = [1, 8, 8], strides = [1, 1, 1]} : vector<4x8x8xf32> to vector<1x8x8xf32>
    %105 = vector.shape_cast %104 : vector<1x8x8xf32> to vector<8x8xf32>
    %106 = vector.extract_strided_slice %103 {offsets = [1, 0, 0], sizes = [1, 8, 8], strides = [1, 1, 1]} : vector<4x8x8xf32> to vector<1x8x8xf32>
    %107 = vector.shape_cast %106 : vector<1x8x8xf32> to vector<8x8xf32>
    %108 = vector.extract_strided_slice %103 {offsets = [2, 0, 0], sizes = [1, 8, 8], strides = [1, 1, 1]} : vector<4x8x8xf32> to vector<1x8x8xf32>
    %109 = vector.shape_cast %108 : vector<1x8x8xf32> to vector<8x8xf32>
    %110 = vector.extract_strided_slice %103 {offsets = [3, 0, 0], sizes = [1, 8, 8], strides = [1, 1, 1]} : vector<4x8x8xf32> to vector<1x8x8xf32>
    %111 = vector.shape_cast %110 : vector<1x8x8xf32> to vector<8x8xf32>
    %112 = tpu.concatenate %105, %107, %109, %111 in 1 : vector<8x8xf32>, vector<8x8xf32>, vector<8x8xf32>, vector<8x8xf32> -> vector<8x32xf32>
    %113 = arith.truncf %112 : vector<8x32xf32> to vector<8x32xbf16>
    %cst_34 = arith.constant dense<0.000000e+00> : vector<8x32xf32>
    %114 = tpu.matmul %113, %44, %cst_34 {dimension_numbers = #tpu.dot_dimension_numbers<[1], [0], [0], [1], [0, 0, 1, 1], [], []>} : vector<8x32xbf16>, vector<32x32xbf16>, vector<8x32xf32> -> vector<8x32xf32>
    %115 = vector.broadcast %46 : vector<1x32xf32> to vector<8x32xf32>
    %116 = arith.addf %114, %115 : vector<8x32xf32>
    %117 = arith.addf %3, %116 : vector<8x32xf32>
    %c0_35 = arith.constant 0 : index
    %c0_36 = arith.constant 0 : index
    %c0_37 = arith.constant 0 : index
    %118 = vector.load %arg10[%c0_35, %c0_36, %c0_37] : memref<1x1x32xf32, #tpu.memory_space<vmem>>, vector<1x1x32xf32>
    %119 = vector.shape_cast %118 : vector<1x1x32xf32> to vector<1x32xf32>
    %c0_38 = arith.constant 0 : index
    %c0_39 = arith.constant 0 : index
    %c0_40 = arith.constant 0 : index
    %120 = vector.load %arg11[%c0_38, %c0_39, %c0_40] : memref<1x1x32xf32, #tpu.memory_space<vmem>>, vector<1x1x32xf32>
    %121 = vector.shape_cast %120 : vector<1x1x32xf32> to vector<1x32xf32>
    %cst_41 = arith.constant dense<0.000000e+00> : vector<8xf32>
    %122 = vector.multi_reduction <add>, %117, %cst_41 [1] : vector<8x32xf32> to vector<8xf32>
    %123 = vector.shape_cast %122 : vector<8xf32> to vector<8x1xf32>
    %cst_42 = arith.constant 3.200000e+01 : f32
    %124 = vector.broadcast %cst_42 : f32 to vector<8x1xf32>
    %125 = arith.divf %123, %124 : vector<8x1xf32>
    %126 = vector.broadcast %125 : vector<8x1xf32> to vector<8x32xf32>
    %127 = arith.subf %117, %126 : vector<8x32xf32>
    %128 = arith.mulf %127, %127 : vector<8x32xf32>
    %cst_43 = arith.constant dense<0.000000e+00> : vector<8xf32>
    %129 = vector.multi_reduction <add>, %128, %cst_43 [1] : vector<8x32xf32> to vector<8xf32>
    %130 = vector.shape_cast %129 : vector<8xf32> to vector<8x1xf32>
    %cst_44 = arith.constant 3.200000e+01 : f32
    %131 = vector.broadcast %cst_44 : f32 to vector<8x1xf32>
    %132 = arith.divf %130, %131 : vector<8x1xf32>
    %133 = vector.broadcast %125 : vector<8x1xf32> to vector<8x32xf32>
    %134 = arith.subf %117, %133 : vector<8x32xf32>
    %cst_45 = arith.constant 9.99999974E-6 : f32
    %135 = vector.broadcast %cst_45 : f32 to vector<8x1xf32>
    %136 = arith.addf %132, %135 : vector<8x1xf32>
    %137 = math.rsqrt %136 : vector<8x1xf32>
    %138 = vector.broadcast %137 : vector<8x1xf32> to vector<8x32xf32>
    %139 = arith.mulf %134, %138 : vector<8x32xf32>
    %140 = vector.broadcast %119 : vector<1x32xf32> to vector<8x32xf32>
    %141 = arith.mulf %139, %140 : vector<8x32xf32>
    %142 = vector.broadcast %121 : vector<1x32xf32> to vector<8x32xf32>
    %143 = arith.addf %141, %142 : vector<8x32xf32>
    %144 = arith.truncf %143 : vector<8x32xf32> to vector<8x32xbf16>
    %c0_46 = arith.constant 0 : index
    %c0_47 = arith.constant 0 : index
    %c0_48 = arith.constant 0 : index
    %145 = vector.load %arg12[%c0_46, %c0_47, %c0_48] : memref<1x32x32xbf16, #tpu.memory_space<vmem>>, vector<1x32x32xbf16>
    %146 = vector.shape_cast %145 : vector<1x32x32xbf16> to vector<32x32xbf16>
    %cst_49 = arith.constant dense<0.000000e+00> : vector<8x32xf32>
    %147 = tpu.matmul %144, %146, %cst_49 {dimension_numbers = #tpu.dot_dimension_numbers<[1], [0], [0], [1], [0, 0, 1, 1], [], []>} : vector<8x32xbf16>, vector<32x32xbf16>, vector<8x32xf32> -> vector<8x32xf32>
    %c0_50 = arith.constant 0 : index
    %c0_51 = arith.constant 0 : index
    %c0_52 = arith.constant 0 : index
    %148 = vector.load %arg13[%c0_50, %c0_51, %c0_52] : memref<1x1x32xf32, #tpu.memory_space<vmem>>, vector<1x1x32xf32>
    %149 = vector.shape_cast %148 : vector<1x1x32xf32> to vector<1x32xf32>
    %150 = vector.broadcast %149 : vector<1x32xf32> to vector<8x32xf32>
    %151 = arith.addf %147, %150 : vector<8x32xf32>
    %152 = arith.truncf %5 : vector<16x32xf32> to vector<16x32xbf16>
    %c0_53 = arith.constant 0 : index
    %c0_54 = arith.constant 0 : index
    %c0_55 = arith.constant 0 : index
    %153 = vector.load %arg14[%c0_53, %c0_54, %c0_55] : memref<1x32x64xbf16, #tpu.memory_space<vmem>>, vector<1x32x64xbf16>
    %154 = vector.shape_cast %153 : vector<1x32x64xbf16> to vector<32x64xbf16>
    %cst_56 = arith.constant dense<0.000000e+00> : vector<16x64xf32>
    %155 = tpu.matmul %152, %154, %cst_56 {dimension_numbers = #tpu.dot_dimension_numbers<[1], [0], [0], [1], [0, 0, 1, 1], [], []>} : vector<16x32xbf16>, vector<32x64xbf16>, vector<16x64xf32> -> vector<16x64xf32>
    %c0_57 = arith.constant 0 : index
    %c0_58 = arith.constant 0 : index
    %c0_59 = arith.constant 0 : index
    %156 = vector.load %arg15[%c0_57, %c0_58, %c0_59] : memref<1x1x64xf32, #tpu.memory_space<vmem>>, vector<1x1x64xf32>
    %157 = vector.shape_cast %156 : vector<1x1x64xf32> to vector<1x64xf32>
    %158 = vector.broadcast %157 : vector<1x64xf32> to vector<16x64xf32>
    %159 = arith.addf %155, %158 : vector<16x64xf32>
    %160 = vector.extract_strided_slice %159 {offsets = [0, 0], sizes = [16, 32], strides = [1, 1]} : vector<16x64xf32> to vector<16x32xf32>
    %161 = vector.extract_strided_slice %159 {offsets = [0, 32], sizes = [16, 32], strides = [1, 1]} : vector<16x64xf32> to vector<16x32xf32>
    %c0_60 = arith.constant 0 : index
    %c0_61 = arith.constant 0 : index
    %c0_62 = arith.constant 0 : index
    %162 = vector.load %arg16[%c0_60, %c0_61, %c0_62] : memref<1x32x32xbf16, #tpu.memory_space<vmem>>, vector<1x32x32xbf16>
    %163 = vector.shape_cast %162 : vector<1x32x32xbf16> to vector<32x32xbf16>
    %c0_63 = arith.constant 0 : index
    %c0_64 = arith.constant 0 : index
    %c0_65 = arith.constant 0 : index
    %164 = vector.load %arg17[%c0_63, %c0_64, %c0_65] : memref<1x1x32xf32, #tpu.memory_space<vmem>>, vector<1x1x32xf32>
    %165 = vector.shape_cast %164 : vector<1x1x32xf32> to vector<1x32xf32>
    %166 = arith.truncf %151 : vector<8x32xf32> to vector<8x32xbf16>
    %167 = arith.truncf %160 : vector<16x32xf32> to vector<16x32xbf16>
    %168 = arith.truncf %161 : vector<16x32xf32> to vector<16x32xbf16>
    %169 = vector.extract_strided_slice %166 {offsets = [0, 0], sizes = [8, 8], strides = [1, 1]} : vector<8x32xbf16> to vector<8x8xbf16>
    %170 = vector.extract_strided_slice %166 {offsets = [0, 8], sizes = [8, 8], strides = [1, 1]} : vector<8x32xbf16> to vector<8x8xbf16>
    %171 = vector.extract_strided_slice %166 {offsets = [0, 16], sizes = [8, 8], strides = [1, 1]} : vector<8x32xbf16> to vector<8x8xbf16>
    %172 = vector.extract_strided_slice %166 {offsets = [0, 24], sizes = [8, 8], strides = [1, 1]} : vector<8x32xbf16> to vector<8x8xbf16>
    %173 = vector.shape_cast %169 : vector<8x8xbf16> to vector<1x8x8xbf16>
    %174 = vector.shape_cast %170 : vector<8x8xbf16> to vector<1x8x8xbf16>
    %175 = vector.shape_cast %171 : vector<8x8xbf16> to vector<1x8x8xbf16>
    %176 = vector.shape_cast %172 : vector<8x8xbf16> to vector<1x8x8xbf16>
    %177 = tpu.concatenate %173, %174, %175, %176 in 0 : vector<1x8x8xbf16>, vector<1x8x8xbf16>, vector<1x8x8xbf16>, vector<1x8x8xbf16> -> vector<4x8x8xbf16>
    %178 = vector.extract_strided_slice %167 {offsets = [0, 0], sizes = [16, 8], strides = [1, 1]} : vector<16x32xbf16> to vector<16x8xbf16>
    %179 = tpu.transpose %178, [1, 0] : vector<16x8xbf16> -> vector<8x16xbf16>
    %180 = vector.extract_strided_slice %167 {offsets = [0, 8], sizes = [16, 8], strides = [1, 1]} : vector<16x32xbf16> to vector<16x8xbf16>
    %181 = tpu.transpose %180, [1, 0] : vector<16x8xbf16> -> vector<8x16xbf16>
    %182 = vector.extract_strided_slice %167 {offsets = [0, 16], sizes = [16, 8], strides = [1, 1]} : vector<16x32xbf16> to vector<16x8xbf16>
    %183 = tpu.transpose %182, [1, 0] : vector<16x8xbf16> -> vector<8x16xbf16>
    %184 = vector.extract_strided_slice %167 {offsets = [0, 24], sizes = [16, 8], strides = [1, 1]} : vector<16x32xbf16> to vector<16x8xbf16>
    %185 = tpu.transpose %184, [1, 0] : vector<16x8xbf16> -> vector<8x16xbf16>
    %186 = vector.shape_cast %179 : vector<8x16xbf16> to vector<1x8x16xbf16>
    %187 = vector.shape_cast %181 : vector<8x16xbf16> to vector<1x8x16xbf16>
    %188 = vector.shape_cast %183 : vector<8x16xbf16> to vector<1x8x16xbf16>
    %189 = vector.shape_cast %185 : vector<8x16xbf16> to vector<1x8x16xbf16>
    %190 = tpu.concatenate %186, %187, %188, %189 in 0 : vector<1x8x16xbf16>, vector<1x8x16xbf16>, vector<1x8x16xbf16>, vector<1x8x16xbf16> -> vector<4x8x16xbf16>
    %191 = vector.extract_strided_slice %168 {offsets = [0, 0], sizes = [16, 8], strides = [1, 1]} : vector<16x32xbf16> to vector<16x8xbf16>
    %192 = vector.extract_strided_slice %168 {offsets = [0, 8], sizes = [16, 8], strides = [1, 1]} : vector<16x32xbf16> to vector<16x8xbf16>
    %193 = vector.extract_strided_slice %168 {offsets = [0, 16], sizes = [16, 8], strides = [1, 1]} : vector<16x32xbf16> to vector<16x8xbf16>
    %194 = vector.extract_strided_slice %168 {offsets = [0, 24], sizes = [16, 8], strides = [1, 1]} : vector<16x32xbf16> to vector<16x8xbf16>
    %195 = vector.shape_cast %191 : vector<16x8xbf16> to vector<1x16x8xbf16>
    %196 = vector.shape_cast %192 : vector<16x8xbf16> to vector<1x16x8xbf16>
    %197 = vector.shape_cast %193 : vector<16x8xbf16> to vector<1x16x8xbf16>
    %198 = vector.shape_cast %194 : vector<16x8xbf16> to vector<1x16x8xbf16>
    %199 = tpu.concatenate %195, %196, %197, %198 in 0 : vector<1x16x8xbf16>, vector<1x16x8xbf16>, vector<1x16x8xbf16>, vector<1x16x8xbf16> -> vector<4x16x8xbf16>
    %cst_66 = arith.constant dense<0.000000e+00> : vector<4x8x16xf32>
    %200 = tpu.matmul %177, %190, %cst_66 {dimension_numbers = #tpu.dot_dimension_numbers<[2], [1], [1], [2], [0, 0, 0, 1, 1, 2], [0], [0]>} : vector<4x8x8xbf16>, vector<4x8x16xbf16>, vector<4x8x16xf32> -> vector<4x8x16xf32>
    %cst_67 = arith.constant 0.353553385 : f32
    %201 = vector.broadcast %cst_67 : f32 to vector<4x8x16xf32>
    %202 = arith.mulf %200, %201 : vector<4x8x16xf32>
    %cst_68 = arith.constant dense<0xFF800000> : vector<4x8xf32>
    %203 = vector.multi_reduction <maximumf>, %202, %cst_68 [2] : vector<4x8x16xf32> to vector<4x8xf32>
    %204 = vector.shape_cast %203 : vector<4x8xf32> to vector<4x8x1xf32>
    %205 = vector.broadcast %204 : vector<4x8x1xf32> to vector<4x8x16xf32>
    %206 = arith.subf %202, %205 : vector<4x8x16xf32>
    %207 = math.exp %206 : vector<4x8x16xf32>
    %cst_69 = arith.constant dense<0.000000e+00> : vector<4x8xf32>
    %208 = vector.multi_reduction <add>, %207, %cst_69 [2] : vector<4x8x16xf32> to vector<4x8xf32>
    %209 = vector.shape_cast %208 : vector<4x8xf32> to vector<4x8x1xf32>
    %210 = tpu.reciprocal %209 {approx = true} : vector<4x8x1xf32> -> vector<4x8x1xf32>
    %211 = vector.broadcast %210 : vector<4x8x1xf32> to vector<4x8x16xf32>
    %212 = arith.mulf %207, %211 : vector<4x8x16xf32>
    %213 = arith.truncf %212 : vector<4x8x16xf32> to vector<4x8x16xbf16>
    %cst_70 = arith.constant dense<0.000000e+00> : vector<4x8x8xf32>
    %214 = tpu.matmul %213, %199, %cst_70 {dimension_numbers = #tpu.dot_dimension_numbers<[2], [1], [1], [2], [0, 0, 0, 1, 1, 2], [0], [0]>} : vector<4x8x16xbf16>, vector<4x16x8xbf16>, vector<4x8x8xf32> -> vector<4x8x8xf32>
    %215 = vector.extract_strided_slice %214 {offsets = [0, 0, 0], sizes = [1, 8, 8], strides = [1, 1, 1]} : vector<4x8x8xf32> to vector<1x8x8xf32>
    %216 = vector.shape_cast %215 : vector<1x8x8xf32> to vector<8x8xf32>
    %217 = vector.extract_strided_slice %214 {offsets = [1, 0, 0], sizes = [1, 8, 8], strides = [1, 1, 1]} : vector<4x8x8xf32> to vector<1x8x8xf32>
    %218 = vector.shape_cast %217 : vector<1x8x8xf32> to vector<8x8xf32>
    %219 = vector.extract_strided_slice %214 {offsets = [2, 0, 0], sizes = [1, 8, 8], strides = [1, 1, 1]} : vector<4x8x8xf32> to vector<1x8x8xf32>
    %220 = vector.shape_cast %219 : vector<1x8x8xf32> to vector<8x8xf32>
    %221 = vector.extract_strided_slice %214 {offsets = [3, 0, 0], sizes = [1, 8, 8], strides = [1, 1, 1]} : vector<4x8x8xf32> to vector<1x8x8xf32>
    %222 = vector.shape_cast %221 : vector<1x8x8xf32> to vector<8x8xf32>
    %223 = tpu.concatenate %216, %218, %220, %222 in 1 : vector<8x8xf32>, vector<8x8xf32>, vector<8x8xf32>, vector<8x8xf32> -> vector<8x32xf32>
    %224 = arith.truncf %223 : vector<8x32xf32> to vector<8x32xbf16>
    %cst_71 = arith.constant dense<0.000000e+00> : vector<8x32xf32>
    %225 = tpu.matmul %224, %163, %cst_71 {dimension_numbers = #tpu.dot_dimension_numbers<[1], [0], [0], [1], [0, 0, 1, 1], [], []>} : vector<8x32xbf16>, vector<32x32xbf16>, vector<8x32xf32> -> vector<8x32xf32>
    %226 = vector.broadcast %165 : vector<1x32xf32> to vector<8x32xf32>
    %227 = arith.addf %225, %226 : vector<8x32xf32>
    %228 = arith.addf %117, %227 : vector<8x32xf32>
    %c0_72 = arith.constant 0 : index
    %c0_73 = arith.constant 0 : index
    %c0_74 = arith.constant 0 : index
    %229 = vector.load %arg18[%c0_72, %c0_73, %c0_74] : memref<1x1x32xf32, #tpu.memory_space<vmem>>, vector<1x1x32xf32>
    %230 = vector.shape_cast %229 : vector<1x1x32xf32> to vector<1x32xf32>
    %c0_75 = arith.constant 0 : index
    %c0_76 = arith.constant 0 : index
    %c0_77 = arith.constant 0 : index
    %231 = vector.load %arg19[%c0_75, %c0_76, %c0_77] : memref<1x1x32xf32, #tpu.memory_space<vmem>>, vector<1x1x32xf32>
    %232 = vector.shape_cast %231 : vector<1x1x32xf32> to vector<1x32xf32>
    %cst_78 = arith.constant dense<0.000000e+00> : vector<8xf32>
    %233 = vector.multi_reduction <add>, %228, %cst_78 [1] : vector<8x32xf32> to vector<8xf32>
    %234 = vector.shape_cast %233 : vector<8xf32> to vector<8x1xf32>
    %cst_79 = arith.constant 3.200000e+01 : f32
    %235 = vector.broadcast %cst_79 : f32 to vector<8x1xf32>
    %236 = arith.divf %234, %235 : vector<8x1xf32>
    %237 = vector.broadcast %236 : vector<8x1xf32> to vector<8x32xf32>
    %238 = arith.subf %228, %237 : vector<8x32xf32>
    %239 = arith.mulf %238, %238 : vector<8x32xf32>
    %cst_80 = arith.constant dense<0.000000e+00> : vector<8xf32>
    %240 = vector.multi_reduction <add>, %239, %cst_80 [1] : vector<8x32xf32> to vector<8xf32>
    %241 = vector.shape_cast %240 : vector<8xf32> to vector<8x1xf32>
    %cst_81 = arith.constant 3.200000e+01 : f32
    %242 = vector.broadcast %cst_81 : f32 to vector<8x1xf32>
    %243 = arith.divf %241, %242 : vector<8x1xf32>
    %244 = vector.broadcast %236 : vector<8x1xf32> to vector<8x32xf32>
    %245 = arith.subf %228, %244 : vector<8x32xf32>
    %cst_82 = arith.constant 9.99999974E-6 : f32
    %246 = vector.broadcast %cst_82 : f32 to vector<8x1xf32>
    %247 = arith.addf %243, %246 : vector<8x1xf32>
    %248 = math.rsqrt %247 : vector<8x1xf32>
    %249 = vector.broadcast %248 : vector<8x1xf32> to vector<8x32xf32>
    %250 = arith.mulf %245, %249 : vector<8x32xf32>
    %251 = vector.broadcast %230 : vector<1x32xf32> to vector<8x32xf32>
    %252 = arith.mulf %250, %251 : vector<8x32xf32>
    %253 = vector.broadcast %232 : vector<1x32xf32> to vector<8x32xf32>
    %254 = arith.addf %252, %253 : vector<8x32xf32>
    %255 = arith.truncf %254 : vector<8x32xf32> to vector<8x32xbf16>
    %c0_83 = arith.constant 0 : index
    %c0_84 = arith.constant 0 : index
    %c0_85 = arith.constant 0 : index
    %256 = vector.load %arg20[%c0_83, %c0_84, %c0_85] : memref<1x32x64xbf16, #tpu.memory_space<vmem>>, vector<1x32x64xbf16>
    %257 = vector.shape_cast %256 : vector<1x32x64xbf16> to vector<32x64xbf16>
    %cst_86 = arith.constant dense<0.000000e+00> : vector<8x64xf32>
    %258 = tpu.matmul %255, %257, %cst_86 {dimension_numbers = #tpu.dot_dimension_numbers<[1], [0], [0], [1], [0, 0, 1, 1], [], []>} : vector<8x32xbf16>, vector<32x64xbf16>, vector<8x64xf32> -> vector<8x64xf32>
    %c0_87 = arith.constant 0 : index
    %c0_88 = arith.constant 0 : index
    %c0_89 = arith.constant 0 : index
    %259 = vector.load %arg21[%c0_87, %c0_88, %c0_89] : memref<1x1x64xf32, #tpu.memory_space<vmem>>, vector<1x1x64xf32>
    %260 = vector.shape_cast %259 : vector<1x1x64xf32> to vector<1x64xf32>
    %261 = vector.broadcast %260 : vector<1x64xf32> to vector<8x64xf32>
    %262 = arith.addf %258, %261 : vector<8x64xf32>
    %cst_90 = arith.constant 0.000000e+00 : f32
    %263 = vector.broadcast %cst_90 : f32 to vector<8x64xf32>
    %264 = arith.maximumf %262, %263 : vector<8x64xf32>
    %265 = arith.truncf %264 : vector<8x64xf32> to vector<8x64xbf16>
    %c0_91 = arith.constant 0 : index
    %c0_92 = arith.constant 0 : index
    %c0_93 = arith.constant 0 : index
    %266 = vector.load %arg22[%c0_91, %c0_92, %c0_93] : memref<1x64x32xbf16, #tpu.memory_space<vmem>>, vector<1x64x32xbf16>
    %267 = vector.shape_cast %266 : vector<1x64x32xbf16> to vector<64x32xbf16>
    %cst_94 = arith.constant dense<0.000000e+00> : vector<8x32xf32>
    %268 = tpu.matmul %265, %267, %cst_94 {dimension_numbers = #tpu.dot_dimension_numbers<[1], [0], [0], [1], [0, 0, 1, 1], [], []>} : vector<8x64xbf16>, vector<64x32xbf16>, vector<8x32xf32> -> vector<8x32xf32>
    %269 = arith.addf %228, %268 : vector<8x32xf32>
    %c0_95 = arith.constant 0 : index
    %c0_96 = arith.constant 0 : index
    %c0_97 = arith.constant 0 : index
    %270 = vector.load %arg23[%c0_95, %c0_96, %c0_97] : memref<1x1x32xf32, #tpu.memory_space<vmem>>, vector<1x1x32xf32>
    %271 = vector.shape_cast %270 : vector<1x1x32xf32> to vector<1x32xf32>
    %272 = vector.broadcast %271 : vector<1x32xf32> to vector<8x32xf32>
    %273 = arith.addf %269, %272 : vector<8x32xf32>
    %c0_98 = arith.constant 0 : index
    %c0_99 = arith.constant 0 : index
    %274 = vector.load %arg30[%c0_98, %c0_99] : memref<8x32xf32, #tpu.memory_space<vmem>>, vector<8x32xf32>
    tpu.vector_store %arg30[%c0_98, %c0_99], %273 {strides = array<i32>} : memref<8x32xf32, #tpu.memory_space<vmem>>, vector<8x32xf32>,
    %c1_i32 = arith.constant 1 : i32
    %275 = arith.cmpi eq, %arg1, %c1_i32 : i32
    %276 = arith.extui %275 : i1 to i32
    %c0_i32_100 = arith.constant 0 : i32
    %277 = arith.cmpi ne, %276, %c0_i32_100 : i32
    scf.if %277 {
      %c0_101 = arith.constant 0 : index
      %c0_102 = arith.constant 0 : index
      %278 = vector.load %arg24[%c0_101, %c0_102] : memref<1x32xf32, #tpu.memory_space<vmem>>, vector<1x32xf32>
      %c0_103 = arith.constant 0 : index
      %c0_104 = arith.constant 0 : index
      %279 = vector.load %arg25[%c0_103, %c0_104] : memref<1x32xf32, #tpu.memory_space<vmem>>, vector<1x32xf32>
      %cst_105 = arith.constant dense<0.000000e+00> : vector<8xf32>
      %280 = vector.multi_reduction <add>, %273, %cst_105 [1] : vector<8x32xf32> to vector<8xf32>
      %281 = vector.shape_cast %280 : vector<8xf32> to vector<8x1xf32>
      %cst_106 = arith.constant 3.200000e+01 : f32
      %282 = vector.broadcast %cst_106 : f32 to vector<8x1xf32>
      %283 = arith.divf %281, %282 : vector<8x1xf32>
      %284 = vector.broadcast %283 : vector<8x1xf32> to vector<8x32xf32>
      %285 = arith.subf %273, %284 : vector<8x32xf32>
      %286 = arith.mulf %285, %285 : vector<8x32xf32>
      %cst_107 = arith.constant dense<0.000000e+00> : vector<8xf32>
      %287 = vector.multi_reduction <add>, %286, %cst_107 [1] : vector<8x32xf32> to vector<8xf32>
      %288 = vector.shape_cast %287 : vector<8xf32> to vector<8x1xf32>
      %cst_108 = arith.constant 3.200000e+01 : f32
      %289 = vector.broadcast %cst_108 : f32 to vector<8x1xf32>
      %290 = arith.divf %288, %289 : vector<8x1xf32>
      %291 = vector.broadcast %283 : vector<8x1xf32> to vector<8x32xf32>
      %292 = arith.subf %273, %291 : vector<8x32xf32>
      %cst_109 = arith.constant 9.99999974E-6 : f32
      %293 = vector.broadcast %cst_109 : f32 to vector<8x1xf32>
      %294 = arith.addf %290, %293 : vector<8x1xf32>
      %295 = math.rsqrt %294 : vector<8x1xf32>
      %296 = vector.broadcast %295 : vector<8x1xf32> to vector<8x32xf32>
      %297 = arith.mulf %292, %296 : vector<8x32xf32>
      %298 = vector.broadcast %278 : vector<1x32xf32> to vector<8x32xf32>
      %299 = arith.mulf %297, %298 : vector<8x32xf32>
      %300 = vector.broadcast %279 : vector<1x32xf32> to vector<8x32xf32>
      %301 = arith.addf %299, %300 : vector<8x32xf32>
      %302 = arith.truncf %301 : vector<8x32xf32> to vector<8x32xbf16>
      %c0_110 = arith.constant 0 : index
      %c0_111 = arith.constant 0 : index
      %303 = vector.load %arg26[%c0_110, %c0_111] : memref<32x128xbf16, #tpu.memory_space<vmem>>, vector<32x128xbf16>
      %cst_112 = arith.constant dense<0.000000e+00> : vector<8x128xf32>
      %304 = tpu.matmul %302, %303, %cst_112 {dimension_numbers = #tpu.dot_dimension_numbers<[1], [0], [0], [1], [0, 0, 1, 1], [], []>} : vector<8x32xbf16>, vector<32x128xbf16>, vector<8x128xf32> -> vector<8x128xf32>
      %c0_113 = arith.constant 0 : index
      %c0_114 = arith.constant 0 : index
      %305 = vector.load %arg27[%c0_113, %c0_114] : memref<1x128xf32, #tpu.memory_space<vmem>>, vector<1x128xf32>
      %306 = vector.broadcast %305 : vector<1x128xf32> to vector<8x128xf32>
      %307 = arith.addf %304, %306 : vector<8x128xf32>
      %308 = tpu.iota {dimensions = array<i32: 1>} : vector<8x128xi32>
      %c12_i32 = arith.constant 12 : i32
      %309 = vector.broadcast %c12_i32 : i32 to vector<8x128xi32>
      %310 = arith.cmpi slt, %308, %309 : vector<8x128xi32>
      %cst_115 = arith.constant -1.000000e+09 : f32
      %311 = vector.broadcast %cst_115 : f32 to vector<8x128xf32>
      %312 = arith.select %310, %307, %311 : vector<8x128xi1>, vector<8x128xf32>
      %cst_116 = arith.constant dense<0xFF800000> : vector<8xf32>
      %313 = vector.multi_reduction <maximumf>, %312, %cst_116 [1] : vector<8x128xf32> to vector<8xf32>
      %314 = vector.shape_cast %313 : vector<8xf32> to vector<8x1xf32>
      %315 = vector.broadcast %314 : vector<8x1xf32> to vector<8x128xf32>
      %316 = arith.subf %312, %315 : vector<8x128xf32>
      %317 = math.exp %316 : vector<8x128xf32>
      %cst_117 = arith.constant dense<0.000000e+00> : vector<8xf32>
      %318 = vector.multi_reduction <add>, %317, %cst_117 [1] : vector<8x128xf32> to vector<8xf32>
      %319 = vector.shape_cast %318 : vector<8xf32> to vector<8x1xf32>
      %320 = vector.broadcast %319 : vector<8x1xf32> to vector<8x128xf32>
      %321 = arith.divf %317, %320 : vector<8x128xf32>
      %c0_118 = arith.constant 0 : index
      %c0_119 = arith.constant 0 : index
      %c0_120 = arith.constant 0 : index
      %322 = vector.load %arg28[%c0_118, %c0_119, %c0_120] : memref<1x8x128xf32, #tpu.memory_space<vmem>>, vector<1x8x128xf32>
      %323 = vector.shape_cast %322 : vector<1x8x128xf32> to vector<8x128xf32>
      %324 = vector.shape_cast %307 : vector<8x128xf32> to vector<1x8x128xf32>
      tpu.vector_store %arg28[%c0_118, %c0_119, %c0_120], %324 {strides = array<i32>} : memref<1x8x128xf32, #tpu.memory_space<vmem>>, vector<1x8x128xf32>,
      %c0_121 = arith.constant 0 : index
      %c0_122 = arith.constant 0 : index
      %c0_123 = arith.constant 0 : index
      %325 = vector.load %arg29[%c0_121, %c0_122, %c0_123] : memref<1x8x128xf32, #tpu.memory_space<vmem>>, vector<1x8x128xf32>
      %326 = vector.shape_cast %325 : vector<1x8x128xf32> to vector<8x128xf32>
      %327 = vector.shape_cast %321 : vector<8x128xf32> to vector<1x8x128xf32>
      tpu.vector_store %arg29[%c0_121, %c0_122, %c0_123], %327 {strides = array<i32>} : memref<1x8x128xf32, #tpu.memory_space<vmem>>, vector<1x8x128xf32>,
    } else {
    }
    return
  }
  func.func @transform_0(%arg0: i32, %arg1: i32) -> (i32, i32, i32) {
    %c0_i32 = arith.constant 0 : i32
    %c0_i32_0 = arith.constant 0 : i32
    %c0_i32_1 = arith.constant 0 : i32
    return %arg0, %c0_i32, %c0_i32_0 : i32, i32, i32
  }
  func.func @transform_1(%arg0: i32, %arg1: i32) -> (i32, i32, i32) {
    %c0_i32 = arith.constant 0 : i32
    %c0_i32_0 = arith.constant 0 : i32
    %c0_i32_1 = arith.constant 0 : i32
    return %arg0, %c0_i32, %c0_i32_0 : i32, i32, i32
  }
  func.func @transform_2(%arg0: i32, %arg1: i32) -> (i32, i32, i32) {
    %c0_i32 = arith.constant 0 : i32
    %c0_i32_0 = arith.constant 0 : i32
    %c0_i32_1 = arith.constant 0 : i32
    return %arg1, %c0_i32, %c0_i32_0 : i32, i32, i32
  }
  func.func @transform_3(%arg0: i32, %arg1: i32) -> (i32, i32, i32) {
    %c0_i32 = arith.constant 0 : i32
    %c0_i32_0 = arith.constant 0 : i32
    %c0_i32_1 = arith.constant 0 : i32
    return %arg1, %c0_i32, %c0_i32_0 : i32, i32, i32
  }
  func.func @transform_4(%arg0: i32, %arg1: i32) -> (i32, i32, i32) {
    %c0_i32 = arith.constant 0 : i32
    %c0_i32_0 = arith.constant 0 : i32
    %c0_i32_1 = arith.constant 0 : i32
    return %arg1, %c0_i32, %c0_i32_0 : i32, i32, i32
  }
  func.func @transform_5(%arg0: i32, %arg1: i32) -> (i32, i32, i32) {
    %c0_i32 = arith.constant 0 : i32
    %c0_i32_0 = arith.constant 0 : i32
    %c0_i32_1 = arith.constant 0 : i32
    return %arg1, %c0_i32, %c0_i32_0 : i32, i32, i32
  }
  func.func @transform_6(%arg0: i32, %arg1: i32) -> (i32, i32, i32) {
    %c0_i32 = arith.constant 0 : i32
    %c0_i32_0 = arith.constant 0 : i32
    %c0_i32_1 = arith.constant 0 : i32
    return %arg1, %c0_i32, %c0_i32_0 : i32, i32, i32
  }
  func.func @transform_7(%arg0: i32, %arg1: i32) -> (i32, i32, i32) {
    %c0_i32 = arith.constant 0 : i32
    %c0_i32_0 = arith.constant 0 : i32
    %c0_i32_1 = arith.constant 0 : i32
    return %arg1, %c0_i32, %c0_i32_0 : i32, i32, i32
  }
  func.func @transform_8(%arg0: i32, %arg1: i32) -> (i32, i32, i32) {
    %c0_i32 = arith.constant 0 : i32
    %c0_i32_0 = arith.constant 0 : i32
    %c0_i32_1 = arith.constant 0 : i32
    return %arg1, %c0_i32, %c0_i32_0 : i32, i32, i32
  }
  func.func @transform_9(%arg0: i32, %arg1: i32) -> (i32, i32, i32) {
    %c0_i32 = arith.constant 0 : i32
    %c0_i32_0 = arith.constant 0 : i32
    %c0_i32_1 = arith.constant 0 : i32
    return %arg1, %c0_i32, %c0_i32_0 : i32, i32, i32
  }
  func.func @transform_10(%arg0: i32, %arg1: i32) -> (i32, i32, i32) {
    %c0_i32 = arith.constant 0 : i32
    %c0_i32_0 = arith.constant 0 : i32
    %c0_i32_1 = arith.constant 0 : i32
    return %arg1, %c0_i32, %c0_i32_0 : i32, i32, i32
  }
  func.func @transform_11(%arg0: i32, %arg1: i32) -> (i32, i32, i32) {
    %c0_i32 = arith.constant 0 : i32
    %c0_i32_0 = arith.constant 0 : i32
    %c0_i32_1 = arith.constant 0 : i32
    return %arg1, %c0_i32, %c0_i32_0 : i32, i32, i32
  }
  func.func @transform_12(%arg0: i32, %arg1: i32) -> (i32, i32, i32) {
    %c0_i32 = arith.constant 0 : i32
    %c0_i32_0 = arith.constant 0 : i32
    %c0_i32_1 = arith.constant 0 : i32
    return %arg1, %c0_i32, %c0_i32_0 : i32, i32, i32
  }
  func.func @transform_13(%arg0: i32, %arg1: i32) -> (i32, i32, i32) {
    %c0_i32 = arith.constant 0 : i32
    %c0_i32_0 = arith.constant 0 : i32
    %c0_i32_1 = arith.constant 0 : i32
    return %arg1, %c0_i32, %c0_i32_0 : i32, i32, i32
  }
  func.func @transform_14(%arg0: i32, %arg1: i32) -> (i32, i32, i32) {
    %c0_i32 = arith.constant 0 : i32
    %c0_i32_0 = arith.constant 0 : i32
    %c0_i32_1 = arith.constant 0 : i32
    return %arg1, %c0_i32, %c0_i32_0 : i32, i32, i32
  }
  func.func @transform_15(%arg0: i32, %arg1: i32) -> (i32, i32, i32) {
    %c0_i32 = arith.constant 0 : i32
    %c0_i32_0 = arith.constant 0 : i32
    %c0_i32_1 = arith.constant 0 : i32
    return %arg1, %c0_i32, %c0_i32_0 : i32, i32, i32
  }
  func.func @transform_16(%arg0: i32, %arg1: i32) -> (i32, i32, i32) {
    %c0_i32 = arith.constant 0 : i32
    %c0_i32_0 = arith.constant 0 : i32
    %c0_i32_1 = arith.constant 0 : i32
    return %arg1, %c0_i32, %c0_i32_0 : i32, i32, i32
  }
  func.func @transform_17(%arg0: i32, %arg1: i32) -> (i32, i32, i32) {
    %c0_i32 = arith.constant 0 : i32
    %c0_i32_0 = arith.constant 0 : i32
    %c0_i32_1 = arith.constant 0 : i32
    return %arg1, %c0_i32, %c0_i32_0 : i32, i32, i32
  }
  func.func @transform_18(%arg0: i32, %arg1: i32) -> (i32, i32, i32) {
    %c0_i32 = arith.constant 0 : i32
    %c0_i32_0 = arith.constant 0 : i32
    %c0_i32_1 = arith.constant 0 : i32
    return %arg1, %c0_i32, %c0_i32_0 : i32, i32, i32
  }
  func.func @transform_19(%arg0: i32, %arg1: i32) -> (i32, i32, i32) {
    %c0_i32 = arith.constant 0 : i32
    %c0_i32_0 = arith.constant 0 : i32
    %c0_i32_1 = arith.constant 0 : i32
    return %arg1, %c0_i32, %c0_i32_0 : i32, i32, i32
  }
  func.func @transform_20(%arg0: i32, %arg1: i32) -> (i32, i32, i32) {
    %c0_i32 = arith.constant 0 : i32
    %c0_i32_0 = arith.constant 0 : i32
    %c0_i32_1 = arith.constant 0 : i32
    return %arg1, %c0_i32, %c0_i32_0 : i32, i32, i32
  }
  func.func @transform_21(%arg0: i32, %arg1: i32) -> (i32, i32, i32) {
    %c0_i32 = arith.constant 0 : i32
    %c0_i32_0 = arith.constant 0 : i32
    %c0_i32_1 = arith.constant 0 : i32
    return %arg1, %c0_i32, %c0_i32_0 : i32, i32, i32
  }
  func.func @transform_22(%arg0: i32, %arg1: i32) -> (i32, i32) {
    %c0_i32 = arith.constant 0 : i32
    %c0_i32_0 = arith.constant 0 : i32
    %c0_i32_1 = arith.constant 0 : i32
    return %c0_i32, %c0_i32_0 : i32, i32
  }
  func.func @transform_23(%arg0: i32, %arg1: i32) -> (i32, i32) {
    %c0_i32 = arith.constant 0 : i32
    %c0_i32_0 = arith.constant 0 : i32
    %c0_i32_1 = arith.constant 0 : i32
    return %c0_i32, %c0_i32_0 : i32, i32
  }
  func.func @transform_24(%arg0: i32, %arg1: i32) -> (i32, i32) {
    %c0_i32 = arith.constant 0 : i32
    %c0_i32_0 = arith.constant 0 : i32
    %c0_i32_1 = arith.constant 0 : i32
    return %c0_i32, %c0_i32_0 : i32, i32
  }
  func.func @transform_25(%arg0: i32, %arg1: i32) -> (i32, i32) {
    %c0_i32 = arith.constant 0 : i32
    %c0_i32_0 = arith.constant 0 : i32
    %c0_i32_1 = arith.constant 0 : i32
    return %c0_i32, %c0_i32_0 : i32, i32
  }
  func.func @transform_26(%arg0: i32, %arg1: i32) -> (i32, i32, i32) {
    %c0_i32 = arith.constant 0 : i32
    %c0_i32_0 = arith.constant 0 : i32
    %c0_i32_1 = arith.constant 0 : i32
    return %arg0, %c0_i32, %c0_i32_0 : i32, i32, i32
  }
  func.func @transform_27(%arg0: i32, %arg1: i32) -> (i32, i32, i32) {
    %c0_i32 = arith.constant 0 : i32
    %c0_i32_0 = arith.constant 0 : i32
    %c0_i32_1 = arith.constant 0 : i32
    return %arg0, %c0_i32, %c0_i32_0 : i32, i32, i32
  }
}

</mosaic_0001>

<llo_original>
// kernel: cnn_transformer_forward.2
$region0: #{cnn_transformer_forward.2}
  #allocation0 [shape = 'u32[]', space=smem, size = 0x4, offset = 0x4, fixed_abs, tag = 'smem constant byte address 0x4 - core index']
  #allocation1 [shape = 'u32[144,128]{1,0:T(1,128)}', space=vmem, size = 0x12000, scoped, tag = 'internal scratch']
  #allocation2 [shape = 'f32[16,32]{1,0:T(8,128)}', space=vmem, size = 0x2000, scoped, tag = 'scratch operand']
  %s0 = inlined_call_operand.vmem [shape: f32[2,16,24], index: 0, kind: input, shape index: {}]
  %s1 = inlined_call_operand.vmem [shape: bf16[24,32], index: 1, kind: input, shape index: {}]
  %s2 = inlined_call_operand.vmem [shape: f32[1,32], index: 2, kind: input, shape index: {}]
  %s3 = inlined_call_operand.vmem [shape: f32[16,32], index: 3, kind: input, shape index: {}]
  %s4 = inlined_call_operand.vmem [shape: f32[2,1,32], index: 4, kind: input, shape index: {}]
  %s5 = inlined_call_operand.vmem [shape: f32[2,1,32], index: 5, kind: input, shape index: {}]
  %s6 = inlined_call_operand.vmem [shape: bf16[2,32,96], index: 6, kind: input, shape index: {}]
  %s7 = inlined_call_operand.vmem [shape: f32[2,1,96], index: 7, kind: input, shape index: {}]
  %s8 = inlined_call_operand.vmem [shape: bf16[2,32,32], index: 8, kind: input, shape index: {}]
  %s9 = inlined_call_operand.vmem [shape: f32[2,1,32], index: 9, kind: input, shape index: {}]
  %s10 = inlined_call_operand.vmem [shape: f32[2,1,32], index: 10, kind: input, shape index: {}]
  %s11 = inlined_call_operand.vmem [shape: f32[2,1,32], index: 11, kind: input, shape index: {}]
  %s12 = inlined_call_operand.vmem [shape: bf16[2,32,64], index: 12, kind: input, shape index: {}]
  %s13 = inlined_call_operand.vmem [shape: f32[2,1,64], index: 13, kind: input, shape index: {}]
  %s14 = inlined_call_operand.vmem [shape: bf16[2,64,32], index: 14, kind: input, shape index: {}]
  %s15 = inlined_call_operand.vmem [shape: f32[2,1,32], index: 15, kind: input, shape index: {}]
  %s16 = inlined_call_operand.vmem [shape: f32[1,32], index: 16, kind: input, shape index: {}]
  %s17 = inlined_call_operand.vmem [shape: f32[1,32], index: 17, kind: input, shape index: {}]
  %s18 = inlined_call_operand.vmem [shape: f32[2,16,32], index: 18, kind: output, shape index: {}]
  %s19 = sld [smem:[#allocation0]]
  $region113: #{cnn_transformer_forward.2} parent=0
    _
  %s21 = ssub.s32 1, %s19
  %s22 = scalar_select 0, %s21, %s19
  loop: start=0, step=1, limit=6
  $region2: #{cnn_transformer_forward.2} parent=0 // loop_pre_header
    _
  $region3: #{cnn_transformer_forward.2} parent=0 // loop_header
    %s24 = sphi 0, %s28
    %p25 = scmp.ge.s32.totalorder %s24, 6
    %s31 = sphi 0, %s43
    %s32 = sphi 0, %s39
    %s33 = sphi 0, %s31
    %s34 = sphi 0, %s32
    %s35 = sphi 0, %s33
    %s36 = sphi 0, %s34
    %s46 = sphi 0, %s48
    %s49 = sphi 0, %s46
    %s50 = sphi 0, %s49
    %s66 = sphi 0, %s50
    %s70 = sphi 0, %s70
    %s72 = sphi 0, %s70
    %s73 = sphi 0, %s72
    %s87 = sphi 0, %s73
    %s91 = sphi 0, %s91
    %s93 = sphi 0, %s91
    %s94 = sphi 0, %s93
    %s108 = sphi 0, %s94
    %s112 = sphi 0, %s112
    %s114 = sphi 0, %s112
    %s115 = sphi 0, %s114
    %s129 = sphi 0, %s115
    %s135 = sphi 0, %s137
    %s138 = sphi 0, %s135
    %s139 = sphi 0, %s138
    %s155 = sphi 0, %s139
    %s161 = sphi 0, %s163
    %s164 = sphi 0, %s161
    %s165 = sphi 0, %s164
    %s181 = sphi 0, %s165
    %s187 = sphi 0, %s189
    %s190 = sphi 0, %s187
    %s191 = sphi 0, %s190
    %s207 = sphi 0, %s191
    %s213 = sphi 0, %s215
    %s216 = sphi 0, %s213
    %s217 = sphi 0, %s216
    %s233 = sphi 0, %s217
    %s239 = sphi 0, %s241
    %s242 = sphi 0, %s239
    %s243 = sphi 0, %s242
    %s259 = sphi 0, %s243
    %s265 = sphi 0, %s267
    %s268 = sphi 0, %s265
    %s269 = sphi 0, %s268
    %s285 = sphi 0, %s269
    %s291 = sphi 0, %s293
    %s294 = sphi 0, %s291
    %s295 = sphi 0, %s294
    %s311 = sphi 0, %s295
    %s317 = sphi 0, %s319
    %s320 = sphi 0, %s317
    %s321 = sphi 0, %s320
    %s337 = sphi 0, %s321
    %s343 = sphi 0, %s345
    %s346 = sphi 0, %s343
    %s347 = sphi 0, %s346
    %s363 = sphi 0, %s347
    %s369 = sphi 0, %s371
    %s372 = sphi 0, %s369
    %s373 = sphi 0, %s372
    %s389 = sphi 0, %s373
    %s395 = sphi 0, %s397
    %s398 = sphi 0, %s395
    %s399 = sphi 0, %s398
    %s415 = sphi 0, %s399
    %s421 = sphi 0, %s423
    %s424 = sphi 0, %s421
    %s425 = sphi 0, %s424
    %s441 = sphi 0, %s425
    %s445 = sphi 0, %s445
    %s447 = sphi 0, %s445
    %s448 = sphi 0, %s447
    %s462 = sphi 0, %s448
    %s466 = sphi 0, %s466
    %s468 = sphi 0, %s466
    %s469 = sphi 0, %s468
    %s483 = sphi 0, %s469
    %s489 = sphi 0, %s491
    %s492 = sphi 0, %s489
    %s493 = sphi 0, %s492
    %s509 = sphi 0, %s493
  $region4: #{cnn_transformer_forward.2} parent=0 // loop_header_branch
    %27 = sbr.rel (%p25) target = $region8
  $region5: #{cnn_transformer_forward.2} parent=0 // loop_body
    %s29 = ssub.s32 %s24, 1
    %s30 = ssub.s32 %s24, 2
    %s37 = sadd.s32 1, %s32
    %p38 = scmp.ge.s32.totalorder %s37, 2
    %s39 = scalar_select %p38, 0, %s37
    %s40 = sadd.s32 1, %s31
    %s41 = scalar_select %p38, %s40, %s31
    %p42 = scmp.ge.s32.totalorder %s41, 2
    %s43 = scalar_select %p42, 0, %s41
    %s44 = ssub.s32 %s31, %s43
    %p45 = scmp.eq.s32.totalorder %s44, 0
    %s47 = sadd.s32 %s46, 1
    %s48 = scalar_select %p45, %s46, %s47
    %p51 = pneg %p45
    %p52 = scmp.eq.s32.totalorder %s24, 3
    %p53 = por %p51, %p52
    %p54 = scmp.ne.s32.totalorder %s46, %s49
    %p55 = scmp.eq.s32.totalorder %s24, 0
    %p56 = por %p54, %p55
    %p57 = scmp.ne.s32.totalorder %s46, %s49
    %p58 = scmp.eq.s32.totalorder %s29, 3
    %p59 = por %p57, %p58
    %p60 = scmp.ne.s32.totalorder %s49, %s50
    %p61 = scmp.eq.s32.totalorder %s29, 0
    %p62 = por %p60, %p61
    %p63 = scmp.ne.s32.totalorder %s49, %s50
    %p64 = scmp.eq.s32.totalorder %s30, 3
    %p65 = por %p63, %p64
    %p67 = scmp.ne.s32.totalorder %s50, %s66
    %p68 = scmp.eq.s32.totalorder %s30, 0
    %p69 = por %p67, %p68
    %s71 = sadd.s32 %s70, 1
    %p74 = scmp.eq.s32.totalorder %s24, 3
    %p75 = scmp.ne.s32.totalorder %s70, %s72
    %p76 = scmp.eq.s32.totalorder %s24, 0
    %p77 = por %p75, %p76
    %p78 = scmp.ne.s32.totalorder %s70, %s72
    %p79 = scmp.eq.s32.totalorder %s29, 3
    %p80 = por %p78, %p79
    %p81 = scmp.ne.s32.totalorder %s72, %s73
    %p82 = scmp.eq.s32.totalorder %s29, 0
    %p83 = por %p81, %p82
    %p84 = scmp.ne.s32.totalorder %s72, %s73
    %p85 = scmp.eq.s32.totalorder %s30, 3
    %p86 = por %p84, %p85
    %p88 = scmp.ne.s32.totalorder %s73, %s87
    %p89 = scmp.eq.s32.totalorder %s30, 0
    %p90 = por %p88, %p89
    %s92 = sadd.s32 %s91, 1
    %p95 = scmp.eq.s32.totalorder %s24, 3
    %p96 = scmp.ne.s32.totalorder %s91, %s93
    %p97 = scmp.eq.s32.totalorder %s24, 0
    %p98 = por %p96, %p97
    %p99 = scmp.ne.s32.totalorder %s91, %s93
    %p100 = scmp.eq.s32.totalorder %s29, 3
    %p101 = por %p99, %p100
    %p102 = scmp.ne.s32.totalorder %s93, %s94
    %p103 = scmp.eq.s32.totalorder %s29, 0
    %p104 = por %p102, %p103
    %p105 = scmp.ne.s32.totalorder %s93, %s94
    %p106 = scmp.eq.s32.totalorder %s30, 3
    %p107 = por %p105, %p106
    %p109 = scmp.ne.s32.totalorder %s94, %s108
    %p110 = scmp.eq.s32.totalorder %s30, 0
    %p111 = por %p109, %p110
    %s113 = sadd.s32 %s112, 1
    %p116 = scmp.eq.s32.totalorder %s24, 3
    %p117 = scmp.ne.s32.totalorder %s112, %s114
    %p118 = scmp.eq.s32.totalorder %s24, 0
    %p119 = por %p117, %p118
    %p120 = scmp.ne.s32.totalorder %s112, %s114
    %p121 = scmp.eq.s32.totalorder %s29, 3
    %p122 = por %p120, %p121
    %p123 = scmp.ne.s32.totalorder %s114, %s115
    %p124 = scmp.eq.s32.totalorder %s29, 0
    %p125 = por %p123, %p124
    %p126 = scmp.ne.s32.totalorder %s114, %s115
    %p127 = scmp.eq.s32.totalorder %s30, 3
    %p128 = por %p126, %p127
    %p130 = scmp.ne.s32.totalorder %s115, %s129
    %p131 = scmp.eq.s32.totalorder %s30, 0
    %p132 = por %p130, %p131
    %s133 = ssub.s32 %s32, %s39
    %p134 = scmp.eq.s32.totalorder %s133, 0
    %s136 = sadd.s32 %s135, 1
    %s137 = scalar_select %p134, %s135, %s136
    %p140 = pneg %p134
    %p141 = scmp.eq.s32.totalorder %s24, 3
    %p142 = por %p140, %p141
    %p143 = scmp.ne.s32.totalorder %s135, %s138
    %p144 = scmp.eq.s32.totalorder %s24, 0
    %p145 = por %p143, %p144
    %p146 = scmp.ne.s32.totalorder %s135, %s138
    %p147 = scmp.eq.s32.totalorder %s29, 3
    %p148 = por %p146, %p147
    %p149 = scmp.ne.s32.totalorder %s138, %s139
    %p150 = scmp.eq.s32.totalorder %s29, 0
    %p151 = por %p149, %p150
    %p152 = scmp.ne.s32.totalorder %s138, %s139
    %p153 = scmp.eq.s32.totalorder %s30, 3
    %p154 = por %p152, %p153
    %p156 = scmp.ne.s32.totalorder %s139, %s155
    %p157 = scmp.eq.s32.totalorder %s30, 0
    %p158 = por %p156, %p157
    %s159 = ssub.s32 %s32, %s39
    %p160 = scmp.eq.s32.totalorder %s159, 0
    %s162 = sadd.s32 %s161, 1
    %s163 = scalar_select %p160, %s161, %s162
    %p166 = pneg %p160
    %p167 = scmp.eq.s32.totalorder %s24, 3
    %p168 = por %p166, %p167
    %p169 = scmp.ne.s32.totalorder %s161, %s164
    %p170 = scmp.eq.s32.totalorder %s24, 0
    %p171 = por %p169, %p170
    %p172 = scmp.ne.s32.totalorder %s161, %s164
    %p173 = scmp.eq.s32.totalorder %s29, 3
    %p174 = por %p172, %p173
    %p175 = scmp.ne.s32.totalorder %s164, %s165
    %p176 = scmp.eq.s32.totalorder %s29, 0
    %p177 = por %p175, %p176
    %p178 = scmp.ne.s32.totalorder %s164, %s165
    %p179 = scmp.eq.s32.totalorder %s30, 3
    %p180 = por %p178, %p179
    %p182 = scmp.ne.s32.totalorder %s165, %s181
    %p183 = scmp.eq.s32.totalorder %s30, 0
    %p184 = por %p182, %p183
    %s185 = ssub.s32 %s32, %s39
    %p186 = scmp.eq.s32.totalorder %s185, 0
    %s188 = sadd.s32 %s187, 1
    %s189 = scalar_select %p186, %s187, %s188
    %p192 = pneg %p186
    %p193 = scmp.eq.s32.totalorder %s24, 3
    %p194 = por %p192, %p193
    %p195 = scmp.ne.s32.totalorder %s187, %s190
    %p196 = scmp.eq.s32.totalorder %s24, 0
    %p197 = por %p195, %p196
    %p198 = scmp.ne.s32.totalorder %s187, %s190
    %p199 = scmp.eq.s32.totalorder %s29, 3
    %p200 = por %p198, %p199
    %p201 = scmp.ne.s32.totalorder %s190, %s191
    %p202 = scmp.eq.s32.totalorder %s29, 0
    %p203 = por %p201, %p202
    %p204 = scmp.ne.s32.totalorder %s190, %s191
    %p205 = scmp.eq.s32.totalorder %s30, 3
    %p206 = por %p204, %p205
    %p208 = scmp.ne.s32.totalorder %s191, %s207
    %p209 = scmp.eq.s32.totalorder %s30, 0
    %p210 = por %p208, %p209
    %s211 = ssub.s32 %s32, %s39
    %p212 = scmp.eq.s32.totalorder %s211, 0
    %s214 = sadd.s32 %s213, 1
    %s215 = scalar_select %p212, %s213, %s214
    %p218 = pneg %p212
    %p219 = scmp.eq.s32.totalorder %s24, 3
    %p220 = por %p218, %p219
    %p221 = scmp.ne.s32.totalorder %s213, %s216
    %p222 = scmp.eq.s32.totalorder %s24, 0
    %p223 = por %p221, %p222
    %p224 = scmp.ne.s32.totalorder %s213, %s216
    %p225 = scmp.eq.s32.totalorder %s29, 3
    %p226 = por %p224, %p225
    %p227 = scmp.ne.s32.totalorder %s216, %s217
    %p228 = scmp.eq.s32.totalorder %s29, 0
    %p229 = por %p227, %p228
    %p230 = scmp.ne.s32.totalorder %s216, %s217
    %p231 = scmp.eq.s32.totalorder %s30, 3
    %p232 = por %p230, %p231
    %p234 = scmp.ne.s32.totalorder %s217, %s233
    %p235 = scmp.eq.s32.totalorder %s30, 0
    %p236 = por %p234, %p235
    %s237 = ssub.s32 %s32, %s39
    %p238 = scmp.eq.s32.totalorder %s237, 0
    %s240 = sadd.s32 %s239, 1
    %s241 = scalar_select %p238, %s239, %s240
    %p244 = pneg %p238
    %p245 = scmp.eq.s32.totalorder %s24, 3
    %p246 = por %p244, %p245
    %p247 = scmp.ne.s32.totalorder %s239, %s242
    %p248 = scmp.eq.s32.totalorder %s24, 0
    %p249 = por %p247, %p248
    %p250 = scmp.ne.s32.totalorder %s239, %s242
    %p251 = scmp.eq.s32.totalorder %s29, 3
    %p252 = por %p250, %p251
    %p253 = scmp.ne.s32.totalorder %s242, %s243
    %p254 = scmp.eq.s32.totalorder %s29, 0
    %p255 = por %p253, %p254
    %p256 = scmp.ne.s32.totalorder %s242, %s243
    %p257 = scmp.eq.s32.totalorder %s30, 3
    %p258 = por %p256, %p257
    %p260 = scmp.ne.s32.totalorder %s243, %s259
    %p261 = scmp.eq.s32.totalorder %s30, 0
    %p262 = por %p260, %p261
    %s263 = ssub.s32 %s32, %s39
    %p264 = scmp.eq.s32.totalorder %s263, 0
    %s266 = sadd.s32 %s265, 1
    %s267 = scalar_select %p264, %s265, %s266
    %p270 = pneg %p264
    %p271 = scmp.eq.s32.totalorder %s24, 3
    %p272 = por %p270, %p271
    %p273 = scmp.ne.s32.totalorder %s265, %s268
    %p274 = scmp.eq.s32.totalorder %s24, 0
    %p275 = por %p273, %p274
    %p276 = scmp.ne.s32.totalorder %s265, %s268
    %p277 = scmp.eq.s32.totalorder %s29, 3
    %p278 = por %p276, %p277
    %p279 = scmp.ne.s32.totalorder %s268, %s269
    %p280 = scmp.eq.s32.totalorder %s29, 0
    %p281 = por %p279, %p280
    %p282 = scmp.ne.s32.totalorder %s268, %s269
    %p283 = scmp.eq.s32.totalorder %s30, 3
    %p284 = por %p282, %p283
    %p286 = scmp.ne.s32.totalorder %s269, %s285
    %p287 = scmp.eq.s32.totalorder %s30, 0
    %p288 = por %p286, %p287
    %s289 = ssub.s32 %s32, %s39
    %p290 = scmp.eq.s32.totalorder %s289, 0
    %s292 = sadd.s32 %s291, 1
    %s293 = scalar_select %p290, %s291, %s292
    %p296 = pneg %p290
    %p297 = scmp.eq.s32.totalorder %s24, 3
    %p298 = por %p296, %p297
    %p299 = scmp.ne.s32.totalorder %s291, %s294
    %p300 = scmp.eq.s32.totalorder %s24, 0
    %p301 = por %p299, %p300
    %p302 = scmp.ne.s32.totalorder %s291, %s294
    %p303 = scmp.eq.s32.totalorder %s29, 3
    %p304 = por %p302, %p303
    %p305 = scmp.ne.s32.totalorder %s294, %s295
    %p306 = scmp.eq.s32.totalorder %s29, 0
    %p307 = por %p305, %p306
    %p308 = scmp.ne.s32.totalorder %s294, %s295
    %p309 = scmp.eq.s32.totalorder %s30, 3
    %p310 = por %p308, %p309
    %p312 = scmp.ne.s32.totalorder %s295, %s311
    %p313 = scmp.eq.s32.totalorder %s30, 0
    %p314 = por %p312, %p313
    %s315 = ssub.s32 %s32, %s39
    %p316 = scmp.eq.s32.totalorder %s315, 0
    %s318 = sadd.s32 %s317, 1
    %s319 = scalar_select %p316, %s317, %s318
    %p322 = pneg %p316
    %p323 = scmp.eq.s32.totalorder %s24, 3
    %p324 = por %p322, %p323
    %p325 = scmp.ne.s32.totalorder %s317, %s320
    %p326 = scmp.eq.s32.totalorder %s24, 0
    %p327 = por %p325, %p326
    %p328 = scmp.ne.s32.totalorder %s317, %s320
    %p329 = scmp.eq.s32.totalorder %s29, 3
    %p330 = por %p328, %p329
    %p331 = scmp.ne.s32.totalorder %s320, %s321
    %p332 = scmp.eq.s32.totalorder %s29, 0
    %p333 = por %p331, %p332
    %p334 = scmp.ne.s32.totalorder %s320, %s321
    %p335 = scmp.eq.s32.totalorder %s30, 3
    %p336 = por %p334, %p335
    %p338 = scmp.ne.s32.totalorder %s321, %s337
    %p339 = scmp.eq.s32.totalorder %s30, 0
    %p340 = por %p338, %p339
    %s341 = ssub.s32 %s32, %s39
    %p342 = scmp.eq.s32.totalorder %s341, 0
    %s344 = sadd.s32 %s343, 1
    %s345 = scalar_select %p342, %s343, %s344
    %p348 = pneg %p342
    %p349 = scmp.eq.s32.totalorder %s24, 3
    %p350 = por %p348, %p349
    %p351 = scmp.ne.s32.totalorder %s343, %s346
    %p352 = scmp.eq.s32.totalorder %s24, 0
    %p353 = por %p351, %p352
    %p354 = scmp.ne.s32.totalorder %s343, %s346
    %p355 = scmp.eq.s32.totalorder %s29, 3
    %p356 = por %p354, %p355
    %p357 = scmp.ne.s32.totalorder %s346, %s347
    %p358 = scmp.eq.s32.totalorder %s29, 0
    %p359 = por %p357, %p358
    %p360 = scmp.ne.s32.totalorder %s346, %s347
    %p361 = scmp.eq.s32.totalorder %s30, 3
    %p362 = por %p360, %p361
    %p364 = scmp.ne.s32.totalorder %s347, %s363
    %p365 = scmp.eq.s32.totalorder %s30, 0
    %p366 = por %p364, %p365
    %s367 = ssub.s32 %s32, %s39
    %p368 = scmp.eq.s32.totalorder %s367, 0
    %s370 = sadd.s32 %s369, 1
    %s371 = scalar_select %p368, %s369, %s370
    %p374 = pneg %p368
    %p375 = scmp.eq.s32.totalorder %s24, 3
    %p376 = por %p374, %p375
    %p377 = scmp.ne.s32.totalorder %s369, %s372
    %p378 = scmp.eq.s32.totalorder %s24, 0
    %p379 = por %p377, %p378
    %p380 = scmp.ne.s32.totalorder %s369, %s372
    %p381 = scmp.eq.s32.totalorder %s29, 3
    %p382 = por %p380, %p381
    %p383 = scmp.ne.s32.totalorder %s372, %s373
    %p384 = scmp.eq.s32.totalorder %s29, 0
    %p385 = por %p383, %p384
    %p386 = scmp.ne.s32.totalorder %s372, %s373
    %p387 = scmp.eq.s32.totalorder %s30, 3
    %p388 = por %p386, %p387
    %p390 = scmp.ne.s32.totalorder %s373, %s389
    %p391 = scmp.eq.s32.totalorder %s30, 0
    %p392 = por %p390, %p391
    %s393 = ssub.s32 %s32, %s39
    %p394 = scmp.eq.s32.totalorder %s393, 0
    %s396 = sadd.s32 %s395, 1
    %s397 = scalar_select %p394, %s395, %s396
    %p400 = pneg %p394
    %p401 = scmp.eq.s32.totalorder %s24, 3
    %p402 = por %p400, %p401
    %p403 = scmp.ne.s32.totalorder %s395, %s398
    %p404 = scmp.eq.s32.totalorder %s24, 0
    %p405 = por %p403, %p404
    %p406 = scmp.ne.s32.totalorder %s395, %s398
    %p407 = scmp.eq.s32.totalorder %s29, 3
    %p408 = por %p406, %p407
    %p409 = scmp.ne.s32.totalorder %s398, %s399
    %p410 = scmp.eq.s32.totalorder %s29, 0
    %p411 = por %p409, %p410
    %p412 = scmp.ne.s32.totalorder %s398, %s399
    %p413 = scmp.eq.s32.totalorder %s30, 3
    %p414 = por %p412, %p413
    %p416 = scmp.ne.s32.totalorder %s399, %s415
    %p417 = scmp.eq.s32.totalorder %s30, 0
    %p418 = por %p416, %p417
    %s419 = ssub.s32 %s32, %s39
    %p420 = scmp.eq.s32.totalorder %s419, 0
    %s422 = sadd.s32 %s421, 1
    %s423 = scalar_select %p420, %s421, %s422
    %p426 = pneg %p420
    %p427 = scmp.eq.s32.totalorder %s24, 3
    %p428 = por %p426, %p427
    %p429 = scmp.ne.s32.totalorder %s421, %s424
    %p430 = scmp.eq.s32.totalorder %s24, 0
    %p431 = por %p429, %p430
    %p432 = scmp.ne.s32.totalorder %s421, %s424
    %p433 = scmp.eq.s32.totalorder %s29, 3
    %p434 = por %p432, %p433
    %p435 = scmp.ne.s32.totalorder %s424, %s425
    %p436 = scmp.eq.s32.totalorder %s29, 0
    %p437 = por %p435, %p436
    %p438 = scmp.ne.s32.totalorder %s424, %s425
    %p439 = scmp.eq.s32.totalorder %s30, 3
    %p440 = por %p438, %p439
    %p442 = scmp.ne.s32.totalorder %s425, %s441
    %p443 = scmp.eq.s32.totalorder %s30, 0
    %p444 = por %p442, %p443
    %s446 = sadd.s32 %s445, 1
    %p449 = scmp.eq.s32.totalorder %s24, 3
    %p450 = scmp.ne.s32.totalorder %s445, %s447
    %p451 = scmp.eq.s32.totalorder %s24, 0
    %p452 = por %p450, %p451
    %p453 = scmp.ne.s32.totalorder %s445, %s447
    %p454 = scmp.eq.s32.totalorder %s29, 3
    %p455 = por %p453, %p454
    %p456 = scmp.ne.s32.totalorder %s447, %s448
    %p457 = scmp.eq.s32.totalorder %s29, 0
    %p458 = por %p456, %p457
    %p459 = scmp.ne.s32.totalorder %s447, %s448
    %p460 = scmp.eq.s32.totalorder %s30, 3
    %p461 = por %p459, %p460
    %p463 = scmp.ne.s32.totalorder %s448, %s462
    %p464 = scmp.eq.s32.totalorder %s30, 0
    %p465 = por %p463, %p464
    %s467 = sadd.s32 %s466, 1
    %p470 = scmp.eq.s32.totalorder %s24, 3
    %p471 = scmp.ne.s32.totalorder %s466, %s468
    %p472 = scmp.eq.s32.totalorder %s24, 0
    %p473 = por %p471, %p472
    %p474 = scmp.ne.s32.totalorder %s466, %s468
    %p475 = scmp.eq.s32.totalorder %s29, 3
    %p476 = por %p474, %p475
    %p477 = scmp.ne.s32.totalorder %s468, %s469
    %p478 = scmp.eq.s32.totalorder %s29, 0
    %p479 = por %p477, %p478
    %p480 = scmp.ne.s32.totalorder %s468, %s469
    %p481 = scmp.eq.s32.totalorder %s30, 3
    %p482 = por %p480, %p481
    %p484 = scmp.ne.s32.totalorder %s469, %s483
    %p485 = scmp.eq.s32.totalorder %s30, 0
    %p486 = por %p484, %p485
    %s487 = ssub.s32 %s31, %s43
    %p488 = scmp.eq.s32.totalorder %s487, 0
    %s490 = sadd.s32 %s489, 1
    %s491 = scalar_select %p488, %s489, %s490
    %p494 = pneg %p488
    %p495 = scmp.eq.s32.totalorder %s24, 3
    %p496 = por %p494, %p495
    %p497 = scmp.ne.s32.totalorder %s489, %s492
    %p498 = scmp.eq.s32.totalorder %s24, 0
    %p499 = por %p497, %p498
    %p500 = scmp.ne.s32.totalorder %s489, %s492
    %p501 = scmp.eq.s32.totalorder %s29, 3
    %p502 = por %p500, %p501
    %p503 = scmp.ne.s32.totalorder %s492, %s493
    %p504 = scmp.eq.s32.totalorder %s29, 0
    %p505 = por %p503, %p504
    %p506 = scmp.ne.s32.totalorder %s492, %s493
    %p507 = scmp.eq.s32.totalorder %s30, 3
    %p508 = por %p506, %p507
    %p510 = scmp.ne.s32.totalorder %s493, %s509
    %p511 = scmp.eq.s32.totalorder %s30, 0
    %p512 = por %p510, %p511
    %p513 = scmp.le.s32.totalorder 1, %s24
    %p514 = scmp.lt.s32.totalorder %s24, 5
    %p515 = pnand %p513, %p514
    %p516 = pneg %p515
    // Predicated region
    $region9: #{cnn_transformer_forward.2} parent=5 // pred_check
      _
    $region10: #{cnn_transformer_forward.2} parent=5 // pred_check_branch
      %518 = sbr.rel (%p515) target = $region12
    $region11: #{cnn_transformer_forward.2} parent=5 // pred_region
      %s519 = ssub.s32 %s24, 1
      // Predicated region
      $region13: #{cnn_transformer_forward.2} parent=11 // pred_check
        %p520 = pneg %p83
      $region14: #{cnn_transformer_forward.2} parent=11 // pred_check_branch
        %522 = sbr.rel (%p520) target = $region16
      $region15: #{cnn_transformer_forward.2} parent=11 // pred_region
        _
      $region16: #{cnn_transformer_forward.2} parent=11 // pred_fallthru
        _
      // Predicated region
      $region17: #{cnn_transformer_forward.2} parent=11 // pred_check
        %p523 = pneg %p104
      $region18: #{cnn_transformer_forward.2} parent=11 // pred_check_branch
        %525 = sbr.rel (%p523) target = $region20
      $region19: #{cnn_transformer_forward.2} parent=11 // pred_region
        _
      $region20: #{cnn_transformer_forward.2} parent=11 // pred_fallthru
        _
      // Predicated region
      $region21: #{cnn_transformer_forward.2} parent=11 // pred_check
        %p526 = pneg %p125
      $region22: #{cnn_transformer_forward.2} parent=11 // pred_check_branch
        %528 = sbr.rel (%p526) target = $region24
      $region23: #{cnn_transformer_forward.2} parent=11 // pred_region
        _
      $region24: #{cnn_transformer_forward.2} parent=11 // pred_fallthru
        _
      // Predicated region
      $region25: #{cnn_transformer_forward.2} parent=11 // pred_check
        %p529 = pneg %p458
      $region26: #{cnn_transformer_forward.2} parent=11 // pred_check_branch
        %531 = sbr.rel (%p529) target = $region28
      $region27: #{cnn_transformer_forward.2} parent=11 // pred_region
        _
      $region28: #{cnn_transformer_forward.2} parent=11 // pred_fallthru
        _
      // Predicated region
      $region29: #{cnn_transformer_forward.2} parent=11 // pred_check
        %p532 = pneg %p479
      $region30: #{cnn_transformer_forward.2} parent=11 // pred_check_branch
        %534 = sbr.rel (%p532) target = $region32
      $region31: #{cnn_transformer_forward.2} parent=11 // pred_region
        _
      $region32: #{cnn_transformer_forward.2} parent=11 // pred_fallthru
        _
    $region12: #{cnn_transformer_forward.2} parent=5 // pred_fallthru
      _
    %p535 = scmp.lt.s32.totalorder %s24, 4
    // Predicated region
    $region33: #{cnn_transformer_forward.2} parent=5 // pred_check
      %p536 = pneg %p535
    $region34: #{cnn_transformer_forward.2} parent=5 // pred_check_branch
      %538 = sbr.rel (%p536) target = $region36
    $region35: #{cnn_transformer_forward.2} parent=5 // pred_region
      // Predicated region
      $region37: #{cnn_transformer_forward.2} parent=35 // pred_check
        %p539 = pneg %p56
      $region38: #{cnn_transformer_forward.2} parent=35 // pred_check_branch
        %541 = sbr.rel (%p539) target = $region40
      $region39: #{cnn_transformer_forward.2} parent=35 // pred_region
        %p542 = scmp.lt.s32.totalorder %s31, 1
        %s543 = scalar_select %p542, %s31, 1
        %s544 = smul.addr %s543, 2
        %s545 = smul.addr %s544, 8
        %s546 = scalar_lea.vmem %s0, %s545
      $region40: #{cnn_transformer_forward.2} parent=35 // pred_fallthru
        _
      // Predicated region
      $region41: #{cnn_transformer_forward.2} parent=35 // pred_check
        %p547 = pneg %p145
      $region42: #{cnn_transformer_forward.2} parent=35 // pred_check_branch
        %549 = sbr.rel (%p547) target = $region44
      $region43: #{cnn_transformer_forward.2} parent=35 // pred_region
        %p550 = scmp.lt.s32.totalorder %s32, 1
        %s551 = scalar_select %p550, %s32, 1
        %s552 = scalar_lea.vmem %s4, %s551
      $region44: #{cnn_transformer_forward.2} parent=35 // pred_fallthru
        _
      // Predicated region
      $region45: #{cnn_transformer_forward.2} parent=35 // pred_check
        %p553 = pneg %p171
      $region46: #{cnn_transformer_forward.2} parent=35 // pred_check_branch
        %555 = sbr.rel (%p553) target = $region48
      $region47: #{cnn_transformer_forward.2} parent=35 // pred_region
        %p556 = scmp.lt.s32.totalorder %s32, 1
        %s557 = scalar_select %p556, %s32, 1
        %s558 = scalar_lea.vmem %s5, %s557
      $region48: #{cnn_transformer_forward.2} parent=35 // pred_fallthru
        _
      // Predicated region
      $region49: #{cnn_transformer_forward.2} parent=35 // pred_check
        %p559 = pneg %p197
      $region50: #{cnn_transformer_forward.2} parent=35 // pred_check_branch
        %561 = sbr.rel (%p559) target = $region52
      $region51: #{cnn_transformer_forward.2} parent=35 // pred_region
        %p562 = scmp.lt.s32.totalorder %s32, 1
        %s563 = scalar_select %p562, %s32, 1
        %s564 = smul.addr %s563, 4
        %s565 = smul.addr %s564, 4
        %s566 = scalar_lea.vmem %s6, %s565
      $region52: #{cnn_transformer_forward.2} parent=35 // pred_fallthru
        _
      // Predicated region
      $region53: #{cnn_transformer_forward.2} parent=35 // pred_check
        %p567 = pneg %p223
      $region54: #{cnn_transformer_forward.2} parent=35 // pred_check_branch
        %569 = sbr.rel (%p567) target = $region56
      $region55: #{cnn_transformer_forward.2} parent=35 // pred_region
        %p570 = scmp.lt.s32.totalorder %s32, 1
        %s571 = scalar_select %p570, %s32, 1
        %s572 = scalar_lea.vmem %s7, %s571
      $region56: #{cnn_transformer_forward.2} parent=35 // pred_fallthru
        _
      // Predicated region
      $region57: #{cnn_transformer_forward.2} parent=35 // pred_check
        %p573 = pneg %p249
      $region58: #{cnn_transformer_forward.2} parent=35 // pred_check_branch
        %575 = sbr.rel (%p573) target = $region60
      $region59: #{cnn_transformer_forward.2} parent=35 // pred_region
        %p576 = scmp.lt.s32.totalorder %s32, 1
        %s577 = scalar_select %p576, %s32, 1
        %s578 = smul.addr %s577, 4
        %s579 = smul.addr %s578, 4
        %s580 = scalar_lea.vmem %s8, %s579
      $region60: #{cnn_transformer_forward.2} parent=35 // pred_fallthru
        _
      // Predicated region
      $region61: #{cnn_transformer_forward.2} parent=35 // pred_check
        %p581 = pneg %p275
      $region62: #{cnn_transformer_forward.2} parent=35 // pred_check_branch
        %583 = sbr.rel (%p581) target = $region64
      $region63: #{cnn_transformer_forward.2} parent=35 // pred_region
        %p584 = scmp.lt.s32.totalorder %s32, 1
        %s585 = scalar_select %p584, %s32, 1
        %s586 = scalar_lea.vmem %s9, %s585
      $region64: #{cnn_transformer_forward.2} parent=35 // pred_fallthru
        _
      // Predicated region
      $region65: #{cnn_transformer_forward.2} parent=35 // pred_check
        %p587 = pneg %p301
      $region66: #{cnn_transformer_forward.2} parent=35 // pred_check_branch
        %589 = sbr.rel (%p587) target = $region68
      $region67: #{cnn_transformer_forward.2} parent=35 // pred_region
        %p590 = scmp.lt.s32.totalorder %s32, 1
        %s591 = scalar_select %p590, %s32, 1
        %s592 = scalar_lea.vmem %s10, %s591
      $region68: #{cnn_transformer_forward.2} parent=35 // pred_fallthru
        _
      // Predicated region
      $region69: #{cnn_transformer_forward.2} parent=35 // pred_check
        %p593 = pneg %p327
      $region70: #{cnn_transformer_forward.2} parent=35 // pred_check_branch
        %595 = sbr.rel (%p593) target = $region72
      $region71: #{cnn_transformer_forward.2} parent=35 // pred_region
        %p596 = scmp.lt.s32.totalorder %s32, 1
        %s597 = scalar_select %p596, %s32, 1
        %s598 = scalar_lea.vmem %s11, %s597
      $region72: #{cnn_transformer_forward.2} parent=35 // pred_fallthru
        _
      // Predicated region
      $region73: #{cnn_transformer_forward.2} parent=35 // pred_check
        %p599 = pneg %p353
      $region74: #{cnn_transformer_forward.2} parent=35 // pred_check_branch
        %601 = sbr.rel (%p599) target = $region76
      $region75: #{cnn_transformer_forward.2} parent=35 // pred_region
        %p602 = scmp.lt.s32.totalorder %s32, 1
        %s603 = scalar_select %p602, %s32, 1
        %s604 = smul.addr %s603, 4
        %s605 = smul.addr %s604, 4
        %s606 = scalar_lea.vmem %s12, %s605
      $region76: #{cnn_transformer_forward.2} parent=35 // pred_fallthru
        _
      // Predicated region
      $region77: #{cnn_transformer_forward.2} parent=35 // pred_check
        %p607 = pneg %p379
      $region78: #{cnn_transformer_forward.2} parent=35 // pred_check_branch
        %609 = sbr.rel (%p607) target = $region80
      $region79: #{cnn_transformer_forward.2} parent=35 // pred_region
        %p610 = scmp.lt.s32.totalorder %s32, 1
        %s611 = scalar_select %p610, %s32, 1
        %s612 = scalar_lea.vmem %s13, %s611
      $region80: #{cnn_transformer_forward.2} parent=35 // pred_fallthru
        _
      // Predicated region
      $region81: #{cnn_transformer_forward.2} parent=35 // pred_check
        %p613 = pneg %p405
      $region82: #{cnn_transformer_forward.2} parent=35 // pred_check_branch
        %615 = sbr.rel (%p613) target = $region84
      $region83: #{cnn_transformer_forward.2} parent=35 // pred_region
        %p616 = scmp.lt.s32.totalorder %s32, 1
        %s617 = scalar_select %p616, %s32, 1
        %s618 = smul.addr %s617, 8
        %s619 = smul.addr %s618, 4
        %s620 = scalar_lea.vmem %s14, %s619
      $region84: #{cnn_transformer_forward.2} parent=35 // pred_fallthru
        _
      // Predicated region
      $region85: #{cnn_transformer_forward.2} parent=35 // pred_check
        %p621 = pneg %p431
      $region86: #{cnn_transformer_forward.2} parent=35 // pred_check_branch
        %623 = sbr.rel (%p621) target = $region88
      $region87: #{cnn_transformer_forward.2} parent=35 // pred_region
        %p624 = scmp.lt.s32.totalorder %s32, 1
        %s625 = scalar_select %p624, %s32, 1
        %s626 = scalar_lea.vmem %s15, %s625
      $region88: #{cnn_transformer_forward.2} parent=35 // pred_fallthru
        _
    $region36: #{cnn_transformer_forward.2} parent=5 // pred_fallthru
      _
    %p627 = scmp.le.s32.totalorder 1, %s24
    %p628 = scmp.lt.s32.totalorder %s24, 5
    %p629 = pnand %p627, %p628
    %p630 = pneg %p629
    // Predicated region
    $region89: #{cnn_transformer_forward.2} parent=5 // pred_check
      _
    $region90: #{cnn_transformer_forward.2} parent=5 // pred_check_branch
      %632 = sbr.rel (%p629) target = $region92
    $region91: #{cnn_transformer_forward.2} parent=5 // pred_region
      %s633 = ssub.s32 %s24, 1
      %p634 = scmp.lt.s32.totalorder %s33, 1
      %s635 = scalar_select %p634, %s33, 1
      %s636 = smul.addr %s635, 2
      %s637 = smul.addr %s636, 8
      %s638 = scalar_lea.vmem %s0, %s637
      %p639 = pneg %p62
      %p640 = pneg %p59
      %p641 = pneg %p83
      %p642 = pneg %p80
      %p643 = pneg %p104
      %p644 = pneg %p101
      %p645 = pneg %p125
      %p646 = pneg %p122
      %p647 = scmp.lt.s32.totalorder %s34, 1
      %s648 = scalar_select %p647, %s34, 1
      %s649 = scalar_lea.vmem %s4, %s648
      %p650 = pneg %p151
      %p651 = pneg %p148
      %p652 = scmp.lt.s32.totalorder %s34, 1
      %s653 = scalar_select %p652, %s34, 1
      %s654 = scalar_lea.vmem %s5, %s653
      %p655 = pneg %p177
      %p656 = pneg %p174
      %p657 = scmp.lt.s32.totalorder %s34, 1
      %s658 = scalar_select %p657, %s34, 1
      %s659 = smul.addr %s658, 4
      %s660 = smul.addr %s659, 4
      %s661 = scalar_lea.vmem %s6, %s660
      %p662 = pneg %p203
      %p663 = pneg %p200
      %p664 = scmp.lt.s32.totalorder %s34, 1
      %s665 = scalar_select %p664, %s34, 1
      %s666 = scalar_lea.vmem %s7, %s665
      %p667 = pneg %p229
      %p668 = pneg %p226
      %p669 = scmp.lt.s32.totalorder %s34, 1
      %s670 = scalar_select %p669, %s34, 1
      %s671 = smul.addr %s670, 4
      %s672 = smul.addr %s671, 4
      %s673 = scalar_lea.vmem %s8, %s672
      %p674 = pneg %p255
      %p675 = pneg %p252
      %p676 = scmp.lt.s32.totalorder %s34, 1
      %s677 = scalar_select %p676, %s34, 1
      %s678 = scalar_lea.vmem %s9, %s677
      %p679 = pneg %p281
      %p680 = pneg %p278
      %p681 = scmp.lt.s32.totalorder %s34, 1
      %s682 = scalar_select %p681, %s34, 1
      %s683 = scalar_lea.vmem %s10, %s682
      %p684 = pneg %p307
      %p685 = pneg %p304
      %p686 = scmp.lt.s32.totalorder %s34, 1
      %s687 = scalar_select %p686, %s34, 1
      %s688 = scalar_lea.vmem %s11, %s687
      %p689 = pneg %p333
      %p690 = pneg %p330
      %p691 = scmp.lt.s32.totalorder %s34, 1
      %s692 = scalar_select %p691, %s34, 1
      %s693 = smul.addr %s692, 4
      %s694 = smul.addr %s693, 4
      %s695 = scalar_lea.vmem %s12, %s694
      %p696 = pneg %p359
      %p697 = pneg %p356
      %p698 = scmp.lt.s32.totalorder %s34, 1
      %s699 = scalar_select %p698, %s34, 1
      %s700 = scalar_lea.vmem %s13, %s699
      %p701 = pneg %p385
      %p702 = pneg %p382
      %p703 = scmp.lt.s32.totalorder %s34, 1
      %s704 = scalar_select %p703, %s34, 1
      %s705 = smul.addr %s704, 8
      %s706 = smul.addr %s705, 4
      %s707 = scalar_lea.vmem %s14, %s706
      %p708 = pneg %p411
      %p709 = pneg %p408
      %p710 = scmp.lt.s32.totalorder %s34, 1
      %s711 = scalar_select %p710, %s34, 1
      %s712 = scalar_lea.vmem %s15, %s711
      %p713 = pneg %p437
      %p714 = pneg %p434
      %p715 = pneg %p458
      %p716 = pneg %p455
      %p717 = pneg %p479
      %p718 = pneg %p476
      %p719 = pneg %p505
      %p720 = pneg %p502
      %p721 = scmp.lt.s32.totalorder %s33, 1
      %s722 = scalar_select %p721, %s33, 1
      %s723 = smul.addr %s722, 2
      %s724 = smul.addr %s723, 8
      %s725 = scalar_lea.vmem %s18, %s724
      %p726 = scmp.lt.s32.totalorder %s33, 1
      %s727 = scalar_select %p726, %s33, 1
      %s728 = smul.addr %s727, 2
      %s729 = smul.addr %s728, 8
      %s730 = scalar_lea.vmem %s0, %s729
      %p731 = scmp.lt.s32.totalorder %s34, 1
      %s732 = scalar_select %p731, %s34, 1
      %s733 = scalar_lea.vmem %s4, %s732
      %p734 = scmp.lt.s32.totalorder %s34, 1
      %s735 = scalar_select %p734, %s34, 1
      %s736 = scalar_lea.vmem %s5, %s735
      %p737 = scmp.lt.s32.totalorder %s34, 1
      %s738 = scalar_select %p737, %s34, 1
      %s739 = smul.addr %s738, 4
      %s740 = smul.addr %s739, 4
      %s741 = scalar_lea.vmem %s6, %s740
      %p742 = scmp.lt.s32.totalorder %s34, 1
      %s743 = scalar_select %p742, %s34, 1
      %s744 = scalar_lea.vmem %s7, %s743
      %p745 = scmp.lt.s32.totalorder %s34, 1
      %s746 = scalar_select %p745, %s34, 1
      %s747 = smul.addr %s746, 4
      %s748 = smul.addr %s747, 4
      %s749 = scalar_lea.vmem %s8, %s748
      %p750 = scmp.lt.s32.totalorder %s34, 1
      %s751 = scalar_select %p750, %s34, 1
      %s752 = scalar_lea.vmem %s9, %s751
      %p753 = scmp.lt.s32.totalorder %s34, 1
      %s754 = scalar_select %p753, %s34, 1
      %s755 = scalar_lea.vmem %s10, %s754
      %p756 = scmp.lt.s32.totalorder %s34, 1
      %s757 = scalar_select %p756, %s34, 1
      %s758 = scalar_lea.vmem %s11, %s757
      %p759 = scmp.lt.s32.totalorder %s34, 1
      %s760 = scalar_select %p759, %s34, 1
      %s761 = smul.addr %s760, 4
      %s762 = smul.addr %s761, 4
      %s763 = scalar_lea.vmem %s12, %s762
      %p764 = scmp.lt.s32.totalorder %s34, 1
      %s765 = scalar_select %p764, %s34, 1
      %s766 = scalar_lea.vmem %s13, %s765
      %p767 = scmp.lt.s32.totalorder %s34, 1
      %s768 = scalar_select %p767, %s34, 1
      %s769 = smul.addr %s768, 8
      %s770 = smul.addr %s769, 4
      %s771 = scalar_lea.vmem %s14, %s770
      %p772 = scmp.lt.s32.totalorder %s34, 1
      %s773 = scalar_select %p772, %s34, 1
      %s774 = scalar_lea.vmem %s15, %s773
      %p775 = scmp.lt.s32.totalorder %s33, 1
      %s776 = scalar_select %p775, %s33, 1
      %s777 = smul.addr %s776, 2
      %s778 = smul.addr %s777, 8
      %s779 = scalar_lea.vmem %s18, %s778
      %p781 = scmp.eq.s32.totalorder %s34, 0
      // Predicated region
      $region93: #{cnn_transformer_forward.2} parent=91 // pred_check
        %p782 = pneg %p781
      $region94: #{cnn_transformer_forward.2} parent=91 // pred_check_branch
        %784 = sbr.rel (%p782) target = $region96
      $region95: #{cnn_transformer_forward.2} parent=91 // pred_region
        %v785 = vld [vmem:[%s730] sm:$0xff]
        %v786 = vld [vmem:[%s730 + $0x8] sm:$0xff]
        %v787 = vpack.c.bf16 %v786, %v785
        %v788 = vld [vmem:[%s1] sm:$0xf]
        %v789 = vld [vmem:[%s1 + $0x4] sm:$0xf]
        %v790 = vld [vmem:[%s1 + $0x8] sm:$0xf]
        %v791 = vld [vmem:[%s2] sm:$0x1]
        %v793 = vlaneseq
        %v794 = vshrl.u32 %v793, 7
        %v795 = vsub.s32 0, %v794
        %v796 = vrot.slane %v791, %v795
        %v801 = vunpack.c.l.b16 %v788
        %v802 = vunpack.c.l.b16 %v789
        %v803 = vunpack.c.l.b16 %v790
        %v804 = vpack.c.b16 %v802, %v801
        %v805 = vpack.c.b16 %v803, %v803
        %vm807 = vcmask 195584
        %v809 = vsel %vm807, %v787, 0
        %vm811 = vcmask 1043456
        %v813 = vsel %vm811, %v805, 0
        %815 = vmatprep.subr.bf16.mxu0 0
        %816 = vmatpush1.bf16.msra.mxu0 0
        %817 = vmatprep.subr.bf16.mxu0 0
        %818 = vmatpush1.bf16.msra.mxu0 0
        %819 = vmatprep.subr.bf16.mxu0 0
        %820 = vmatpush1.bf16.msra.mxu0 0
        %821 = vmatprep.subr.bf16.mxu0 0
        %822 = vmatpush1.bf16.msra.mxu0 0
        %823 = vmatprep.subr.bf16.mxu0 0
        %824 = vmatpush1.bf16.msra.mxu0 0
        %825 = vmatprep.subr.bf16.mxu0 0
        %826 = vmatpush1.bf16.msra.mxu0 0
        %827 = vmatprep.subr.bf16.mxu0 0
        %828 = vmatpush1.bf16.msra.mxu0 %v813
        %829 = vmatprep.subr.bf16.mxu0 0
        %830 = vmatpush1.bf16.msra.mxu0 %v804
        %831 = vmatprep.subr.bf16.mxu0 0
        %832 = vmatpush2.bf16.msra.mxu0 0
        %833 = vmatprep.subr.bf16.mxu0 0
        %834 = vmatpush2.bf16.msra.mxu0 0
        %835 = vmatprep.subr.bf16.mxu0 0
        %836 = vmatpush2.bf16.msra.mxu0 0
        %837 = vmatprep.subr.bf16.mxu0 0
        %838 = vmatpush2.bf16.msra.mxu0 0
        %839 = vmatprep.subr.bf16.mxu0 0
        %840 = vmatpush2.bf16.msra.mxu0 0
        %841 = vmatprep.subr.bf16.mxu0 0
        %842 = vmatpush2.bf16.msra.mxu0 0
        %843 = vmatprep.subr.bf16.mxu0 0
        %844 = vmatpush2.bf16.msra.mxu0 0
        %845 = vmatprep.subr.bf16.mxu0 0
        %846 = vmatpush2.bf16.msra.mxu0 0
        %847 = vmatprep.mubr.bf16.mxu0 0
        %848 = vmatmul.mubr.bf16.gmra.mxu0 %v809
        %v849 = vpop.f32.mrf.mxu0
        %v850 = vadd.f32 %v796, %v849
        %v851 = vpop.f32.mrf.mxu0
        %v852 = vpop.f32.mrf.mxu0
        %v853 = vadd.f32 %v796, %v852
        %v854 = vpop.f32.mrf.mxu0
        %855 = vdwg.mxu0
        %v856 = vmax.f32 %v850, 0.0
        %v857 = vmax.f32 %v853, 0.0
        %v858 = vld [vmem:[%s3] sm:$0xff]
        %v859 = vld [vmem:[%s3 + $0x8] sm:$0xff]
        %v860 = vadd.f32 %v856, %v858
        %v861 = vadd.f32 %v857, %v859
        %vm862 = vcmask 261120
        %863 = vst.msk [vmem:[#allocation2] sm:$0xff] %vm862, %v860
        %864 = vst.msk [vmem:[#allocation2 + $0x8] sm:$0xff] %vm862, %v861
      $region96: #{cnn_transformer_forward.2} parent=91 // pred_fallthru
        _
      %v865 = vld [vmem:[#allocation2] sm:$0xff]
      %v866 = vld [vmem:[#allocation2 + $0x8] sm:$0xff]
      %v867 = vld [vmem:[%s733] sm:$0x1]
      %v868 = vld [vmem:[%s736] sm:$0x1]
      %vm869 = vcmask 261120
      %v870 = vsel %vm869, %v865, 0.0
      %871 = vadd.xlane.f32.xlu0 %v870
      %v872 = vpop.xlane.xlu0 %871
      %v873 = vsel %vm869, %v866, 0.0
      %874 = vadd.xlane.f32.xlu0 %v873
      %v875 = vpop.xlane.xlu0 %874
      %v876 = vrcp.pop 32.0
      %v877 = vmul.f32 %v872, %v876
      %v878 = vmul.f32 %v875, %v876
      %v879 = vsub.f32 %v865, %v877
      %v880 = vsub.f32 %v866, %v878
      %v881 = vmul.f32 %v879, %v879
      %v882 = vmul.f32 %v880, %v880
      %v883 = vsel %vm869, %v881, 0.0
      %884 = vadd.xlane.f32.xlu0 %v883
      %v885 = vpop.xlane.xlu0 %884
      %v886 = vsel %vm869, %v882, 0.0
      %887 = vadd.xlane.f32.xlu0 %v886
      %v888 = vpop.xlane.xlu0 %887
      %v889 = vmul.f32 %v885, %v876
      %v890 = vmul.f32 %v888, %v876
      %v891 = vadd.f32 %v889, 1e-05
      %v892 = vadd.f32 %v890, 1e-05
      %v893 = vrsqrt.pop %v891
      %v894 = vrsqrt.pop %v892
      %v895 = vmul.f32 %v879, %v893
      %v896 = vmul.f32 %v880, %v894
      %v898 = vlaneseq
      %v899 = vshrl.u32 %v898, 7
      %v900 = vsub.s32 0, %v899
      %v901 = vrot.slane %v867, %v900
      %v903 = vmul.f32 %v895, %v901
      %v904 = vmul.f32 %v896, %v901
      %v906 = vlaneseq
      %v907 = vshrl.u32 %v906, 7
      %v908 = vsub.s32 0, %v907
      %v909 = vrot.slane %v868, %v908
      %v911 = vadd.f32 %v903, %v909
      %v912 = vadd.f32 %v904, %v909
      %v913 = vpack.c.bf16 %v912, %v911
      %v914 = vld [vmem:[%s741] sm:$0xf]
      %v915 = vld [vmem:[%s741 + $0x4] sm:$0xf]
      %v916 = vld [vmem:[%s741 + $0x8] sm:$0xf]
      %v917 = vld [vmem:[%s741 + $0xc] sm:$0xf]
      %v918 = vld [vmem:[%s744] sm:$0x1]
      %v920 = vlaneseq
      %v921 = vshrl.u32 %v920, 7
      %v922 = vsub.s32 0, %v921
      %v923 = vrot.slane %v918, %v922
      %v929 = vunpack.c.l.b16 %v914
      %v930 = vunpack.c.l.b16 %v915
      %v931 = vunpack.c.l.b16 %v916
      %v932 = vunpack.c.l.b16 %v917
      %v933 = vpack.c.b16 %v930, %v929
      %v934 = vpack.c.b16 %v932, %v931
      %v938 = vsel %vm869, %v913, 0
      %940 = vmatprep.subr.bf16.mxu0 0
      %941 = vmatpush1.bf16.msra.mxu0 0
      %942 = vmatprep.subr.bf16.mxu0 0
      %943 = vmatpush1.bf16.msra.mxu0 0
      %944 = vmatprep.subr.bf16.mxu0 0
      %945 = vmatpush1.bf16.msra.mxu0 0
      %946 = vmatprep.subr.bf16.mxu0 0
      %947 = vmatpush1.bf16.msra.mxu0 0
      %948 = vmatprep.subr.bf16.mxu0 0
      %949 = vmatpush1.bf16.msra.mxu0 0
      %950 = vmatprep.subr.bf16.mxu0 0
      %951 = vmatpush1.bf16.msra.mxu0 0
      %952 = vmatprep.subr.bf16.mxu0 0
      %953 = vmatpush1.bf16.msra.mxu0 %v934
      %954 = vmatprep.subr.bf16.mxu0 0
      %955 = vmatpush1.bf16.msra.mxu0 %v933
      %956 = vmatprep.subr.bf16.mxu0 0
      %957 = vmatpush2.bf16.msra.mxu0 0
      %958 = vmatprep.subr.bf16.mxu0 0
      %959 = vmatpush2.bf16.msra.mxu0 0
      %960 = vmatprep.subr.bf16.mxu0 0
      %961 = vmatpush2.bf16.msra.mxu0 0
      %962 = vmatprep.subr.bf16.mxu0 0
      %963 = vmatpush2.bf16.msra.mxu0 0
      %964 = vmatprep.subr.bf16.mxu0 0
      %965 = vmatpush2.bf16.msra.mxu0 0
      %966 = vmatprep.subr.bf16.mxu0 0
      %967 = vmatpush2.bf16.msra.mxu0 0
      %968 = vmatprep.subr.bf16.mxu0 0
      %969 = vmatpush2.bf16.msra.mxu0 0
      %970 = vmatprep.subr.bf16.mxu0 0
      %971 = vmatpush2.bf16.msra.mxu0 0
      %972 = vmatprep.mubr.bf16.mxu0 0
      %973 = vmatmul.mubr.bf16.gmra.mxu0 %v938
      %v974 = vpop.f32.mrf.mxu0
      %v975 = vadd.f32 %v923, %v974
      %v976 = vpop.f32.mrf.mxu0
      %v977 = vpop.f32.mrf.mxu0
      %v978 = vadd.f32 %v923, %v977
      %v979 = vpop.f32.mrf.mxu0
      %980 = vdwg.mxu0
      %v981 = vld [vmem:[%s749] sm:$0xf]
      %v982 = vld [vmem:[%s749 + $0x4] sm:$0xf]
      %v983 = vld [vmem:[%s749 + $0x8] sm:$0xf]
      %v984 = vld [vmem:[%s749 + $0xc] sm:$0xf]
      %v985 = vld [vmem:[%s752] sm:$0x1]
      %v986 = vpack.c.bf16 %v978, %v975
      %988 = vrot.lane.b32.xlu0 %v986, 120
      %v989 = vpop.permute.xlu0 %988
      %990 = vrot.lane.b32.xlu0 %v986, 112
      %v991 = vpop.permute.xlu0 %990
      %992 = vrot.lane.b32.xlu0 %v986, 104
      %v993 = vpop.permute.xlu0 %992
      %994 = vrot.lane.b32.xlu0 %v986, 96
      %v995 = vpop.permute.xlu0 %994
      %997 = vxpose.xlu0.c.b16.start [1/8] %v995, 128
      %998 = vxpose.xlu0.c.b16.cont [2/8] 0, 128
      %999 = vxpose.xlu0.c.b16.cont [3/8] 0, 128
      %1000 = vxpose.xlu0.c.b16.cont [4/8] 0, 128
      %1001 = vxpose.xlu0.c.b16.cont [5/8] 0, 128
      %1002 = vxpose.xlu0.c.b16.cont [6/8] 0, 128
      %1003 = vxpose.xlu0.c.b16.cont [7/8] 0, 128
      %1004 = vxpose.xlu0.c.b16.end [8/8] 0, 128
      %v1005 = vpop.trf.xlu0
      %v1006 = vpop.trf.xlu0
      %v1007 = vpop.trf.xlu0
      %v1008 = vpop.trf.xlu0
      %v1009 = vpop.trf.xlu0
      %v1010 = vpop.trf.xlu0
      %v1011 = vpop.trf.xlu0
      %v1012 = vpop.trf.xlu0
      %1013 = vrot.lane.b32.xlu0 %v986, 88
      %v1014 = vpop.permute.xlu0 %1013
      %1016 = vxpose.xlu0.c.b16.start [1/8] %v1014, 128
      %1017 = vxpose.xlu0.c.b16.cont [2/8] 0, 128
      %1018 = vxpose.xlu0.c.b16.cont [3/8] 0, 128
      %1019 = vxpose.xlu0.c.b16.cont [4/8] 0, 128
      %1020 = vxpose.xlu0.c.b16.cont [5/8] 0, 128
      %1021 = vxpose.xlu0.c.b16.cont [6/8] 0, 128
      %1022 = vxpose.xlu0.c.b16.cont [7/8] 0, 128
      %1023 = vxpose.xlu0.c.b16.end [8/8] 0, 128
      %v1024 = vpop.trf.xlu0
      %v1025 = vpop.trf.xlu0
      %v1026 = vpop.trf.xlu0
      %v1027 = vpop.trf.xlu0
      %v1028 = vpop.trf.xlu0
      %v1029 = vpop.trf.xlu0
      %v1030 = vpop.trf.xlu0
      %v1031 = vpop.trf.xlu0
      %1032 = vrot.lane.b32.xlu0 %v986, 80
      %v1033 = vpop.permute.xlu0 %1032
      %1035 = vxpose.xlu0.c.b16.start [1/8] %v1033, 128
      %1036 = vxpose.xlu0.c.b16.cont [2/8] 0, 128
      %1037 = vxpose.xlu0.c.b16.cont [3/8] 0, 128
      %1038 = vxpose.xlu0.c.b16.cont [4/8] 0, 128
      %1039 = vxpose.xlu0.c.b16.cont [5/8] 0, 128
      %1040 = vxpose.xlu0.c.b16.cont [6/8] 0, 128
      %1041 = vxpose.xlu0.c.b16.cont [7/8] 0, 128
      %1042 = vxpose.xlu0.c.b16.end [8/8] 0, 128
      %v1043 = vpop.trf.xlu0
      %v1044 = vpop.trf.xlu0
      %v1045 = vpop.trf.xlu0
      %v1046 = vpop.trf.xlu0
      %v1047 = vpop.trf.xlu0
      %v1048 = vpop.trf.xlu0
      %v1049 = vpop.trf.xlu0
      %v1050 = vpop.trf.xlu0
      %1051 = vrot.lane.b32.xlu0 %v986, 72
      %v1052 = vpop.permute.xlu0 %1051
      %1054 = vxpose.xlu0.c.b16.start [1/8] %v1052, 128
      %1055 = vxpose.xlu0.c.b16.cont [2/8] 0, 128
      %1056 = vxpose.xlu0.c.b16.cont [3/8] 0, 128
      %1057 = vxpose.xlu0.c.b16.cont [4/8] 0, 128
      %1058 = vxpose.xlu0.c.b16.cont [5/8] 0, 128
      %1059 = vxpose.xlu0.c.b16.cont [6/8] 0, 128
      %1060 = vxpose.xlu0.c.b16.cont [7/8] 0, 128
      %1061 = vxpose.xlu0.c.b16.end [8/8] 0, 128
      %v1062 = vpop.trf.xlu0
      %v1063 = vpop.trf.xlu0
      %v1064 = vpop.trf.xlu0
      %v1065 = vpop.trf.xlu0
      %v1066 = vpop.trf.xlu0
      %v1067 = vpop.trf.xlu0
      %v1068 = vpop.trf.xlu0
      %v1069 = vpop.trf.xlu0
      %vm1070 = vcmask 64512
      %v1072 = vsel %vm1070, %v986, 0
      %vm1074 = vcmask 1043456
      %v1076 = vsel %vm1074, %v1005, 0
      %1078 = vmatprep.subr.bf16.mxu0 0
      %1079 = vmatpush1.bf16.msra.mxu0 0
      %1080 = vmatprep.subr.bf16.mxu0 0
      %1081 = vmatpush1.bf16.msra.mxu0 0
      %1082 = vmatprep.subr.bf16.mxu0 0
      %1083 = vmatpush1.bf16.msra.mxu0 0
      %1084 = vmatprep.subr.bf16.mxu0 0
      %1085 = vmatpush1.bf16.msra.mxu0 0
      %1086 = vmatprep.subr.bf16.mxu0 0
      %1087 = vmatpush1.bf16.msra.mxu0 0
      %1088 = vmatprep.subr.bf16.mxu0 0
      %1089 = vmatpush1.bf16.msra.mxu0 0
      %1090 = vmatprep.subr.bf16.mxu0 0
      %1091 = vmatpush1.bf16.msra.mxu0 0
      %1092 = vmatprep.subr.bf16.mxu0 0
      %1093 = vmatpush1.bf16.msra.mxu0 %v1076
      %1094 = vmatprep.subr.bf16.mxu0 0
      %1095 = vmatpush2.bf16.msra.mxu0 0
      %1096 = vmatprep.subr.bf16.mxu0 0
      %1097 = vmatpush2.bf16.msra.mxu0 0
      %1098 = vmatprep.subr.bf16.mxu0 0
      %1099 = vmatpush2.bf16.msra.mxu0 0
      %1100 = vmatprep.subr.bf16.mxu0 0
      %1101 = vmatpush2.bf16.msra.mxu0 0
      %1102 = vmatprep.subr.bf16.mxu0 0
      %1103 = vmatpush2.bf16.msra.mxu0 0
      %1104 = vmatprep.subr.bf16.mxu0 0
      %1105 = vmatpush2.bf16.msra.mxu0 0
      %1106 = vmatprep.subr.bf16.mxu0 0
      %1107 = vmatpush2.bf16.msra.mxu0 0
      %1108 = vmatprep.subr.bf16.mxu0 0
      %1109 = vmatpush2.bf16.msra.mxu0 0
      %1110 = vmatprep.mubr.bf16.mxu0 0
      %1111 = vmatmul.mubr.bf16.gmra.mxu0 %v1072
      %v1112 = vpop.f32.mrf.mxu0
      %v1113 = vadd.f32 0.0, %v1112
      %v1114 = vpop.f32.mrf.mxu0
      %v1115 = vpop.f32.mrf.mxu0
      %v1116 = vadd.f32 0.0, %v1115
      %v1117 = vpop.f32.mrf.mxu0
      %1118 = vdwg.mxu0
      %v1120 = vsel %vm1070, %v989, 0
      %v1123 = vsel %vm1074, %v1024, 0
      %1125 = vmatprep.subr.bf16.mxu0 0
      %1126 = vmatpush1.bf16.msra.mxu0 0
      %1127 = vmatprep.subr.bf16.mxu0 0
      %1128 = vmatpush1.bf16.msra.mxu0 0
      %1129 = vmatprep.subr.bf16.mxu0 0
      %1130 = vmatpush1.bf16.msra.mxu0 0
      %1131 = vmatprep.subr.bf16.mxu0 0
      %1132 = vmatpush1.bf16.msra.mxu0 0
      %1133 = vmatprep.subr.bf16.mxu0 0
      %1134 = vmatpush1.bf16.msra.mxu0 0
      %1135 = vmatprep.subr.bf16.mxu0 0
      %1136 = vmatpush1.bf16.msra.mxu0 0
      %1137 = vmatprep.subr.bf16.mxu0 0
      %1138 = vmatpush1.bf16.msra.mxu0 0
      %1139 = vmatprep.subr.bf16.mxu0 0
      %1140 = vmatpush1.bf16.msra.mxu0 %v1123
      %1141 = vmatprep.subr.bf16.mxu0 0
      %1142 = vmatpush2.bf16.msra.mxu0 0
      %1143 = vmatprep.subr.bf16.mxu0 0
      %1144 = vmatpush2.bf16.msra.mxu0 0
      %1145 = vmatprep.subr.bf16.mxu0 0
      %1146 = vmatpush2.bf16.msra.mxu0 0
      %1147 = vmatprep.subr.bf16.mxu0 0
      %1148 = vmatpush2.bf16.msra.mxu0 0
      %1149 = vmatprep.subr.bf16.mxu0 0
      %1150 = vmatpush2.bf16.msra.mxu0 0
      %1151 = vmatprep.subr.bf16.mxu0 0
      %1152 = vmatpush2.bf16.msra.mxu0 0
      %1153 = vmatprep.subr.bf16.mxu0 0
      %1154 = vmatpush2.bf16.msra.mxu0 0
      %1155 = vmatprep.subr.bf16.mxu0 0
      %1156 = vmatpush2.bf16.msra.mxu0 0
      %1157 = vmatprep.mubr.bf16.mxu0 0
      %1158 = vmatmul.mubr.bf16.gmra.mxu0 %v1120
      %v1159 = vpop.f32.mrf.mxu0
      %v1160 = vadd.f32 0.0, %v1159
      %v1161 = vpop.f32.mrf.mxu0
      %v1162 = vpop.f32.mrf.mxu0
      %v1163 = vadd.f32 0.0, %v1162
      %v1164 = vpop.f32.mrf.mxu0
      %1165 = vdwg.mxu0
      %v1167 = vsel %vm1070, %v991, 0
      %v1170 = vsel %vm1074, %v1043, 0
      %1172 = vmatprep.subr.bf16.mxu0 0
      %1173 = vmatpush1.bf16.msra.mxu0 0
      %1174 = vmatprep.subr.bf16.mxu0 0
      %1175 = vmatpush1.bf16.msra.mxu0 0
      %1176 = vmatprep.subr.bf16.mxu0 0
      %1177 = vmatpush1.bf16.msra.mxu0 0
      %1178 = vmatprep.subr.bf16.mxu0 0
      %1179 = vmatpush1.bf16.msra.mxu0 0
      %1180 = vmatprep.subr.bf16.mxu0 0
      %1181 = vmatpush1.bf16.msra.mxu0 0
      %1182 = vmatprep.subr.bf16.mxu0 0
      %1183 = vmatpush1.bf16.msra.mxu0 0
      %1184 = vmatprep.subr.bf16.mxu0 0
      %1185 = vmatpush1.bf16.msra.mxu0 0
      %1186 = vmatprep.subr.bf16.mxu0 0
      %1187 = vmatpush1.bf16.msra.mxu0 %v1170
      %1188 = vmatprep.subr.bf16.mxu0 0
      %1189 = vmatpush2.bf16.msra.mxu0 0
      %1190 = vmatprep.subr.bf16.mxu0 0
      %1191 = vmatpush2.bf16.msra.mxu0 0
      %1192 = vmatprep.subr.bf16.mxu0 0
      %1193 = vmatpush2.bf16.msra.mxu0 0
      %1194 = vmatprep.subr.bf16.mxu0 0
      %1195 = vmatpush2.bf16.msra.mxu0 0
      %1196 = vmatprep.subr.bf16.mxu0 0
      %1197 = vmatpush2.bf16.msra.mxu0 0
      %1198 = vmatprep.subr.bf16.mxu0 0
      %1199 = vmatpush2.bf16.msra.mxu0 0
      %1200 = vmatprep.subr.bf16.mxu0 0
      %1201 = vmatpush2.bf16.msra.mxu0 0
      %1202 = vmatprep.subr.bf16.mxu0 0
      %1203 = vmatpush2.bf16.msra.mxu0 0
      %1204 = vmatprep.mubr.bf16.mxu0 0
      %1205 = vmatmul.mubr.bf16.gmra.mxu0 %v1167
      %v1206 = vpop.f32.mrf.mxu0
      %v1207 = vadd.f32 0.0, %v1206
      %v1208 = vpop.f32.mrf.mxu0
      %v1209 = vpop.f32.mrf.mxu0
      %v1210 = vadd.f32 0.0, %v1209
      %v1211 = vpop.f32.mrf.mxu0
      %1212 = vdwg.mxu0
      %v1214 = vsel %vm1070, %v993, 0
      %v1217 = vsel %vm1074, %v1062, 0
      %1219 = vmatprep.subr.bf16.mxu0 0
      %1220 = vmatpush1.bf16.msra.mxu0 0
      %1221 = vmatprep.subr.bf16.mxu0 0
      %1222 = vmatpush1.bf16.msra.mxu0 0
      %1223 = vmatprep.subr.bf16.mxu0 0
      %1224 = vmatpush1.bf16.msra.mxu0 0
      %1225 = vmatprep.subr.bf16.mxu0 0
      %1226 = vmatpush1.bf16.msra.mxu0 0
      %1227 = vmatprep.subr.bf16.mxu0 0
      %1228 = vmatpush1.bf16.msra.mxu0 0
      %1229 = vmatprep.subr.bf16.mxu0 0
      %1230 = vmatpush1.bf16.msra.mxu0 0
      %1231 = vmatprep.subr.bf16.mxu0 0
      %1232 = vmatpush1.bf16.msra.mxu0 0
      %1233 = vmatprep.subr.bf16.mxu0 0
      %1234 = vmatpush1.bf16.msra.mxu0 %v1217
      %1235 = vmatprep.subr.bf16.mxu0 0
      %1236 = vmatpush2.bf16.msra.mxu0 0
      %1237 = vmatprep.subr.bf16.mxu0 0
      %1238 = vmatpush2.bf16.msra.mxu0 0
      %1239 = vmatprep.subr.bf16.mxu0 0
      %1240 = vmatpush2.bf16.msra.mxu0 0
      %1241 = vmatprep.subr.bf16.mxu0 0
      %1242 = vmatpush2.bf16.msra.mxu0 0
      %1243 = vmatprep.subr.bf16.mxu0 0
      %1244 = vmatpush2.bf16.msra.mxu0 0
      %1245 = vmatprep.subr.bf16.mxu0 0
      %1246 = vmatpush2.bf16.msra.mxu0 0
      %1247 = vmatprep.subr.bf16.mxu0 0
      %1248 = vmatpush2.bf16.msra.mxu0 0
      %1249 = vmatprep.subr.bf16.mxu0 0
      %1250 = vmatpush2.bf16.msra.mxu0 0
      %1251 = vmatprep.mubr.bf16.mxu0 0
      %1252 = vmatmul.mubr.bf16.gmra.mxu0 %v1214
      %v1253 = vpop.f32.mrf.mxu0
      %v1254 = vadd.f32 0.0, %v1253
      %v1255 = vpop.f32.mrf.mxu0
      %v1256 = vpop.f32.mrf.mxu0
      %v1257 = vadd.f32 0.0, %v1256
      %v1258 = vpop.f32.mrf.mxu0
      %1259 = vdwg.mxu0
      %v1260 = vmul.f32 %v1113, 0.35355338
      %v1261 = vmul.f32 %v1116, 0.35355338
      %v1262 = vmul.f32 %v1160, 0.35355338
      %v1263 = vmul.f32 %v1163, 0.35355338
      %v1264 = vmul.f32 %v1207, 0.35355338
      %v1265 = vmul.f32 %v1210, 0.35355338
      %v1266 = vmul.f32 %v1254, 0.35355338
      %v1267 = vmul.f32 %v1257, 0.35355338
      %vm1268 = vcmask 130048
      %v1269 = vsel %vm1268, %v1260, -inf
      %1270 = vmax.xlane.f32.xlu0 %v1269
      %v1271 = vpop.xlane.xlu0 %1270
      %v1272 = vsel %vm1268, %v1261, -inf
      %1273 = vmax.xlane.f32.xlu0 %v1272
      %v1274 = vpop.xlane.xlu0 %1273
      %v1275 = vsel %vm1268, %v1262, -inf
      %1276 = vmax.xlane.f32.xlu0 %v1275
      %v1277 = vpop.xlane.xlu0 %1276
      %v1278 = vsel %vm1268, %v1263, -inf
      %1279 = vmax.xlane.f32.xlu0 %v1278
      %v1280 = vpop.xlane.xlu0 %1279
      %v1281 = vsel %vm1268, %v1264, -inf
      %1282 = vmax.xlane.f32.xlu0 %v1281
      %v1283 = vpop.xlane.xlu0 %1282
      %v1284 = vsel %vm1268, %v1265, -inf
      %1285 = vmax.xlane.f32.xlu0 %v1284
      %v1286 = vpop.xlane.xlu0 %1285
      %v1287 = vsel %vm1268, %v1266, -inf
      %1288 = vmax.xlane.f32.xlu0 %v1287
      %v1289 = vpop.xlane.xlu0 %1288
      %v1290 = vsel %vm1268, %v1267, -inf
      %1291 = vmax.xlane.f32.xlu0 %v1290
      %v1292 = vpop.xlane.xlu0 %1291
      %v1293 = vsub.f32 %v1260, %v1271
      %v1294 = vsub.f32 %v1261, %v1274
      %v1295 = vsub.f32 %v1262, %v1277
      %v1296 = vsub.f32 %v1263, %v1280
      %v1297 = vsub.f32 %v1264, %v1283
      %v1298 = vsub.f32 %v1265, %v1286
      %v1299 = vsub.f32 %v1266, %v1289
      %v1300 = vsub.f32 %v1267, %v1292
      %v1301 = vmul.f32 %v1293, 1.442695
      %v1302 = vpow.pop %v1301
      %v1303 = vmul.f32 %v1294, 1.442695
      %v1304 = vpow.pop %v1303
      %v1305 = vmul.f32 %v1295, 1.442695
      %v1306 = vpow.pop %v1305
      %v1307 = vmul.f32 %v1296, 1.442695
      %v1308 = vpow.pop %v1307
      %v1309 = vmul.f32 %v1297, 1.442695
      %v1310 = vpow.pop %v1309
      %v1311 = vmul.f32 %v1298, 1.442695
      %v1312 = vpow.pop %v1311
      %v1313 = vmul.f32 %v1299, 1.442695
      %v1314 = vpow.pop %v1313
      %v1315 = vmul.f32 %v1300, 1.442695
      %v1316 = vpow.pop %v1315
      %v1317 = vsel %vm1268, %v1302, 0.0
      %1318 = vadd.xlane.f32.xlu0 %v1317
      %v1319 = vpop.xlane.xlu0 %1318
      %v1320 = vsel %vm1268, %v1304, 0.0
      %1321 = vadd.xlane.f32.xlu0 %v1320
      %v1322 = vpop.xlane.xlu0 %1321
      %v1323 = vsel %vm1268, %v1306, 0.0
      %1324 = vadd.xlane.f32.xlu0 %v1323
      %v1325 = vpop.xlane.xlu0 %1324
      %v1326 = vsel %vm1268, %v1308, 0.0
      %1327 = vadd.xlane.f32.xlu0 %v1326
      %v1328 = vpop.xlane.xlu0 %1327
      %v1329 = vsel %vm1268, %v1310, 0.0
      %1330 = vadd.xlane.f32.xlu0 %v1329
      %v1331 = vpop.xlane.xlu0 %1330
      %v1332 = vsel %vm1268, %v1312, 0.0
      %1333 = vadd.xlane.f32.xlu0 %v1332
      %v1334 = vpop.xlane.xlu0 %1333
      %v1335 = vsel %vm1268, %v1314, 0.0
      %1336 = vadd.xlane.f32.xlu0 %v1335
      %v1337 = vpop.xlane.xlu0 %1336
      %v1338 = vsel %vm1268, %v1316, 0.0
      %1339 = vadd.xlane.f32.xlu0 %v1338
      %v1340 = vpop.xlane.xlu0 %1339
      %v1341 = vrcp.pop %v1319
      %v1342 = vrcp.pop %v1322
      %v1343 = vrcp.pop %v1325
      %v1344 = vrcp.pop %v1328
      %v1345 = vrcp.pop %v1331
      %v1346 = vrcp.pop %v1334
      %v1347 = vrcp.pop %v1337
      %v1348 = vrcp.pop %v1340
      %v1349 = vmul.f32 %v1302, %v1341
      %v1350 = vmul.f32 %v1304, %v1342
      %v1351 = vmul.f32 %v1306, %v1343
      %v1352 = vmul.f32 %v1308, %v1344
      %v1353 = vmul.f32 %v1310, %v1345
      %v1354 = vmul.f32 %v1312, %v1346
      %v1355 = vmul.f32 %v1314, %v1347
      %v1356 = vmul.f32 %v1316, %v1348
      %v1357 = vpack.c.bf16 %v1350, %v1349
      %v1358 = vpack.c.bf16 %v1352, %v1351
      %v1359 = vpack.c.bf16 %v1354, %v1353
      %v1360 = vpack.c.bf16 %v1356, %v1355
      %1361 = vrot.lane.b32.xlu0 %v986, 64
      %v1362 = vpop.permute.xlu0 %1361
      %v1365 = vsel %vm1268, %v1357, 0
      %1367 = vmatprep.subr.bf16.mxu0 0
      %1368 = vmatpush1.bf16.msra.mxu0 0
      %1369 = vmatprep.subr.bf16.mxu0 0
      %1370 = vmatpush1.bf16.msra.mxu0 0
      %1371 = vmatprep.subr.bf16.mxu0 0
      %1372 = vmatpush1.bf16.msra.mxu0 0
      %1373 = vmatprep.subr.bf16.mxu0 0
      %1374 = vmatpush1.bf16.msra.mxu0 0
      %1375 = vmatprep.subr.bf16.mxu0 0
      %1376 = vmatpush1.bf16.msra.mxu0 0
      %1377 = vmatprep.subr.bf16.mxu0 0
      %1378 = vmatpush1.bf16.msra.mxu0 0
      %1379 = vmatprep.subr.bf16.mxu0 0
      %1380 = vmatpush1.bf16.msra.mxu0 0
      %1381 = vmatprep.subr.bf16.mxu0 0
      %1382 = vmatpush1.bf16.msra.mxu0 %v1362
      %1383 = vmatprep.subr.bf16.mxu0 0
      %1384 = vmatpush2.bf16.msra.mxu0 0
      %1385 = vmatprep.subr.bf16.mxu0 0
      %1386 = vmatpush2.bf16.msra.mxu0 0
      %1387 = vmatprep.subr.bf16.mxu0 0
      %1388 = vmatpush2.bf16.msra.mxu0 0
      %1389 = vmatprep.subr.bf16.mxu0 0
      %1390 = vmatpush2.bf16.msra.mxu0 0
      %1391 = vmatprep.subr.bf16.mxu0 0
      %1392 = vmatpush2.bf16.msra.mxu0 0
      %1393 = vmatprep.subr.bf16.mxu0 0
      %1394 = vmatpush2.bf16.msra.mxu0 0
      %1395 = vmatprep.subr.bf16.mxu0 0
      %1396 = vmatpush2.bf16.msra.mxu0 0
      %1397 = vmatprep.subr.bf16.mxu0 0
      %1398 = vmatpush2.bf16.msra.mxu0 0
      %1399 = vmatprep.mubr.bf16.mxu0 0
      %1400 = vmatmul.mubr.bf16.gmra.mxu0 %v1365
      %v1401 = vpop.f32.mrf.mxu0
      %v1402 = vadd.f32 0.0, %v1401
      %v1403 = vpop.f32.mrf.mxu0
      %v1404 = vpop.f32.mrf.mxu0
      %v1405 = vadd.f32 0.0, %v1404
      %v1406 = vpop.f32.mrf.mxu0
      %1407 = vdwg.mxu0
      %1408 = vrot.lane.b32.xlu0 %v989, 64
      %v1409 = vpop.permute.xlu0 %1408
      %v1412 = vsel %vm1268, %v1358, 0
      %1414 = vmatprep.subr.bf16.mxu0 0
      %1415 = vmatpush1.bf16.msra.mxu0 0
      %1416 = vmatprep.subr.bf16.mxu0 0
      %1417 = vmatpush1.bf16.msra.mxu0 0
      %1418 = vmatprep.subr.bf16.mxu0 0
      %1419 = vmatpush1.bf16.msra.mxu0 0
      %1420 = vmatprep.subr.bf16.mxu0 0
      %1421 = vmatpush1.bf16.msra.mxu0 0
      %1422 = vmatprep.subr.bf16.mxu0 0
      %1423 = vmatpush1.bf16.msra.mxu0 0
      %1424 = vmatprep.subr.bf16.mxu0 0
      %1425 = vmatpush1.bf16.msra.mxu0 0
      %1426 = vmatprep.subr.bf16.mxu0 0
      %1427 = vmatpush1.bf16.msra.mxu0 0
      %1428 = vmatprep.subr.bf16.mxu0 0
      %1429 = vmatpush1.bf16.msra.mxu0 %v1409
      %1430 = vmatprep.subr.bf16.mxu0 0
      %1431 = vmatpush2.bf16.msra.mxu0 0
      %1432 = vmatprep.subr.bf16.mxu0 0
      %1433 = vmatpush2.bf16.msra.mxu0 0
      %1434 = vmatprep.subr.bf16.mxu0 0
      %1435 = vmatpush2.bf16.msra.mxu0 0
      %1436 = vmatprep.subr.bf16.mxu0 0
      %1437 = vmatpush2.bf16.msra.mxu0 0
      %1438 = vmatprep.subr.bf16.mxu0 0
      %1439 = vmatpush2.bf16.msra.mxu0 0
      %1440 = vmatprep.subr.bf16.mxu0 0
      %1441 = vmatpush2.bf16.msra.mxu0 0
      %1442 = vmatprep.subr.bf16.mxu0 0
      %1443 = vmatpush2.bf16.msra.mxu0 0
      %1444 = vmatprep.subr.bf16.mxu0 0
      %1445 = vmatpush2.bf16.msra.mxu0 0
      %1446 = vmatprep.mubr.bf16.mxu0 0
      %1447 = vmatmul.mubr.bf16.gmra.mxu0 %v1412
      %v1448 = vpop.f32.mrf.mxu0
      %v1449 = vadd.f32 0.0, %v1448
      %v1450 = vpop.f32.mrf.mxu0
      %v1451 = vpop.f32.mrf.mxu0
      %v1452 = vadd.f32 0.0, %v1451
      %v1453 = vpop.f32.mrf.mxu0
      %1454 = vdwg.mxu0
      %1455 = vrot.lane.b32.xlu0 %v991, 64
      %v1456 = vpop.permute.xlu0 %1455
      %v1459 = vsel %vm1268, %v1359, 0
      %1461 = vmatprep.subr.bf16.mxu0 0
      %1462 = vmatpush1.bf16.msra.mxu0 0
      %1463 = vmatprep.subr.bf16.mxu0 0
      %1464 = vmatpush1.bf16.msra.mxu0 0
      %1465 = vmatprep.subr.bf16.mxu0 0
      %1466 = vmatpush1.bf16.msra.mxu0 0
      %1467 = vmatprep.subr.bf16.mxu0 0
      %1468 = vmatpush1.bf16.msra.mxu0 0
      %1469 = vmatprep.subr.bf16.mxu0 0
      %1470 = vmatpush1.bf16.msra.mxu0 0
      %1471 = vmatprep.subr.bf16.mxu0 0
      %1472 = vmatpush1.bf16.msra.mxu0 0
      %1473 = vmatprep.subr.bf16.mxu0 0
      %1474 = vmatpush1.bf16.msra.mxu0 0
      %1475 = vmatprep.subr.bf16.mxu0 0
      %1476 = vmatpush1.bf16.msra.mxu0 %v1456
      %1477 = vmatprep.subr.bf16.mxu0 0
      %1478 = vmatpush2.bf16.msra.mxu0 0
      %1479 = vmatprep.subr.bf16.mxu0 0
      %1480 = vmatpush2.bf16.msra.mxu0 0
      %1481 = vmatprep.subr.bf16.mxu0 0
      %1482 = vmatpush2.bf16.msra.mxu0 0
      %1483 = vmatprep.subr.bf16.mxu0 0
      %1484 = vmatpush2.bf16.msra.mxu0 0
      %1485 = vmatprep.subr.bf16.mxu0 0
      %1486 = vmatpush2.bf16.msra.mxu0 0
      %1487 = vmatprep.subr.bf16.mxu0 0
      %1488 = vmatpush2.bf16.msra.mxu0 0
      %1489 = vmatprep.subr.bf16.mxu0 0
      %1490 = vmatpush2.bf16.msra.mxu0 0
      %1491 = vmatprep.subr.bf16.mxu0 0
      %1492 = vmatpush2.bf16.msra.mxu0 0
      %1493 = vmatprep.mubr.bf16.mxu0 0
      %1494 = vmatmul.mubr.bf16.gmra.mxu0 %v1459
      %v1495 = vpop.f32.mrf.mxu0
      %v1496 = vadd.f32 0.0, %v1495
      %v1497 = vpop.f32.mrf.mxu0
      %v1498 = vpop.f32.mrf.mxu0
      %v1499 = vadd.f32 0.0, %v1498
      %v1500 = vpop.f32.mrf.mxu0
      %1501 = vdwg.mxu0
      %1502 = vrot.lane.b32.xlu0 %v993, 64
      %v1503 = vpop.permute.xlu0 %1502
      %v1506 = vsel %vm1268, %v1360, 0
      %1508 = vmatprep.subr.bf16.mxu0 0
      %1509 = vmatpush1.bf16.msra.mxu0 0
      %1510 = vmatprep.subr.bf16.mxu0 0
      %1511 = vmatpush1.bf16.msra.mxu0 0
      %1512 = vmatprep.subr.bf16.mxu0 0
      %1513 = vmatpush1.bf16.msra.mxu0 0
      %1514 = vmatprep.subr.bf16.mxu0 0
      %1515 = vmatpush1.bf16.msra.mxu0 0
      %1516 = vmatprep.subr.bf16.mxu0 0
      %1517 = vmatpush1.bf16.msra.mxu0 0
      %1518 = vmatprep.subr.bf16.mxu0 0
      %1519 = vmatpush1.bf16.msra.mxu0 0
      %1520 = vmatprep.subr.bf16.mxu0 0
      %1521 = vmatpush1.bf16.msra.mxu0 0
      %1522 = vmatprep.subr.bf16.mxu0 0
      %1523 = vmatpush1.bf16.msra.mxu0 %v1503
      %1524 = vmatprep.subr.bf16.mxu0 0
      %1525 = vmatpush2.bf16.msra.mxu0 0
      %1526 = vmatprep.subr.bf16.mxu0 0
      %1527 = vmatpush2.bf16.msra.mxu0 0
      %1528 = vmatprep.subr.bf16.mxu0 0
      %1529 = vmatpush2.bf16.msra.mxu0 0
      %1530 = vmatprep.subr.bf16.mxu0 0
      %1531 = vmatpush2.bf16.msra.mxu0 0
      %1532 = vmatprep.subr.bf16.mxu0 0
      %1533 = vmatpush2.bf16.msra.mxu0 0
      %1534 = vmatprep.subr.bf16.mxu0 0
      %1535 = vmatpush2.bf16.msra.mxu0 0
      %1536 = vmatprep.subr.bf16.mxu0 0
      %1537 = vmatpush2.bf16.msra.mxu0 0
      %1538 = vmatprep.subr.bf16.mxu0 0
      %1539 = vmatpush2.bf16.msra.mxu0 0
      %1540 = vmatprep.mubr.bf16.mxu0 0
      %1541 = vmatmul.mubr.bf16.gmra.mxu0 %v1506
      %v1542 = vpop.f32.mrf.mxu0
      %v1543 = vadd.f32 0.0, %v1542
      %v1544 = vpop.f32.mrf.mxu0
      %v1545 = vpop.f32.mrf.mxu0
      %v1546 = vadd.f32 0.0, %v1545
      %v1547 = vpop.f32.mrf.mxu0
      %1548 = vdwg.mxu0
      %1551 = vrot.lane.b32.xlu0 %v1449, 8
      %v1552 = vpop.permute.xlu0 %1551
      %1553 = vrot.lane.b32.xlu0 %v1452, 8
      %v1554 = vpop.permute.xlu0 %1553
      %1559 = vrot.lane.b32.xlu0 %v1496, 16
      %v1560 = vpop.permute.xlu0 %1559
      %1561 = vrot.lane.b32.xlu0 %v1499, 16
      %v1562 = vpop.permute.xlu0 %1561
      %1567 = vrot.lane.b32.xlu0 %v1543, 24
      %v1568 = vpop.permute.xlu0 %1567
      %1569 = vrot.lane.b32.xlu0 %v1546, 24
      %v1570 = vpop.permute.xlu0 %1569
      %v1573 = vsel %vm1070, %v1402, %v1552
      %v1574 = vsel %vm1070, %v1405, %v1554
      %v1575 = vsel %vm1268, %v1573, %v1560
      %v1576 = vsel %vm1268, %v1574, %v1562
      %vm1577 = vcmask 195584
      %v1578 = vsel %vm1577, %v1575, %v1568
      %v1579 = vsel %vm1577, %v1576, %v1570
      %v1580 = vpack.c.bf16 %v1579, %v1578
      %v1582 = vlaneseq
      %v1583 = vshrl.u32 %v1582, 7
      %v1584 = vsub.s32 0, %v1583
      %v1585 = vrot.slane %v985, %v1584
      %v1591 = vunpack.c.l.b16 %v981
      %v1592 = vunpack.c.l.b16 %v982
      %v1593 = vunpack.c.l.b16 %v983
      %v1594 = vunpack.c.l.b16 %v984
      %v1595 = vpack.c.b16 %v1592, %v1591
      %v1596 = vpack.c.b16 %v1594, %v1593
      %v1600 = vsel %vm869, %v1580, 0
      %1602 = vmatprep.subr.bf16.mxu0 0
      %1603 = vmatpush1.bf16.msra.mxu0 0
      %1604 = vmatprep.subr.bf16.mxu0 0
      %1605 = vmatpush1.bf16.msra.mxu0 0
      %1606 = vmatprep.subr.bf16.mxu0 0
      %1607 = vmatpush1.bf16.msra.mxu0 0
      %1608 = vmatprep.subr.bf16.mxu0 0
      %1609 = vmatpush1.bf16.msra.mxu0 0
      %1610 = vmatprep.subr.bf16.mxu0 0
      %1611 = vmatpush1.bf16.msra.mxu0 0
      %1612 = vmatprep.subr.bf16.mxu0 0
      %1613 = vmatpush1.bf16.msra.mxu0 0
      %1614 = vmatprep.subr.bf16.mxu0 0
      %1615 = vmatpush1.bf16.msra.mxu0 %v1596
      %1616 = vmatprep.subr.bf16.mxu0 0
      %1617 = vmatpush1.bf16.msra.mxu0 %v1595
      %1618 = vmatprep.subr.bf16.mxu0 0
      %1619 = vmatpush2.bf16.msra.mxu0 0
      %1620 = vmatprep.subr.bf16.mxu0 0
      %1621 = vmatpush2.bf16.msra.mxu0 0
      %1622 = vmatprep.subr.bf16.mxu0 0
      %1623 = vmatpush2.bf16.msra.mxu0 0
      %1624 = vmatprep.subr.bf16.mxu0 0
      %1625 = vmatpush2.bf16.msra.mxu0 0
      %1626 = vmatprep.subr.bf16.mxu0 0
      %1627 = vmatpush2.bf16.msra.mxu0 0
      %1628 = vmatprep.subr.bf16.mxu0 0
      %1629 = vmatpush2.bf16.msra.mxu0 0
      %1630 = vmatprep.subr.bf16.mxu0 0
      %1631 = vmatpush2.bf16.msra.mxu0 0
      %1632 = vmatprep.subr.bf16.mxu0 0
      %1633 = vmatpush2.bf16.msra.mxu0 0
      %1634 = vmatprep.mubr.bf16.mxu0 0
      %1635 = vmatmul.mubr.bf16.gmra.mxu0 %v1600
      %v1636 = vpop.f32.mrf.mxu0
      %v1637 = vadd.f32 %v1585, %v1636
      %v1638 = vpop.f32.mrf.mxu0
      %v1639 = vpop.f32.mrf.mxu0
      %v1640 = vadd.f32 %v1585, %v1639
      %v1641 = vpop.f32.mrf.mxu0
      %1642 = vdwg.mxu0
      %v1643 = vadd.f32 %v865, %v1637
      %v1644 = vadd.f32 %v866, %v1640
      %v1645 = vld [vmem:[%s755] sm:$0x1]
      %v1646 = vld [vmem:[%s758] sm:$0x1]
      %v1647 = vsel %vm869, %v1643, 0.0
      %1648 = vadd.xlane.f32.xlu0 %v1647
      %v1649 = vpop.xlane.xlu0 %1648
      %v1650 = vsel %vm869, %v1644, 0.0
      %1651 = vadd.xlane.f32.xlu0 %v1650
      %v1652 = vpop.xlane.xlu0 %1651
      %v1653 = vmul.f32 %v1649, %v876
      %v1654 = vmul.f32 %v1652, %v876
      %v1655 = vsub.f32 %v1643, %v1653
      %v1656 = vsub.f32 %v1644, %v1654
      %v1657 = vmul.f32 %v1655, %v1655
      %v1658 = vmul.f32 %v1656, %v1656
      %v1659 = vsel %vm869, %v1657, 0.0
      %1660 = vadd.xlane.f32.xlu0 %v1659
      %v1661 = vpop.xlane.xlu0 %1660
      %v1662 = vsel %vm869, %v1658, 0.0
      %1663 = vadd.xlane.f32.xlu0 %v1662
      %v1664 = vpop.xlane.xlu0 %1663
      %v1665 = vmul.f32 %v1661, %v876
      %v1666 = vmul.f32 %v1664, %v876
      %v1667 = vadd.f32 %v1665, 1e-05
      %v1668 = vadd.f32 %v1666, 1e-05
      %v1669 = vrsqrt.pop %v1667
      %v1670 = vrsqrt.pop %v1668
      %v1671 = vmul.f32 %v1655, %v1669
      %v1672 = vmul.f32 %v1656, %v1670
      %v1674 = vlaneseq
      %v1675 = vshrl.u32 %v1674, 7
      %v1676 = vsub.s32 0, %v1675
      %v1677 = vrot.slane %v1645, %v1676
      %v1679 = vmul.f32 %v1671, %v1677
      %v1680 = vmul.f32 %v1672, %v1677
      %v1682 = vlaneseq
      %v1683 = vshrl.u32 %v1682, 7
      %v1684 = vsub.s32 0, %v1683
      %v1685 = vrot.slane %v1646, %v1684
      %v1687 = vadd.f32 %v1679, %v1685
      %v1688 = vadd.f32 %v1680, %v1685
      %v1689 = vpack.c.bf16 %v1688, %v1687
      %v1690 = vld [vmem:[%s763] sm:$0xf]
      %v1691 = vld [vmem:[%s763 + $0x4] sm:$0xf]
      %v1692 = vld [vmem:[%s763 + $0x8] sm:$0xf]
      %v1693 = vld [vmem:[%s763 + $0xc] sm:$0xf]
      %v1694 = vld [vmem:[%s766] sm:$0x1]
      %v1696 = vlaneseq
      %v1697 = vshrl.u32 %v1696, 7
      %v1698 = vsub.s32 0, %v1697
      %v1699 = vrot.slane %v1694, %v1698
      %v1705 = vunpack.c.l.b16 %v1690
      %v1706 = vunpack.c.l.b16 %v1691
      %v1707 = vunpack.c.l.b16 %v1692
      %v1708 = vunpack.c.l.b16 %v1693
      %v1709 = vpack.c.b16 %v1706, %v1705
      %v1710 = vpack.c.b16 %v1708, %v1707
      %v1714 = vsel %vm869, %v1689, 0
      %1716 = vmatprep.subr.bf16.mxu0 0
      %1717 = vmatpush1.bf16.msra.mxu0 0
      %1718 = vmatprep.subr.bf16.mxu0 0
      %1719 = vmatpush1.bf16.msra.mxu0 0
      %1720 = vmatprep.subr.bf16.mxu0 0
      %1721 = vmatpush1.bf16.msra.mxu0 0
      %1722 = vmatprep.subr.bf16.mxu0 0
      %1723 = vmatpush1.bf16.msra.mxu0 0
      %1724 = vmatprep.subr.bf16.mxu0 0
      %1725 = vmatpush1.bf16.msra.mxu0 0
      %1726 = vmatprep.subr.bf16.mxu0 0
      %1727 = vmatpush1.bf16.msra.mxu0 0
      %1728 = vmatprep.subr.bf16.mxu0 0
      %1729 = vmatpush1.bf16.msra.mxu0 %v1710
      %1730 = vmatprep.subr.bf16.mxu0 0
      %1731 = vmatpush1.bf16.msra.mxu0 %v1709
      %1732 = vmatprep.subr.bf16.mxu0 0
      %1733 = vmatpush2.bf16.msra.mxu0 0
      %1734 = vmatprep.subr.bf16.mxu0 0
      %1735 = vmatpush2.bf16.msra.mxu0 0
      %1736 = vmatprep.subr.bf16.mxu0 0
      %1737 = vmatpush2.bf16.msra.mxu0 0
      %1738 = vmatprep.subr.bf16.mxu0 0
      %1739 = vmatpush2.bf16.msra.mxu0 0
      %1740 = vmatprep.subr.bf16.mxu0 0
      %1741 = vmatpush2.bf16.msra.mxu0 0
      %1742 = vmatprep.subr.bf16.mxu0 0
      %1743 = vmatpush2.bf16.msra.mxu0 0
      %1744 = vmatprep.subr.bf16.mxu0 0
      %1745 = vmatpush2.bf16.msra.mxu0 0
      %1746 = vmatprep.subr.bf16.mxu0 0
      %1747 = vmatpush2.bf16.msra.mxu0 0
      %1748 = vmatprep.mubr.bf16.mxu0 0
      %1749 = vmatmul.mubr.bf16.gmra.mxu0 %v1714
      %v1750 = vpop.f32.mrf.mxu0
      %v1751 = vadd.f32 %v1699, %v1750
      %v1752 = vpop.f32.mrf.mxu0
      %v1753 = vpop.f32.mrf.mxu0
      %v1754 = vadd.f32 %v1699, %v1753
      %v1755 = vpop.f32.mrf.mxu0
      %1756 = vdwg.mxu0
      %v1757 = vmax.f32 %v1751, 0.0
      %v1758 = vmax.f32 %v1754, 0.0
      %v1759 = vpack.c.bf16 %v1758, %v1757
      %v1760 = vld [vmem:[%s771] sm:$0xf]
      %v1761 = vld [vmem:[%s771 + $0x4] sm:$0xf]
      %v1762 = vld [vmem:[%s771 + $0x8] sm:$0xf]
      %v1763 = vld [vmem:[%s771 + $0xc] sm:$0xf]
      %v1764 = vld [vmem:[%s771 + $0x10] sm:$0xf]
      %v1765 = vld [vmem:[%s771 + $0x14] sm:$0xf]
      %v1766 = vld [vmem:[%s771 + $0x18] sm:$0xf]
      %v1767 = vld [vmem:[%s771 + $0x1c] sm:$0xf]
      %v1776 = vunpack.c.l.b16 %v1760
      %v1777 = vunpack.c.l.b16 %v1761
      %v1778 = vunpack.c.l.b16 %v1762
      %v1779 = vunpack.c.l.b16 %v1763
      %v1780 = vunpack.c.l.b16 %v1764
      %v1781 = vunpack.c.l.b16 %v1765
      %v1782 = vunpack.c.l.b16 %v1766
      %v1783 = vunpack.c.l.b16 %v1767
      %v1784 = vpack.c.b16 %v1777, %v1776
      %v1785 = vpack.c.b16 %v1779, %v1778
      %v1786 = vpack.c.b16 %v1781, %v1780
      %v1787 = vpack.c.b16 %v1783, %v1782
      %vm1792 = vcmask 523264
      %v1794 = vsel %vm1792, %v1759, 0
      %1796 = vmatprep.subr.bf16.mxu0 0
      %1797 = vmatpush1.bf16.msra.mxu0 0
      %1798 = vmatprep.subr.bf16.mxu0 0
      %1799 = vmatpush1.bf16.msra.mxu0 0
      %1800 = vmatprep.subr.bf16.mxu0 0
      %1801 = vmatpush1.bf16.msra.mxu0 0
      %1802 = vmatprep.subr.bf16.mxu0 0
      %1803 = vmatpush1.bf16.msra.mxu0 0
      %1804 = vmatprep.subr.bf16.mxu0 0
      %1805 = vmatpush1.bf16.msra.mxu0 %v1787
      %1806 = vmatprep.subr.bf16.mxu0 0
      %1807 = vmatpush1.bf16.msra.mxu0 %v1786
      %1808 = vmatprep.subr.bf16.mxu0 0
      %1809 = vmatpush1.bf16.msra.mxu0 %v1785
      %1810 = vmatprep.subr.bf16.mxu0 0
      %1811 = vmatpush1.bf16.msra.mxu0 %v1784
      %1812 = vmatprep.subr.bf16.mxu0 0
      %1813 = vmatpush2.bf16.msra.mxu0 0
      %1814 = vmatprep.subr.bf16.mxu0 0
      %1815 = vmatpush2.bf16.msra.mxu0 0
      %1816 = vmatprep.subr.bf16.mxu0 0
      %1817 = vmatpush2.bf16.msra.mxu0 0
      %1818 = vmatprep.subr.bf16.mxu0 0
      %1819 = vmatpush2.bf16.msra.mxu0 0
      %1820 = vmatprep.subr.bf16.mxu0 0
      %1821 = vmatpush2.bf16.msra.mxu0 0
      %1822 = vmatprep.subr.bf16.mxu0 0
      %1823 = vmatpush2.bf16.msra.mxu0 0
      %1824 = vmatprep.subr.bf16.mxu0 0
      %1825 = vmatpush2.bf16.msra.mxu0 0
      %1826 = vmatprep.subr.bf16.mxu0 0
      %1827 = vmatpush2.bf16.msra.mxu0 0
      %1828 = vmatprep.mubr.bf16.mxu0 0
      %1829 = vmatmul.mubr.bf16.gmra.mxu0 %v1794
      %v1830 = vpop.f32.mrf.mxu0
      %v1831 = vadd.f32 0.0, %v1830
      %v1832 = vpop.f32.mrf.mxu0
      %v1833 = vpop.f32.mrf.mxu0
      %v1834 = vadd.f32 0.0, %v1833
      %v1835 = vpop.f32.mrf.mxu0
      %1836 = vdwg.mxu0
      %v1837 = vadd.f32 %v1643, %v1831
      %v1838 = vadd.f32 %v1644, %v1834
      %v1839 = vld [vmem:[%s774] sm:$0x1]
      %v1841 = vlaneseq
      %v1842 = vshrl.u32 %v1841, 7
      %v1843 = vsub.s32 0, %v1842
      %v1844 = vrot.slane %v1839, %v1843
      %v1846 = vadd.f32 %v1837, %v1844
      %v1847 = vadd.f32 %v1838, %v1844
      %1848 = vst.msk [vmem:[#allocation2] sm:$0xff] %vm869, %v1846
      %1849 = vst.msk [vmem:[#allocation2 + $0x8] sm:$0xff] %vm869, %v1847
      %p1850 = scmp.eq.s32.totalorder %s34, 1
      // Predicated region
      $region97: #{cnn_transformer_forward.2} parent=91 // pred_check
        %p1851 = pneg %p1850
      $region98: #{cnn_transformer_forward.2} parent=91 // pred_check_branch
        %1853 = sbr.rel (%p1851) target = $region100
      $region99: #{cnn_transformer_forward.2} parent=91 // pred_region
        %v1854 = vld [vmem:[%s16] sm:$0x1]
        %v1855 = vld [vmem:[%s17] sm:$0x1]
        %v1856 = vsel %vm869, %v1846, 0.0
        %1857 = vadd.xlane.f32.xlu0 %v1856
        %v1858 = vpop.xlane.xlu0 %1857
        %v1859 = vsel %vm869, %v1847, 0.0
        %1860 = vadd.xlane.f32.xlu0 %v1859
        %v1861 = vpop.xlane.xlu0 %1860
        %v1862 = vmul.f32 %v1858, %v876
        %v1863 = vmul.f32 %v1861, %v876
        %v1864 = vsub.f32 %v1846, %v1862
        %v1865 = vsub.f32 %v1847, %v1863
        %v1866 = vmul.f32 %v1864, %v1864
        %v1867 = vmul.f32 %v1865, %v1865
        %v1868 = vsel %vm869, %v1866, 0.0
        %1869 = vadd.xlane.f32.xlu0 %v1868
        %v1870 = vpop.xlane.xlu0 %1869
        %v1871 = vsel %vm869, %v1867, 0.0
        %1872 = vadd.xlane.f32.xlu0 %v1871
        %v1873 = vpop.xlane.xlu0 %1872
        %v1874 = vmul.f32 %v1870, %v876
        %v1875 = vmul.f32 %v1873, %v876
        %v1876 = vadd.f32 %v1874, 1e-05
        %v1877 = vadd.f32 %v1875, 1e-05
        %v1878 = vrsqrt.pop %v1876
        %v1879 = vrsqrt.pop %v1877
        %v1880 = vmul.f32 %v1864, %v1878
        %v1881 = vmul.f32 %v1865, %v1879
        %v1883 = vlaneseq
        %v1884 = vshrl.u32 %v1883, 7
        %v1885 = vsub.s32 0, %v1884
        %v1886 = vrot.slane %v1854, %v1885
        %v1888 = vmul.f32 %v1880, %v1886
        %v1889 = vmul.f32 %v1881, %v1886
        %v1891 = vlaneseq
        %v1892 = vshrl.u32 %v1891, 7
        %v1893 = vsub.s32 0, %v1892
        %v1894 = vrot.slane %v1855, %v1893
        %v1896 = vadd.f32 %v1888, %v1894
        %v1897 = vadd.f32 %v1889, %v1894
        %1898 = vst.msk [vmem:[%s779] sm:$0xff] %vm869, %v1896
        %1899 = vst.msk [vmem:[%s779 + $0x8] sm:$0xff] %vm869, %v1897
      $region100: #{cnn_transformer_forward.2} parent=91 // pred_fallthru
        _
      %p1900 = scmp.lt.s32.totalorder %s33, 1
      %s1901 = scalar_select %p1900, %s33, 1
      %s1902 = smul.addr %s1901, 2
      %s1903 = smul.addr %s1902, 8
      %s1904 = scalar_lea.vmem %s18, %s1903
      // Predicated region
      $region101: #{cnn_transformer_forward.2} parent=91 // pred_check
        %p1905 = pneg %p502
      $region102: #{cnn_transformer_forward.2} parent=91 // pred_check_branch
        %1907 = sbr.rel (%p1905) target = $region104
      $region103: #{cnn_transformer_forward.2} parent=91 // pred_region
        _
      $region104: #{cnn_transformer_forward.2} parent=91 // pred_fallthru
        _
    $region92: #{cnn_transformer_forward.2} parent=5 // pred_fallthru
      _
    %p1908 = scmp.le.s32.totalorder 2, %s24
    // Predicated region
    $region105: #{cnn_transformer_forward.2} parent=5 // pred_check
      %p1909 = pneg %p1908
    $region106: #{cnn_transformer_forward.2} parent=5 // pred_check_branch
      %1911 = sbr.rel (%p1909) target = $region108
    $region107: #{cnn_transformer_forward.2} parent=5 // pred_region
      %s1912 = ssub.s32 %s24, 2
      // Predicated region
      $region109: #{cnn_transformer_forward.2} parent=107 // pred_check
        %p1913 = pneg %p508
      $region110: #{cnn_transformer_forward.2} parent=107 // pred_check_branch
        %1915 = sbr.rel (%p1913) target = $region112
      $region111: #{cnn_transformer_forward.2} parent=107 // pred_region
        %p1916 = scmp.lt.s32.totalorder %s35, 1
        %s1917 = scalar_select %p1916, %s35, 1
        %s1918 = smul.addr %s1917, 2
        %s1919 = smul.addr %s1918, 8
        %s1920 = scalar_lea.vmem %s18, %s1919
      $region112: #{cnn_transformer_forward.2} parent=107 // pred_fallthru
        _
    $region108: #{cnn_transformer_forward.2} parent=5 // pred_fallthru
      _
  $region6: #{cnn_transformer_forward.2} parent=0 // loop_footer
    %s28 = sadd.s32 1, %s24
  $region7: #{cnn_transformer_forward.2} parent=0 // loop_footer_branch
    %23 = sbr.rel target = $region3
  $region8: #{cnn_transformer_forward.2} parent=0 // loop_exit
    _

// kernel: cnn_transformer_forward.3
$region0: #{cnn_transformer_forward.3}
  #allocation0 [shape = 'u32[]', space=smem, size = 0x4, offset = 0x4, fixed_abs, tag = 'smem constant byte address 0x4 - core index']
  #allocation1 [shape = 'u32[144,128]{1,0:T(1,128)}', space=vmem, size = 0x12000, scoped, tag = 'internal scratch']
  #allocation2 [shape = 'f32[8,32]{1,0:T(8,128)}', space=vmem, size = 0x1000, scoped, tag = 'scratch operand']
  %s0 = inlined_call_operand.vmem [shape: f32[2,8,32], index: 0, kind: input, shape index: {}]
  %s1 = inlined_call_operand.vmem [shape: f32[2,16,32], index: 1, kind: input, shape index: {}]
  %s2 = inlined_call_operand.vmem [shape: f32[2,1,32], index: 2, kind: input, shape index: {}]
  %s3 = inlined_call_operand.vmem [shape: f32[2,1,32], index: 3, kind: input, shape index: {}]
  %s4 = inlined_call_operand.vmem [shape: bf16[2,32,96], index: 4, kind: input, shape index: {}]
  %s5 = inlined_call_operand.vmem [shape: f32[2,1,96], index: 5, kind: input, shape index: {}]
  %s6 = inlined_call_operand.vmem [shape: bf16[2,32,32], index: 6, kind: input, shape index: {}]
  %s7 = inlined_call_operand.vmem [shape: f32[2,1,32], index: 7, kind: input, shape index: {}]
  %s8 = inlined_call_operand.vmem [shape: f32[2,1,32], index: 8, kind: input, shape index: {}]
  %s9 = inlined_call_operand.vmem [shape: f32[2,1,32], index: 9, kind: input, shape index: {}]
  %s10 = inlined_call_operand.vmem [shape: bf16[2,32,32], index: 10, kind: input, shape index: {}]
  %s11 = inlined_call_operand.vmem [shape: f32[2,1,32], index: 11, kind: input, shape index: {}]
  %s12 = inlined_call_operand.vmem [shape: bf16[2,32,64], index: 12, kind: input, shape index: {}]
  %s13 = inlined_call_operand.vmem [shape: f32[2,1,64], index: 13, kind: input, shape index: {}]
  %s14 = inlined_call_operand.vmem [shape: bf16[2,32,32], index: 14, kind: input, shape index: {}]
  %s15 = inlined_call_operand.vmem [shape: f32[2,1,32], index: 15, kind: input, shape index: {}]
  %s16 = inlined_call_operand.vmem [shape: f32[2,1,32], index: 16, kind: input, shape index: {}]
  %s17 = inlined_call_operand.vmem [shape: f32[2,1,32], index: 17, kind: input, shape index: {}]
  %s18 = inlined_call_operand.vmem [shape: bf16[2,32,64], index: 18, kind: input, shape index: {}]
  %s19 = inlined_call_operand.vmem [shape: f32[2,1,64], index: 19, kind: input, shape index: {}]
  %s20 = inlined_call_operand.vmem [shape: bf16[2,64,32], index: 20, kind: input, shape index: {}]
  %s21 = inlined_call_operand.vmem [shape: f32[2,1,32], index: 21, kind: input, shape index: {}]
  %s22 = inlined_call_operand.hbm [shape: f32[1,32], index: 22, kind: input, shape index: {}]
  %s23 = inlined_call_operand.hbm [shape: f32[1,32], index: 23, kind: input, shape index: {}]
  %s24 = inlined_call_operand.vmem [shape: bf16[32,128], index: 24, kind: input, shape index: {}]
  %s25 = inlined_call_operand.hbm [shape: f32[1,128], index: 25, kind: input, shape index: {}]
  %s26 = inlined_call_operand.hbm [shape: f32[2,8,128], index: 26, kind: output, shape index: {0}]
  %s27 = inlined_call_operand.hbm [shape: f32[2,8,128], index: 27, kind: output, shape index: {1}]
  %28 = xla_tuple %s26, %s27
  %s29 = sld [smem:[#allocation0]]
  $region165: #{cnn_transformer_forward.3} parent=0
    _
  %s31 = ssub.s32 1, %s29
  %s32 = scalar_select 0, %s31, %s29
  $region1: #{cnn_transformer_forward.3} parent=0
    #allocation3 [shape = 'u8[512]{0}', space=vmem, size = 0x400, scoped, tag = 'input window, operand 22, single buffered']
    #allocation4 [shape = 's32[2]{0}', space=sflag, size = 0x8, scoped, tag = 'scoped memory for cnn_transformer_forward.3']
    #allocation5 [shape = 's32[2]{0}', space=sflag, size = 0x8, scoped, tag = 'scoped memory for cnn_transformer_forward.3']
    #allocation6 [shape = 'u8[512]{0}', space=vmem, size = 0x400, scoped, tag = 'input window, operand 23, single buffered']
    #allocation7 [shape = 's32[1]{0}', space=sflag, size = 0x4, scoped, tag = 'scoped memory for cnn_transformer_forward.3']
    #allocation8 [shape = 'u8[512]{0}', space=vmem, size = 0x400, scoped, tag = 'input window, operand 25, single buffered']
    #allocation9 [shape = 'u8[8192]{0}', space=vmem, size = 0x2000, scoped, tag = 'output window, operand 0']
    #allocation10 [shape = 'u8[8192]{0}', space=vmem, size = 0x2000, scoped, tag = 'output window, operand 1']
    #allocation11 [shape = 's32[2]{0}', space=sflag, size = 0x8, scoped, tag = 'scoped memory for cnn_transformer_forward.3']
    %33 = vsyncpa [#allocation4], 0
    %34 = vsyncpa [#allocation7], 0
    %35 = vsyncpa [#allocation5], 0
    %s36 = scalar_lea.sflag [#allocation5], 1
    %37 = vsyncpa %s36, 0
    %38 = vsyncpa [#allocation11], 0
    %s39 = scalar_lea.sflag [#allocation11], 1
    %40 = vsyncpa %s39, 0
    loop: start=0, step=1, limit=6
    $region2: #{cnn_transformer_forward.3} parent=1 // loop_pre_header
      _
    $region3: #{cnn_transformer_forward.3} parent=1 // loop_header
      %s42 = sphi 0, %s46
      %p43 = scmp.ge.s32.totalorder %s42, 6
      %s49 = sphi 0, %s61
      %s50 = sphi 0, %s57
      %s51 = sphi 0, %s49
      %s52 = sphi 0, %s50
      %s53 = sphi 0, %s51
      %s54 = sphi 0, %s52
      %s64 = sphi 0, %s66
      %s67 = sphi 0, %s64
      %s68 = sphi 0, %s67
      %s84 = sphi 0, %s68
      %s90 = sphi 0, %s92
      %s93 = sphi 0, %s90
      %s94 = sphi 0, %s93
      %s110 = sphi 0, %s94
      %s116 = sphi 0, %s118
      %s119 = sphi 0, %s116
      %s120 = sphi 0, %s119
      %s136 = sphi 0, %s120
      %s142 = sphi 0, %s144
      %s145 = sphi 0, %s142
      %s146 = sphi 0, %s145
      %s162 = sphi 0, %s146
      %s168 = sphi 0, %s170
      %s171 = sphi 0, %s168
      %s172 = sphi 0, %s171
      %s188 = sphi 0, %s172
      %s194 = sphi 0, %s196
      %s197 = sphi 0, %s194
      %s198 = sphi 0, %s197
      %s214 = sphi 0, %s198
      %s220 = sphi 0, %s222
      %s223 = sphi 0, %s220
      %s224 = sphi 0, %s223
      %s240 = sphi 0, %s224
      %s246 = sphi 0, %s248
      %s249 = sphi 0, %s246
      %s250 = sphi 0, %s249
      %s266 = sphi 0, %s250
      %s272 = sphi 0, %s274
      %s275 = sphi 0, %s272
      %s276 = sphi 0, %s275
      %s292 = sphi 0, %s276
      %s298 = sphi 0, %s300
      %s301 = sphi 0, %s298
      %s302 = sphi 0, %s301
      %s318 = sphi 0, %s302
      %s324 = sphi 0, %s326
      %s327 = sphi 0, %s324
      %s328 = sphi 0, %s327
      %s344 = sphi 0, %s328
      %s350 = sphi 0, %s352
      %s353 = sphi 0, %s350
      %s354 = sphi 0, %s353
      %s370 = sphi 0, %s354
      %s376 = sphi 0, %s378
      %s379 = sphi 0, %s376
      %s380 = sphi 0, %s379
      %s396 = sphi 0, %s380
      %s402 = sphi 0, %s404
      %s405 = sphi 0, %s402
      %s406 = sphi 0, %s405
      %s422 = sphi 0, %s406
      %s428 = sphi 0, %s430
      %s431 = sphi 0, %s428
      %s432 = sphi 0, %s431
      %s448 = sphi 0, %s432
      %s454 = sphi 0, %s456
      %s457 = sphi 0, %s454
      %s458 = sphi 0, %s457
      %s474 = sphi 0, %s458
      %s480 = sphi 0, %s482
      %s483 = sphi 0, %s480
      %s484 = sphi 0, %s483
      %s500 = sphi 0, %s484
      %s506 = sphi 0, %s508
      %s509 = sphi 0, %s506
      %s510 = sphi 0, %s509
      %s526 = sphi 0, %s510
      %s532 = sphi 0, %s534
      %s535 = sphi 0, %s532
      %s536 = sphi 0, %s535
      %s552 = sphi 0, %s536
      %s558 = sphi 0, %s560
      %s561 = sphi 0, %s558
      %s562 = sphi 0, %s561
      %s578 = sphi 0, %s562
      %s584 = sphi 0, %s586
      %s587 = sphi 0, %s584
      %s588 = sphi 0, %s587
      %s604 = sphi 0, %s588
      %s610 = sphi 0, %s612
      %s613 = sphi 0, %s610
      %s614 = sphi 0, %s613
      %s630 = sphi 0, %s614
      %s634 = sphi 0, %s634
      %s636 = sphi 0, %s634
      %s637 = sphi 0, %s636
      %s651 = sphi 0, %s637
      %s655 = sphi 0, %s655
      %s657 = sphi 0, %s655
      %s658 = sphi 0, %s657
      %s672 = sphi 0, %s658
      %s676 = sphi 0, %s676
      %s678 = sphi 0, %s676
      %s679 = sphi 0, %s678
      %s693 = sphi 0, %s679
      %s697 = sphi 0, %s697
      %s699 = sphi 0, %s697
      %s700 = sphi 0, %s699
      %s714 = sphi 0, %s700
      %s720 = sphi 0, %s722
      %s723 = sphi 0, %s720
      %s724 = sphi 0, %s723
      %s740 = sphi 0, %s724
      %s746 = sphi 0, %s748
      %s749 = sphi 0, %s746
      %s750 = sphi 0, %s749
      %s766 = sphi 0, %s750
    $region4: #{cnn_transformer_forward.3} parent=1 // loop_header_branch
      %45 = sbr.rel (%p43) target = $region8
    $region5: #{cnn_transformer_forward.3} parent=1 // loop_body
      %s47 = ssub.s32 %s42, 1
      %s48 = ssub.s32 %s42, 2
      %s55 = sadd.s32 1, %s50
      %p56 = scmp.ge.s32.totalorder %s55, 2
      %s57 = scalar_select %p56, 0, %s55
      %s58 = sadd.s32 1, %s49
      %s59 = scalar_select %p56, %s58, %s49
      %p60 = scmp.ge.s32.totalorder %s59, 2
      %s61 = scalar_select %p60, 0, %s59
      %s62 = ssub.s32 %s49, %s61
      %p63 = scmp.eq.s32.totalorder %s62, 0
      %s65 = sadd.s32 %s64, 1
      %s66 = scalar_select %p63, %s64, %s65
      %p69 = pneg %p63
      %p70 = scmp.eq.s32.totalorder %s42, 3
      %p71 = por %p69, %p70
      %p72 = scmp.ne.s32.totalorder %s64, %s67
      %p73 = scmp.eq.s32.totalorder %s42, 0
      %p74 = por %p72, %p73
      %p75 = scmp.ne.s32.totalorder %s64, %s67
      %p76 = scmp.eq.s32.totalorder %s47, 3
      %p77 = por %p75, %p76
      %p78 = scmp.ne.s32.totalorder %s67, %s68
      %p79 = scmp.eq.s32.totalorder %s47, 0
      %p80 = por %p78, %p79
      %p81 = scmp.ne.s32.totalorder %s67, %s68
      %p82 = scmp.eq.s32.totalorder %s48, 3
      %p83 = por %p81, %p82
      %p85 = scmp.ne.s32.totalorder %s68, %s84
      %p86 = scmp.eq.s32.totalorder %s48, 0
      %p87 = por %p85, %p86
      %s88 = ssub.s32 %s49, %s61
      %p89 = scmp.eq.s32.totalorder %s88, 0
      %s91 = sadd.s32 %s90, 1
      %s92 = scalar_select %p89, %s90, %s91
      %p95 = pneg %p89
      %p96 = scmp.eq.s32.totalorder %s42, 3
      %p97 = por %p95, %p96
      %p98 = scmp.ne.s32.totalorder %s90, %s93
      %p99 = scmp.eq.s32.totalorder %s42, 0
      %p100 = por %p98, %p99
      %p101 = scmp.ne.s32.totalorder %s90, %s93
      %p102 = scmp.eq.s32.totalorder %s47, 3
      %p103 = por %p101, %p102
      %p104 = scmp.ne.s32.totalorder %s93, %s94
      %p105 = scmp.eq.s32.totalorder %s47, 0
      %p106 = por %p104, %p105
      %p107 = scmp.ne.s32.totalorder %s93, %s94
      %p108 = scmp.eq.s32.totalorder %s48, 3
      %p109 = por %p107, %p108
      %p111 = scmp.ne.s32.totalorder %s94, %s110
      %p112 = scmp.eq.s32.totalorder %s48, 0
      %p113 = por %p111, %p112
      %s114 = ssub.s32 %s50, %s57
      %p115 = scmp.eq.s32.totalorder %s114, 0
      %s117 = sadd.s32 %s116, 1
      %s118 = scalar_select %p115, %s116, %s117
      %p121 = pneg %p115
      %p122 = scmp.eq.s32.totalorder %s42, 3
      %p123 = por %p121, %p122
      %p124 = scmp.ne.s32.totalorder %s116, %s119
      %p125 = scmp.eq.s32.totalorder %s42, 0
      %p126 = por %p124, %p125
      %p127 = scmp.ne.s32.totalorder %s116, %s119
      %p128 = scmp.eq.s32.totalorder %s47, 3
      %p129 = por %p127, %p128
      %p130 = scmp.ne.s32.totalorder %s119, %s120
      %p131 = scmp.eq.s32.totalorder %s47, 0
      %p132 = por %p130, %p131
      %p133 = scmp.ne.s32.totalorder %s119, %s120
      %p134 = scmp.eq.s32.totalorder %s48, 3
      %p135 = por %p133, %p134
      %p137 = scmp.ne.s32.totalorder %s120, %s136
      %p138 = scmp.eq.s32.totalorder %s48, 0
      %p139 = por %p137, %p138
      %s140 = ssub.s32 %s50, %s57
      %p141 = scmp.eq.s32.totalorder %s140, 0
      %s143 = sadd.s32 %s142, 1
      %s144 = scalar_select %p141, %s142, %s143
      %p147 = pneg %p141
      %p148 = scmp.eq.s32.totalorder %s42, 3
      %p149 = por %p147, %p148
      %p150 = scmp.ne.s32.totalorder %s142, %s145
      %p151 = scmp.eq.s32.totalorder %s42, 0
      %p152 = por %p150, %p151
      %p153 = scmp.ne.s32.totalorder %s142, %s145
      %p154 = scmp.eq.s32.totalorder %s47, 3
      %p155 = por %p153, %p154
      %p156 = scmp.ne.s32.totalorder %s145, %s146
      %p157 = scmp.eq.s32.totalorder %s47, 0
      %p158 = por %p156, %p157
      %p159 = scmp.ne.s32.totalorder %s145, %s146
      %p160 = scmp.eq.s32.totalorder %s48, 3
      %p161 = por %p159, %p160
      %p163 = scmp.ne.s32.totalorder %s146, %s162
      %p164 = scmp.eq.s32.totalorder %s48, 0
      %p165 = por %p163, %p164
      %s166 = ssub.s32 %s50, %s57
      %p167 = scmp.eq.s32.totalorder %s166, 0
      %s169 = sadd.s32 %s168, 1
      %s170 = scalar_select %p167, %s168, %s169
      %p173 = pneg %p167
      %p174 = scmp.eq.s32.totalorder %s42, 3
      %p175 = por %p173, %p174
      %p176 = scmp.ne.s32.totalorder %s168, %s171
      %p177 = scmp.eq.s32.totalorder %s42, 0
      %p178 = por %p176, %p177
      %p179 = scmp.ne.s32.totalorder %s168, %s171
      %p180 = scmp.eq.s32.totalorder %s47, 3
      %p181 = por %p179, %p180
      %p182 = scmp.ne.s32.totalorder %s171, %s172
      %p183 = scmp.eq.s32.totalorder %s47, 0
      %p184 = por %p182, %p183
      %p185 = scmp.ne.s32.totalorder %s171, %s172
      %p186 = scmp.eq.s32.totalorder %s48, 3
      %p187 = por %p185, %p186
      %p189 = scmp.ne.s32.totalorder %s172, %s188
      %p190 = scmp.eq.s32.totalorder %s48, 0
      %p191 = por %p189, %p190
      %s192 = ssub.s32 %s50, %s57
      %p193 = scmp.eq.s32.totalorder %s192, 0
      %s195 = sadd.s32 %s194, 1
      %s196 = scalar_select %p193, %s194, %s195
      %p199 = pneg %p193
      %p200 = scmp.eq.s32.totalorder %s42, 3
      %p201 = por %p199, %p200
      %p202 = scmp.ne.s32.totalorder %s194, %s197
      %p203 = scmp.eq.s32.totalorder %s42, 0
      %p204 = por %p202, %p203
      %p205 = scmp.ne.s32.totalorder %s194, %s197
      %p206 = scmp.eq.s32.totalorder %s47, 3
      %p207 = por %p205, %p206
      %p208 = scmp.ne.s32.totalorder %s197, %s198
      %p209 = scmp.eq.s32.totalorder %s47, 0
      %p210 = por %p208, %p209
      %p211 = scmp.ne.s32.totalorder %s197, %s198
      %p212 = scmp.eq.s32.totalorder %s48, 3
      %p213 = por %p211, %p212
      %p215 = scmp.ne.s32.totalorder %s198, %s214
      %p216 = scmp.eq.s32.totalorder %s48, 0
      %p217 = por %p215, %p216
      %s218 = ssub.s32 %s50, %s57
      %p219 = scmp.eq.s32.totalorder %s218, 0
      %s221 = sadd.s32 %s220, 1
      %s222 = scalar_select %p219, %s220, %s221
      %p225 = pneg %p219
      %p226 = scmp.eq.s32.totalorder %s42, 3
      %p227 = por %p225, %p226
      %p228 = scmp.ne.s32.totalorder %s220, %s223
      %p229 = scmp.eq.s32.totalorder %s42, 0
      %p230 = por %p228, %p229
      %p231 = scmp.ne.s32.totalorder %s220, %s223
      %p232 = scmp.eq.s32.totalorder %s47, 3
      %p233 = por %p231, %p232
      %p234 = scmp.ne.s32.totalorder %s223, %s224
      %p235 = scmp.eq.s32.totalorder %s47, 0
      %p236 = por %p234, %p235
      %p237 = scmp.ne.s32.totalorder %s223, %s224
      %p238 = scmp.eq.s32.totalorder %s48, 3
      %p239 = por %p237, %p238
      %p241 = scmp.ne.s32.totalorder %s224, %s240
      %p242 = scmp.eq.s32.totalorder %s48, 0
      %p243 = por %p241, %p242
      %s244 = ssub.s32 %s50, %s57
      %p245 = scmp.eq.s32.totalorder %s244, 0
      %s247 = sadd.s32 %s246, 1
      %s248 = scalar_select %p245, %s246, %s247
      %p251 = pneg %p245
      %p252 = scmp.eq.s32.totalorder %s42, 3
      %p253 = por %p251, %p252
      %p254 = scmp.ne.s32.totalorder %s246, %s249
      %p255 = scmp.eq.s32.totalorder %s42, 0
      %p256 = por %p254, %p255
      %p257 = scmp.ne.s32.totalorder %s246, %s249
      %p258 = scmp.eq.s32.totalorder %s47, 3
      %p259 = por %p257, %p258
      %p260 = scmp.ne.s32.totalorder %s249, %s250
      %p261 = scmp.eq.s32.totalorder %s47, 0
      %p262 = por %p260, %p261
      %p263 = scmp.ne.s32.totalorder %s249, %s250
      %p264 = scmp.eq.s32.totalorder %s48, 3
      %p265 = por %p263, %p264
      %p267 = scmp.ne.s32.totalorder %s250, %s266
      %p268 = scmp.eq.s32.totalorder %s48, 0
      %p269 = por %p267, %p268
      %s270 = ssub.s32 %s50, %s57
      %p271 = scmp.eq.s32.totalorder %s270, 0
      %s273 = sadd.s32 %s272, 1
      %s274 = scalar_select %p271, %s272, %s273
      %p277 = pneg %p271
      %p278 = scmp.eq.s32.totalorder %s42, 3
      %p279 = por %p277, %p278
      %p280 = scmp.ne.s32.totalorder %s272, %s275
      %p281 = scmp.eq.s32.totalorder %s42, 0
      %p282 = por %p280, %p281
      %p283 = scmp.ne.s32.totalorder %s272, %s275
      %p284 = scmp.eq.s32.totalorder %s47, 3
      %p285 = por %p283, %p284
      %p286 = scmp.ne.s32.totalorder %s275, %s276
      %p287 = scmp.eq.s32.totalorder %s47, 0
      %p288 = por %p286, %p287
      %p289 = scmp.ne.s32.totalorder %s275, %s276
      %p290 = scmp.eq.s32.totalorder %s48, 3
      %p291 = por %p289, %p290
      %p293 = scmp.ne.s32.totalorder %s276, %s292
      %p294 = scmp.eq.s32.totalorder %s48, 0
      %p295 = por %p293, %p294
      %s296 = ssub.s32 %s50, %s57
      %p297 = scmp.eq.s32.totalorder %s296, 0
      %s299 = sadd.s32 %s298, 1
      %s300 = scalar_select %p297, %s298, %s299
      %p303 = pneg %p297
      %p304 = scmp.eq.s32.totalorder %s42, 3
      %p305 = por %p303, %p304
      %p306 = scmp.ne.s32.totalorder %s298, %s301
      %p307 = scmp.eq.s32.totalorder %s42, 0
      %p308 = por %p306, %p307
      %p309 = scmp.ne.s32.totalorder %s298, %s301
      %p310 = scmp.eq.s32.totalorder %s47, 3
      %p311 = por %p309, %p310
      %p312 = scmp.ne.s32.totalorder %s301, %s302
      %p313 = scmp.eq.s32.totalorder %s47, 0
      %p314 = por %p312, %p313
      %p315 = scmp.ne.s32.totalorder %s301, %s302
      %p316 = scmp.eq.s32.totalorder %s48, 3
      %p317 = por %p315, %p316
      %p319 = scmp.ne.s32.totalorder %s302, %s318
      %p320 = scmp.eq.s32.totalorder %s48, 0
      %p321 = por %p319, %p320
      %s322 = ssub.s32 %s50, %s57
      %p323 = scmp.eq.s32.totalorder %s322, 0
      %s325 = sadd.s32 %s324, 1
      %s326 = scalar_select %p323, %s324, %s325
      %p329 = pneg %p323
      %p330 = scmp.eq.s32.totalorder %s42, 3
      %p331 = por %p329, %p330
      %p332 = scmp.ne.s32.totalorder %s324, %s327
      %p333 = scmp.eq.s32.totalorder %s42, 0
      %p334 = por %p332, %p333
      %p335 = scmp.ne.s32.totalorder %s324, %s327
      %p336 = scmp.eq.s32.totalorder %s47, 3
      %p337 = por %p335, %p336
      %p338 = scmp.ne.s32.totalorder %s327, %s328
      %p339 = scmp.eq.s32.totalorder %s47, 0
      %p340 = por %p338, %p339
      %p341 = scmp.ne.s32.totalorder %s327, %s328
      %p342 = scmp.eq.s32.totalorder %s48, 3
      %p343 = por %p341, %p342
      %p345 = scmp.ne.s32.totalorder %s328, %s344
      %p346 = scmp.eq.s32.totalorder %s48, 0
      %p347 = por %p345, %p346
      %s348 = ssub.s32 %s50, %s57
      %p349 = scmp.eq.s32.totalorder %s348, 0
      %s351 = sadd.s32 %s350, 1
      %s352 = scalar_select %p349, %s350, %s351
      %p355 = pneg %p349
      %p356 = scmp.eq.s32.totalorder %s42, 3
      %p357 = por %p355, %p356
      %p358 = scmp.ne.s32.totalorder %s350, %s353
      %p359 = scmp.eq.s32.totalorder %s42, 0
      %p360 = por %p358, %p359
      %p361 = scmp.ne.s32.totalorder %s350, %s353
      %p362 = scmp.eq.s32.totalorder %s47, 3
      %p363 = por %p361, %p362
      %p364 = scmp.ne.s32.totalorder %s353, %s354
      %p365 = scmp.eq.s32.totalorder %s47, 0
      %p366 = por %p364, %p365
      %p367 = scmp.ne.s32.totalorder %s353, %s354
      %p368 = scmp.eq.s32.totalorder %s48, 3
      %p369 = por %p367, %p368
      %p371 = scmp.ne.s32.totalorder %s354, %s370
      %p372 = scmp.eq.s32.totalorder %s48, 0
      %p373 = por %p371, %p372
      %s374 = ssub.s32 %s50, %s57
      %p375 = scmp.eq.s32.totalorder %s374, 0
      %s377 = sadd.s32 %s376, 1
      %s378 = scalar_select %p375, %s376, %s377
      %p381 = pneg %p375
      %p382 = scmp.eq.s32.totalorder %s42, 3
      %p383 = por %p381, %p382
      %p384 = scmp.ne.s32.totalorder %s376, %s379
      %p385 = scmp.eq.s32.totalorder %s42, 0
      %p386 = por %p384, %p385
      %p387 = scmp.ne.s32.totalorder %s376, %s379
      %p388 = scmp.eq.s32.totalorder %s47, 3
      %p389 = por %p387, %p388
      %p390 = scmp.ne.s32.totalorder %s379, %s380
      %p391 = scmp.eq.s32.totalorder %s47, 0
      %p392 = por %p390, %p391
      %p393 = scmp.ne.s32.totalorder %s379, %s380
      %p394 = scmp.eq.s32.totalorder %s48, 3
      %p395 = por %p393, %p394
      %p397 = scmp.ne.s32.totalorder %s380, %s396
      %p398 = scmp.eq.s32.totalorder %s48, 0
      %p399 = por %p397, %p398
      %s400 = ssub.s32 %s50, %s57
      %p401 = scmp.eq.s32.totalorder %s400, 0
      %s403 = sadd.s32 %s402, 1
      %s404 = scalar_select %p401, %s402, %s403
      %p407 = pneg %p401
      %p408 = scmp.eq.s32.totalorder %s42, 3
      %p409 = por %p407, %p408
      %p410 = scmp.ne.s32.totalorder %s402, %s405
      %p411 = scmp.eq.s32.totalorder %s42, 0
      %p412 = por %p410, %p411
      %p413 = scmp.ne.s32.totalorder %s402, %s405
      %p414 = scmp.eq.s32.totalorder %s47, 3
      %p415 = por %p413, %p414
      %p416 = scmp.ne.s32.totalorder %s405, %s406
      %p417 = scmp.eq.s32.totalorder %s47, 0
      %p418 = por %p416, %p417
      %p419 = scmp.ne.s32.totalorder %s405, %s406
      %p420 = scmp.eq.s32.totalorder %s48, 3
      %p421 = por %p419, %p420
      %p423 = scmp.ne.s32.totalorder %s406, %s422
      %p424 = scmp.eq.s32.totalorder %s48, 0
      %p425 = por %p423, %p424
      %s426 = ssub.s32 %s50, %s57
      %p427 = scmp.eq.s32.totalorder %s426, 0
      %s429 = sadd.s32 %s428, 1
      %s430 = scalar_select %p427, %s428, %s429
      %p433 = pneg %p427
      %p434 = scmp.eq.s32.totalorder %s42, 3
      %p435 = por %p433, %p434
      %p436 = scmp.ne.s32.totalorder %s428, %s431
      %p437 = scmp.eq.s32.totalorder %s42, 0
      %p438 = por %p436, %p437
      %p439 = scmp.ne.s32.totalorder %s428, %s431
      %p440 = scmp.eq.s32.totalorder %s47, 3
      %p441 = por %p439, %p440
      %p442 = scmp.ne.s32.totalorder %s431, %s432
      %p443 = scmp.eq.s32.totalorder %s47, 0
      %p444 = por %p442, %p443
      %p445 = scmp.ne.s32.totalorder %s431, %s432
      %p446 = scmp.eq.s32.totalorder %s48, 3
      %p447 = por %p445, %p446
      %p449 = scmp.ne.s32.totalorder %s432, %s448
      %p450 = scmp.eq.s32.totalorder %s48, 0
      %p451 = por %p449, %p450
      %s452 = ssub.s32 %s50, %s57
      %p453 = scmp.eq.s32.totalorder %s452, 0
      %s455 = sadd.s32 %s454, 1
      %s456 = scalar_select %p453, %s454, %s455
      %p459 = pneg %p453
      %p460 = scmp.eq.s32.totalorder %s42, 3
      %p461 = por %p459, %p460
      %p462 = scmp.ne.s32.totalorder %s454, %s457
      %p463 = scmp.eq.s32.totalorder %s42, 0
      %p464 = por %p462, %p463
      %p465 = scmp.ne.s32.totalorder %s454, %s457
      %p466 = scmp.eq.s32.totalorder %s47, 3
      %p467 = por %p465, %p466
      %p468 = scmp.ne.s32.totalorder %s457, %s458
      %p469 = scmp.eq.s32.totalorder %s47, 0
      %p470 = por %p468, %p469
      %p471 = scmp.ne.s32.totalorder %s457, %s458
      %p472 = scmp.eq.s32.totalorder %s48, 3
      %p473 = por %p471, %p472
      %p475 = scmp.ne.s32.totalorder %s458, %s474
      %p476 = scmp.eq.s32.totalorder %s48, 0
      %p477 = por %p475, %p476
      %s478 = ssub.s32 %s50, %s57
      %p479 = scmp.eq.s32.totalorder %s478, 0
      %s481 = sadd.s32 %s480, 1
      %s482 = scalar_select %p479, %s480, %s481
      %p485 = pneg %p479
      %p486 = scmp.eq.s32.totalorder %s42, 3
      %p487 = por %p485, %p486
      %p488 = scmp.ne.s32.totalorder %s480, %s483
      %p489 = scmp.eq.s32.totalorder %s42, 0
      %p490 = por %p488, %p489
      %p491 = scmp.ne.s32.totalorder %s480, %s483
      %p492 = scmp.eq.s32.totalorder %s47, 3
      %p493 = por %p491, %p492
      %p494 = scmp.ne.s32.totalorder %s483, %s484
      %p495 = scmp.eq.s32.totalorder %s47, 0
      %p496 = por %p494, %p495
      %p497 = scmp.ne.s32.totalorder %s483, %s484
      %p498 = scmp.eq.s32.totalorder %s48, 3
      %p499 = por %p497, %p498
      %p501 = scmp.ne.s32.totalorder %s484, %s500
      %p502 = scmp.eq.s32.totalorder %s48, 0
      %p503 = por %p501, %p502
      %s504 = ssub.s32 %s50, %s57
      %p505 = scmp.eq.s32.totalorder %s504, 0
      %s507 = sadd.s32 %s506, 1
      %s508 = scalar_select %p505, %s506, %s507
      %p511 = pneg %p505
      %p512 = scmp.eq.s32.totalorder %s42, 3
      %p513 = por %p511, %p512
      %p514 = scmp.ne.s32.totalorder %s506, %s509
      %p515 = scmp.eq.s32.totalorder %s42, 0
      %p516 = por %p514, %p515
      %p517 = scmp.ne.s32.totalorder %s506, %s509
      %p518 = scmp.eq.s32.totalorder %s47, 3
      %p519 = por %p517, %p518
      %p520 = scmp.ne.s32.totalorder %s509, %s510
      %p521 = scmp.eq.s32.totalorder %s47, 0
      %p522 = por %p520, %p521
      %p523 = scmp.ne.s32.totalorder %s509, %s510
      %p524 = scmp.eq.s32.totalorder %s48, 3
      %p525 = por %p523, %p524
      %p527 = scmp.ne.s32.totalorder %s510, %s526
      %p528 = scmp.eq.s32.totalorder %s48, 0
      %p529 = por %p527, %p528
      %s530 = ssub.s32 %s50, %s57
      %p531 = scmp.eq.s32.totalorder %s530, 0
      %s533 = sadd.s32 %s532, 1
      %s534 = scalar_select %p531, %s532, %s533
      %p537 = pneg %p531
      %p538 = scmp.eq.s32.totalorder %s42, 3
      %p539 = por %p537, %p538
      %p540 = scmp.ne.s32.totalorder %s532, %s535
      %p541 = scmp.eq.s32.totalorder %s42, 0
      %p542 = por %p540, %p541
      %p543 = scmp.ne.s32.totalorder %s532, %s535
      %p544 = scmp.eq.s32.totalorder %s47, 3
      %p545 = por %p543, %p544
      %p546 = scmp.ne.s32.totalorder %s535, %s536
      %p547 = scmp.eq.s32.totalorder %s47, 0
      %p548 = por %p546, %p547
      %p549 = scmp.ne.s32.totalorder %s535, %s536
      %p550 = scmp.eq.s32.totalorder %s48, 3
      %p551 = por %p549, %p550
      %p553 = scmp.ne.s32.totalorder %s536, %s552
      %p554 = scmp.eq.s32.totalorder %s48, 0
      %p555 = por %p553, %p554
      %s556 = ssub.s32 %s50, %s57
      %p557 = scmp.eq.s32.totalorder %s556, 0
      %s559 = sadd.s32 %s558, 1
      %s560 = scalar_select %p557, %s558, %s559
      %p563 = pneg %p557
      %p564 = scmp.eq.s32.totalorder %s42, 3
      %p565 = por %p563, %p564
      %p566 = scmp.ne.s32.totalorder %s558, %s561
      %p567 = scmp.eq.s32.totalorder %s42, 0
      %p568 = por %p566, %p567
      %p569 = scmp.ne.s32.totalorder %s558, %s561
      %p570 = scmp.eq.s32.totalorder %s47, 3
      %p571 = por %p569, %p570
      %p572 = scmp.ne.s32.totalorder %s561, %s562
      %p573 = scmp.eq.s32.totalorder %s47, 0
      %p574 = por %p572, %p573
      %p575 = scmp.ne.s32.totalorder %s561, %s562
      %p576 = scmp.eq.s32.totalorder %s48, 3
      %p577 = por %p575, %p576
      %p579 = scmp.ne.s32.totalorder %s562, %s578
      %p580 = scmp.eq.s32.totalorder %s48, 0
      %p581 = por %p579, %p580
      %s582 = ssub.s32 %s50, %s57
      %p583 = scmp.eq.s32.totalorder %s582, 0
      %s585 = sadd.s32 %s584, 1
      %s586 = scalar_select %p583, %s584, %s585
      %p589 = pneg %p583
      %p590 = scmp.eq.s32.totalorder %s42, 3
      %p591 = por %p589, %p590
      %p592 = scmp.ne.s32.totalorder %s584, %s587
      %p593 = scmp.eq.s32.totalorder %s42, 0
      %p594 = por %p592, %p593
      %p595 = scmp.ne.s32.totalorder %s584, %s587
      %p596 = scmp.eq.s32.totalorder %s47, 3
      %p597 = por %p595, %p596
      %p598 = scmp.ne.s32.totalorder %s587, %s588
      %p599 = scmp.eq.s32.totalorder %s47, 0
      %p600 = por %p598, %p599
      %p601 = scmp.ne.s32.totalorder %s587, %s588
      %p602 = scmp.eq.s32.totalorder %s48, 3
      %p603 = por %p601, %p602
      %p605 = scmp.ne.s32.totalorder %s588, %s604
      %p606 = scmp.eq.s32.totalorder %s48, 0
      %p607 = por %p605, %p606
      %s608 = ssub.s32 %s50, %s57
      %p609 = scmp.eq.s32.totalorder %s608, 0
      %s611 = sadd.s32 %s610, 1
      %s612 = scalar_select %p609, %s610, %s611
      %p615 = pneg %p609
      %p616 = scmp.eq.s32.totalorder %s42, 3
      %p617 = por %p615, %p616
      %p618 = scmp.ne.s32.totalorder %s610, %s613
      %p619 = scmp.eq.s32.totalorder %s42, 0
      %p620 = por %p618, %p619
      %p621 = scmp.ne.s32.totalorder %s610, %s613
      %p622 = scmp.eq.s32.totalorder %s47, 3
      %p623 = por %p621, %p622
      %p624 = scmp.ne.s32.totalorder %s613, %s614
      %p625 = scmp.eq.s32.totalorder %s47, 0
      %p626 = por %p624, %p625
      %p627 = scmp.ne.s32.totalorder %s613, %s614
      %p628 = scmp.eq.s32.totalorder %s48, 3
      %p629 = por %p627, %p628
      %p631 = scmp.ne.s32.totalorder %s614, %s630
      %p632 = scmp.eq.s32.totalorder %s48, 0
      %p633 = por %p631, %p632
      %s635 = sadd.s32 %s634, 1
      %p638 = scmp.eq.s32.totalorder %s42, 3
      %p639 = scmp.ne.s32.totalorder %s634, %s636
      %p640 = scmp.eq.s32.totalorder %s42, 0
      %p641 = por %p639, %p640
      %p642 = scmp.ne.s32.totalorder %s634, %s636
      %p643 = scmp.eq.s32.totalorder %s47, 3
      %p644 = por %p642, %p643
      %p645 = scmp.ne.s32.totalorder %s636, %s637
      %p646 = scmp.eq.s32.totalorder %s47, 0
      %p647 = por %p645, %p646
      %p648 = scmp.ne.s32.totalorder %s636, %s637
      %p649 = scmp.eq.s32.totalorder %s48, 3
      %p650 = por %p648, %p649
      %p652 = scmp.ne.s32.totalorder %s637, %s651
      %p653 = scmp.eq.s32.totalorder %s48, 0
      %p654 = por %p652, %p653
      %s656 = sadd.s32 %s655, 1
      %p659 = scmp.eq.s32.totalorder %s42, 3
      %p660 = scmp.ne.s32.totalorder %s655, %s657
      %p661 = scmp.eq.s32.totalorder %s42, 0
      %p662 = por %p660, %p661
      %p663 = scmp.ne.s32.totalorder %s655, %s657
      %p664 = scmp.eq.s32.totalorder %s47, 3
      %p665 = por %p663, %p664
      %p666 = scmp.ne.s32.totalorder %s657, %s658
      %p667 = scmp.eq.s32.totalorder %s47, 0
      %p668 = por %p666, %p667
      %p669 = scmp.ne.s32.totalorder %s657, %s658
      %p670 = scmp.eq.s32.totalorder %s48, 3
      %p671 = por %p669, %p670
      %p673 = scmp.ne.s32.totalorder %s658, %s672
      %p674 = scmp.eq.s32.totalorder %s48, 0
      %p675 = por %p673, %p674
      %s677 = sadd.s32 %s676, 1
      %p680 = scmp.eq.s32.totalorder %s42, 3
      %p681 = scmp.ne.s32.totalorder %s676, %s678
      %p682 = scmp.eq.s32.totalorder %s42, 0
      %p683 = por %p681, %p682
      %p684 = scmp.ne.s32.totalorder %s676, %s678
      %p685 = scmp.eq.s32.totalorder %s47, 3
      %p686 = por %p684, %p685
      %p687 = scmp.ne.s32.totalorder %s678, %s679
      %p688 = scmp.eq.s32.totalorder %s47, 0
      %p689 = por %p687, %p688
      %p690 = scmp.ne.s32.totalorder %s678, %s679
      %p691 = scmp.eq.s32.totalorder %s48, 3
      %p692 = por %p690, %p691
      %p694 = scmp.ne.s32.totalorder %s679, %s693
      %p695 = scmp.eq.s32.totalorder %s48, 0
      %p696 = por %p694, %p695
      %s698 = sadd.s32 %s697, 1
      %p701 = scmp.eq.s32.totalorder %s42, 3
      %p702 = scmp.ne.s32.totalorder %s697, %s699
      %p703 = scmp.eq.s32.totalorder %s42, 0
      %p704 = por %p702, %p703
      %p705 = scmp.ne.s32.totalorder %s697, %s699
      %p706 = scmp.eq.s32.totalorder %s47, 3
      %p707 = por %p705, %p706
      %p708 = scmp.ne.s32.totalorder %s699, %s700
      %p709 = scmp.eq.s32.totalorder %s47, 0
      %p710 = por %p708, %p709
      %p711 = scmp.ne.s32.totalorder %s699, %s700
      %p712 = scmp.eq.s32.totalorder %s48, 3
      %p713 = por %p711, %p712
      %p715 = scmp.ne.s32.totalorder %s700, %s714
      %p716 = scmp.eq.s32.totalorder %s48, 0
      %p717 = por %p715, %p716
      %s718 = ssub.s32 %s49, %s61
      %p719 = scmp.eq.s32.totalorder %s718, 0
      %s721 = sadd.s32 %s720, 1
      %s722 = scalar_select %p719, %s720, %s721
      %p725 = pneg %p719
      %p726 = scmp.eq.s32.totalorder %s42, 3
      %p727 = por %p725, %p726
      %p728 = scmp.ne.s32.totalorder %s720, %s723
      %p729 = scmp.eq.s32.totalorder %s42, 0
      %p730 = por %p728, %p729
      %p731 = scmp.ne.s32.totalorder %s720, %s723
      %p732 = scmp.eq.s32.totalorder %s47, 3
      %p733 = por %p731, %p732
      %p734 = scmp.ne.s32.totalorder %s723, %s724
      %p735 = scmp.eq.s32.totalorder %s47, 0
      %p736 = por %p734, %p735
      %p737 = scmp.ne.s32.totalorder %s723, %s724
      %p738 = scmp.eq.s32.totalorder %s48, 3
      %p739 = por %p737, %p738
      %p741 = scmp.ne.s32.totalorder %s724, %s740
      %p742 = scmp.eq.s32.totalorder %s48, 0
      %p743 = por %p741, %p742
      %s744 = ssub.s32 %s49, %s61
      %p745 = scmp.eq.s32.totalorder %s744, 0
      %s747 = sadd.s32 %s746, 1
      %s748 = scalar_select %p745, %s746, %s747
      %p751 = pneg %p745
      %p752 = scmp.eq.s32.totalorder %s42, 3
      %p753 = por %p751, %p752
      %p754 = scmp.ne.s32.totalorder %s746, %s749
      %p755 = scmp.eq.s32.totalorder %s42, 0
      %p756 = por %p754, %p755
      %p757 = scmp.ne.s32.totalorder %s746, %s749
      %p758 = scmp.eq.s32.totalorder %s47, 3
      %p759 = por %p757, %p758
      %p760 = scmp.ne.s32.totalorder %s749, %s750
      %p761 = scmp.eq.s32.totalorder %s47, 0
      %p762 = por %p760, %p761
      %p763 = scmp.ne.s32.totalorder %s749, %s750
      %p764 = scmp.eq.s32.totalorder %s48, 3
      %p765 = por %p763, %p764
      %p767 = scmp.ne.s32.totalorder %s750, %s766
      %p768 = scmp.eq.s32.totalorder %s48, 0
      %p769 = por %p767, %p768
      %p770 = scmp.le.s32.totalorder 1, %s42
      %p771 = scmp.lt.s32.totalorder %s42, 5
      %p772 = pnand %p770, %p771
      %p773 = pneg %p772
      // Predicated region
      $region9: #{cnn_transformer_forward.3} parent=5 // pred_check
        _
      $region10: #{cnn_transformer_forward.3} parent=5 // pred_check_branch
        %775 = sbr.rel (%p772) target = $region12
      $region11: #{cnn_transformer_forward.3} parent=5 // pred_region
        %s776 = ssub.s32 %s42, 1
        // Predicated region
        $region13: #{cnn_transformer_forward.3} parent=11 // pred_check
          %p777 = pneg %p647
        $region14: #{cnn_transformer_forward.3} parent=11 // pred_check_branch
          %779 = sbr.rel (%p777) target = $region16
        $region15: #{cnn_transformer_forward.3} parent=11 // pred_region
          %s781 = ssub.s32 16, 16
          %782 = vsyncadd [#allocation4], %s781
          %s784 = sshll.u32 [#allocation3], 4
          %s785 = int_to_ptr.vmem [resolvable:$true] %s784
          %787 = dma.hbm_to_vmem [thread:$0]  %s22, 16, %s785, [#allocation4]
        $region16: #{cnn_transformer_forward.3} parent=11 // pred_fallthru
          _
        // Predicated region
        $region17: #{cnn_transformer_forward.3} parent=11 // pred_check
          %p788 = pneg %p668
        $region18: #{cnn_transformer_forward.3} parent=11 // pred_check_branch
          %790 = sbr.rel (%p788) target = $region20
        $region19: #{cnn_transformer_forward.3} parent=11 // pred_region
          %s792 = ssub.s32 16, 16
          %793 = vsyncadd [#allocation7], %s792
          %s795 = sshll.u32 [#allocation6], 4
          %s796 = int_to_ptr.vmem [resolvable:$true] %s795
          %798 = dma.hbm_to_vmem [thread:$0]  %s23, 16, %s796, [#allocation7]
        $region20: #{cnn_transformer_forward.3} parent=11 // pred_fallthru
          _
        // Predicated region
        $region21: #{cnn_transformer_forward.3} parent=11 // pred_check
          %p799 = pneg %p689
        $region22: #{cnn_transformer_forward.3} parent=11 // pred_check_branch
          %801 = sbr.rel (%p799) target = $region24
        $region23: #{cnn_transformer_forward.3} parent=11 // pred_region
          _
        $region24: #{cnn_transformer_forward.3} parent=11 // pred_fallthru
          _
        // Predicated region
        $region25: #{cnn_transformer_forward.3} parent=11 // pred_check
          %p802 = pneg %p710
        $region26: #{cnn_transformer_forward.3} parent=11 // pred_check_branch
          %804 = sbr.rel (%p802) target = $region28
        $region27: #{cnn_transformer_forward.3} parent=11 // pred_region
          %s806 = ssub.s32 16, 16
          %807 = vsyncadd [#allocation7], %s806
          %s809 = sshll.u32 [#allocation8], 4
          %s810 = int_to_ptr.vmem [resolvable:$true] %s809
          %812 = dma.hbm_to_vmem [thread:$0]  %s25, 16, %s810, [#allocation7]
        $region28: #{cnn_transformer_forward.3} parent=11 // pred_fallthru
          _
      $region12: #{cnn_transformer_forward.3} parent=5 // pred_fallthru
        _
      %p813 = scmp.lt.s32.totalorder %s42, 4
      // Predicated region
      $region29: #{cnn_transformer_forward.3} parent=5 // pred_check
        %p814 = pneg %p813
      $region30: #{cnn_transformer_forward.3} parent=5 // pred_check_branch
        %816 = sbr.rel (%p814) target = $region32
      $region31: #{cnn_transformer_forward.3} parent=5 // pred_region
        // Predicated region
        $region33: #{cnn_transformer_forward.3} parent=31 // pred_check
          %p817 = pneg %p74
        $region34: #{cnn_transformer_forward.3} parent=31 // pred_check_branch
          %819 = sbr.rel (%p817) target = $region36
        $region35: #{cnn_transformer_forward.3} parent=31 // pred_region
          %p820 = scmp.lt.s32.totalorder %s49, 1
          %s821 = scalar_select %p820, %s49, 1
          %s822 = smul.addr %s821, 8
          %s823 = scalar_lea.vmem %s0, %s822
        $region36: #{cnn_transformer_forward.3} parent=31 // pred_fallthru
          _
        // Predicated region
        $region37: #{cnn_transformer_forward.3} parent=31 // pred_check
          %p824 = pneg %p100
        $region38: #{cnn_transformer_forward.3} parent=31 // pred_check_branch
          %826 = sbr.rel (%p824) target = $region40
        $region39: #{cnn_transformer_forward.3} parent=31 // pred_region
          %p827 = scmp.lt.s32.totalorder %s49, 1
          %s828 = scalar_select %p827, %s49, 1
          %s829 = smul.addr %s828, 2
          %s830 = smul.addr %s829, 8
          %s831 = scalar_lea.vmem %s1, %s830
        $region40: #{cnn_transformer_forward.3} parent=31 // pred_fallthru
          _
        // Predicated region
        $region41: #{cnn_transformer_forward.3} parent=31 // pred_check
          %p832 = pneg %p126
        $region42: #{cnn_transformer_forward.3} parent=31 // pred_check_branch
          %834 = sbr.rel (%p832) target = $region44
        $region43: #{cnn_transformer_forward.3} parent=31 // pred_region
          %p835 = scmp.lt.s32.totalorder %s50, 1
          %s836 = scalar_select %p835, %s50, 1
          %s837 = scalar_lea.vmem %s2, %s836
        $region44: #{cnn_transformer_forward.3} parent=31 // pred_fallthru
          _
        // Predicated region
        $region45: #{cnn_transformer_forward.3} parent=31 // pred_check
          %p838 = pneg %p152
        $region46: #{cnn_transformer_forward.3} parent=31 // pred_check_branch
          %840 = sbr.rel (%p838) target = $region48
        $region47: #{cnn_transformer_forward.3} parent=31 // pred_region
          %p841 = scmp.lt.s32.totalorder %s50, 1
          %s842 = scalar_select %p841, %s50, 1
          %s843 = scalar_lea.vmem %s3, %s842
        $region48: #{cnn_transformer_forward.3} parent=31 // pred_fallthru
          _
        // Predicated region
        $region49: #{cnn_transformer_forward.3} parent=31 // pred_check
          %p844 = pneg %p178
        $region50: #{cnn_transformer_forward.3} parent=31 // pred_check_branch
          %846 = sbr.rel (%p844) target = $region52
        $region51: #{cnn_transformer_forward.3} parent=31 // pred_region
          %p847 = scmp.lt.s32.totalorder %s50, 1
          %s848 = scalar_select %p847, %s50, 1
          %s849 = smul.addr %s848, 4
          %s850 = smul.addr %s849, 4
          %s851 = scalar_lea.vmem %s4, %s850
        $region52: #{cnn_transformer_forward.3} parent=31 // pred_fallthru
          _
        // Predicated region
        $region53: #{cnn_transformer_forward.3} parent=31 // pred_check
          %p852 = pneg %p204
        $region54: #{cnn_transformer_forward.3} parent=31 // pred_check_branch
          %854 = sbr.rel (%p852) target = $region56
        $region55: #{cnn_transformer_forward.3} parent=31 // pred_region
          %p855 = scmp.lt.s32.totalorder %s50, 1
          %s856 = scalar_select %p855, %s50, 1
          %s857 = scalar_lea.vmem %s5, %s856
        $region56: #{cnn_transformer_forward.3} parent=31 // pred_fallthru
          _
        // Predicated region
        $region57: #{cnn_transformer_forward.3} parent=31 // pred_check
          %p858 = pneg %p230
        $region58: #{cnn_transformer_forward.3} parent=31 // pred_check_branch
          %860 = sbr.rel (%p858) target = $region60
        $region59: #{cnn_transformer_forward.3} parent=31 // pred_region
          %p861 = scmp.lt.s32.totalorder %s50, 1
          %s862 = scalar_select %p861, %s50, 1
          %s863 = smul.addr %s862, 4
          %s864 = smul.addr %s863, 4
          %s865 = scalar_lea.vmem %s6, %s864
        $region60: #{cnn_transformer_forward.3} parent=31 // pred_fallthru
          _
        // Predicated region
        $region61: #{cnn_transformer_forward.3} parent=31 // pred_check
          %p866 = pneg %p256
        $region62: #{cnn_transformer_forward.3} parent=31 // pred_check_branch
          %868 = sbr.rel (%p866) target = $region64
        $region63: #{cnn_transformer_forward.3} parent=31 // pred_region
          %p869 = scmp.lt.s32.totalorder %s50, 1
          %s870 = scalar_select %p869, %s50, 1
          %s871 = scalar_lea.vmem %s7, %s870
        $region64: #{cnn_transformer_forward.3} parent=31 // pred_fallthru
          _
        // Predicated region
        $region65: #{cnn_transformer_forward.3} parent=31 // pred_check
          %p872 = pneg %p282
        $region66: #{cnn_transformer_forward.3} parent=31 // pred_check_branch
          %874 = sbr.rel (%p872) target = $region68
        $region67: #{cnn_transformer_forward.3} parent=31 // pred_region
          %p875 = scmp.lt.s32.totalorder %s50, 1
          %s876 = scalar_select %p875, %s50, 1
          %s877 = scalar_lea.vmem %s8, %s876
        $region68: #{cnn_transformer_forward.3} parent=31 // pred_fallthru
          _
        // Predicated region
        $region69: #{cnn_transformer_forward.3} parent=31 // pred_check
          %p878 = pneg %p308
        $region70: #{cnn_transformer_forward.3} parent=31 // pred_check_branch
          %880 = sbr.rel (%p878) target = $region72
        $region71: #{cnn_transformer_forward.3} parent=31 // pred_region
          %p881 = scmp.lt.s32.totalorder %s50, 1
          %s882 = scalar_select %p881, %s50, 1
          %s883 = scalar_lea.vmem %s9, %s882
        $region72: #{cnn_transformer_forward.3} parent=31 // pred_fallthru
          _
        // Predicated region
        $region73: #{cnn_transformer_forward.3} parent=31 // pred_check
          %p884 = pneg %p334
        $region74: #{cnn_transformer_forward.3} parent=31 // pred_check_branch
          %886 = sbr.rel (%p884) target = $region76
        $region75: #{cnn_transformer_forward.3} parent=31 // pred_region
          %p887 = scmp.lt.s32.totalorder %s50, 1
          %s888 = scalar_select %p887, %s50, 1
          %s889 = smul.addr %s888, 4
          %s890 = smul.addr %s889, 4
          %s891 = scalar_lea.vmem %s10, %s890
        $region76: #{cnn_transformer_forward.3} parent=31 // pred_fallthru
          _
        // Predicated region
        $region77: #{cnn_transformer_forward.3} parent=31 // pred_check
          %p892 = pneg %p360
        $region78: #{cnn_transformer_forward.3} parent=31 // pred_check_branch
          %894 = sbr.rel (%p892) target = $region80
        $region79: #{cnn_transformer_forward.3} parent=31 // pred_region
          %p895 = scmp.lt.s32.totalorder %s50, 1
          %s896 = scalar_select %p895, %s50, 1
          %s897 = scalar_lea.vmem %s11, %s896
        $region80: #{cnn_transformer_forward.3} parent=31 // pred_fallthru
          _
        // Predicated region
        $region81: #{cnn_transformer_forward.3} parent=31 // pred_check
          %p898 = pneg %p386
        $region82: #{cnn_transformer_forward.3} parent=31 // pred_check_branch
          %900 = sbr.rel (%p898) target = $region84
        $region83: #{cnn_transformer_forward.3} parent=31 // pred_region
          %p901 = scmp.lt.s32.totalorder %s50, 1
          %s902 = scalar_select %p901, %s50, 1
          %s903 = smul.addr %s902, 4
          %s904 = smul.addr %s903, 4
          %s905 = scalar_lea.vmem %s12, %s904
        $region84: #{cnn_transformer_forward.3} parent=31 // pred_fallthru
          _
        // Predicated region
        $region85: #{cnn_transformer_forward.3} parent=31 // pred_check
          %p906 = pneg %p412
        $region86: #{cnn_transformer_forward.3} parent=31 // pred_check_branch
          %908 = sbr.rel (%p906) target = $region88
        $region87: #{cnn_transformer_forward.3} parent=31 // pred_region
          %p909 = scmp.lt.s32.totalorder %s50, 1
          %s910 = scalar_select %p909, %s50, 1
          %s911 = scalar_lea.vmem %s13, %s910
        $region88: #{cnn_transformer_forward.3} parent=31 // pred_fallthru
          _
        // Predicated region
        $region89: #{cnn_transformer_forward.3} parent=31 // pred_check
          %p912 = pneg %p438
        $region90: #{cnn_transformer_forward.3} parent=31 // pred_check_branch
          %914 = sbr.rel (%p912) target = $region92
        $region91: #{cnn_transformer_forward.3} parent=31 // pred_region
          %p915 = scmp.lt.s32.totalorder %s50, 1
          %s916 = scalar_select %p915, %s50, 1
          %s917 = smul.addr %s916, 4
          %s918 = smul.addr %s917, 4
          %s919 = scalar_lea.vmem %s14, %s918
        $region92: #{cnn_transformer_forward.3} parent=31 // pred_fallthru
          _
        // Predicated region
        $region93: #{cnn_transformer_forward.3} parent=31 // pred_check
          %p920 = pneg %p464
        $region94: #{cnn_transformer_forward.3} parent=31 // pred_check_branch
          %922 = sbr.rel (%p920) target = $region96
        $region95: #{cnn_transformer_forward.3} parent=31 // pred_region
          %p923 = scmp.lt.s32.totalorder %s50, 1
          %s924 = scalar_select %p923, %s50, 1
          %s925 = scalar_lea.vmem %s15, %s924
        $region96: #{cnn_transformer_forward.3} parent=31 // pred_fallthru
          _
        // Predicated region
        $region97: #{cnn_transformer_forward.3} parent=31 // pred_check
          %p926 = pneg %p490
        $region98: #{cnn_transformer_forward.3} parent=31 // pred_check_branch
          %928 = sbr.rel (%p926) target = $region100
        $region99: #{cnn_transformer_forward.3} parent=31 // pred_region
          %p929 = scmp.lt.s32.totalorder %s50, 1
          %s930 = scalar_select %p929, %s50, 1
          %s931 = scalar_lea.vmem %s16, %s930
        $region100: #{cnn_transformer_forward.3} parent=31 // pred_fallthru
          _
        // Predicated region
        $region101: #{cnn_transformer_forward.3} parent=31 // pred_check
          %p932 = pneg %p516
        $region102: #{cnn_transformer_forward.3} parent=31 // pred_check_branch
          %934 = sbr.rel (%p932) target = $region104
        $region103: #{cnn_transformer_forward.3} parent=31 // pred_region
          %p935 = scmp.lt.s32.totalorder %s50, 1
          %s936 = scalar_select %p935, %s50, 1
          %s937 = scalar_lea.vmem %s17, %s936
        $region104: #{cnn_transformer_forward.3} parent=31 // pred_fallthru
          _
        // Predicated region
        $region105: #{cnn_transformer_forward.3} parent=31 // pred_check
          %p938 = pneg %p542
        $region106: #{cnn_transformer_forward.3} parent=31 // pred_check_branch
          %940 = sbr.rel (%p938) target = $region108
        $region107: #{cnn_transformer_forward.3} parent=31 // pred_region
          %p941 = scmp.lt.s32.totalorder %s50, 1
          %s942 = scalar_select %p941, %s50, 1
          %s943 = smul.addr %s942, 4
          %s944 = smul.addr %s943, 4
          %s945 = scalar_lea.vmem %s18, %s944
        $region108: #{cnn_transformer_forward.3} parent=31 // pred_fallthru
          _
        // Predicated region
        $region109: #{cnn_transformer_forward.3} parent=31 // pred_check
          %p946 = pneg %p568
        $region110: #{cnn_transformer_forward.3} parent=31 // pred_check_branch
          %948 = sbr.rel (%p946) target = $region112
        $region111: #{cnn_transformer_forward.3} parent=31 // pred_region
          %p949 = scmp.lt.s32.totalorder %s50, 1
          %s950 = scalar_select %p949, %s50, 1
          %s951 = scalar_lea.vmem %s19, %s950
        $region112: #{cnn_transformer_forward.3} parent=31 // pred_fallthru
          _
        // Predicated region
        $region113: #{cnn_transformer_forward.3} parent=31 // pred_check
          %p952 = pneg %p594
        $region114: #{cnn_transformer_forward.3} parent=31 // pred_check_branch
          %954 = sbr.rel (%p952) target = $region116
        $region115: #{cnn_transformer_forward.3} parent=31 // pred_region
          %p955 = scmp.lt.s32.totalorder %s50, 1
          %s956 = scalar_select %p955, %s50, 1
          %s957 = smul.addr %s956, 8
          %s958 = smul.addr %s957, 4
          %s959 = scalar_lea.vmem %s20, %s958
        $region116: #{cnn_transformer_forward.3} parent=31 // pred_fallthru
          _
        // Predicated region
        $region117: #{cnn_transformer_forward.3} parent=31 // pred_check
          %p960 = pneg %p620
        $region118: #{cnn_transformer_forward.3} parent=31 // pred_check_branch
          %962 = sbr.rel (%p960) target = $region120
        $region119: #{cnn_transformer_forward.3} parent=31 // pred_region
          %p963 = scmp.lt.s32.totalorder %s50, 1
          %s964 = scalar_select %p963, %s50, 1
          %s965 = scalar_lea.vmem %s21, %s964
        $region120: #{cnn_transformer_forward.3} parent=31 // pred_fallthru
          _
      $region32: #{cnn_transformer_forward.3} parent=5 // pred_fallthru
        _
      %p966 = scmp.le.s32.totalorder 1, %s42
      %p967 = scmp.lt.s32.totalorder %s42, 5
      %p968 = pnand %p966, %p967
      %p969 = pneg %p968
      // Predicated region
      $region121: #{cnn_transformer_forward.3} parent=5 // pred_check
        _
      $region122: #{cnn_transformer_forward.3} parent=5 // pred_check_branch
        %971 = sbr.rel (%p968) target = $region124
      $region123: #{cnn_transformer_forward.3} parent=5 // pred_region
        %s972 = ssub.s32 %s42, 1
        // Predicated region
        $region125: #{cnn_transformer_forward.3} parent=123 // pred_check
          %p973 = pneg %p647
        $region126: #{cnn_transformer_forward.3} parent=123 // pred_check_branch
          %975 = sbr.rel (%p973) target = $region128
        $region127: #{cnn_transformer_forward.3} parent=123 // pred_region
          %976 = dma.done [#allocation4], 16
        $region128: #{cnn_transformer_forward.3} parent=123 // pred_fallthru
          _
        // Predicated region
        $region129: #{cnn_transformer_forward.3} parent=123 // pred_check
          %p977 = pneg %p668
        $region130: #{cnn_transformer_forward.3} parent=123 // pred_check_branch
          %979 = sbr.rel (%p977) target = $region132
        $region131: #{cnn_transformer_forward.3} parent=123 // pred_region
          %980 = dma.done [#allocation7], 16
        $region132: #{cnn_transformer_forward.3} parent=123 // pred_fallthru
          _
        // Predicated region
        $region133: #{cnn_transformer_forward.3} parent=123 // pred_check
          %p981 = pneg %p710
        $region134: #{cnn_transformer_forward.3} parent=123 // pred_check_branch
          %983 = sbr.rel (%p981) target = $region136
        $region135: #{cnn_transformer_forward.3} parent=123 // pred_region
          %984 = dma.done [#allocation7], 16
        $region136: #{cnn_transformer_forward.3} parent=123 // pred_fallthru
          _
        %p985 = scmp.lt.s32.totalorder %s51, 1
        %s986 = scalar_select %p985, %s51, 1
        %s987 = smul.addr %s986, 8
        %s988 = scalar_lea.vmem %s0, %s987
        %p989 = pneg %p80
        %p990 = pneg %p77
        %p991 = scmp.lt.s32.totalorder %s51, 1
        %s992 = scalar_select %p991, %s51, 1
        %s993 = smul.addr %s992, 2
        %s994 = smul.addr %s993, 8
        %s995 = scalar_lea.vmem %s1, %s994
        %p996 = pneg %p106
        %p997 = pneg %p103
        %p998 = scmp.lt.s32.totalorder %s52, 1
        %s999 = scalar_select %p998, %s52, 1
        %s1000 = scalar_lea.vmem %s2, %s999
        %p1001 = pneg %p132
        %p1002 = pneg %p129
        %p1003 = scmp.lt.s32.totalorder %s52, 1
        %s1004 = scalar_select %p1003, %s52, 1
        %s1005 = scalar_lea.vmem %s3, %s1004
        %p1006 = pneg %p158
        %p1007 = pneg %p155
        %p1008 = scmp.lt.s32.totalorder %s52, 1
        %s1009 = scalar_select %p1008, %s52, 1
        %s1010 = smul.addr %s1009, 4
        %s1011 = smul.addr %s1010, 4
        %s1012 = scalar_lea.vmem %s4, %s1011
        %p1013 = pneg %p184
        %p1014 = pneg %p181
        %p1015 = scmp.lt.s32.totalorder %s52, 1
        %s1016 = scalar_select %p1015, %s52, 1
        %s1017 = scalar_lea.vmem %s5, %s1016
        %p1018 = pneg %p210
        %p1019 = pneg %p207
        %p1020 = scmp.lt.s32.totalorder %s52, 1
        %s1021 = scalar_select %p1020, %s52, 1
        %s1022 = smul.addr %s1021, 4
        %s1023 = smul.addr %s1022, 4
        %s1024 = scalar_lea.vmem %s6, %s1023
        %p1025 = pneg %p236
        %p1026 = pneg %p233
        %p1027 = scmp.lt.s32.totalorder %s52, 1
        %s1028 = scalar_select %p1027, %s52, 1
        %s1029 = scalar_lea.vmem %s7, %s1028
        %p1030 = pneg %p262
        %p1031 = pneg %p259
        %p1032 = scmp.lt.s32.totalorder %s52, 1
        %s1033 = scalar_select %p1032, %s52, 1
        %s1034 = scalar_lea.vmem %s8, %s1033
        %p1035 = pneg %p288
        %p1036 = pneg %p285
        %p1037 = scmp.lt.s32.totalorder %s52, 1
        %s1038 = scalar_select %p1037, %s52, 1
        %s1039 = scalar_lea.vmem %s9, %s1038
        %p1040 = pneg %p314
        %p1041 = pneg %p311
        %p1042 = scmp.lt.s32.totalorder %s52, 1
        %s1043 = scalar_select %p1042, %s52, 1
        %s1044 = smul.addr %s1043, 4
        %s1045 = smul.addr %s1044, 4
        %s1046 = scalar_lea.vmem %s10, %s1045
        %p1047 = pneg %p340
        %p1048 = pneg %p337
        %p1049 = scmp.lt.s32.totalorder %s52, 1
        %s1050 = scalar_select %p1049, %s52, 1
        %s1051 = scalar_lea.vmem %s11, %s1050
        %p1052 = pneg %p366
        %p1053 = pneg %p363
        %p1054 = scmp.lt.s32.totalorder %s52, 1
        %s1055 = scalar_select %p1054, %s52, 1
        %s1056 = smul.addr %s1055, 4
        %s1057 = smul.addr %s1056, 4
        %s1058 = scalar_lea.vmem %s12, %s1057
        %p1059 = pneg %p392
        %p1060 = pneg %p389
        %p1061 = scmp.lt.s32.totalorder %s52, 1
        %s1062 = scalar_select %p1061, %s52, 1
        %s1063 = scalar_lea.vmem %s13, %s1062
        %p1064 = pneg %p418
        %p1065 = pneg %p415
        %p1066 = scmp.lt.s32.totalorder %s52, 1
        %s1067 = scalar_select %p1066, %s52, 1
        %s1068 = smul.addr %s1067, 4
        %s1069 = smul.addr %s1068, 4
        %s1070 = scalar_lea.vmem %s14, %s1069
        %p1071 = pneg %p444
        %p1072 = pneg %p441
        %p1073 = scmp.lt.s32.totalorder %s52, 1
        %s1074 = scalar_select %p1073, %s52, 1
        %s1075 = scalar_lea.vmem %s15, %s1074
        %p1076 = pneg %p470
        %p1077 = pneg %p467
        %p1078 = scmp.lt.s32.totalorder %s52, 1
        %s1079 = scalar_select %p1078, %s52, 1
        %s1080 = scalar_lea.vmem %s16, %s1079
        %p1081 = pneg %p496
        %p1082 = pneg %p493
        %p1083 = scmp.lt.s32.totalorder %s52, 1
        %s1084 = scalar_select %p1083, %s52, 1
        %s1085 = scalar_lea.vmem %s17, %s1084
        %p1086 = pneg %p522
        %p1087 = pneg %p519
        %p1088 = scmp.lt.s32.totalorder %s52, 1
        %s1089 = scalar_select %p1088, %s52, 1
        %s1090 = smul.addr %s1089, 4
        %s1091 = smul.addr %s1090, 4
        %s1092 = scalar_lea.vmem %s18, %s1091
        %p1093 = pneg %p548
        %p1094 = pneg %p545
        %p1095 = scmp.lt.s32.totalorder %s52, 1
        %s1096 = scalar_select %p1095, %s52, 1
        %s1097 = scalar_lea.vmem %s19, %s1096
        %p1098 = pneg %p574
        %p1099 = pneg %p571
        %p1100 = scmp.lt.s32.totalorder %s52, 1
        %s1101 = scalar_select %p1100, %s52, 1
        %s1102 = smul.addr %s1101, 8
        %s1103 = smul.addr %s1102, 4
        %s1104 = scalar_lea.vmem %s20, %s1103
        %p1105 = pneg %p600
        %p1106 = pneg %p597
        %p1107 = scmp.lt.s32.totalorder %s52, 1
        %s1108 = scalar_select %p1107, %s52, 1
        %s1109 = scalar_lea.vmem %s21, %s1108
        %p1110 = pneg %p626
        %p1111 = pneg %p623
        %p1112 = pneg %p647
        %p1113 = pneg %p644
        %p1114 = pneg %p668
        %p1115 = pneg %p665
        %p1116 = pneg %p689
        %p1117 = pneg %p686
        %p1118 = pneg %p710
        %p1119 = pneg %p707
        %p1120 = pneg %p736
        %p1121 = pneg %p733
        %s1122 = sand.u32 %s723, 1
        %s1123 = scalar_lea.sflag [#allocation5], %s1122
        %s1124 = sand.u32 %s723, 1
        %s1125 = smul.addr %s1124, 8
        %s1126 = scalar_lea.vmem [#allocation9], %s1125
        %p1127 = pneg %p762
        %p1128 = pneg %p759
        %s1129 = sand.u32 %s749, 1
        %s1130 = scalar_lea.sflag [#allocation11], %s1129
        %s1131 = sand.u32 %s749, 1
        %s1132 = smul.addr %s1131, 8
        %s1133 = scalar_lea.vmem [#allocation10], %s1132
        %p1134 = scmp.lt.s32.totalorder %s51, 1
        %s1135 = scalar_select %p1134, %s51, 1
        %s1136 = smul.addr %s1135, 8
        %s1137 = scalar_lea.vmem %s0, %s1136
        %p1138 = scmp.lt.s32.totalorder %s51, 1
        %s1139 = scalar_select %p1138, %s51, 1
        %s1140 = smul.addr %s1139, 2
        %s1141 = smul.addr %s1140, 8
        %s1142 = scalar_lea.vmem %s1, %s1141
        %p1143 = scmp.lt.s32.totalorder %s52, 1
        %s1144 = scalar_select %p1143, %s52, 1
        %s1145 = scalar_lea.vmem %s2, %s1144
        %p1146 = scmp.lt.s32.totalorder %s52, 1
        %s1147 = scalar_select %p1146, %s52, 1
        %s1148 = scalar_lea.vmem %s3, %s1147
        %p1149 = scmp.lt.s32.totalorder %s52, 1
        %s1150 = scalar_select %p1149, %s52, 1
        %s1151 = smul.addr %s1150, 4
        %s1152 = smul.addr %s1151, 4
        %s1153 = scalar_lea.vmem %s4, %s1152
        %p1154 = scmp.lt.s32.totalorder %s52, 1
        %s1155 = scalar_select %p1154, %s52, 1
        %s1156 = scalar_lea.vmem %s5, %s1155
        %p1157 = scmp.lt.s32.totalorder %s52, 1
        %s1158 = scalar_select %p1157, %s52, 1
        %s1159 = smul.addr %s1158, 4
        %s1160 = smul.addr %s1159, 4
        %s1161 = scalar_lea.vmem %s6, %s1160
        %p1162 = scmp.lt.s32.totalorder %s52, 1
        %s1163 = scalar_select %p1162, %s52, 1
        %s1164 = scalar_lea.vmem %s7, %s1163
        %p1165 = scmp.lt.s32.totalorder %s52, 1
        %s1166 = scalar_select %p1165, %s52, 1
        %s1167 = scalar_lea.vmem %s8, %s1166
        %p1168 = scmp.lt.s32.totalorder %s52, 1
        %s1169 = scalar_select %p1168, %s52, 1
        %s1170 = scalar_lea.vmem %s9, %s1169
        %p1171 = scmp.lt.s32.totalorder %s52, 1
        %s1172 = scalar_select %p1171, %s52, 1
        %s1173 = smul.addr %s1172, 4
        %s1174 = smul.addr %s1173, 4
        %s1175 = scalar_lea.vmem %s10, %s1174
        %p1176 = scmp.lt.s32.totalorder %s52, 1
        %s1177 = scalar_select %p1176, %s52, 1
        %s1178 = scalar_lea.vmem %s11, %s1177
        %p1179 = scmp.lt.s32.totalorder %s52, 1
        %s1180 = scalar_select %p1179, %s52, 1
        %s1181 = smul.addr %s1180, 4
        %s1182 = smul.addr %s1181, 4
        %s1183 = scalar_lea.vmem %s12, %s1182
        %p1184 = scmp.lt.s32.totalorder %s52, 1
        %s1185 = scalar_select %p1184, %s52, 1
        %s1186 = scalar_lea.vmem %s13, %s1185
        %p1187 = scmp.lt.s32.totalorder %s52, 1
        %s1188 = scalar_select %p1187, %s52, 1
        %s1189 = smul.addr %s1188, 4
        %s1190 = smul.addr %s1189, 4
        %s1191 = scalar_lea.vmem %s14, %s1190
        %p1192 = scmp.lt.s32.totalorder %s52, 1
        %s1193 = scalar_select %p1192, %s52, 1
        %s1194 = scalar_lea.vmem %s15, %s1193
        %p1195 = scmp.lt.s32.totalorder %s52, 1
        %s1196 = scalar_select %p1195, %s52, 1
        %s1197 = scalar_lea.vmem %s16, %s1196
        %p1198 = scmp.lt.s32.totalorder %s52, 1
        %s1199 = scalar_select %p1198, %s52, 1
        %s1200 = scalar_lea.vmem %s17, %s1199
        %p1201 = scmp.lt.s32.totalorder %s52, 1
        %s1202 = scalar_select %p1201, %s52, 1
        %s1203 = smul.addr %s1202, 4
        %s1204 = smul.addr %s1203, 4
        %s1205 = scalar_lea.vmem %s18, %s1204
        %p1206 = scmp.lt.s32.totalorder %s52, 1
        %s1207 = scalar_select %p1206, %s52, 1
        %s1208 = scalar_lea.vmem %s19, %s1207
        %p1209 = scmp.lt.s32.totalorder %s52, 1
        %s1210 = scalar_select %p1209, %s52, 1
        %s1211 = smul.addr %s1210, 8
        %s1212 = smul.addr %s1211, 4
        %s1213 = scalar_lea.vmem %s20, %s1212
        %p1214 = scmp.lt.s32.totalorder %s52, 1
        %s1215 = scalar_select %p1214, %s52, 1
        %s1216 = scalar_lea.vmem %s21, %s1215
        %p1218 = scmp.eq.s32.totalorder %s52, 0
        // Predicated region
        $region137: #{cnn_transformer_forward.3} parent=123 // pred_check
          %p1219 = pneg %p1218
        $region138: #{cnn_transformer_forward.3} parent=123 // pred_check_branch
          %1221 = sbr.rel (%p1219) target = $region140
        $region139: #{cnn_transformer_forward.3} parent=123 // pred_region
          %v1222 = vld [vmem:[%s1137] sm:$0xff]
          %vm1223 = vcmask 261120
          %1224 = vst.msk [vmem:[#allocation2] sm:$0xff] %vm1223, %v1222
        $region140: #{cnn_transformer_forward.3} parent=123 // pred_fallthru
          _
        %v1225 = vld [vmem:[#allocation2] sm:$0xff]
        %v1226 = vld [vmem:[%s1142] sm:$0xff]
        %v1227 = vld [vmem:[%s1142 + $0x8] sm:$0xff]
        %v1228 = vld [vmem:[%s1145] sm:$0x1]
        %v1229 = vld [vmem:[%s1148] sm:$0x1]
        %vm1230 = vcmask 261120
        %v1231 = vsel %vm1230, %v1225, 0.0
        %1232 = vadd.xlane.f32.xlu0 %v1231
        %v1233 = vpop.xlane.xlu0 %1232
        %v1234 = vrcp.pop 32.0
        %v1235 = vmul.f32 %v1233, %v1234
        %v1236 = vsub.f32 %v1225, %v1235
        %v1237 = vmul.f32 %v1236, %v1236
        %v1238 = vsel %vm1230, %v1237, 0.0
        %1239 = vadd.xlane.f32.xlu0 %v1238
        %v1240 = vpop.xlane.xlu0 %1239
        %v1241 = vmul.f32 %v1240, %v1234
        %v1242 = vadd.f32 %v1241, 1e-05
        %v1243 = vrsqrt.pop %v1242
        %v1244 = vmul.f32 %v1236, %v1243
        %v1246 = vlaneseq
        %v1247 = vshrl.u32 %v1246, 7
        %v1248 = vsub.s32 0, %v1247
        %v1249 = vrot.slane %v1228, %v1248
        %v1251 = vmul.f32 %v1244, %v1249
        %v1253 = vlaneseq
        %v1254 = vshrl.u32 %v1253, 7
        %v1255 = vsub.s32 0, %v1254
        %v1256 = vrot.slane %v1229, %v1255
        %v1258 = vadd.f32 %v1251, %v1256
        %v1259 = vpack.c.bf16 %v1258, %v1258
        %v1260 = vld [vmem:[%s1153] sm:$0xf]
        %v1261 = vld [vmem:[%s1153 + $0x4] sm:$0xf]
        %v1262 = vld [vmem:[%s1153 + $0x8] sm:$0xf]
        %v1263 = vld [vmem:[%s1153 + $0xc] sm:$0xf]
        %v1264 = vld [vmem:[%s1156] sm:$0x1]
        %v1266 = vlaneseq
        %v1267 = vshrl.u32 %v1266, 7
        %v1268 = vsub.s32 0, %v1267
        %v1269 = vrot.slane %v1264, %v1268
        %v1275 = vunpack.c.l.b16 %v1260
        %v1276 = vunpack.c.l.b16 %v1261
        %v1277 = vunpack.c.l.b16 %v1262
        %v1278 = vunpack.c.l.b16 %v1263
        %v1279 = vpack.c.b16 %v1276, %v1275
        %v1280 = vpack.c.b16 %v1278, %v1277
        %v1284 = vsel %vm1230, %v1259, 0
        %1286 = vmatprep.subr.bf16.mxu0 0
        %1287 = vmatpush1.bf16.msra.mxu0 0
        %1288 = vmatprep.subr.bf16.mxu0 0
        %1289 = vmatpush1.bf16.msra.mxu0 0
        %1290 = vmatprep.subr.bf16.mxu0 0
        %1291 = vmatpush1.bf16.msra.mxu0 0
        %1292 = vmatprep.subr.bf16.mxu0 0
        %1293 = vmatpush1.bf16.msra.mxu0 0
        %1294 = vmatprep.subr.bf16.mxu0 0
        %1295 = vmatpush1.bf16.msra.mxu0 0
        %1296 = vmatprep.subr.bf16.mxu0 0
        %1297 = vmatpush1.bf16.msra.mxu0 0
        %1298 = vmatprep.subr.bf16.mxu0 0
        %1299 = vmatpush1.bf16.msra.mxu0 %v1280
        %1300 = vmatprep.subr.bf16.mxu0 0
        %1301 = vmatpush1.bf16.msra.mxu0 %v1279
        %1302 = vmatprep.subr.bf16.mxu0 0
        %1303 = vmatpush2.bf16.msra.mxu0 0
        %1304 = vmatprep.subr.bf16.mxu0 0
        %1305 = vmatpush2.bf16.msra.mxu0 0
        %1306 = vmatprep.subr.bf16.mxu0 0
        %1307 = vmatpush2.bf16.msra.mxu0 0
        %1308 = vmatprep.subr.bf16.mxu0 0
        %1309 = vmatpush2.bf16.msra.mxu0 0
        %1310 = vmatprep.subr.bf16.mxu0 0
        %1311 = vmatpush2.bf16.msra.mxu0 0
        %1312 = vmatprep.subr.bf16.mxu0 0
        %1313 = vmatpush2.bf16.msra.mxu0 0
        %1314 = vmatprep.subr.bf16.mxu0 0
        %1315 = vmatpush2.bf16.msra.mxu0 0
        %1316 = vmatprep.subr.bf16.mxu0 0
        %1317 = vmatpush2.bf16.msra.mxu0 0
        %1318 = vmatprep.mubr.bf16.mxu0 0
        %1319 = vmatmul.mubr.bf16.gmra.mxu0 %v1284
        %v1320 = vpop.f32.mrf.mxu0
        %v1321 = vadd.f32 %v1269, %v1320
        %v1322 = vpop.f32.mrf.mxu0
        %v1323 = vpop.f32.mrf.mxu0
        %v1324 = vpop.f32.mrf.mxu0
        %1325 = vdwg.mxu0
        %v1326 = vld [vmem:[%s1161] sm:$0xf]
        %v1327 = vld [vmem:[%s1161 + $0x4] sm:$0xf]
        %v1328 = vld [vmem:[%s1161 + $0x8] sm:$0xf]
        %v1329 = vld [vmem:[%s1161 + $0xc] sm:$0xf]
        %v1330 = vld [vmem:[%s1164] sm:$0x1]
        %v1331 = vpack.c.bf16 %v1321, %v1321
        %1333 = vrot.lane.b32.xlu0 %v1331, 120
        %v1334 = vpop.permute.xlu0 %1333
        %1335 = vrot.lane.b32.xlu0 %v1331, 112
        %v1336 = vpop.permute.xlu0 %1335
        %1337 = vrot.lane.b32.xlu0 %v1331, 104
        %v1338 = vpop.permute.xlu0 %1337
        %1339 = vrot.lane.b32.xlu0 %v1331, 96
        %v1340 = vpop.permute.xlu0 %1339
        %1342 = vxpose.xlu0.c.b16.start [1/8] %v1340, 128
        %1343 = vxpose.xlu0.c.b16.cont [2/8] 0, 128
        %1344 = vxpose.xlu0.c.b16.cont [3/8] 0, 128
        %1345 = vxpose.xlu0.c.b16.cont [4/8] 0, 128
        %1346 = vxpose.xlu0.c.b16.cont [5/8] 0, 128
        %1347 = vxpose.xlu0.c.b16.cont [6/8] 0, 128
        %1348 = vxpose.xlu0.c.b16.cont [7/8] 0, 128
        %1349 = vxpose.xlu0.c.b16.end [8/8] 0, 128
        %v1350 = vpop.trf.xlu0
        %v1351 = vpop.trf.xlu0
        %v1352 = vpop.trf.xlu0
        %v1353 = vpop.trf.xlu0
        %v1354 = vpop.trf.xlu0
        %v1355 = vpop.trf.xlu0
        %v1356 = vpop.trf.xlu0
        %v1357 = vpop.trf.xlu0
        %1358 = vrot.lane.b32.xlu0 %v1331, 88
        %v1359 = vpop.permute.xlu0 %1358
        %1361 = vxpose.xlu0.c.b16.start [1/8] %v1359, 128
        %1362 = vxpose.xlu0.c.b16.cont [2/8] 0, 128
        %1363 = vxpose.xlu0.c.b16.cont [3/8] 0, 128
        %1364 = vxpose.xlu0.c.b16.cont [4/8] 0, 128
        %1365 = vxpose.xlu0.c.b16.cont [5/8] 0, 128
        %1366 = vxpose.xlu0.c.b16.cont [6/8] 0, 128
        %1367 = vxpose.xlu0.c.b16.cont [7/8] 0, 128
        %1368 = vxpose.xlu0.c.b16.end [8/8] 0, 128
        %v1369 = vpop.trf.xlu0
        %v1370 = vpop.trf.xlu0
        %v1371 = vpop.trf.xlu0
        %v1372 = vpop.trf.xlu0
        %v1373 = vpop.trf.xlu0
        %v1374 = vpop.trf.xlu0
        %v1375 = vpop.trf.xlu0
        %v1376 = vpop.trf.xlu0
        %1377 = vrot.lane.b32.xlu0 %v1331, 80
        %v1378 = vpop.permute.xlu0 %1377
        %1380 = vxpose.xlu0.c.b16.start [1/8] %v1378, 128
        %1381 = vxpose.xlu0.c.b16.cont [2/8] 0, 128
        %1382 = vxpose.xlu0.c.b16.cont [3/8] 0, 128
        %1383 = vxpose.xlu0.c.b16.cont [4/8] 0, 128
        %1384 = vxpose.xlu0.c.b16.cont [5/8] 0, 128
        %1385 = vxpose.xlu0.c.b16.cont [6/8] 0, 128
        %1386 = vxpose.xlu0.c.b16.cont [7/8] 0, 128
        %1387 = vxpose.xlu0.c.b16.end [8/8] 0, 128
        %v1388 = vpop.trf.xlu0
        %v1389 = vpop.trf.xlu0
        %v1390 = vpop.trf.xlu0
        %v1391 = vpop.trf.xlu0
        %v1392 = vpop.trf.xlu0
        %v1393 = vpop.trf.xlu0
        %v1394 = vpop.trf.xlu0
        %v1395 = vpop.trf.xlu0
        %1396 = vrot.lane.b32.xlu0 %v1331, 72
        %v1397 = vpop.permute.xlu0 %1396
        %1399 = vxpose.xlu0.c.b16.start [1/8] %v1397, 128
        %1400 = vxpose.xlu0.c.b16.cont [2/8] 0, 128
        %1401 = vxpose.xlu0.c.b16.cont [3/8] 0, 128
        %1402 = vxpose.xlu0.c.b16.cont [4/8] 0, 128
        %1403 = vxpose.xlu0.c.b16.cont [5/8] 0, 128
        %1404 = vxpose.xlu0.c.b16.cont [6/8] 0, 128
        %1405 = vxpose.xlu0.c.b16.cont [7/8] 0, 128
        %1406 = vxpose.xlu0.c.b16.end [8/8] 0, 128
        %v1407 = vpop.trf.xlu0
        %v1408 = vpop.trf.xlu0
        %v1409 = vpop.trf.xlu0
        %v1410 = vpop.trf.xlu0
        %v1411 = vpop.trf.xlu0
        %v1412 = vpop.trf.xlu0
        %v1413 = vpop.trf.xlu0
        %v1414 = vpop.trf.xlu0
        %vm1415 = vcmask 64512
        %v1417 = vsel %vm1415, %v1331, 0
        %vm1419 = vcmask 1043456
        %v1421 = vsel %vm1419, %v1350, 0
        %1423 = vmatprep.subr.bf16.mxu0 0
        %1424 = vmatpush1.bf16.msra.mxu0 0
        %1425 = vmatprep.subr.bf16.mxu0 0
        %1426 = vmatpush1.bf16.msra.mxu0 0
        %1427 = vmatprep.subr.bf16.mxu0 0
        %1428 = vmatpush1.bf16.msra.mxu0 0
        %1429 = vmatprep.subr.bf16.mxu0 0
        %1430 = vmatpush1.bf16.msra.mxu0 0
        %1431 = vmatprep.subr.bf16.mxu0 0
        %1432 = vmatpush1.bf16.msra.mxu0 0
        %1433 = vmatprep.subr.bf16.mxu0 0
        %1434 = vmatpush1.bf16.msra.mxu0 0
        %1435 = vmatprep.subr.bf16.mxu0 0
        %1436 = vmatpush1.bf16.msra.mxu0 0
        %1437 = vmatprep.subr.bf16.mxu0 0
        %1438 = vmatpush1.bf16.msra.mxu0 %v1421
        %1439 = vmatprep.subr.bf16.mxu0 0
        %1440 = vmatpush2.bf16.msra.mxu0 0
        %1441 = vmatprep.subr.bf16.mxu0 0
        %1442 = vmatpush2.bf16.msra.mxu0 0
        %1443 = vmatprep.subr.bf16.mxu0 0
        %1444 = vmatpush2.bf16.msra.mxu0 0
        %1445 = vmatprep.subr.bf16.mxu0 0
        %1446 = vmatpush2.bf16.msra.mxu0 0
        %1447 = vmatprep.subr.bf16.mxu0 0
        %1448 = vmatpush2.bf16.msra.mxu0 0
        %1449 = vmatprep.subr.bf16.mxu0 0
        %1450 = vmatpush2.bf16.msra.mxu0 0
        %1451 = vmatprep.subr.bf16.mxu0 0
        %1452 = vmatpush2.bf16.msra.mxu0 0
        %1453 = vmatprep.subr.bf16.mxu0 0
        %1454 = vmatpush2.bf16.msra.mxu0 0
        %1455 = vmatprep.mubr.bf16.mxu0 0
        %1456 = vmatmul.mubr.bf16.gmra.mxu0 %v1417
        %v1457 = vpop.f32.mrf.mxu0
        %v1458 = vadd.f32 0.0, %v1457
        %v1459 = vpop.f32.mrf.mxu0
        %v1460 = vpop.f32.mrf.mxu0
        %v1461 = vpop.f32.mrf.mxu0
        %1462 = vdwg.mxu0
        %v1464 = vsel %vm1415, %v1334, 0
        %v1467 = vsel %vm1419, %v1369, 0
        %1469 = vmatprep.subr.bf16.mxu0 0
        %1470 = vmatpush1.bf16.msra.mxu0 0
        %1471 = vmatprep.subr.bf16.mxu0 0
        %1472 = vmatpush1.bf16.msra.mxu0 0
        %1473 = vmatprep.subr.bf16.mxu0 0
        %1474 = vmatpush1.bf16.msra.mxu0 0
        %1475 = vmatprep.subr.bf16.mxu0 0
        %1476 = vmatpush1.bf16.msra.mxu0 0
        %1477 = vmatprep.subr.bf16.mxu0 0
        %1478 = vmatpush1.bf16.msra.mxu0 0
        %1479 = vmatprep.subr.bf16.mxu0 0
        %1480 = vmatpush1.bf16.msra.mxu0 0
        %1481 = vmatprep.subr.bf16.mxu0 0
        %1482 = vmatpush1.bf16.msra.mxu0 0
        %1483 = vmatprep.subr.bf16.mxu0 0
        %1484 = vmatpush1.bf16.msra.mxu0 %v1467
        %1485 = vmatprep.subr.bf16.mxu0 0
        %1486 = vmatpush2.bf16.msra.mxu0 0
        %1487 = vmatprep.subr.bf16.mxu0 0
        %1488 = vmatpush2.bf16.msra.mxu0 0
        %1489 = vmatprep.subr.bf16.mxu0 0
        %1490 = vmatpush2.bf16.msra.mxu0 0
        %1491 = vmatprep.subr.bf16.mxu0 0
        %1492 = vmatpush2.bf16.msra.mxu0 0
        %1493 = vmatprep.subr.bf16.mxu0 0
        %1494 = vmatpush2.bf16.msra.mxu0 0
        %1495 = vmatprep.subr.bf16.mxu0 0
        %1496 = vmatpush2.bf16.msra.mxu0 0
        %1497 = vmatprep.subr.bf16.mxu0 0
        %1498 = vmatpush2.bf16.msra.mxu0 0
        %1499 = vmatprep.subr.bf16.mxu0 0
        %1500 = vmatpush2.bf16.msra.mxu0 0
        %1501 = vmatprep.mubr.bf16.mxu0 0
        %1502 = vmatmul.mubr.bf16.gmra.mxu0 %v1464
        %v1503 = vpop.f32.mrf.mxu0
        %v1504 = vadd.f32 0.0, %v1503
        %v1505 = vpop.f32.mrf.mxu0
        %v1506 = vpop.f32.mrf.mxu0
        %v1507 = vpop.f32.mrf.mxu0
        %1508 = vdwg.mxu0
        %v1510 = vsel %vm1415, %v1336, 0
        %v1513 = vsel %vm1419, %v1388, 0
        %1515 = vmatprep.subr.bf16.mxu0 0
        %1516 = vmatpush1.bf16.msra.mxu0 0
        %1517 = vmatprep.subr.bf16.mxu0 0
        %1518 = vmatpush1.bf16.msra.mxu0 0
        %1519 = vmatprep.subr.bf16.mxu0 0
        %1520 = vmatpush1.bf16.msra.mxu0 0
        %1521 = vmatprep.subr.bf16.mxu0 0
        %1522 = vmatpush1.bf16.msra.mxu0 0
        %1523 = vmatprep.subr.bf16.mxu0 0
        %1524 = vmatpush1.bf16.msra.mxu0 0
        %1525 = vmatprep.subr.bf16.mxu0 0
        %1526 = vmatpush1.bf16.msra.mxu0 0
        %1527 = vmatprep.subr.bf16.mxu0 0
        %1528 = vmatpush1.bf16.msra.mxu0 0
        %1529 = vmatprep.subr.bf16.mxu0 0
        %1530 = vmatpush1.bf16.msra.mxu0 %v1513
        %1531 = vmatprep.subr.bf16.mxu0 0
        %1532 = vmatpush2.bf16.msra.mxu0 0
        %1533 = vmatprep.subr.bf16.mxu0 0
        %1534 = vmatpush2.bf16.msra.mxu0 0
        %1535 = vmatprep.subr.bf16.mxu0 0
        %1536 = vmatpush2.bf16.msra.mxu0 0
        %1537 = vmatprep.subr.bf16.mxu0 0
        %1538 = vmatpush2.bf16.msra.mxu0 0
        %1539 = vmatprep.subr.bf16.mxu0 0
        %1540 = vmatpush2.bf16.msra.mxu0 0
        %1541 = vmatprep.subr.bf16.mxu0 0
        %1542 = vmatpush2.bf16.msra.mxu0 0
        %1543 = vmatprep.subr.bf16.mxu0 0
        %1544 = vmatpush2.bf16.msra.mxu0 0
        %1545 = vmatprep.subr.bf16.mxu0 0
        %1546 = vmatpush2.bf16.msra.mxu0 0
        %1547 = vmatprep.mubr.bf16.mxu0 0
        %1548 = vmatmul.mubr.bf16.gmra.mxu0 %v1510
        %v1549 = vpop.f32.mrf.mxu0
        %v1550 = vadd.f32 0.0, %v1549
        %v1551 = vpop.f32.mrf.mxu0
        %v1552 = vpop.f32.mrf.mxu0
        %v1553 = vpop.f32.mrf.mxu0
        %1554 = vdwg.mxu0
        %v1556 = vsel %vm1415, %v1338, 0
        %v1559 = vsel %vm1419, %v1407, 0
        %1561 = vmatprep.subr.bf16.mxu0 0
        %1562 = vmatpush1.bf16.msra.mxu0 0
        %1563 = vmatprep.subr.bf16.mxu0 0
        %1564 = vmatpush1.bf16.msra.mxu0 0
        %1565 = vmatprep.subr.bf16.mxu0 0
        %1566 = vmatpush1.bf16.msra.mxu0 0
        %1567 = vmatprep.subr.bf16.mxu0 0
        %1568 = vmatpush1.bf16.msra.mxu0 0
        %1569 = vmatprep.subr.bf16.mxu0 0
        %1570 = vmatpush1.bf16.msra.mxu0 0
        %1571 = vmatprep.subr.bf16.mxu0 0
        %1572 = vmatpush1.bf16.msra.mxu0 0
        %1573 = vmatprep.subr.bf16.mxu0 0
        %1574 = vmatpush1.bf16.msra.mxu0 0
        %1575 = vmatprep.subr.bf16.mxu0 0
        %1576 = vmatpush1.bf16.msra.mxu0 %v1559
        %1577 = vmatprep.subr.bf16.mxu0 0
        %1578 = vmatpush2.bf16.msra.mxu0 0
        %1579 = vmatprep.subr.bf16.mxu0 0
        %1580 = vmatpush2.bf16.msra.mxu0 0
        %1581 = vmatprep.subr.bf16.mxu0 0
        %1582 = vmatpush2.bf16.msra.mxu0 0
        %1583 = vmatprep.subr.bf16.mxu0 0
        %1584 = vmatpush2.bf16.msra.mxu0 0
        %1585 = vmatprep.subr.bf16.mxu0 0
        %1586 = vmatpush2.bf16.msra.mxu0 0
        %1587 = vmatprep.subr.bf16.mxu0 0
        %1588 = vmatpush2.bf16.msra.mxu0 0
        %1589 = vmatprep.subr.bf16.mxu0 0
        %1590 = vmatpush2.bf16.msra.mxu0 0
        %1591 = vmatprep.subr.bf16.mxu0 0
        %1592 = vmatpush2.bf16.msra.mxu0 0
        %1593 = vmatprep.mubr.bf16.mxu0 0
        %1594 = vmatmul.mubr.bf16.gmra.mxu0 %v1556
        %v1595 = vpop.f32.mrf.mxu0
        %v1596 = vadd.f32 0.0, %v1595
        %v1597 = vpop.f32.mrf.mxu0
        %v1598 = vpop.f32.mrf.mxu0
        %v1599 = vpop.f32.mrf.mxu0
        %1600 = vdwg.mxu0
        %v1601 = vmul.f32 %v1458, 0.35355338
        %v1602 = vmul.f32 %v1504, 0.35355338
        %v1603 = vmul.f32 %v1550, 0.35355338
        %v1604 = vmul.f32 %v1596, 0.35355338
        %v1605 = vlaneseq
        %v1606 = vshrl.u32 %v1605, 7
        %v1607 = vlaneseq
        %v1608 = vand.u32 %v1607, 127
        %vm1609 = vcmp.ge.s32.totalorder %v1606, %v1608
        %v1610 = vsel %vm1609, 1, 0
        %vm1611 = vcmp.eq.s32.totalorder %v1610, 1
        %v1612 = vsel %vm1611, %v1601, -1e+09
        %v1613 = vsel %vm1611, %v1602, -1e+09
        %v1614 = vsel %vm1611, %v1603, -1e+09
        %v1615 = vsel %vm1611, %v1604, -1e+09
        %v1616 = vsel %vm1415, %v1612, -inf
        %1617 = vmax.xlane.f32.xlu0 %v1616
        %v1618 = vpop.xlane.xlu0 %1617
        %v1619 = vsel %vm1415, %v1613, -inf
        %1620 = vmax.xlane.f32.xlu0 %v1619
        %v1621 = vpop.xlane.xlu0 %1620
        %v1622 = vsel %vm1415, %v1614, -inf
        %1623 = vmax.xlane.f32.xlu0 %v1622
        %v1624 = vpop.xlane.xlu0 %1623
        %v1625 = vsel %vm1415, %v1615, -inf
        %1626 = vmax.xlane.f32.xlu0 %v1625
        %v1627 = vpop.xlane.xlu0 %1626
        %v1628 = vsub.f32 %v1612, %v1618
        %v1629 = vsub.f32 %v1613, %v1621
        %v1630 = vsub.f32 %v1614, %v1624
        %v1631 = vsub.f32 %v1615, %v1627
        %v1632 = vmul.f32 %v1628, 1.442695
        %v1633 = vpow.pop %v1632
        %v1634 = vmul.f32 %v1629, 1.442695
        %v1635 = vpow.pop %v1634
        %v1636 = vmul.f32 %v1630, 1.442695
        %v1637 = vpow.pop %v1636
        %v1638 = vmul.f32 %v1631, 1.442695
        %v1639 = vpow.pop %v1638
        %v1640 = vsel %vm1415, %v1633, 0.0
        %1641 = vadd.xlane.f32.xlu0 %v1640
        %v1642 = vpop.xlane.xlu0 %1641
        %v1643 = vsel %vm1415, %v1635, 0.0
        %1644 = vadd.xlane.f32.xlu0 %v1643
        %v1645 = vpop.xlane.xlu0 %1644
        %v1646 = vsel %vm1415, %v1637, 0.0
        %1647 = vadd.xlane.f32.xlu0 %v1646
        %v1648 = vpop.xlane.xlu0 %1647
        %v1649 = vsel %vm1415, %v1639, 0.0
        %1650 = vadd.xlane.f32.xlu0 %v1649
        %v1651 = vpop.xlane.xlu0 %1650
        %v1652 = vrcp.pop %v1642
        %v1653 = vrcp.pop %v1645
        %v1654 = vrcp.pop %v1648
        %v1655 = vrcp.pop %v1651
        %v1656 = vmul.f32 %v1633, %v1652
        %v1657 = vmul.f32 %v1635, %v1653
        %v1658 = vmul.f32 %v1637, %v1654
        %v1659 = vmul.f32 %v1639, %v1655
        %v1660 = vpack.c.bf16 %v1656, %v1656
        %v1661 = vpack.c.bf16 %v1657, %v1657
        %v1662 = vpack.c.bf16 %v1658, %v1658
        %v1663 = vpack.c.bf16 %v1659, %v1659
        %1664 = vrot.lane.b32.xlu0 %v1331, 64
        %v1665 = vpop.permute.xlu0 %1664
        %v1667 = vsel %vm1415, %v1660, 0
        %v1670 = vsel %vm1419, %v1665, 0
        %1672 = vmatprep.subr.bf16.mxu0 0
        %1673 = vmatpush1.bf16.msra.mxu0 0
        %1674 = vmatprep.subr.bf16.mxu0 0
        %1675 = vmatpush1.bf16.msra.mxu0 0
        %1676 = vmatprep.subr.bf16.mxu0 0
        %1677 = vmatpush1.bf16.msra.mxu0 0
        %1678 = vmatprep.subr.bf16.mxu0 0
        %1679 = vmatpush1.bf16.msra.mxu0 0
        %1680 = vmatprep.subr.bf16.mxu0 0
        %1681 = vmatpush1.bf16.msra.mxu0 0
        %1682 = vmatprep.subr.bf16.mxu0 0
        %1683 = vmatpush1.bf16.msra.mxu0 0
        %1684 = vmatprep.subr.bf16.mxu0 0
        %1685 = vmatpush1.bf16.msra.mxu0 0
        %1686 = vmatprep.subr.bf16.mxu0 0
        %1687 = vmatpush1.bf16.msra.mxu0 %v1670
        %1688 = vmatprep.subr.bf16.mxu0 0
        %1689 = vmatpush2.bf16.msra.mxu0 0
        %1690 = vmatprep.subr.bf16.mxu0 0
        %1691 = vmatpush2.bf16.msra.mxu0 0
        %1692 = vmatprep.subr.bf16.mxu0 0
        %1693 = vmatpush2.bf16.msra.mxu0 0
        %1694 = vmatprep.subr.bf16.mxu0 0
        %1695 = vmatpush2.bf16.msra.mxu0 0
        %1696 = vmatprep.subr.bf16.mxu0 0
        %1697 = vmatpush2.bf16.msra.mxu0 0
        %1698 = vmatprep.subr.bf16.mxu0 0
        %1699 = vmatpush2.bf16.msra.mxu0 0
        %1700 = vmatprep.subr.bf16.mxu0 0
        %1701 = vmatpush2.bf16.msra.mxu0 0
        %1702 = vmatprep.subr.bf16.mxu0 0
        %1703 = vmatpush2.bf16.msra.mxu0 0
        %1704 = vmatprep.mubr.bf16.mxu0 0
        %1705 = vmatmul.mubr.bf16.gmra.mxu0 %v1667
        %v1706 = vpop.f32.mrf.mxu0
        %v1707 = vadd.f32 0.0, %v1706
        %v1708 = vpop.f32.mrf.mxu0
        %v1709 = vpop.f32.mrf.mxu0
        %v1710 = vpop.f32.mrf.mxu0
        %1711 = vdwg.mxu0
        %1712 = vrot.lane.b32.xlu0 %v1334, 64
        %v1713 = vpop.permute.xlu0 %1712
        %v1715 = vsel %vm1415, %v1661, 0
        %v1718 = vsel %vm1419, %v1713, 0
        %1720 = vmatprep.subr.bf16.mxu0 0
        %1721 = vmatpush1.bf16.msra.mxu0 0
        %1722 = vmatprep.subr.bf16.mxu0 0
        %1723 = vmatpush1.bf16.msra.mxu0 0
        %1724 = vmatprep.subr.bf16.mxu0 0
        %1725 = vmatpush1.bf16.msra.mxu0 0
        %1726 = vmatprep.subr.bf16.mxu0 0
        %1727 = vmatpush1.bf16.msra.mxu0 0
        %1728 = vmatprep.subr.bf16.mxu0 0
        %1729 = vmatpush1.bf16.msra.mxu0 0
        %1730 = vmatprep.subr.bf16.mxu0 0
        %1731 = vmatpush1.bf16.msra.mxu0 0
        %1732 = vmatprep.subr.bf16.mxu0 0
        %1733 = vmatpush1.bf16.msra.mxu0 0
        %1734 = vmatprep.subr.bf16.mxu0 0
        %1735 = vmatpush1.bf16.msra.mxu0 %v1718
        %1736 = vmatprep.subr.bf16.mxu0 0
        %1737 = vmatpush2.bf16.msra.mxu0 0
        %1738 = vmatprep.subr.bf16.mxu0 0
        %1739 = vmatpush2.bf16.msra.mxu0 0
        %1740 = vmatprep.subr.bf16.mxu0 0
        %1741 = vmatpush2.bf16.msra.mxu0 0
        %1742 = vmatprep.subr.bf16.mxu0 0
        %1743 = vmatpush2.bf16.msra.mxu0 0
        %1744 = vmatprep.subr.bf16.mxu0 0
        %1745 = vmatpush2.bf16.msra.mxu0 0
        %1746 = vmatprep.subr.bf16.mxu0 0
        %1747 = vmatpush2.bf16.msra.mxu0 0
        %1748 = vmatprep.subr.bf16.mxu0 0
        %1749 = vmatpush2.bf16.msra.mxu0 0
        %1750 = vmatprep.subr.bf16.mxu0 0
        %1751 = vmatpush2.bf16.msra.mxu0 0
        %1752 = vmatprep.mubr.bf16.mxu0 0
        %1753 = vmatmul.mubr.bf16.gmra.mxu0 %v1715
        %v1754 = vpop.f32.mrf.mxu0
        %v1755 = vadd.f32 0.0, %v1754
        %v1756 = vpop.f32.mrf.mxu0
        %v1757 = vpop.f32.mrf.mxu0
        %v1758 = vpop.f32.mrf.mxu0
        %1759 = vdwg.mxu0
        %1760 = vrot.lane.b32.xlu0 %v1336, 64
        %v1761 = vpop.permute.xlu0 %1760
        %v1763 = vsel %vm1415, %v1662, 0
        %v1766 = vsel %vm1419, %v1761, 0
        %1768 = vmatprep.subr.bf16.mxu0 0
        %1769 = vmatpush1.bf16.msra.mxu0 0
        %1770 = vmatprep.subr.bf16.mxu0 0
        %1771 = vmatpush1.bf16.msra.mxu0 0
        %1772 = vmatprep.subr.bf16.mxu0 0
        %1773 = vmatpush1.bf16.msra.mxu0 0
        %1774 = vmatprep.subr.bf16.mxu0 0
        %1775 = vmatpush1.bf16.msra.mxu0 0
        %1776 = vmatprep.subr.bf16.mxu0 0
        %1777 = vmatpush1.bf16.msra.mxu0 0
        %1778 = vmatprep.subr.bf16.mxu0 0
        %1779 = vmatpush1.bf16.msra.mxu0 0
        %1780 = vmatprep.subr.bf16.mxu0 0
        %1781 = vmatpush1.bf16.msra.mxu0 0
        %1782 = vmatprep.subr.bf16.mxu0 0
        %1783 = vmatpush1.bf16.msra.mxu0 %v1766
        %1784 = vmatprep.subr.bf16.mxu0 0
        %1785 = vmatpush2.bf16.msra.mxu0 0
        %1786 = vmatprep.subr.bf16.mxu0 0
        %1787 = vmatpush2.bf16.msra.mxu0 0
        %1788 = vmatprep.subr.bf16.mxu0 0
        %1789 = vmatpush2.bf16.msra.mxu0 0
        %1790 = vmatprep.subr.bf16.mxu0 0
        %1791 = vmatpush2.bf16.msra.mxu0 0
        %1792 = vmatprep.subr.bf16.mxu0 0
        %1793 = vmatpush2.bf16.msra.mxu0 0
        %1794 = vmatprep.subr.bf16.mxu0 0
        %1795 = vmatpush2.bf16.msra.mxu0 0
        %1796 = vmatprep.subr.bf16.mxu0 0
        %1797 = vmatpush2.bf16.msra.mxu0 0
        %1798 = vmatprep.subr.bf16.mxu0 0
        %1799 = vmatpush2.bf16.msra.mxu0 0
        %1800 = vmatprep.mubr.bf16.mxu0 0
        %1801 = vmatmul.mubr.bf16.gmra.mxu0 %v1763
        %v1802 = vpop.f32.mrf.mxu0
        %v1803 = vadd.f32 0.0, %v1802
        %v1804 = vpop.f32.mrf.mxu0
        %v1805 = vpop.f32.mrf.mxu0
        %v1806 = vpop.f32.mrf.mxu0
        %1807 = vdwg.mxu0
        %1808 = vrot.lane.b32.xlu0 %v1338, 64
        %v1809 = vpop.permute.xlu0 %1808
        %v1811 = vsel %vm1415, %v1663, 0
        %v1814 = vsel %vm1419, %v1809, 0
        %1816 = vmatprep.subr.bf16.mxu0 0
        %1817 = vmatpush1.bf16.msra.mxu0 0
        %1818 = vmatprep.subr.bf16.mxu0 0
        %1819 = vmatpush1.bf16.msra.mxu0 0
        %1820 = vmatprep.subr.bf16.mxu0 0
        %1821 = vmatpush1.bf16.msra.mxu0 0
        %1822 = vmatprep.subr.bf16.mxu0 0
        %1823 = vmatpush1.bf16.msra.mxu0 0
        %1824 = vmatprep.subr.bf16.mxu0 0
        %1825 = vmatpush1.bf16.msra.mxu0 0
        %1826 = vmatprep.subr.bf16.mxu0 0
        %1827 = vmatpush1.bf16.msra.mxu0 0
        %1828 = vmatprep.subr.bf16.mxu0 0
        %1829 = vmatpush1.bf16.msra.mxu0 0
        %1830 = vmatprep.subr.bf16.mxu0 0
        %1831 = vmatpush1.bf16.msra.mxu0 %v1814
        %1832 = vmatprep.subr.bf16.mxu0 0
        %1833 = vmatpush2.bf16.msra.mxu0 0
        %1834 = vmatprep.subr.bf16.mxu0 0
        %1835 = vmatpush2.bf16.msra.mxu0 0
        %1836 = vmatprep.subr.bf16.mxu0 0
        %1837 = vmatpush2.bf16.msra.mxu0 0
        %1838 = vmatprep.subr.bf16.mxu0 0
        %1839 = vmatpush2.bf16.msra.mxu0 0
        %1840 = vmatprep.subr.bf16.mxu0 0
        %1841 = vmatpush2.bf16.msra.mxu0 0
        %1842 = vmatprep.subr.bf16.mxu0 0
        %1843 = vmatpush2.bf16.msra.mxu0 0
        %1844 = vmatprep.subr.bf16.mxu0 0
        %1845 = vmatpush2.bf16.msra.mxu0 0
        %1846 = vmatprep.subr.bf16.mxu0 0
        %1847 = vmatpush2.bf16.msra.mxu0 0
        %1848 = vmatprep.mubr.bf16.mxu0 0
        %1849 = vmatmul.mubr.bf16.gmra.mxu0 %v1811
        %v1850 = vpop.f32.mrf.mxu0
        %v1851 = vadd.f32 0.0, %v1850
        %v1852 = vpop.f32.mrf.mxu0
        %v1853 = vpop.f32.mrf.mxu0
        %v1854 = vpop.f32.mrf.mxu0
        %1855 = vdwg.mxu0
        %1857 = vrot.lane.b32.xlu0 %v1755, 8
        %v1858 = vpop.permute.xlu0 %1857
        %1861 = vrot.lane.b32.xlu0 %v1803, 16
        %v1862 = vpop.permute.xlu0 %1861
        %1865 = vrot.lane.b32.xlu0 %v1851, 24
        %v1866 = vpop.permute.xlu0 %1865
        %v1868 = vsel %vm1415, %v1707, %v1858
        %vm1869 = vcmask 130048
        %v1870 = vsel %vm1869, %v1868, %v1862
        %vm1871 = vcmask 195584
        %v1872 = vsel %vm1871, %v1870, %v1866
        %v1873 = vpack.c.bf16 %v1872, %v1872
        %v1875 = vlaneseq
        %v1876 = vshrl.u32 %v1875, 7
        %v1877 = vsub.s32 0, %v1876
        %v1878 = vrot.slane %v1330, %v1877
        %v1884 = vunpack.c.l.b16 %v1326
        %v1885 = vunpack.c.l.b16 %v1327
        %v1886 = vunpack.c.l.b16 %v1328
        %v1887 = vunpack.c.l.b16 %v1329
        %v1888 = vpack.c.b16 %v1885, %v1884
        %v1889 = vpack.c.b16 %v1887, %v1886
        %v1893 = vsel %vm1230, %v1873, 0
        %1895 = vmatprep.subr.bf16.mxu0 0
        %1896 = vmatpush1.bf16.msra.mxu0 0
        %1897 = vmatprep.subr.bf16.mxu0 0
        %1898 = vmatpush1.bf16.msra.mxu0 0
        %1899 = vmatprep.subr.bf16.mxu0 0
        %1900 = vmatpush1.bf16.msra.mxu0 0
        %1901 = vmatprep.subr.bf16.mxu0 0
        %1902 = vmatpush1.bf16.msra.mxu0 0
        %1903 = vmatprep.subr.bf16.mxu0 0
        %1904 = vmatpush1.bf16.msra.mxu0 0
        %1905 = vmatprep.subr.bf16.mxu0 0
        %1906 = vmatpush1.bf16.msra.mxu0 0
        %1907 = vmatprep.subr.bf16.mxu0 0
        %1908 = vmatpush1.bf16.msra.mxu0 %v1889
        %1909 = vmatprep.subr.bf16.mxu0 0
        %1910 = vmatpush1.bf16.msra.mxu0 %v1888
        %1911 = vmatprep.subr.bf16.mxu0 0
        %1912 = vmatpush2.bf16.msra.mxu0 0
        %1913 = vmatprep.subr.bf16.mxu0 0
        %1914 = vmatpush2.bf16.msra.mxu0 0
        %1915 = vmatprep.subr.bf16.mxu0 0
        %1916 = vmatpush2.bf16.msra.mxu0 0
        %1917 = vmatprep.subr.bf16.mxu0 0
        %1918 = vmatpush2.bf16.msra.mxu0 0
        %1919 = vmatprep.subr.bf16.mxu0 0
        %1920 = vmatpush2.bf16.msra.mxu0 0
        %1921 = vmatprep.subr.bf16.mxu0 0
        %1922 = vmatpush2.bf16.msra.mxu0 0
        %1923 = vmatprep.subr.bf16.mxu0 0
        %1924 = vmatpush2.bf16.msra.mxu0 0
        %1925 = vmatprep.subr.bf16.mxu0 0
        %1926 = vmatpush2.bf16.msra.mxu0 0
        %1927 = vmatprep.mubr.bf16.mxu0 0
        %1928 = vmatmul.mubr.bf16.gmra.mxu0 %v1893
        %v1929 = vpop.f32.mrf.mxu0
        %v1930 = vadd.f32 %v1878, %v1929
        %v1931 = vpop.f32.mrf.mxu0
        %v1932 = vpop.f32.mrf.mxu0
        %v1933 = vpop.f32.mrf.mxu0
        %1934 = vdwg.mxu0
        %v1935 = vadd.f32 %v1225, %v1930
        %v1936 = vld [vmem:[%s1167] sm:$0x1]
        %v1937 = vld [vmem:[%s1170] sm:$0x1]
        %v1938 = vsel %vm1230, %v1935, 0.0
        %1939 = vadd.xlane.f32.xlu0 %v1938
        %v1940 = vpop.xlane.xlu0 %1939
        %v1941 = vmul.f32 %v1940, %v1234
        %v1942 = vsub.f32 %v1935, %v1941
        %v1943 = vmul.f32 %v1942, %v1942
        %v1944 = vsel %vm1230, %v1943, 0.0
        %1945 = vadd.xlane.f32.xlu0 %v1944
        %v1946 = vpop.xlane.xlu0 %1945
        %v1947 = vmul.f32 %v1946, %v1234
        %v1948 = vadd.f32 %v1947, 1e-05
        %v1949 = vrsqrt.pop %v1948
        %v1950 = vmul.f32 %v1942, %v1949
        %v1952 = vlaneseq
        %v1953 = vshrl.u32 %v1952, 7
        %v1954 = vsub.s32 0, %v1953
        %v1955 = vrot.slane %v1936, %v1954
        %v1957 = vmul.f32 %v1950, %v1955
        %v1959 = vlaneseq
        %v1960 = vshrl.u32 %v1959, 7
        %v1961 = vsub.s32 0, %v1960
        %v1962 = vrot.slane %v1937, %v1961
        %v1964 = vadd.f32 %v1957, %v1962
        %v1965 = vpack.c.bf16 %v1964, %v1964
        %v1966 = vld [vmem:[%s1175] sm:$0xf]
        %v1967 = vld [vmem:[%s1175 + $0x4] sm:$0xf]
        %v1968 = vld [vmem:[%s1175 + $0x8] sm:$0xf]
        %v1969 = vld [vmem:[%s1175 + $0xc] sm:$0xf]
        %v1970 = vld [vmem:[%s1178] sm:$0x1]
        %v1972 = vlaneseq
        %v1973 = vshrl.u32 %v1972, 7
        %v1974 = vsub.s32 0, %v1973
        %v1975 = vrot.slane %v1970, %v1974
        %v1981 = vunpack.c.l.b16 %v1966
        %v1982 = vunpack.c.l.b16 %v1967
        %v1983 = vunpack.c.l.b16 %v1968
        %v1984 = vunpack.c.l.b16 %v1969
        %v1985 = vpack.c.b16 %v1982, %v1981
        %v1986 = vpack.c.b16 %v1984, %v1983
        %v1990 = vsel %vm1230, %v1965, 0
        %1992 = vmatprep.subr.bf16.mxu0 0
        %1993 = vmatpush1.bf16.msra.mxu0 0
        %1994 = vmatprep.subr.bf16.mxu0 0
        %1995 = vmatpush1.bf16.msra.mxu0 0
        %1996 = vmatprep.subr.bf16.mxu0 0
        %1997 = vmatpush1.bf16.msra.mxu0 0
        %1998 = vmatprep.subr.bf16.mxu0 0
        %1999 = vmatpush1.bf16.msra.mxu0 0
        %2000 = vmatprep.subr.bf16.mxu0 0
        %2001 = vmatpush1.bf16.msra.mxu0 0
        %2002 = vmatprep.subr.bf16.mxu0 0
        %2003 = vmatpush1.bf16.msra.mxu0 0
        %2004 = vmatprep.subr.bf16.mxu0 0
        %2005 = vmatpush1.bf16.msra.mxu0 %v1986
        %2006 = vmatprep.subr.bf16.mxu0 0
        %2007 = vmatpush1.bf16.msra.mxu0 %v1985
        %2008 = vmatprep.subr.bf16.mxu0 0
        %2009 = vmatpush2.bf16.msra.mxu0 0
        %2010 = vmatprep.subr.bf16.mxu0 0
        %2011 = vmatpush2.bf16.msra.mxu0 0
        %2012 = vmatprep.subr.bf16.mxu0 0
        %2013 = vmatpush2.bf16.msra.mxu0 0
        %2014 = vmatprep.subr.bf16.mxu0 0
        %2015 = vmatpush2.bf16.msra.mxu0 0
        %2016 = vmatprep.subr.bf16.mxu0 0
        %2017 = vmatpush2.bf16.msra.mxu0 0
        %2018 = vmatprep.subr.bf16.mxu0 0
        %2019 = vmatpush2.bf16.msra.mxu0 0
        %2020 = vmatprep.subr.bf16.mxu0 0
        %2021 = vmatpush2.bf16.msra.mxu0 0
        %2022 = vmatprep.subr.bf16.mxu0 0
        %2023 = vmatpush2.bf16.msra.mxu0 0
        %2024 = vmatprep.mubr.bf16.mxu0 0
        %2025 = vmatmul.mubr.bf16.gmra.mxu0 %v1990
        %v2026 = vpop.f32.mrf.mxu0
        %v2027 = vadd.f32 %v1975, %v2026
        %v2028 = vpop.f32.mrf.mxu0
        %v2029 = vpop.f32.mrf.mxu0
        %v2030 = vpop.f32.mrf.mxu0
        %2031 = vdwg.mxu0
        %v2032 = vpack.c.bf16 %v1227, %v1226
        %v2033 = vld [vmem:[%s1183] sm:$0xf]
        %v2034 = vld [vmem:[%s1183 + $0x4] sm:$0xf]
        %v2035 = vld [vmem:[%s1183 + $0x8] sm:$0xf]
        %v2036 = vld [vmem:[%s1183 + $0xc] sm:$0xf]
        %v2037 = vld [vmem:[%s1186] sm:$0x1]
        %v2039 = vlaneseq
        %v2040 = vshrl.u32 %v2039, 7
        %v2041 = vsub.s32 0, %v2040
        %v2042 = vrot.slane %v2037, %v2041
        %v2048 = vunpack.c.l.b16 %v2033
        %v2049 = vunpack.c.l.b16 %v2034
        %v2050 = vunpack.c.l.b16 %v2035
        %v2051 = vunpack.c.l.b16 %v2036
        %v2052 = vpack.c.b16 %v2049, %v2048
        %v2053 = vpack.c.b16 %v2051, %v2050
        %v2057 = vsel %vm1230, %v2032, 0
        %2059 = vmatprep.subr.bf16.mxu0 0
        %2060 = vmatpush1.bf16.msra.mxu0 0
        %2061 = vmatprep.subr.bf16.mxu0 0
        %2062 = vmatpush1.bf16.msra.mxu0 0
        %2063 = vmatprep.subr.bf16.mxu0 0
        %2064 = vmatpush1.bf16.msra.mxu0 0
        %2065 = vmatprep.subr.bf16.mxu0 0
        %2066 = vmatpush1.bf16.msra.mxu0 0
        %2067 = vmatprep.subr.bf16.mxu0 0
        %2068 = vmatpush1.bf16.msra.mxu0 0
        %2069 = vmatprep.subr.bf16.mxu0 0
        %2070 = vmatpush1.bf16.msra.mxu0 0
        %2071 = vmatprep.subr.bf16.mxu0 0
        %2072 = vmatpush1.bf16.msra.mxu0 %v2053
        %2073 = vmatprep.subr.bf16.mxu0 0
        %2074 = vmatpush1.bf16.msra.mxu0 %v2052
        %2075 = vmatprep.subr.bf16.mxu0 0
        %2076 = vmatpush2.bf16.msra.mxu0 0
        %2077 = vmatprep.subr.bf16.mxu0 0
        %2078 = vmatpush2.bf16.msra.mxu0 0
        %2079 = vmatprep.subr.bf16.mxu0 0
        %2080 = vmatpush2.bf16.msra.mxu0 0
        %2081 = vmatprep.subr.bf16.mxu0 0
        %2082 = vmatpush2.bf16.msra.mxu0 0
        %2083 = vmatprep.subr.bf16.mxu0 0
        %2084 = vmatpush2.bf16.msra.mxu0 0
        %2085 = vmatprep.subr.bf16.mxu0 0
        %2086 = vmatpush2.bf16.msra.mxu0 0
        %2087 = vmatprep.subr.bf16.mxu0 0
        %2088 = vmatpush2.bf16.msra.mxu0 0
        %2089 = vmatprep.subr.bf16.mxu0 0
        %2090 = vmatpush2.bf16.msra.mxu0 0
        %2091 = vmatprep.mubr.bf16.mxu0 0
        %2092 = vmatmul.mubr.bf16.gmra.mxu0 %v2057
        %v2093 = vpop.f32.mrf.mxu0
        %v2094 = vadd.f32 %v2042, %v2093
        %v2095 = vpop.f32.mrf.mxu0
        %v2096 = vpop.f32.mrf.mxu0
        %v2097 = vadd.f32 %v2042, %v2096
        %v2098 = vpop.f32.mrf.mxu0
        %2099 = vdwg.mxu0
        %v2100 = vld [vmem:[%s1191] sm:$0xf]
        %v2101 = vld [vmem:[%s1191 + $0x4] sm:$0xf]
        %v2102 = vld [vmem:[%s1191 + $0x8] sm:$0xf]
        %v2103 = vld [vmem:[%s1191 + $0xc] sm:$0xf]
        %v2104 = vld [vmem:[%s1194] sm:$0x1]
        %v2105 = vpack.c.bf16 %v2027, %v2027
        %v2106 = vpack.c.bf16 %v2097, %v2094
        %2108 = vrot.lane.b32.xlu0 %v2105, 120
        %v2109 = vpop.permute.xlu0 %2108
        %2110 = vrot.lane.b32.xlu0 %v2105, 112
        %v2111 = vpop.permute.xlu0 %2110
        %2112 = vrot.lane.b32.xlu0 %v2105, 104
        %v2113 = vpop.permute.xlu0 %2112
        %2114 = vxpose.xlu0.c.b16.start [1/8] %v2106, 128
        %2115 = vxpose.xlu0.c.b16.cont [2/8] 0, 128
        %2116 = vxpose.xlu0.c.b16.cont [3/8] 0, 128
        %2117 = vxpose.xlu0.c.b16.cont [4/8] 0, 128
        %2118 = vxpose.xlu0.c.b16.cont [5/8] 0, 128
        %2119 = vxpose.xlu0.c.b16.cont [6/8] 0, 128
        %2120 = vxpose.xlu0.c.b16.cont [7/8] 0, 128
        %2121 = vxpose.xlu0.c.b16.end [8/8] 0, 128
        %v2122 = vpop.trf.xlu0
        %v2123 = vpop.trf.xlu0
        %v2124 = vpop.trf.xlu0
        %v2125 = vpop.trf.xlu0
        %v2126 = vpop.trf.xlu0
        %v2127 = vpop.trf.xlu0
        %v2128 = vpop.trf.xlu0
        %v2129 = vpop.trf.xlu0
        %2131 = vrot.lane.b32.xlu0 %v2106, 120
        %v2132 = vpop.permute.xlu0 %2131
        %2134 = vxpose.xlu0.c.b16.start [1/8] %v2132, 128
        %2135 = vxpose.xlu0.c.b16.cont [2/8] 0, 128
        %2136 = vxpose.xlu0.c.b16.cont [3/8] 0, 128
        %2137 = vxpose.xlu0.c.b16.cont [4/8] 0, 128
        %2138 = vxpose.xlu0.c.b16.cont [5/8] 0, 128
        %2139 = vxpose.xlu0.c.b16.cont [6/8] 0, 128
        %2140 = vxpose.xlu0.c.b16.cont [7/8] 0, 128
        %2141 = vxpose.xlu0.c.b16.end [8/8] 0, 128
        %v2142 = vpop.trf.xlu0
        %v2143 = vpop.trf.xlu0
        %v2144 = vpop.trf.xlu0
        %v2145 = vpop.trf.xlu0
        %v2146 = vpop.trf.xlu0
        %v2147 = vpop.trf.xlu0
        %v2148 = vpop.trf.xlu0
        %v2149 = vpop.trf.xlu0
        %2150 = vrot.lane.b32.xlu0 %v2106, 112
        %v2151 = vpop.permute.xlu0 %2150
        %2153 = vxpose.xlu0.c.b16.start [1/8] %v2151, 128
        %2154 = vxpose.xlu0.c.b16.cont [2/8] 0, 128
        %2155 = vxpose.xlu0.c.b16.cont [3/8] 0, 128
        %2156 = vxpose.xlu0.c.b16.cont [4/8] 0, 128
        %2157 = vxpose.xlu0.c.b16.cont [5/8] 0, 128
        %2158 = vxpose.xlu0.c.b16.cont [6/8] 0, 128
        %2159 = vxpose.xlu0.c.b16.cont [7/8] 0, 128
        %2160 = vxpose.xlu0.c.b16.end [8/8] 0, 128
        %v2161 = vpop.trf.xlu0
        %v2162 = vpop.trf.xlu0
        %v2163 = vpop.trf.xlu0
        %v2164 = vpop.trf.xlu0
        %v2165 = vpop.trf.xlu0
        %v2166 = vpop.trf.xlu0
        %v2167 = vpop.trf.xlu0
        %v2168 = vpop.trf.xlu0
        %2169 = vrot.lane.b32.xlu0 %v2106, 104
        %v2170 = vpop.permute.xlu0 %2169
        %2172 = vxpose.xlu0.c.b16.start [1/8] %v2170, 128
        %2173 = vxpose.xlu0.c.b16.cont [2/8] 0, 128
        %2174 = vxpose.xlu0.c.b16.cont [3/8] 0, 128
        %2175 = vxpose.xlu0.c.b16.cont [4/8] 0, 128
        %2176 = vxpose.xlu0.c.b16.cont [5/8] 0, 128
        %2177 = vxpose.xlu0.c.b16.cont [6/8] 0, 128
        %2178 = vxpose.xlu0.c.b16.cont [7/8] 0, 128
        %2179 = vxpose.xlu0.c.b16.end [8/8] 0, 128
        %v2180 = vpop.trf.xlu0
        %v2181 = vpop.trf.xlu0
        %v2182 = vpop.trf.xlu0
        %v2183 = vpop.trf.xlu0
        %v2184 = vpop.trf.xlu0
        %v2185 = vpop.trf.xlu0
        %v2186 = vpop.trf.xlu0
        %v2187 = vpop.trf.xlu0
        %v2189 = vsel %vm1415, %v2105, 0
        %v2192 = vsel %vm1419, %v2122, 0
        %2194 = vmatprep.subr.bf16.mxu0 0
        %2195 = vmatpush1.bf16.msra.mxu0 0
        %2196 = vmatprep.subr.bf16.mxu0 0
        %2197 = vmatpush1.bf16.msra.mxu0 0
        %2198 = vmatprep.subr.bf16.mxu0 0
        %2199 = vmatpush1.bf16.msra.mxu0 0
        %2200 = vmatprep.subr.bf16.mxu0 0
        %2201 = vmatpush1.bf16.msra.mxu0 0
        %2202 = vmatprep.subr.bf16.mxu0 0
        %2203 = vmatpush1.bf16.msra.mxu0 0
        %2204 = vmatprep.subr.bf16.mxu0 0
        %2205 = vmatpush1.bf16.msra.mxu0 0
        %2206 = vmatprep.subr.bf16.mxu0 0
        %2207 = vmatpush1.bf16.msra.mxu0 0
        %2208 = vmatprep.subr.bf16.mxu0 0
        %2209 = vmatpush1.bf16.msra.mxu0 %v2192
        %2210 = vmatprep.subr.bf16.mxu0 0
        %2211 = vmatpush2.bf16.msra.mxu0 0
        %2212 = vmatprep.subr.bf16.mxu0 0
        %2213 = vmatpush2.bf16.msra.mxu0 0
        %2214 = vmatprep.subr.bf16.mxu0 0
        %2215 = vmatpush2.bf16.msra.mxu0 0
        %2216 = vmatprep.subr.bf16.mxu0 0
        %2217 = vmatpush2.bf16.msra.mxu0 0
        %2218 = vmatprep.subr.bf16.mxu0 0
        %2219 = vmatpush2.bf16.msra.mxu0 0
        %2220 = vmatprep.subr.bf16.mxu0 0
        %2221 = vmatpush2.bf16.msra.mxu0 0
        %2222 = vmatprep.subr.bf16.mxu0 0
        %2223 = vmatpush2.bf16.msra.mxu0 0
        %2224 = vmatprep.subr.bf16.mxu0 0
        %2225 = vmatpush2.bf16.msra.mxu0 0
        %2226 = vmatprep.mubr.bf16.mxu0 0
        %2227 = vmatmul.mubr.bf16.gmra.mxu0 %v2189
        %v2228 = vpop.f32.mrf.mxu0
        %v2229 = vadd.f32 0.0, %v2228
        %v2230 = vpop.f32.mrf.mxu0
        %v2231 = vpop.f32.mrf.mxu0
        %v2232 = vpop.f32.mrf.mxu0
        %2233 = vdwg.mxu0
        %v2235 = vsel %vm1415, %v2109, 0
        %v2238 = vsel %vm1419, %v2142, 0
        %2240 = vmatprep.subr.bf16.mxu0 0
        %2241 = vmatpush1.bf16.msra.mxu0 0
        %2242 = vmatprep.subr.bf16.mxu0 0
        %2243 = vmatpush1.bf16.msra.mxu0 0
        %2244 = vmatprep.subr.bf16.mxu0 0
        %2245 = vmatpush1.bf16.msra.mxu0 0
        %2246 = vmatprep.subr.bf16.mxu0 0
        %2247 = vmatpush1.bf16.msra.mxu0 0
        %2248 = vmatprep.subr.bf16.mxu0 0
        %2249 = vmatpush1.bf16.msra.mxu0 0
        %2250 = vmatprep.subr.bf16.mxu0 0
        %2251 = vmatpush1.bf16.msra.mxu0 0
        %2252 = vmatprep.subr.bf16.mxu0 0
        %2253 = vmatpush1.bf16.msra.mxu0 0
        %2254 = vmatprep.subr.bf16.mxu0 0
        %2255 = vmatpush1.bf16.msra.mxu0 %v2238
        %2256 = vmatprep.subr.bf16.mxu0 0
        %2257 = vmatpush2.bf16.msra.mxu0 0
        %2258 = vmatprep.subr.bf16.mxu0 0
        %2259 = vmatpush2.bf16.msra.mxu0 0
        %2260 = vmatprep.subr.bf16.mxu0 0
        %2261 = vmatpush2.bf16.msra.mxu0 0
        %2262 = vmatprep.subr.bf16.mxu0 0
        %2263 = vmatpush2.bf16.msra.mxu0 0
        %2264 = vmatprep.subr.bf16.mxu0 0
        %2265 = vmatpush2.bf16.msra.mxu0 0
        %2266 = vmatprep.subr.bf16.mxu0 0
        %2267 = vmatpush2.bf16.msra.mxu0 0
        %2268 = vmatprep.subr.bf16.mxu0 0
        %2269 = vmatpush2.bf16.msra.mxu0 0
        %2270 = vmatprep.subr.bf16.mxu0 0
        %2271 = vmatpush2.bf16.msra.mxu0 0
        %2272 = vmatprep.mubr.bf16.mxu0 0
        %2273 = vmatmul.mubr.bf16.gmra.mxu0 %v2235
        %v2274 = vpop.f32.mrf.mxu0
        %v2275 = vadd.f32 0.0, %v2274
        %v2276 = vpop.f32.mrf.mxu0
        %v2277 = vpop.f32.mrf.mxu0
        %v2278 = vpop.f32.mrf.mxu0
        %2279 = vdwg.mxu0
        %v2281 = vsel %vm1415, %v2111, 0
        %v2284 = vsel %vm1419, %v2161, 0
        %2286 = vmatprep.subr.bf16.mxu0 0
        %2287 = vmatpush1.bf16.msra.mxu0 0
        %2288 = vmatprep.subr.bf16.mxu0 0
        %2289 = vmatpush1.bf16.msra.mxu0 0
        %2290 = vmatprep.subr.bf16.mxu0 0
        %2291 = vmatpush1.bf16.msra.mxu0 0
        %2292 = vmatprep.subr.bf16.mxu0 0
        %2293 = vmatpush1.bf16.msra.mxu0 0
        %2294 = vmatprep.subr.bf16.mxu0 0
        %2295 = vmatpush1.bf16.msra.mxu0 0
        %2296 = vmatprep.subr.bf16.mxu0 0
        %2297 = vmatpush1.bf16.msra.mxu0 0
        %2298 = vmatprep.subr.bf16.mxu0 0
        %2299 = vmatpush1.bf16.msra.mxu0 0
        %2300 = vmatprep.subr.bf16.mxu0 0
        %2301 = vmatpush1.bf16.msra.mxu0 %v2284
        %2302 = vmatprep.subr.bf16.mxu0 0
        %2303 = vmatpush2.bf16.msra.mxu0 0
        %2304 = vmatprep.subr.bf16.mxu0 0
        %2305 = vmatpush2.bf16.msra.mxu0 0
        %2306 = vmatprep.subr.bf16.mxu0 0
        %2307 = vmatpush2.bf16.msra.mxu0 0
        %2308 = vmatprep.subr.bf16.mxu0 0
        %2309 = vmatpush2.bf16.msra.mxu0 0
        %2310 = vmatprep.subr.bf16.mxu0 0
        %2311 = vmatpush2.bf16.msra.mxu0 0
        %2312 = vmatprep.subr.bf16.mxu0 0
        %2313 = vmatpush2.bf16.msra.mxu0 0
        %2314 = vmatprep.subr.bf16.mxu0 0
        %2315 = vmatpush2.bf16.msra.mxu0 0
        %2316 = vmatprep.subr.bf16.mxu0 0
        %2317 = vmatpush2.bf16.msra.mxu0 0
        %2318 = vmatprep.mubr.bf16.mxu0 0
        %2319 = vmatmul.mubr.bf16.gmra.mxu0 %v2281
        %v2320 = vpop.f32.mrf.mxu0
        %v2321 = vadd.f32 0.0, %v2320
        %v2322 = vpop.f32.mrf.mxu0
        %v2323 = vpop.f32.mrf.mxu0
        %v2324 = vpop.f32.mrf.mxu0
        %2325 = vdwg.mxu0
        %v2327 = vsel %vm1415, %v2113, 0
        %v2330 = vsel %vm1419, %v2180, 0
        %2332 = vmatprep.subr.bf16.mxu0 0
        %2333 = vmatpush1.bf16.msra.mxu0 0
        %2334 = vmatprep.subr.bf16.mxu0 0
        %2335 = vmatpush1.bf16.msra.mxu0 0
        %2336 = vmatprep.subr.bf16.mxu0 0
        %2337 = vmatpush1.bf16.msra.mxu0 0
        %2338 = vmatprep.subr.bf16.mxu0 0
        %2339 = vmatpush1.bf16.msra.mxu0 0
        %2340 = vmatprep.subr.bf16.mxu0 0
        %2341 = vmatpush1.bf16.msra.mxu0 0
        %2342 = vmatprep.subr.bf16.mxu0 0
        %2343 = vmatpush1.bf16.msra.mxu0 0
        %2344 = vmatprep.subr.bf16.mxu0 0
        %2345 = vmatpush1.bf16.msra.mxu0 0
        %2346 = vmatprep.subr.bf16.mxu0 0
        %2347 = vmatpush1.bf16.msra.mxu0 %v2330
        %2348 = vmatprep.subr.bf16.mxu0 0
        %2349 = vmatpush2.bf16.msra.mxu0 0
        %2350 = vmatprep.subr.bf16.mxu0 0
        %2351 = vmatpush2.bf16.msra.mxu0 0
        %2352 = vmatprep.subr.bf16.mxu0 0
        %2353 = vmatpush2.bf16.msra.mxu0 0
        %2354 = vmatprep.subr.bf16.mxu0 0
        %2355 = vmatpush2.bf16.msra.mxu0 0
        %2356 = vmatprep.subr.bf16.mxu0 0
        %2357 = vmatpush2.bf16.msra.mxu0 0
        %2358 = vmatprep.subr.bf16.mxu0 0
        %2359 = vmatpush2.bf16.msra.mxu0 0
        %2360 = vmatprep.subr.bf16.mxu0 0
        %2361 = vmatpush2.bf16.msra.mxu0 0
        %2362 = vmatprep.subr.bf16.mxu0 0
        %2363 = vmatpush2.bf16.msra.mxu0 0
        %2364 = vmatprep.mubr.bf16.mxu0 0
        %2365 = vmatmul.mubr.bf16.gmra.mxu0 %v2327
        %v2366 = vpop.f32.mrf.mxu0
        %v2367 = vadd.f32 0.0, %v2366
        %v2368 = vpop.f32.mrf.mxu0
        %v2369 = vpop.f32.mrf.mxu0
        %v2370 = vpop.f32.mrf.mxu0
        %2371 = vdwg.mxu0
        %v2372 = vmul.f32 %v2229, 0.35355338
        %v2373 = vmul.f32 %v2275, 0.35355338
        %v2374 = vmul.f32 %v2321, 0.35355338
        %v2375 = vmul.f32 %v2367, 0.35355338
        %v2376 = vsel %vm1869, %v2372, -inf
        %2377 = vmax.xlane.f32.xlu0 %v2376
        %v2378 = vpop.xlane.xlu0 %2377
        %v2379 = vsel %vm1869, %v2373, -inf
        %2380 = vmax.xlane.f32.xlu0 %v2379
        %v2381 = vpop.xlane.xlu0 %2380
        %v2382 = vsel %vm1869, %v2374, -inf
        %2383 = vmax.xlane.f32.xlu0 %v2382
        %v2384 = vpop.xlane.xlu0 %2383
        %v2385 = vsel %vm1869, %v2375, -inf
        %2386 = vmax.xlane.f32.xlu0 %v2385
        %v2387 = vpop.xlane.xlu0 %2386
        %v2388 = vsub.f32 %v2372, %v2378
        %v2389 = vsub.f32 %v2373, %v2381
        %v2390 = vsub.f32 %v2374, %v2384
        %v2391 = vsub.f32 %v2375, %v2387
        %v2392 = vmul.f32 %v2388, 1.442695
        %v2393 = vpow.pop %v2392
        %v2394 = vmul.f32 %v2389, 1.442695
        %v2395 = vpow.pop %v2394
        %v2396 = vmul.f32 %v2390, 1.442695
        %v2397 = vpow.pop %v2396
        %v2398 = vmul.f32 %v2391, 1.442695
        %v2399 = vpow.pop %v2398
        %v2400 = vsel %vm1869, %v2393, 0.0
        %2401 = vadd.xlane.f32.xlu0 %v2400
        %v2402 = vpop.xlane.xlu0 %2401
        %v2403 = vsel %vm1869, %v2395, 0.0
        %2404 = vadd.xlane.f32.xlu0 %v2403
        %v2405 = vpop.xlane.xlu0 %2404
        %v2406 = vsel %vm1869, %v2397, 0.0
        %2407 = vadd.xlane.f32.xlu0 %v2406
        %v2408 = vpop.xlane.xlu0 %2407
        %v2409 = vsel %vm1869, %v2399, 0.0
        %2410 = vadd.xlane.f32.xlu0 %v2409
        %v2411 = vpop.xlane.xlu0 %2410
        %v2412 = vrcp.pop %v2402
        %v2413 = vrcp.pop %v2405
        %v2414 = vrcp.pop %v2408
        %v2415 = vrcp.pop %v2411
        %v2416 = vmul.f32 %v2393, %v2412
        %v2417 = vmul.f32 %v2395, %v2413
        %v2418 = vmul.f32 %v2397, %v2414
        %v2419 = vmul.f32 %v2399, %v2415
        %v2420 = vpack.c.bf16 %v2416, %v2416
        %v2421 = vpack.c.bf16 %v2417, %v2417
        %v2422 = vpack.c.bf16 %v2418, %v2418
        %v2423 = vpack.c.bf16 %v2419, %v2419
        %2424 = vrot.lane.b32.xlu0 %v2106, 96
        %v2425 = vpop.permute.xlu0 %2424
        %v2428 = vsel %vm1869, %v2420, 0
        %2430 = vmatprep.subr.bf16.mxu0 0
        %2431 = vmatpush1.bf16.msra.mxu0 0
        %2432 = vmatprep.subr.bf16.mxu0 0
        %2433 = vmatpush1.bf16.msra.mxu0 0
        %2434 = vmatprep.subr.bf16.mxu0 0
        %2435 = vmatpush1.bf16.msra.mxu0 0
        %2436 = vmatprep.subr.bf16.mxu0 0
        %2437 = vmatpush1.bf16.msra.mxu0 0
        %2438 = vmatprep.subr.bf16.mxu0 0
        %2439 = vmatpush1.bf16.msra.mxu0 0
        %2440 = vmatprep.subr.bf16.mxu0 0
        %2441 = vmatpush1.bf16.msra.mxu0 0
        %2442 = vmatprep.subr.bf16.mxu0 0
        %2443 = vmatpush1.bf16.msra.mxu0 0
        %2444 = vmatprep.subr.bf16.mxu0 0
        %2445 = vmatpush1.bf16.msra.mxu0 %v2425
        %2446 = vmatprep.subr.bf16.mxu0 0
        %2447 = vmatpush2.bf16.msra.mxu0 0
        %2448 = vmatprep.subr.bf16.mxu0 0
        %2449 = vmatpush2.bf16.msra.mxu0 0
        %2450 = vmatprep.subr.bf16.mxu0 0
        %2451 = vmatpush2.bf16.msra.mxu0 0
        %2452 = vmatprep.subr.bf16.mxu0 0
        %2453 = vmatpush2.bf16.msra.mxu0 0
        %2454 = vmatprep.subr.bf16.mxu0 0
        %2455 = vmatpush2.bf16.msra.mxu0 0
        %2456 = vmatprep.subr.bf16.mxu0 0
        %2457 = vmatpush2.bf16.msra.mxu0 0
        %2458 = vmatprep.subr.bf16.mxu0 0
        %2459 = vmatpush2.bf16.msra.mxu0 0
        %2460 = vmatprep.subr.bf16.mxu0 0
        %2461 = vmatpush2.bf16.msra.mxu0 0
        %2462 = vmatprep.mubr.bf16.mxu0 0
        %2463 = vmatmul.mubr.bf16.gmra.mxu0 %v2428
        %v2464 = vpop.f32.mrf.mxu0
        %v2465 = vadd.f32 0.0, %v2464
        %v2466 = vpop.f32.mrf.mxu0
        %v2467 = vpop.f32.mrf.mxu0
        %v2468 = vpop.f32.mrf.mxu0
        %2469 = vdwg.mxu0
        %2470 = vrot.lane.b32.xlu0 %v2132, 96
        %v2471 = vpop.permute.xlu0 %2470
        %v2474 = vsel %vm1869, %v2421, 0
        %2476 = vmatprep.subr.bf16.mxu0 0
        %2477 = vmatpush1.bf16.msra.mxu0 0
        %2478 = vmatprep.subr.bf16.mxu0 0
        %2479 = vmatpush1.bf16.msra.mxu0 0
        %2480 = vmatprep.subr.bf16.mxu0 0
        %2481 = vmatpush1.bf16.msra.mxu0 0
        %2482 = vmatprep.subr.bf16.mxu0 0
        %2483 = vmatpush1.bf16.msra.mxu0 0
        %2484 = vmatprep.subr.bf16.mxu0 0
        %2485 = vmatpush1.bf16.msra.mxu0 0
        %2486 = vmatprep.subr.bf16.mxu0 0
        %2487 = vmatpush1.bf16.msra.mxu0 0
        %2488 = vmatprep.subr.bf16.mxu0 0
        %2489 = vmatpush1.bf16.msra.mxu0 0
        %2490 = vmatprep.subr.bf16.mxu0 0
        %2491 = vmatpush1.bf16.msra.mxu0 %v2471
        %2492 = vmatprep.subr.bf16.mxu0 0
        %2493 = vmatpush2.bf16.msra.mxu0 0
        %2494 = vmatprep.subr.bf16.mxu0 0
        %2495 = vmatpush2.bf16.msra.mxu0 0
        %2496 = vmatprep.subr.bf16.mxu0 0
        %2497 = vmatpush2.bf16.msra.mxu0 0
        %2498 = vmatprep.subr.bf16.mxu0 0
        %2499 = vmatpush2.bf16.msra.mxu0 0
        %2500 = vmatprep.subr.bf16.mxu0 0
        %2501 = vmatpush2.bf16.msra.mxu0 0
        %2502 = vmatprep.subr.bf16.mxu0 0
        %2503 = vmatpush2.bf16.msra.mxu0 0
        %2504 = vmatprep.subr.bf16.mxu0 0
        %2505 = vmatpush2.bf16.msra.mxu0 0
        %2506 = vmatprep.subr.bf16.mxu0 0
        %2507 = vmatpush2.bf16.msra.mxu0 0
        %2508 = vmatprep.mubr.bf16.mxu0 0
        %2509 = vmatmul.mubr.bf16.gmra.mxu0 %v2474
        %v2510 = vpop.f32.mrf.mxu0
        %v2511 = vadd.f32 0.0, %v2510
        %v2512 = vpop.f32.mrf.mxu0
        %v2513 = vpop.f32.mrf.mxu0
        %v2514 = vpop.f32.mrf.mxu0
        %2515 = vdwg.mxu0
        %2516 = vrot.lane.b32.xlu0 %v2151, 96
        %v2517 = vpop.permute.xlu0 %2516
        %v2520 = vsel %vm1869, %v2422, 0
        %2522 = vmatprep.subr.bf16.mxu0 0
        %2523 = vmatpush1.bf16.msra.mxu0 0
        %2524 = vmatprep.subr.bf16.mxu0 0
        %2525 = vmatpush1.bf16.msra.mxu0 0
        %2526 = vmatprep.subr.bf16.mxu0 0
        %2527 = vmatpush1.bf16.msra.mxu0 0
        %2528 = vmatprep.subr.bf16.mxu0 0
        %2529 = vmatpush1.bf16.msra.mxu0 0
        %2530 = vmatprep.subr.bf16.mxu0 0
        %2531 = vmatpush1.bf16.msra.mxu0 0
        %2532 = vmatprep.subr.bf16.mxu0 0
        %2533 = vmatpush1.bf16.msra.mxu0 0
        %2534 = vmatprep.subr.bf16.mxu0 0
        %2535 = vmatpush1.bf16.msra.mxu0 0
        %2536 = vmatprep.subr.bf16.mxu0 0
        %2537 = vmatpush1.bf16.msra.mxu0 %v2517
        %2538 = vmatprep.subr.bf16.mxu0 0
        %2539 = vmatpush2.bf16.msra.mxu0 0
        %2540 = vmatprep.subr.bf16.mxu0 0
        %2541 = vmatpush2.bf16.msra.mxu0 0
        %2542 = vmatprep.subr.bf16.mxu0 0
        %2543 = vmatpush2.bf16.msra.mxu0 0
        %2544 = vmatprep.subr.bf16.mxu0 0
        %2545 = vmatpush2.bf16.msra.mxu0 0
        %2546 = vmatprep.subr.bf16.mxu0 0
        %2547 = vmatpush2.bf16.msra.mxu0 0
        %2548 = vmatprep.subr.bf16.mxu0 0
        %2549 = vmatpush2.bf16.msra.mxu0 0
        %2550 = vmatprep.subr.bf16.mxu0 0
        %2551 = vmatpush2.bf16.msra.mxu0 0
        %2552 = vmatprep.subr.bf16.mxu0 0
        %2553 = vmatpush2.bf16.msra.mxu0 0
        %2554 = vmatprep.mubr.bf16.mxu0 0
        %2555 = vmatmul.mubr.bf16.gmra.mxu0 %v2520
        %v2556 = vpop.f32.mrf.mxu0
        %v2557 = vadd.f32 0.0, %v2556
        %v2558 = vpop.f32.mrf.mxu0
        %v2559 = vpop.f32.mrf.mxu0
        %v2560 = vpop.f32.mrf.mxu0
        %2561 = vdwg.mxu0
        %2562 = vrot.lane.b32.xlu0 %v2170, 96
        %v2563 = vpop.permute.xlu0 %2562
        %v2566 = vsel %vm1869, %v2423, 0
        %2568 = vmatprep.subr.bf16.mxu0 0
        %2569 = vmatpush1.bf16.msra.mxu0 0
        %2570 = vmatprep.subr.bf16.mxu0 0
        %2571 = vmatpush1.bf16.msra.mxu0 0
        %2572 = vmatprep.subr.bf16.mxu0 0
        %2573 = vmatpush1.bf16.msra.mxu0 0
        %2574 = vmatprep.subr.bf16.mxu0 0
        %2575 = vmatpush1.bf16.msra.mxu0 0
        %2576 = vmatprep.subr.bf16.mxu0 0
        %2577 = vmatpush1.bf16.msra.mxu0 0
        %2578 = vmatprep.subr.bf16.mxu0 0
        %2579 = vmatpush1.bf16.msra.mxu0 0
        %2580 = vmatprep.subr.bf16.mxu0 0
        %2581 = vmatpush1.bf16.msra.mxu0 0
        %2582 = vmatprep.subr.bf16.mxu0 0
        %2583 = vmatpush1.bf16.msra.mxu0 %v2563
        %2584 = vmatprep.subr.bf16.mxu0 0
        %2585 = vmatpush2.bf16.msra.mxu0 0
        %2586 = vmatprep.subr.bf16.mxu0 0
        %2587 = vmatpush2.bf16.msra.mxu0 0
        %2588 = vmatprep.subr.bf16.mxu0 0
        %2589 = vmatpush2.bf16.msra.mxu0 0
        %2590 = vmatprep.subr.bf16.mxu0 0
        %2591 = vmatpush2.bf16.msra.mxu0 0
        %2592 = vmatprep.subr.bf16.mxu0 0
        %2593 = vmatpush2.bf16.msra.mxu0 0
        %2594 = vmatprep.subr.bf16.mxu0 0
        %2595 = vmatpush2.bf16.msra.mxu0 0
        %2596 = vmatprep.subr.bf16.mxu0 0
        %2597 = vmatpush2.bf16.msra.mxu0 0
        %2598 = vmatprep.subr.bf16.mxu0 0
        %2599 = vmatpush2.bf16.msra.mxu0 0
        %2600 = vmatprep.mubr.bf16.mxu0 0
        %2601 = vmatmul.mubr.bf16.gmra.mxu0 %v2566
        %v2602 = vpop.f32.mrf.mxu0
        %v2603 = vadd.f32 0.0, %v2602
        %v2604 = vpop.f32.mrf.mxu0
        %v2605 = vpop.f32.mrf.mxu0
        %v2606 = vpop.f32.mrf.mxu0
        %2607 = vdwg.mxu0
        %2609 = vrot.lane.b32.xlu0 %v2511, 8
        %v2610 = vpop.permute.xlu0 %2609
        %2613 = vrot.lane.b32.xlu0 %v2557, 16
        %v2614 = vpop.permute.xlu0 %2613
        %2617 = vrot.lane.b32.xlu0 %v2603, 24
        %v2618 = vpop.permute.xlu0 %2617
        %v2620 = vsel %vm1415, %v2465, %v2610
        %v2621 = vsel %vm1869, %v2620, %v2614
        %v2622 = vsel %vm1871, %v2621, %v2618
        %v2623 = vpack.c.bf16 %v2622, %v2622
        %v2625 = vlaneseq
        %v2626 = vshrl.u32 %v2625, 7
        %v2627 = vsub.s32 0, %v2626
        %v2628 = vrot.slane %v2104, %v2627
        %v2634 = vunpack.c.l.b16 %v2100
        %v2635 = vunpack.c.l.b16 %v2101
        %v2636 = vunpack.c.l.b16 %v2102
        %v2637 = vunpack.c.l.b16 %v2103
        %v2638 = vpack.c.b16 %v2635, %v2634
        %v2639 = vpack.c.b16 %v2637, %v2636
        %v2643 = vsel %vm1230, %v2623, 0
        %2645 = vmatprep.subr.bf16.mxu0 0
        %2646 = vmatpush1.bf16.msra.mxu0 0
        %2647 = vmatprep.subr.bf16.mxu0 0
        %2648 = vmatpush1.bf16.msra.mxu0 0
        %2649 = vmatprep.subr.bf16.mxu0 0
        %2650 = vmatpush1.bf16.msra.mxu0 0
        %2651 = vmatprep.subr.bf16.mxu0 0
        %2652 = vmatpush1.bf16.msra.mxu0 0
        %2653 = vmatprep.subr.bf16.mxu0 0
        %2654 = vmatpush1.bf16.msra.mxu0 0
        %2655 = vmatprep.subr.bf16.mxu0 0
        %2656 = vmatpush1.bf16.msra.mxu0 0
        %2657 = vmatprep.subr.bf16.mxu0 0
        %2658 = vmatpush1.bf16.msra.mxu0 %v2639
        %2659 = vmatprep.subr.bf16.mxu0 0
        %2660 = vmatpush1.bf16.msra.mxu0 %v2638
        %2661 = vmatprep.subr.bf16.mxu0 0
        %2662 = vmatpush2.bf16.msra.mxu0 0
        %2663 = vmatprep.subr.bf16.mxu0 0
        %2664 = vmatpush2.bf16.msra.mxu0 0
        %2665 = vmatprep.subr.bf16.mxu0 0
        %2666 = vmatpush2.bf16.msra.mxu0 0
        %2667 = vmatprep.subr.bf16.mxu0 0
        %2668 = vmatpush2.bf16.msra.mxu0 0
        %2669 = vmatprep.subr.bf16.mxu0 0
        %2670 = vmatpush2.bf16.msra.mxu0 0
        %2671 = vmatprep.subr.bf16.mxu0 0
        %2672 = vmatpush2.bf16.msra.mxu0 0
        %2673 = vmatprep.subr.bf16.mxu0 0
        %2674 = vmatpush2.bf16.msra.mxu0 0
        %2675 = vmatprep.subr.bf16.mxu0 0
        %2676 = vmatpush2.bf16.msra.mxu0 0
        %2677 = vmatprep.mubr.bf16.mxu0 0
        %2678 = vmatmul.mubr.bf16.gmra.mxu0 %v2643
        %v2679 = vpop.f32.mrf.mxu0
        %v2680 = vadd.f32 %v2628, %v2679
        %v2681 = vpop.f32.mrf.mxu0
        %v2682 = vpop.f32.mrf.mxu0
        %v2683 = vpop.f32.mrf.mxu0
        %2684 = vdwg.mxu0
        %v2685 = vadd.f32 %v1935, %v2680
        %v2686 = vld [vmem:[%s1197] sm:$0x1]
        %v2687 = vld [vmem:[%s1200] sm:$0x1]
        %v2688 = vsel %vm1230, %v2685, 0.0
        %2689 = vadd.xlane.f32.xlu0 %v2688
        %v2690 = vpop.xlane.xlu0 %2689
        %v2691 = vmul.f32 %v2690, %v1234
        %v2692 = vsub.f32 %v2685, %v2691
        %v2693 = vmul.f32 %v2692, %v2692
        %v2694 = vsel %vm1230, %v2693, 0.0
        %2695 = vadd.xlane.f32.xlu0 %v2694
        %v2696 = vpop.xlane.xlu0 %2695
        %v2697 = vmul.f32 %v2696, %v1234
        %v2698 = vadd.f32 %v2697, 1e-05
        %v2699 = vrsqrt.pop %v2698
        %v2700 = vmul.f32 %v2692, %v2699
        %v2702 = vlaneseq
        %v2703 = vshrl.u32 %v2702, 7
        %v2704 = vsub.s32 0, %v2703
        %v2705 = vrot.slane %v2686, %v2704
        %v2707 = vmul.f32 %v2700, %v2705
        %v2709 = vlaneseq
        %v2710 = vshrl.u32 %v2709, 7
        %v2711 = vsub.s32 0, %v2710
        %v2712 = vrot.slane %v2687, %v2711
        %v2714 = vadd.f32 %v2707, %v2712
        %v2715 = vpack.c.bf16 %v2714, %v2714
        %v2716 = vld [vmem:[%s1205] sm:$0xf]
        %v2717 = vld [vmem:[%s1205 + $0x4] sm:$0xf]
        %v2718 = vld [vmem:[%s1205 + $0x8] sm:$0xf]
        %v2719 = vld [vmem:[%s1205 + $0xc] sm:$0xf]
        %v2720 = vld [vmem:[%s1208] sm:$0x1]
        %v2722 = vlaneseq
        %v2723 = vshrl.u32 %v2722, 7
        %v2724 = vsub.s32 0, %v2723
        %v2725 = vrot.slane %v2720, %v2724
        %v2731 = vunpack.c.l.b16 %v2716
        %v2732 = vunpack.c.l.b16 %v2717
        %v2733 = vunpack.c.l.b16 %v2718
        %v2734 = vunpack.c.l.b16 %v2719
        %v2735 = vpack.c.b16 %v2732, %v2731
        %v2736 = vpack.c.b16 %v2734, %v2733
        %v2740 = vsel %vm1230, %v2715, 0
        %2742 = vmatprep.subr.bf16.mxu0 0
        %2743 = vmatpush1.bf16.msra.mxu0 0
        %2744 = vmatprep.subr.bf16.mxu0 0
        %2745 = vmatpush1.bf16.msra.mxu0 0
        %2746 = vmatprep.subr.bf16.mxu0 0
        %2747 = vmatpush1.bf16.msra.mxu0 0
        %2748 = vmatprep.subr.bf16.mxu0 0
        %2749 = vmatpush1.bf16.msra.mxu0 0
        %2750 = vmatprep.subr.bf16.mxu0 0
        %2751 = vmatpush1.bf16.msra.mxu0 0
        %2752 = vmatprep.subr.bf16.mxu0 0
        %2753 = vmatpush1.bf16.msra.mxu0 0
        %2754 = vmatprep.subr.bf16.mxu0 0
        %2755 = vmatpush1.bf16.msra.mxu0 %v2736
        %2756 = vmatprep.subr.bf16.mxu0 0
        %2757 = vmatpush1.bf16.msra.mxu0 %v2735
        %2758 = vmatprep.subr.bf16.mxu0 0
        %2759 = vmatpush2.bf16.msra.mxu0 0
        %2760 = vmatprep.subr.bf16.mxu0 0
        %2761 = vmatpush2.bf16.msra.mxu0 0
        %2762 = vmatprep.subr.bf16.mxu0 0
        %2763 = vmatpush2.bf16.msra.mxu0 0
        %2764 = vmatprep.subr.bf16.mxu0 0
        %2765 = vmatpush2.bf16.msra.mxu0 0
        %2766 = vmatprep.subr.bf16.mxu0 0
        %2767 = vmatpush2.bf16.msra.mxu0 0
        %2768 = vmatprep.subr.bf16.mxu0 0
        %2769 = vmatpush2.bf16.msra.mxu0 0
        %2770 = vmatprep.subr.bf16.mxu0 0
        %2771 = vmatpush2.bf16.msra.mxu0 0
        %2772 = vmatprep.subr.bf16.mxu0 0
        %2773 = vmatpush2.bf16.msra.mxu0 0
        %2774 = vmatprep.mubr.bf16.mxu0 0
        %2775 = vmatmul.mubr.bf16.gmra.mxu0 %v2740
        %v2776 = vpop.f32.mrf.mxu0
        %v2777 = vadd.f32 %v2725, %v2776
        %v2778 = vpop.f32.mrf.mxu0
        %v2779 = vpop.f32.mrf.mxu0
        %v2780 = vpop.f32.mrf.mxu0
        %2781 = vdwg.mxu0
        %v2782 = vmax.f32 %v2777, 0.0
        %v2783 = vpack.c.bf16 %v2782, %v2782
        %v2784 = vld [vmem:[%s1213] sm:$0xf]
        %v2785 = vld [vmem:[%s1213 + $0x4] sm:$0xf]
        %v2786 = vld [vmem:[%s1213 + $0x8] sm:$0xf]
        %v2787 = vld [vmem:[%s1213 + $0xc] sm:$0xf]
        %v2788 = vld [vmem:[%s1213 + $0x10] sm:$0xf]
        %v2789 = vld [vmem:[%s1213 + $0x14] sm:$0xf]
        %v2790 = vld [vmem:[%s1213 + $0x18] sm:$0xf]
        %v2791 = vld [vmem:[%s1213 + $0x1c] sm:$0xf]
        %v2800 = vunpack.c.l.b16 %v2784
        %v2801 = vunpack.c.l.b16 %v2785
        %v2802 = vunpack.c.l.b16 %v2786
        %v2803 = vunpack.c.l.b16 %v2787
        %v2804 = vunpack.c.l.b16 %v2788
        %v2805 = vunpack.c.l.b16 %v2789
        %v2806 = vunpack.c.l.b16 %v2790
        %v2807 = vunpack.c.l.b16 %v2791
        %v2808 = vpack.c.b16 %v2801, %v2800
        %v2809 = vpack.c.b16 %v2803, %v2802
        %v2810 = vpack.c.b16 %v2805, %v2804
        %v2811 = vpack.c.b16 %v2807, %v2806
        %vm2816 = vcmask 523264
        %v2818 = vsel %vm2816, %v2783, 0
        %2820 = vmatprep.subr.bf16.mxu0 0
        %2821 = vmatpush1.bf16.msra.mxu0 0
        %2822 = vmatprep.subr.bf16.mxu0 0
        %2823 = vmatpush1.bf16.msra.mxu0 0
        %2824 = vmatprep.subr.bf16.mxu0 0
        %2825 = vmatpush1.bf16.msra.mxu0 0
        %2826 = vmatprep.subr.bf16.mxu0 0
        %2827 = vmatpush1.bf16.msra.mxu0 0
        %2828 = vmatprep.subr.bf16.mxu0 0
        %2829 = vmatpush1.bf16.msra.mxu0 %v2811
        %2830 = vmatprep.subr.bf16.mxu0 0
        %2831 = vmatpush1.bf16.msra.mxu0 %v2810
        %2832 = vmatprep.subr.bf16.mxu0 0
        %2833 = vmatpush1.bf16.msra.mxu0 %v2809
        %2834 = vmatprep.subr.bf16.mxu0 0
        %2835 = vmatpush1.bf16.msra.mxu0 %v2808
        %2836 = vmatprep.subr.bf16.mxu0 0
        %2837 = vmatpush2.bf16.msra.mxu0 0
        %2838 = vmatprep.subr.bf16.mxu0 0
        %2839 = vmatpush2.bf16.msra.mxu0 0
        %2840 = vmatprep.subr.bf16.mxu0 0
        %2841 = vmatpush2.bf16.msra.mxu0 0
        %2842 = vmatprep.subr.bf16.mxu0 0
        %2843 = vmatpush2.bf16.msra.mxu0 0
        %2844 = vmatprep.subr.bf16.mxu0 0
        %2845 = vmatpush2.bf16.msra.mxu0 0
        %2846 = vmatprep.subr.bf16.mxu0 0
        %2847 = vmatpush2.bf16.msra.mxu0 0
        %2848 = vmatprep.subr.bf16.mxu0 0
        %2849 = vmatpush2.bf16.msra.mxu0 0
        %2850 = vmatprep.subr.bf16.mxu0 0
        %2851 = vmatpush2.bf16.msra.mxu0 0
        %2852 = vmatprep.mubr.bf16.mxu0 0
        %2853 = vmatmul.mubr.bf16.gmra.mxu0 %v2818
        %v2854 = vpop.f32.mrf.mxu0
        %v2855 = vadd.f32 0.0, %v2854
        %v2856 = vpop.f32.mrf.mxu0
        %v2857 = vpop.f32.mrf.mxu0
        %v2858 = vpop.f32.mrf.mxu0
        %2859 = vdwg.mxu0
        %v2860 = vadd.f32 %v2685, %v2855
        %v2861 = vld [vmem:[%s1216] sm:$0x1]
        %v2863 = vlaneseq
        %v2864 = vshrl.u32 %v2863, 7
        %v2865 = vsub.s32 0, %v2864
        %v2866 = vrot.slane %v2861, %v2865
        %v2868 = vadd.f32 %v2860, %v2866
        %2869 = vst.msk [vmem:[#allocation2] sm:$0xff] %vm1230, %v2868
        %p2870 = scmp.eq.s32.totalorder %s52, 1
        // Predicated region
        $region141: #{cnn_transformer_forward.3} parent=123 // pred_check
          %p2871 = pneg %p2870
        $region142: #{cnn_transformer_forward.3} parent=123 // pred_check_branch
          %2873 = sbr.rel (%p2871) target = $region144
        $region143: #{cnn_transformer_forward.3} parent=123 // pred_region
          %v2874 = vld [vmem:[#allocation3] sm:$0x1]
          %v2875 = vld [vmem:[#allocation6] sm:$0x1]
          %v2876 = vsel %vm1230, %v2868, 0.0
          %2877 = vadd.xlane.f32.xlu0 %v2876
          %v2878 = vpop.xlane.xlu0 %2877
          %v2879 = vmul.f32 %v2878, %v1234
          %v2880 = vsub.f32 %v2868, %v2879
          %v2881 = vmul.f32 %v2880, %v2880
          %v2882 = vsel %vm1230, %v2881, 0.0
          %2883 = vadd.xlane.f32.xlu0 %v2882
          %v2884 = vpop.xlane.xlu0 %2883
          %v2885 = vmul.f32 %v2884, %v1234
          %v2886 = vadd.f32 %v2885, 1e-05
          %v2887 = vrsqrt.pop %v2886
          %v2888 = vmul.f32 %v2880, %v2887
          %v2890 = vlaneseq
          %v2891 = vshrl.u32 %v2890, 7
          %v2892 = vsub.s32 0, %v2891
          %v2893 = vrot.slane %v2874, %v2892
          %v2895 = vmul.f32 %v2888, %v2893
          %v2897 = vlaneseq
          %v2898 = vshrl.u32 %v2897, 7
          %v2899 = vsub.s32 0, %v2898
          %v2900 = vrot.slane %v2875, %v2899
          %v2902 = vadd.f32 %v2895, %v2900
          %v2903 = vpack.c.bf16 %v2902, %v2902
          %v2904 = vld [vmem:[%s24] sm:$0xf]
          %v2905 = vld [vmem:[%s24 + $0x4] sm:$0xf]
          %v2906 = vld [vmem:[%s24 + $0x8] sm:$0xf]
          %v2907 = vld [vmem:[%s24 + $0xc] sm:$0xf]
          %v2908 = vld [vmem:[#allocation8] sm:$0x1]
          %v2910 = vlaneseq
          %v2911 = vshrl.u32 %v2910, 7
          %v2912 = vsub.s32 0, %v2911
          %v2913 = vrot.slane %v2908, %v2912
          %v2919 = vunpack.c.l.b16 %v2904
          %v2920 = vunpack.c.l.b16 %v2905
          %v2921 = vunpack.c.l.b16 %v2906
          %v2922 = vunpack.c.l.b16 %v2907
          %v2923 = vpack.c.b16 %v2920, %v2919
          %v2924 = vpack.c.b16 %v2922, %v2921
          %v2928 = vsel %vm1230, %v2903, 0
          %2930 = vmatprep.subr.bf16.mxu0 0
          %2931 = vmatpush1.bf16.msra.mxu0 0
          %2932 = vmatprep.subr.bf16.mxu0 0
          %2933 = vmatpush1.bf16.msra.mxu0 0
          %2934 = vmatprep.subr.bf16.mxu0 0
          %2935 = vmatpush1.bf16.msra.mxu0 0
          %2936 = vmatprep.subr.bf16.mxu0 0
          %2937 = vmatpush1.bf16.msra.mxu0 0
          %2938 = vmatprep.subr.bf16.mxu0 0
          %2939 = vmatpush1.bf16.msra.mxu0 0
          %2940 = vmatprep.subr.bf16.mxu0 0
          %2941 = vmatpush1.bf16.msra.mxu0 0
          %2942 = vmatprep.subr.bf16.mxu0 0
          %2943 = vmatpush1.bf16.msra.mxu0 %v2924
          %2944 = vmatprep.subr.bf16.mxu0 0
          %2945 = vmatpush1.bf16.msra.mxu0 %v2923
          %2946 = vmatprep.subr.bf16.mxu0 0
          %2947 = vmatpush2.bf16.msra.mxu0 0
          %2948 = vmatprep.subr.bf16.mxu0 0
          %2949 = vmatpush2.bf16.msra.mxu0 0
          %2950 = vmatprep.subr.bf16.mxu0 0
          %2951 = vmatpush2.bf16.msra.mxu0 0
          %2952 = vmatprep.subr.bf16.mxu0 0
          %2953 = vmatpush2.bf16.msra.mxu0 0
          %2954 = vmatprep.subr.bf16.mxu0 0
          %2955 = vmatpush2.bf16.msra.mxu0 0
          %2956 = vmatprep.subr.bf16.mxu0 0
          %2957 = vmatpush2.bf16.msra.mxu0 0
          %2958 = vmatprep.subr.bf16.mxu0 0
          %2959 = vmatpush2.bf16.msra.mxu0 0
          %2960 = vmatprep.subr.bf16.mxu0 0
          %2961 = vmatpush2.bf16.msra.mxu0 0
          %2962 = vmatprep.mubr.bf16.mxu0 0
          %2963 = vmatmul.mubr.bf16.gmra.mxu0 %v2928
          %v2964 = vpop.f32.mrf.mxu0
          %v2965 = vadd.f32 %v2913, %v2964
          %v2966 = vpop.f32.mrf.mxu0
          %v2967 = vpop.f32.mrf.mxu0
          %v2968 = vpop.f32.mrf.mxu0
          %2969 = vdwg.mxu0
          %vm2970 = vcmp.lt.s32.totalorder %v1608, 12
          %v2971 = vsel %vm2970, %v2965, -1e+09
          %2972 = vmax.xlane.f32.xlu0 %v2971
          %v2973 = vpop.xlane.xlu0 %2972
          %v2974 = vsub.f32 %v2971, %v2973
          %v2975 = vmul.f32 %v2974, 1.442695
          %v2976 = vpow.pop %v2975
          %2977 = vadd.xlane.f32.xlu0 %v2976
          %v2978 = vpop.xlane.xlu0 %2977
          %v2979 = vrcp.pop %v2978
          %v2980 = vmul.f32 %v2976, %v2979
          %2981 = vst [vmem:[%s1126] sm:$0xff] %v2965
          %2982 = vst [vmem:[%s1133] sm:$0xff] %v2980
        $region144: #{cnn_transformer_forward.3} parent=123 // pred_fallthru
          _
        %s2983 = sand.u32 %s723, 1
        %s2984 = scalar_lea.sflag [#allocation5], %s2983
        %s2985 = sand.u32 %s723, 1
        %s2986 = smul.addr %s2985, 8
        %s2987 = scalar_lea.vmem [#allocation9], %s2986
        %s2988 = sand.u32 %s749, 1
        %s2989 = scalar_lea.sflag [#allocation11], %s2988
        %s2990 = sand.u32 %s749, 1
        %s2991 = smul.addr %s2990, 8
        %s2992 = scalar_lea.vmem [#allocation10], %s2991
        // Predicated region
        $region145: #{cnn_transformer_forward.3} parent=123 // pred_check
          %p2993 = pneg %p733
        $region146: #{cnn_transformer_forward.3} parent=123 // pred_check_branch
          %2995 = sbr.rel (%p2993) target = $region148
        $region147: #{cnn_transformer_forward.3} parent=123 // pred_region
          %s2997 = ssub.s32 128, 128
          %2998 = vsyncadd %s2984, %s2997
          %s2999 = smul.addr %s51, 128
          %s3000 = scalar_lea.hbm %s26, %s2999
          %s3002 = sshll.u32 %s2987, 4
          %s3003 = int_to_ptr.vmem [resolvable:$true] %s3002
          %3005 = dma.vmem_to_hbm [thread:$0]  %s3003, 128, %s3000, %s2984
        $region148: #{cnn_transformer_forward.3} parent=123 // pred_fallthru
          _
        // Predicated region
        $region149: #{cnn_transformer_forward.3} parent=123 // pred_check
          %p3006 = pneg %p759
        $region150: #{cnn_transformer_forward.3} parent=123 // pred_check_branch
          %3008 = sbr.rel (%p3006) target = $region152
        $region151: #{cnn_transformer_forward.3} parent=123 // pred_region
          %s3010 = ssub.s32 128, 128
          %3011 = vsyncadd %s2989, %s3010
          %s3012 = smul.addr %s51, 128
          %s3013 = scalar_lea.hbm %s27, %s3012
          %s3015 = sshll.u32 %s2992, 4
          %s3016 = int_to_ptr.vmem [resolvable:$true] %s3015
          %3018 = dma.vmem_to_hbm [thread:$0]  %s3016, 128, %s3013, %s2989
        $region152: #{cnn_transformer_forward.3} parent=123 // pred_fallthru
          _
      $region124: #{cnn_transformer_forward.3} parent=5 // pred_fallthru
        _
      %p3019 = scmp.le.s32.totalorder 2, %s42
      // Predicated region
      $region153: #{cnn_transformer_forward.3} parent=5 // pred_check
        %p3020 = pneg %p3019
      $region154: #{cnn_transformer_forward.3} parent=5 // pred_check_branch
        %3022 = sbr.rel (%p3020) target = $region156
      $region155: #{cnn_transformer_forward.3} parent=5 // pred_region
        %s3023 = ssub.s32 %s42, 2
        // Predicated region
        $region157: #{cnn_transformer_forward.3} parent=155 // pred_check
          %p3024 = pneg %p739
        $region158: #{cnn_transformer_forward.3} parent=155 // pred_check_branch
          %3026 = sbr.rel (%p3024) target = $region160
        $region159: #{cnn_transformer_forward.3} parent=155 // pred_region
          %s3027 = sand.u32 %s724, 1
          %s3028 = scalar_lea.sflag [#allocation5], %s3027
          %s3029 = sand.u32 %s724, 1
          %s3030 = smul.addr %s3029, 8
          %s3031 = scalar_lea.vmem [#allocation9], %s3030
          %3032 = dma.done %s3028, 128
        $region160: #{cnn_transformer_forward.3} parent=155 // pred_fallthru
          _
        // Predicated region
        $region161: #{cnn_transformer_forward.3} parent=155 // pred_check
          %p3033 = pneg %p765
        $region162: #{cnn_transformer_forward.3} parent=155 // pred_check_branch
          %3035 = sbr.rel (%p3033) target = $region164
        $region163: #{cnn_transformer_forward.3} parent=155 // pred_region
          %s3036 = sand.u32 %s750, 1
          %s3037 = scalar_lea.sflag [#allocation11], %s3036
          %s3038 = sand.u32 %s750, 1
          %s3039 = smul.addr %s3038, 8
          %s3040 = scalar_lea.vmem [#allocation10], %s3039
          %3041 = dma.done %s3037, 128
        $region164: #{cnn_transformer_forward.3} parent=155 // pred_fallthru
          _
      $region156: #{cnn_transformer_forward.3} parent=5 // pred_fallthru
        _
    $region6: #{cnn_transformer_forward.3} parent=1 // loop_footer
      %s46 = sadd.s32 1, %s42
    $region7: #{cnn_transformer_forward.3} parent=1 // loop_footer_branch
      %41 = sbr.rel target = $region3
    $region8: #{cnn_transformer_forward.3} parent=1 // loop_exit
      _
    %3042 = vsyncpa [#allocation4], 1
    %s3043 = scalar_lea.sflag [#allocation4], 1
    %3044 = vsyncpa %s3043, 1
    %3045 = vsyncpa [#allocation7], 1
    %3046 = vsyncpa [#allocation5], 1
    %s3047 = scalar_lea.sflag [#allocation5], 1
    %3048 = vsyncpa %s3047, 1
    %3049 = vsyncpa [#allocation11], 1
    %s3050 = scalar_lea.sflag [#allocation11], 1
    %3051 = vsyncpa %s3050, 1

</llo_original>
